<compile_context>
chip_gen: v7x
topology: tpu7x:2x2x1
jax: 0.10.0
libtpu: 0.0.40
codegen_flags: <defaults>
</compile_context>

<pallas_src>
import jax
import jax.numpy as jnp
from jax import lax
from jax.experimental import pallas as pl
from jax.experimental.pallas import tpu as pltpu


def _conv3x3(pad_ref, col_ref, acc_ref, w_ref):
    """3x3 'SAME' conv with the kw (dx) axis folded into the contraction dim.

    pad_ref: (Nb, H+2, W+2, C) bf16 VMEM, zero halo / valid interior
    col_ref: (Nb, H+2, W, 3*C) bf16 VMEM scratch (dx-im2col)
    acc_ref: (Nb*H*W, Co)      f32  VMEM scratch (result, bias NOT added)
    w_ref:   (3, 3*C, Co)      bf16 packed weights
    """
    Nb, Hp2, Wp2, C = pad_ref.shape
    H, W = Hp2 - 2, Wp2 - 2
    M = Nb * H * W
    K = 3 * C

    # dx-im2col: the three shifted copies are written once per conv; all nine
    # taps below become plain aligned reads of col_ref (dy is a leading dim).
    for dx in range(3):
        col_ref[:, :, :, pl.ds(dx * C, C)] = pad_ref[:, :, pl.ds(dx, W), :]

    # Pure chained dots into the f32 scratch accumulator (K = 768 each).
    acc_ref[...] = jnp.dot(
        col_ref[:, pl.ds(0, H), :, :].reshape(M, K), w_ref[0],
        preferred_element_type=jnp.float32)
    for dy in (1, 2):
        acc_ref[...] += jnp.dot(
            col_ref[:, pl.ds(dy, H), :, :].reshape(M, K), w_ref[dy],
            preferred_element_type=jnp.float32)


def spp333_kernel(x_ref, m_ref, w1_ref, b1_ref, w2_ref, b2_ref, o_ref,
                  pad_ref, col_ref, acc_ref):
    # x_ref: (Nb, H, W, C) f32      m_ref: (Nb, H, W, 1) f32
    # w*_ref: (3, 3*C, C) bf16      b*_ref: (1, C) f32
    # o_ref: (Nb, H, W, C) f32
    Nb, H, W, C = o_ref.shape

    # Zero only the halo of the padded scratch (interior is fully overwritten
    # before each conv).  Unconditional every step: with the batch grid axis
    # sharded across TensorCores a given core may never execute step 0.
    zrow = jnp.zeros((Nb, 1, W + 2, C), jnp.bfloat16)
    pad_ref[:, pl.ds(0, 1), :, :] = zrow
    pad_ref[:, pl.ds(H + 1, 1), :, :] = zrow
    zcol = jnp.zeros((Nb, H + 2, 1, C), jnp.bfloat16)
    pad_ref[:, :, pl.ds(0, 1), :] = zcol
    pad_ref[:, :, pl.ds(W + 1, 1), :] = zcol

    # ---- mask multiply (f32 VPU) -> conv1 -> bias -> ReLU ----
    masked = (x_ref[...] * m_ref[...]).astype(jnp.bfloat16)
    pad_ref[:, pl.ds(1, H), pl.ds(1, W), :] = masked
    _conv3x3(pad_ref, col_ref, acc_ref, w1_ref)
    h1 = jnp.maximum(acc_ref[...] + b1_ref[...], 0.0)
    pad_ref[:, pl.ds(1, H), pl.ds(1, W), :] = (
        h1.astype(jnp.bfloat16).reshape(Nb, H, W, C))

    # ---- conv2 -> bias ----
    _conv3x3(pad_ref, col_ref, acc_ref, w2_ref)
    o_ref[...] = (acc_ref[...] + b2_ref[...]).reshape(Nb, H, W, C).astype(
        o_ref.dtype)


def pack_params(w1, b1, w2, b2):
    """One-time parameter prep (call at init, NOT per forward step):
    bf16 MXU operands, kw (dx) folded into the contraction dim so that
    col[..., dx*C + ci] pairs with w_packed[dy, dx*C + ci, co]."""
    C = w1.shape[-1]
    w1p = w1.astype(jnp.bfloat16).reshape(3, 3 * C, C)
    w2p = w2.astype(jnp.bfloat16).reshape(3, 3 * C, C)
    b1p = b1.astype(jnp.float32).reshape(1, C)
    b2p = b2.astype(jnp.float32).reshape(1, C)
    return w1p, b1p, w2p, b2p


def _choose_block_batch(n, hw, target_m=1024):
    """Images per grid step: make M = Nb*H*W as large as possible (<= target_m)
    to amortize MXU push/drain and per-step pipeline overhead, while keeping
    >= 2 grid steps whenever N >= 2 so multi-TensorCore chips (v7x) can shard
    the batch axis across cores."""
    max_nb = max(1, target_m // hw)
    multi = [nb for nb in range(1, min(n, max_nb) + 1)
             if n % nb == 0 and n // nb >= 2]
    return max(multi) if multi else 1


def spp333_forward(x_nhwc, mask_nhw1, w1p, b1p, w2p, b2p, block_n=None):
    N, H, W, C = x_nhwc.shape
    K = w1p.shape[1]                      # 3 * C
    if block_n is None:
        block_n = _choose_block_batch(N, H * W)
    assert N % block_n == 0
    M = block_n * H * W

    return pl.pallas_call(
        spp333_kernel,
        out_shape=jax.ShapeDtypeStruct((N, H, W, C), x_nhwc.dtype),
        grid_spec=pltpu.PrefetchScalarGridSpec(
            num_scalar_prefetch=0,
            grid=(N // block_n,),
            in_specs=[
                pl.BlockSpec((block_n, H, W, C), lambda n: (n, 0, 0, 0)),
                pl.BlockSpec((block_n, H, W, 1), lambda n: (n, 0, 0, 0)),
                # Constant block index -> weights/biases are DMA'd only once.
                pl.BlockSpec((3, K, C), lambda n: (0, 0, 0)),
                pl.BlockSpec((1, C), lambda n: (0, 0)),
                pl.BlockSpec((3, K, C), lambda n: (0, 0, 0)),
                pl.BlockSpec((1, C), lambda n: (0, 0)),
            ],
            out_specs=pl.BlockSpec((block_n, H, W, C), lambda n: (n, 0, 0, 0)),
            scratch_shapes=[
                pltpu.VMEM((block_n, H + 2, W + 2, C), jnp.bfloat16),  # padded act
                pltpu.VMEM((block_n, H + 2, W, K), jnp.bfloat16),      # dx-im2col
                pltpu.VMEM((M, C), jnp.float32),                        # f32 acc
            ],
        ),
        compiler_params=pltpu.CompilerParams(
            dimension_semantics=("parallel",),
            vmem_limit_bytes=32 * 1024 * 1024,   # above the 16 MiB v5e default
        ),
    )(x_nhwc, mask_nhw1, w1p, b1p, w2p, b2p)


def reference_forward(x_nchw, mask_nchw, w1, b1, w2, b2):
    """Pure-JAX NCHW reference mirroring the PyTorch module, using the same
    bf16-operand / f32-accumulate numerics the kernel uses on the MXU."""
    dn = ('NCHW', 'HWIO', 'NCHW')
    y = (x_nchw * mask_nchw).astype(jnp.bfloat16)
    y = lax.conv_general_dilated(y, w1.astype(jnp.bfloat16), (1, 1), 'SAME',
                                 dimension_numbers=dn,
                                 preferred_element_type=jnp.float32)
    y = y + b1[0][None, :, None, None]
    y = jnp.maximum(y, 0.0).astype(jnp.bfloat16)
    y = lax.conv_general_dilated(y, w2.astype(jnp.bfloat16), (1, 1), 'SAME',
                                 dimension_numbers=dn,
                                 preferred_element_type=jnp.float32)
    y = y + b2[0][None, :, None, None]
    return y


if __name__ == "__main__":
    key = jax.random.PRNGKey(0)
    k_x, k_m, k_w1, k_b1, k_w2, k_b2 = jax.random.split(key, 6)

    # Channels are fixed to 256 by the module; keep batch/spatial small.
    N, C, H, W = 2, 256, 8, 8
    x_nchw = jax.random.normal(k_x, (N, C, H, W), jnp.float32)

    # Deterministic Conv2d-style init (uniform +-1/sqrt(fan_in)), HWIO layout.
    fan_in = C * 3 * 3
    bound = 1.0 / (fan_in ** 0.5)
    w1 = jax.random.uniform(k_w1, (3, 3, C, C), jnp.float32, -bound, bound)
    b1 = jax.random.uniform(k_b1, (1, C), jnp.float32, -bound, bound)
    w2 = jax.random.uniform(k_w2, (3, 3, C, C), jnp.float32, -bound, bound)
    b2 = jax.random.uniform(k_b2, (1, C), jnp.float32, -bound, bound)

    # Random binary mask: torch.where(torch.rand(N,1,H,W) < 0.15, 0, 1),
    # generated deterministically as plain-JAX glue.
    mat = jax.random.uniform(k_m, (N, 1, H, W), jnp.float32)
    mask_nchw = jnp.where(mat < 0.15, 0.0, 1.0).astype(jnp.float32)

    # One-time parameter packing (bf16, (3, 3C, C)); NOT done per forward call.
    w1p, b1p, w2p, b2p = jax.block_until_ready(pack_params(w1, b1, w2, b2))

    # NCHW -> NHWC at the boundary (kernel layout), back to NCHW afterwards.
    x_nhwc = jnp.transpose(x_nchw, (0, 2, 3, 1))
    mask_nhw1 = jnp.transpose(mask_nchw, (0, 2, 3, 1))

    out_nhwc = spp333_forward(x_nhwc, mask_nhw1, w1p, b1p, w2p, b2p)
    out_nchw = jnp.transpose(out_nhwc, (0, 3, 1, 2))
    jax.block_until_ready(out_nchw)

    ref = reference_forward(x_nchw, mask_nchw, w1, b1, w2, b2)
    assert out_nchw.shape == (N, C, H, W)
    assert jnp.allclose(out_nchw, ref, rtol=2e-2, atol=2e-2), (
        "Pallas kernel result mismatch vs JAX reference")

    print("KERNEL_OK")
</pallas_src>

<mosaic_0001>
module attributes {stable_mosaic.version = 11 : i64} {
  func.func @spp333_kernel(%arg0: i32, %arg1: memref<1x8x8x256xf32, #tpu.memory_space<vmem>>, %arg2: memref<1x8x8x1xf32, #tpu.memory_space<vmem>>, %arg3: memref<3x768x256xbf16, #tpu.memory_space<vmem>>, %arg4: memref<1x256xf32, #tpu.memory_space<vmem>>, %arg5: memref<3x768x256xbf16, #tpu.memory_space<vmem>>, %arg6: memref<1x256xf32, #tpu.memory_space<vmem>>, %arg7: memref<1x8x8x256xf32, #tpu.memory_space<vmem>>, %arg8: memref<1x10x10x256xbf16, #tpu.memory_space<vmem>>, %arg9: memref<1x10x8x768xbf16, #tpu.memory_space<vmem>>, %arg10: memref<64x256xf32, #tpu.memory_space<vmem>>) attributes {dimension_semantics = [#tpu.dimension_semantics<parallel>], iteration_bounds = array<i64: 2>, scalar_prefetch = 0 : i64, scratch_operands = 3 : i64, tpu.core_type = #tpu.core_type<tc>, window_params = [{transform_indices = @transform_0, window_bounds = array<i64: 1, 8, 8, 256>}, {transform_indices = @transform_1, window_bounds = array<i64: 1, 8, 8, 1>}, {pipeline_mode = #tpu.pipeline_mode<synchronous>, transform_indices = @transform_2, window_bounds = array<i64: 3, 768, 256>}, {pipeline_mode = #tpu.pipeline_mode<synchronous>, transform_indices = @transform_3, window_bounds = array<i64: 1, 256>}, {pipeline_mode = #tpu.pipeline_mode<synchronous>, transform_indices = @transform_4, window_bounds = array<i64: 3, 768, 256>}, {pipeline_mode = #tpu.pipeline_mode<synchronous>, transform_indices = @transform_5, window_bounds = array<i64: 1, 256>}, {transform_indices = @transform_6, window_bounds = array<i64: 1, 8, 8, 256>}]} {
    %cst = arith.constant 0.000000e+00 : bf16
    %0 = vector.broadcast %cst : bf16 to vector<1x1x10x256xbf16>
    %c0 = arith.constant 0 : index
    %c0_0 = arith.constant 0 : index
    %c0_1 = arith.constant 0 : index
    %c0_2 = arith.constant 0 : index
    %1 = vector.load %arg8[%c0, %c0_0, %c0_1, %c0_2] : memref<1x10x10x256xbf16, #tpu.memory_space<vmem>>, vector<1x1x10x256xbf16>
    tpu.vector_store %arg8[%c0, %c0_0, %c0_1, %c0_2], %0 {strides = array<i32>} : memref<1x10x10x256xbf16, #tpu.memory_space<vmem>>, vector<1x1x10x256xbf16>,
    %c0_3 = arith.constant 0 : index
    %c9 = arith.constant 9 : index
    %c0_4 = arith.constant 0 : index
    %c0_5 = arith.constant 0 : index
    %2 = vector.load %arg8[%c0_3, %c9, %c0_4, %c0_5] : memref<1x10x10x256xbf16, #tpu.memory_space<vmem>>, vector<1x1x10x256xbf16>
    tpu.vector_store %arg8[%c0_3, %c9, %c0_4, %c0_5], %0 {strides = array<i32>} : memref<1x10x10x256xbf16, #tpu.memory_space<vmem>>, vector<1x1x10x256xbf16>,
    %cst_6 = arith.constant 0.000000e+00 : bf16
    %3 = vector.broadcast %cst_6 : bf16 to vector<1x10x1x256xbf16>
    %c0_7 = arith.constant 0 : index
    %c0_8 = arith.constant 0 : index
    %c0_9 = arith.constant 0 : index
    %c0_10 = arith.constant 0 : index
    %4 = vector.load %arg8[%c0_7, %c0_8, %c0_9, %c0_10] : memref<1x10x10x256xbf16, #tpu.memory_space<vmem>>, vector<1x10x1x256xbf16>
    tpu.vector_store %arg8[%c0_7, %c0_8, %c0_9, %c0_10], %3 {strides = array<i32>} : memref<1x10x10x256xbf16, #tpu.memory_space<vmem>>, vector<1x10x1x256xbf16>,
    %c0_11 = arith.constant 0 : index
    %c0_12 = arith.constant 0 : index
    %c9_13 = arith.constant 9 : index
    %c0_14 = arith.constant 0 : index
    %5 = vector.load %arg8[%c0_11, %c0_12, %c9_13, %c0_14] : memref<1x10x10x256xbf16, #tpu.memory_space<vmem>>, vector<1x10x1x256xbf16>
    tpu.vector_store %arg8[%c0_11, %c0_12, %c9_13, %c0_14], %3 {strides = array<i32>} : memref<1x10x10x256xbf16, #tpu.memory_space<vmem>>, vector<1x10x1x256xbf16>,
    %c0_15 = arith.constant 0 : index
    %c0_16 = arith.constant 0 : index
    %c0_17 = arith.constant 0 : index
    %c0_18 = arith.constant 0 : index
    %6 = vector.load %arg1[%c0_15, %c0_16, %c0_17, %c0_18] : memref<1x8x8x256xf32, #tpu.memory_space<vmem>>, vector<1x8x8x256xf32>
    %c0_19 = arith.constant 0 : index
    %c0_20 = arith.constant 0 : index
    %c0_21 = arith.constant 0 : index
    %c0_22 = arith.constant 0 : index
    %7 = vector.load %arg2[%c0_19, %c0_20, %c0_21, %c0_22] : memref<1x8x8x1xf32, #tpu.memory_space<vmem>>, vector<1x8x8x1xf32>
    %8 = vector.broadcast %7 : vector<1x8x8x1xf32> to vector<1x8x8x256xf32>
    %9 = arith.mulf %6, %8 : vector<1x8x8x256xf32>
    %10 = arith.truncf %9 : vector<1x8x8x256xf32> to vector<1x8x8x256xbf16>
    %c0_23 = arith.constant 0 : index
    %c1 = arith.constant 1 : index
    %c1_24 = arith.constant 1 : index
    %c0_25 = arith.constant 0 : index
    %11 = vector.load %arg8[%c0_23, %c1, %c1_24, %c0_25] : memref<1x10x10x256xbf16, #tpu.memory_space<vmem>>, vector<1x8x8x256xbf16>
    tpu.vector_store %arg8[%c0_23, %c1, %c1_24, %c0_25], %10 {strides = array<i32>} : memref<1x10x10x256xbf16, #tpu.memory_space<vmem>>, vector<1x8x8x256xbf16>,
    %c0_26 = arith.constant 0 : index
    %c0_27 = arith.constant 0 : index
    %c0_28 = arith.constant 0 : index
    %c0_29 = arith.constant 0 : index
    %12 = vector.load %arg8[%c0_26, %c0_27, %c0_28, %c0_29] : memref<1x10x10x256xbf16, #tpu.memory_space<vmem>>, vector<1x10x8x256xbf16>
    %c0_30 = arith.constant 0 : index
    %c0_31 = arith.constant 0 : index
    %c0_32 = arith.constant 0 : index
    %c0_33 = arith.constant 0 : index
    %13 = vector.load %arg9[%c0_30, %c0_31, %c0_32, %c0_33] : memref<1x10x8x768xbf16, #tpu.memory_space<vmem>>, vector<1x10x8x256xbf16>
    tpu.vector_store %arg9[%c0_30, %c0_31, %c0_32, %c0_33], %12 {strides = array<i32>} : memref<1x10x8x768xbf16, #tpu.memory_space<vmem>>, vector<1x10x8x256xbf16>,
    %c0_34 = arith.constant 0 : index
    %c0_35 = arith.constant 0 : index
    %c1_36 = arith.constant 1 : index
    %c0_37 = arith.constant 0 : index
    %14 = vector.load %arg8[%c0_34, %c0_35, %c1_36, %c0_37] : memref<1x10x10x256xbf16, #tpu.memory_space<vmem>>, vector<1x10x8x256xbf16>
    %c0_38 = arith.constant 0 : index
    %c0_39 = arith.constant 0 : index
    %c0_40 = arith.constant 0 : index
    %c256 = arith.constant 256 : index
    %15 = vector.load %arg9[%c0_38, %c0_39, %c0_40, %c256] : memref<1x10x8x768xbf16, #tpu.memory_space<vmem>>, vector<1x10x8x256xbf16>
    tpu.vector_store %arg9[%c0_38, %c0_39, %c0_40, %c256], %14 {strides = array<i32>} : memref<1x10x8x768xbf16, #tpu.memory_space<vmem>>, vector<1x10x8x256xbf16>,
    %c0_41 = arith.constant 0 : index
    %c0_42 = arith.constant 0 : index
    %c2 = arith.constant 2 : index
    %c0_43 = arith.constant 0 : index
    %16 = vector.load %arg8[%c0_41, %c0_42, %c2, %c0_43] : memref<1x10x10x256xbf16, #tpu.memory_space<vmem>>, vector<1x10x8x256xbf16>
    %c0_44 = arith.constant 0 : index
    %c0_45 = arith.constant 0 : index
    %c0_46 = arith.constant 0 : index
    %c512 = arith.constant 512 : index
    %17 = vector.load %arg9[%c0_44, %c0_45, %c0_46, %c512] : memref<1x10x8x768xbf16, #tpu.memory_space<vmem>>, vector<1x10x8x256xbf16>
    tpu.vector_store %arg9[%c0_44, %c0_45, %c0_46, %c512], %16 {strides = array<i32>} : memref<1x10x8x768xbf16, #tpu.memory_space<vmem>>, vector<1x10x8x256xbf16>,
    %c0_47 = arith.constant 0 : index
    %c0_48 = arith.constant 0 : index
    %c0_49 = arith.constant 0 : index
    %c0_50 = arith.constant 0 : index
    %18 = vector.load %arg9[%c0_47, %c0_48, %c0_49, %c0_50] : memref<1x10x8x768xbf16, #tpu.memory_space<vmem>>, vector<1x8x8x768xbf16>
    %19 = vector.shape_cast %18 : vector<1x8x8x768xbf16> to vector<64x768xbf16>
    %c0_51 = arith.constant 0 : index
    %c0_52 = arith.constant 0 : index
    %c0_53 = arith.constant 0 : index
    %20 = vector.load %arg3[%c0_51, %c0_52, %c0_53] : memref<3x768x256xbf16, #tpu.memory_space<vmem>>, vector<1x768x256xbf16>
    %21 = vector.shape_cast %20 : vector<1x768x256xbf16> to vector<768x256xbf16>
    %cst_54 = arith.constant dense<0.000000e+00> : vector<64x256xf32>
    %22 = tpu.matmul %19, %21, %cst_54 {dimension_numbers = #tpu.dot_dimension_numbers<[1], [0], [0], [1], [0, 0, 1, 1], [], []>} : vector<64x768xbf16>, vector<768x256xbf16>, vector<64x256xf32> -> vector<64x256xf32>
    %c0_55 = arith.constant 0 : index
    %c0_56 = arith.constant 0 : index
    %23 = vector.load %arg10[%c0_55, %c0_56] : memref<64x256xf32, #tpu.memory_space<vmem>>, vector<64x256xf32>
    tpu.vector_store %arg10[%c0_55, %c0_56], %22 {strides = array<i32>} : memref<64x256xf32, #tpu.memory_space<vmem>>, vector<64x256xf32>,
    %c0_57 = arith.constant 0 : index
    %c0_58 = arith.constant 0 : index
    %24 = vector.load %arg10[%c0_57, %c0_58] : memref<64x256xf32, #tpu.memory_space<vmem>>, vector<64x256xf32>
    %c0_59 = arith.constant 0 : index
    %c1_60 = arith.constant 1 : index
    %c0_61 = arith.constant 0 : index
    %c0_62 = arith.constant 0 : index
    %25 = vector.load %arg9[%c0_59, %c1_60, %c0_61, %c0_62] : memref<1x10x8x768xbf16, #tpu.memory_space<vmem>>, vector<1x8x8x768xbf16>
    %26 = vector.shape_cast %25 : vector<1x8x8x768xbf16> to vector<64x768xbf16>
    %c1_63 = arith.constant 1 : index
    %c0_64 = arith.constant 0 : index
    %c0_65 = arith.constant 0 : index
    %27 = vector.load %arg3[%c1_63, %c0_64, %c0_65] : memref<3x768x256xbf16, #tpu.memory_space<vmem>>, vector<1x768x256xbf16>
    %28 = vector.shape_cast %27 : vector<1x768x256xbf16> to vector<768x256xbf16>
    %cst_66 = arith.constant dense<0.000000e+00> : vector<64x256xf32>
    %29 = tpu.matmul %26, %28, %cst_66 {dimension_numbers = #tpu.dot_dimension_numbers<[1], [0], [0], [1], [0, 0, 1, 1], [], []>} : vector<64x768xbf16>, vector<768x256xbf16>, vector<64x256xf32> -> vector<64x256xf32>
    %30 = arith.addf %24, %29 : vector<64x256xf32>
    %c0_67 = arith.constant 0 : index
    %c0_68 = arith.constant 0 : index
    %31 = vector.load %arg10[%c0_67, %c0_68] : memref<64x256xf32, #tpu.memory_space<vmem>>, vector<64x256xf32>
    tpu.vector_store %arg10[%c0_67, %c0_68], %30 {strides = array<i32>} : memref<64x256xf32, #tpu.memory_space<vmem>>, vector<64x256xf32>,
    %c0_69 = arith.constant 0 : index
    %c0_70 = arith.constant 0 : index
    %32 = vector.load %arg10[%c0_69, %c0_70] : memref<64x256xf32, #tpu.memory_space<vmem>>, vector<64x256xf32>
    %c0_71 = arith.constant 0 : index
    %c2_72 = arith.constant 2 : index
    %c0_73 = arith.constant 0 : index
    %c0_74 = arith.constant 0 : index
    %33 = vector.load %arg9[%c0_71, %c2_72, %c0_73, %c0_74] : memref<1x10x8x768xbf16, #tpu.memory_space<vmem>>, vector<1x8x8x768xbf16>
    %34 = vector.shape_cast %33 : vector<1x8x8x768xbf16> to vector<64x768xbf16>
    %c2_75 = arith.constant 2 : index
    %c0_76 = arith.constant 0 : index
    %c0_77 = arith.constant 0 : index
    %35 = vector.load %arg3[%c2_75, %c0_76, %c0_77] : memref<3x768x256xbf16, #tpu.memory_space<vmem>>, vector<1x768x256xbf16>
    %36 = vector.shape_cast %35 : vector<1x768x256xbf16> to vector<768x256xbf16>
    %cst_78 = arith.constant dense<0.000000e+00> : vector<64x256xf32>
    %37 = tpu.matmul %34, %36, %cst_78 {dimension_numbers = #tpu.dot_dimension_numbers<[1], [0], [0], [1], [0, 0, 1, 1], [], []>} : vector<64x768xbf16>, vector<768x256xbf16>, vector<64x256xf32> -> vector<64x256xf32>
    %38 = arith.addf %32, %37 : vector<64x256xf32>
    %c0_79 = arith.constant 0 : index
    %c0_80 = arith.constant 0 : index
    %39 = vector.load %arg10[%c0_79, %c0_80] : memref<64x256xf32, #tpu.memory_space<vmem>>, vector<64x256xf32>
    tpu.vector_store %arg10[%c0_79, %c0_80], %38 {strides = array<i32>} : memref<64x256xf32, #tpu.memory_space<vmem>>, vector<64x256xf32>,
    %c0_81 = arith.constant 0 : index
    %c0_82 = arith.constant 0 : index
    %40 = vector.load %arg10[%c0_81, %c0_82] : memref<64x256xf32, #tpu.memory_space<vmem>>, vector<64x256xf32>
    %c0_83 = arith.constant 0 : index
    %c0_84 = arith.constant 0 : index
    %41 = vector.load %arg4[%c0_83, %c0_84] : memref<1x256xf32, #tpu.memory_space<vmem>>, vector<1x256xf32>
    %42 = vector.broadcast %41 : vector<1x256xf32> to vector<64x256xf32>
    %43 = arith.addf %40, %42 : vector<64x256xf32>
    %cst_85 = arith.constant 0.000000e+00 : f32
    %44 = vector.broadcast %cst_85 : f32 to vector<64x256xf32>
    %45 = arith.maximumf %43, %44 : vector<64x256xf32>
    %46 = arith.truncf %45 : vector<64x256xf32> to vector<64x256xbf16>
    %47 = vector.shape_cast %46 : vector<64x256xbf16> to vector<1x8x8x256xbf16>
    %c0_86 = arith.constant 0 : index
    %c1_87 = arith.constant 1 : index
    %c1_88 = arith.constant 1 : index
    %c0_89 = arith.constant 0 : index
    %48 = vector.load %arg8[%c0_86, %c1_87, %c1_88, %c0_89] : memref<1x10x10x256xbf16, #tpu.memory_space<vmem>>, vector<1x8x8x256xbf16>
    tpu.vector_store %arg8[%c0_86, %c1_87, %c1_88, %c0_89], %47 {strides = array<i32>} : memref<1x10x10x256xbf16, #tpu.memory_space<vmem>>, vector<1x8x8x256xbf16>,
    %c0_90 = arith.constant 0 : index
    %c0_91 = arith.constant 0 : index
    %c0_92 = arith.constant 0 : index
    %c0_93 = arith.constant 0 : index
    %49 = vector.load %arg8[%c0_90, %c0_91, %c0_92, %c0_93] : memref<1x10x10x256xbf16, #tpu.memory_space<vmem>>, vector<1x10x8x256xbf16>
    %c0_94 = arith.constant 0 : index
    %c0_95 = arith.constant 0 : index
    %c0_96 = arith.constant 0 : index
    %c0_97 = arith.constant 0 : index
    %50 = vector.load %arg9[%c0_94, %c0_95, %c0_96, %c0_97] : memref<1x10x8x768xbf16, #tpu.memory_space<vmem>>, vector<1x10x8x256xbf16>
    tpu.vector_store %arg9[%c0_94, %c0_95, %c0_96, %c0_97], %49 {strides = array<i32>} : memref<1x10x8x768xbf16, #tpu.memory_space<vmem>>, vector<1x10x8x256xbf16>,
    %c0_98 = arith.constant 0 : index
    %c0_99 = arith.constant 0 : index
    %c1_100 = arith.constant 1 : index
    %c0_101 = arith.constant 0 : index
    %51 = vector.load %arg8[%c0_98, %c0_99, %c1_100, %c0_101] : memref<1x10x10x256xbf16, #tpu.memory_space<vmem>>, vector<1x10x8x256xbf16>
    %c0_102 = arith.constant 0 : index
    %c0_103 = arith.constant 0 : index
    %c0_104 = arith.constant 0 : index
    %c256_105 = arith.constant 256 : index
    %52 = vector.load %arg9[%c0_102, %c0_103, %c0_104, %c256_105] : memref<1x10x8x768xbf16, #tpu.memory_space<vmem>>, vector<1x10x8x256xbf16>
    tpu.vector_store %arg9[%c0_102, %c0_103, %c0_104, %c256_105], %51 {strides = array<i32>} : memref<1x10x8x768xbf16, #tpu.memory_space<vmem>>, vector<1x10x8x256xbf16>,
    %c0_106 = arith.constant 0 : index
    %c0_107 = arith.constant 0 : index
    %c2_108 = arith.constant 2 : index
    %c0_109 = arith.constant 0 : index
    %53 = vector.load %arg8[%c0_106, %c0_107, %c2_108, %c0_109] : memref<1x10x10x256xbf16, #tpu.memory_space<vmem>>, vector<1x10x8x256xbf16>
    %c0_110 = arith.constant 0 : index
    %c0_111 = arith.constant 0 : index
    %c0_112 = arith.constant 0 : index
    %c512_113 = arith.constant 512 : index
    %54 = vector.load %arg9[%c0_110, %c0_111, %c0_112, %c512_113] : memref<1x10x8x768xbf16, #tpu.memory_space<vmem>>, vector<1x10x8x256xbf16>
    tpu.vector_store %arg9[%c0_110, %c0_111, %c0_112, %c512_113], %53 {strides = array<i32>} : memref<1x10x8x768xbf16, #tpu.memory_space<vmem>>, vector<1x10x8x256xbf16>,
    %c0_114 = arith.constant 0 : index
    %c0_115 = arith.constant 0 : index
    %c0_116 = arith.constant 0 : index
    %c0_117 = arith.constant 0 : index
    %55 = vector.load %arg9[%c0_114, %c0_115, %c0_116, %c0_117] : memref<1x10x8x768xbf16, #tpu.memory_space<vmem>>, vector<1x8x8x768xbf16>
    %56 = vector.shape_cast %55 : vector<1x8x8x768xbf16> to vector<64x768xbf16>
    %c0_118 = arith.constant 0 : index
    %c0_119 = arith.constant 0 : index
    %c0_120 = arith.constant 0 : index
    %57 = vector.load %arg5[%c0_118, %c0_119, %c0_120] : memref<3x768x256xbf16, #tpu.memory_space<vmem>>, vector<1x768x256xbf16>
    %58 = vector.shape_cast %57 : vector<1x768x256xbf16> to vector<768x256xbf16>
    %cst_121 = arith.constant dense<0.000000e+00> : vector<64x256xf32>
    %59 = tpu.matmul %56, %58, %cst_121 {dimension_numbers = #tpu.dot_dimension_numbers<[1], [0], [0], [1], [0, 0, 1, 1], [], []>} : vector<64x768xbf16>, vector<768x256xbf16>, vector<64x256xf32> -> vector<64x256xf32>
    %c0_122 = arith.constant 0 : index
    %c0_123 = arith.constant 0 : index
    %60 = vector.load %arg10[%c0_122, %c0_123] : memref<64x256xf32, #tpu.memory_space<vmem>>, vector<64x256xf32>
    tpu.vector_store %arg10[%c0_122, %c0_123], %59 {strides = array<i32>} : memref<64x256xf32, #tpu.memory_space<vmem>>, vector<64x256xf32>,
    %c0_124 = arith.constant 0 : index
    %c0_125 = arith.constant 0 : index
    %61 = vector.load %arg10[%c0_124, %c0_125] : memref<64x256xf32, #tpu.memory_space<vmem>>, vector<64x256xf32>
    %c0_126 = arith.constant 0 : index
    %c1_127 = arith.constant 1 : index
    %c0_128 = arith.constant 0 : index
    %c0_129 = arith.constant 0 : index
    %62 = vector.load %arg9[%c0_126, %c1_127, %c0_128, %c0_129] : memref<1x10x8x768xbf16, #tpu.memory_space<vmem>>, vector<1x8x8x768xbf16>
    %63 = vector.shape_cast %62 : vector<1x8x8x768xbf16> to vector<64x768xbf16>
    %c1_130 = arith.constant 1 : index
    %c0_131 = arith.constant 0 : index
    %c0_132 = arith.constant 0 : index
    %64 = vector.load %arg5[%c1_130, %c0_131, %c0_132] : memref<3x768x256xbf16, #tpu.memory_space<vmem>>, vector<1x768x256xbf16>
    %65 = vector.shape_cast %64 : vector<1x768x256xbf16> to vector<768x256xbf16>
    %cst_133 = arith.constant dense<0.000000e+00> : vector<64x256xf32>
    %66 = tpu.matmul %63, %65, %cst_133 {dimension_numbers = #tpu.dot_dimension_numbers<[1], [0], [0], [1], [0, 0, 1, 1], [], []>} : vector<64x768xbf16>, vector<768x256xbf16>, vector<64x256xf32> -> vector<64x256xf32>
    %67 = arith.addf %61, %66 : vector<64x256xf32>
    %c0_134 = arith.constant 0 : index
    %c0_135 = arith.constant 0 : index
    %68 = vector.load %arg10[%c0_134, %c0_135] : memref<64x256xf32, #tpu.memory_space<vmem>>, vector<64x256xf32>
    tpu.vector_store %arg10[%c0_134, %c0_135], %67 {strides = array<i32>} : memref<64x256xf32, #tpu.memory_space<vmem>>, vector<64x256xf32>,
    %c0_136 = arith.constant 0 : index
    %c0_137 = arith.constant 0 : index
    %69 = vector.load %arg10[%c0_136, %c0_137] : memref<64x256xf32, #tpu.memory_space<vmem>>, vector<64x256xf32>
    %c0_138 = arith.constant 0 : index
    %c2_139 = arith.constant 2 : index
    %c0_140 = arith.constant 0 : index
    %c0_141 = arith.constant 0 : index
    %70 = vector.load %arg9[%c0_138, %c2_139, %c0_140, %c0_141] : memref<1x10x8x768xbf16, #tpu.memory_space<vmem>>, vector<1x8x8x768xbf16>
    %71 = vector.shape_cast %70 : vector<1x8x8x768xbf16> to vector<64x768xbf16>
    %c2_142 = arith.constant 2 : index
    %c0_143 = arith.constant 0 : index
    %c0_144 = arith.constant 0 : index
    %72 = vector.load %arg5[%c2_142, %c0_143, %c0_144] : memref<3x768x256xbf16, #tpu.memory_space<vmem>>, vector<1x768x256xbf16>
    %73 = vector.shape_cast %72 : vector<1x768x256xbf16> to vector<768x256xbf16>
    %cst_145 = arith.constant dense<0.000000e+00> : vector<64x256xf32>
    %74 = tpu.matmul %71, %73, %cst_145 {dimension_numbers = #tpu.dot_dimension_numbers<[1], [0], [0], [1], [0, 0, 1, 1], [], []>} : vector<64x768xbf16>, vector<768x256xbf16>, vector<64x256xf32> -> vector<64x256xf32>
    %75 = arith.addf %69, %74 : vector<64x256xf32>
    %c0_146 = arith.constant 0 : index
    %c0_147 = arith.constant 0 : index
    %76 = vector.load %arg10[%c0_146, %c0_147] : memref<64x256xf32, #tpu.memory_space<vmem>>, vector<64x256xf32>
    tpu.vector_store %arg10[%c0_146, %c0_147], %75 {strides = array<i32>} : memref<64x256xf32, #tpu.memory_space<vmem>>, vector<64x256xf32>,
    %c0_148 = arith.constant 0 : index
    %c0_149 = arith.constant 0 : index
    %77 = vector.load %arg10[%c0_148, %c0_149] : memref<64x256xf32, #tpu.memory_space<vmem>>, vector<64x256xf32>
    %c0_150 = arith.constant 0 : index
    %c0_151 = arith.constant 0 : index
    %78 = vector.load %arg6[%c0_150, %c0_151] : memref<1x256xf32, #tpu.memory_space<vmem>>, vector<1x256xf32>
    %79 = vector.broadcast %78 : vector<1x256xf32> to vector<64x256xf32>
    %80 = arith.addf %77, %79 : vector<64x256xf32>
    %81 = vector.shape_cast %80 : vector<64x256xf32> to vector<1x8x8x256xf32>
    %c0_152 = arith.constant 0 : index
    %c0_153 = arith.constant 0 : index
    %c0_154 = arith.constant 0 : index
    %c0_155 = arith.constant 0 : index
    %82 = vector.load %arg7[%c0_152, %c0_153, %c0_154, %c0_155] : memref<1x8x8x256xf32, #tpu.memory_space<vmem>>, vector<1x8x8x256xf32>
    tpu.vector_store %arg7[%c0_152, %c0_153, %c0_154, %c0_155], %81 {strides = array<i32>} : memref<1x8x8x256xf32, #tpu.memory_space<vmem>>, vector<1x8x8x256xf32>,
    return
  }
  func.func @transform_0(%arg0: i32) -> (i32, i32, i32, i32) {
    %c0_i32 = arith.constant 0 : i32
    %c0_i32_0 = arith.constant 0 : i32
    %c0_i32_1 = arith.constant 0 : i32
    %c0_i32_2 = arith.constant 0 : i32
    return %arg0, %c0_i32, %c0_i32_0, %c0_i32_1 : i32, i32, i32, i32
  }
  func.func @transform_1(%arg0: i32) -> (i32, i32, i32, i32) {
    %c0_i32 = arith.constant 0 : i32
    %c0_i32_0 = arith.constant 0 : i32
    %c0_i32_1 = arith.constant 0 : i32
    %c0_i32_2 = arith.constant 0 : i32
    return %arg0, %c0_i32, %c0_i32_0, %c0_i32_1 : i32, i32, i32, i32
  }
  func.func @transform_2(%arg0: i32) -> (i32, i32, i32) {
    %c0_i32 = arith.constant 0 : i32
    %c0_i32_0 = arith.constant 0 : i32
    %c0_i32_1 = arith.constant 0 : i32
    %c0_i32_2 = arith.constant 0 : i32
    return %c0_i32, %c0_i32_0, %c0_i32_1 : i32, i32, i32
  }
  func.func @transform_3(%arg0: i32) -> (i32, i32) {
    %c0_i32 = arith.constant 0 : i32
    %c0_i32_0 = arith.constant 0 : i32
    %c0_i32_1 = arith.constant 0 : i32
    return %c0_i32, %c0_i32_0 : i32, i32
  }
  func.func @transform_4(%arg0: i32) -> (i32, i32, i32) {
    %c0_i32 = arith.constant 0 : i32
    %c0_i32_0 = arith.constant 0 : i32
    %c0_i32_1 = arith.constant 0 : i32
    %c0_i32_2 = arith.constant 0 : i32
    return %c0_i32, %c0_i32_0, %c0_i32_1 : i32, i32, i32
  }
  func.func @transform_5(%arg0: i32) -> (i32, i32) {
    %c0_i32 = arith.constant 0 : i32
    %c0_i32_0 = arith.constant 0 : i32
    %c0_i32_1 = arith.constant 0 : i32
    return %c0_i32, %c0_i32_0 : i32, i32
  }
  func.func @transform_6(%arg0: i32) -> (i32, i32, i32, i32) {
    %c0_i32 = arith.constant 0 : i32
    %c0_i32_0 = arith.constant 0 : i32
    %c0_i32_1 = arith.constant 0 : i32
    %c0_i32_2 = arith.constant 0 : i32
    return %arg0, %c0_i32, %c0_i32_0, %c0_i32_1 : i32, i32, i32, i32
  }
}

</mosaic_0001>

<llo_original>
// kernel: tpu_custom_call.1
$region0: #{tpu_custom_call.1}
  #allocation0 [shape = 'u32[]', space=smem, size = 0x4, offset = 0x4, fixed_abs, tag = 'smem constant byte address 0x4 - core index']
  #allocation1 [shape = 'u32[144,128]{1,0:T(1,128)}', space=vmem, size = 0x12000, scoped, tag = 'internal scratch']
  #allocation2 [shape = 'bf16[1,10,10,256]{3,2,1,0:T(8,128)(2,1)}', space=vmem, size = 0x14000, scoped, tag = 'scratch operand']
  #allocation3 [shape = 'bf16[1,10,8,768]{3,2,1,0:T(8,128)(2,1)}', space=vmem, size = 0x1e000, scoped, tag = 'scratch operand']
  #allocation4 [shape = 'f32[64,256]{1,0:T(8,128)}', space=vmem, size = 0x10000, scoped, tag = 'scratch operand']
  %s0 = inlined_call_operand.hbm [shape: f32[2,8,8,256], index: 0, kind: input, shape index: {}]
  %s1 = inlined_call_operand.vmem [shape: f32[2,8,8,1], index: 1, kind: input, shape index: {}]
  %s2 = inlined_call_operand.hbm [shape: bf16[3,768,256], index: 2, kind: input, shape index: {}]
  %s3 = inlined_call_operand.hbm [shape: f32[1,256], index: 3, kind: input, shape index: {}]
  %s4 = inlined_call_operand.hbm [shape: bf16[3,768,256], index: 4, kind: input, shape index: {}]
  %s5 = inlined_call_operand.hbm [shape: f32[1,256], index: 5, kind: input, shape index: {}]
  %s6 = inlined_call_operand.hbm [shape: f32[2,8,8,256], index: 6, kind: output, shape index: {}]
  %s7 = sld [smem:[#allocation0]]
  $region77: #{tpu_custom_call.1} parent=0
    _
  %s9 = ssub.s32 1, %s7
  %s10 = scalar_select 0, %s9, %s7
  $region1: #{tpu_custom_call.1} parent=0
    #allocation5 [shape = 'u8[131072]{0}', space=vmem, size = 0x20000, scoped, tag = 'input window, operand 0']
    #allocation6 [shape = 's32[2]{0}', space=sflag, size = 0x8, scoped, tag = 'scoped memory for tpu_custom_call.1']
    #allocation7 [shape = 's32[2]{0}', space=sflag, size = 0x8, scoped, tag = 'scoped memory for tpu_custom_call.1']
    #allocation8 [shape = 'u8[1179648]{0}', space=vmem, size = 0x120000, scoped, tag = 'input window, operand 2, single buffered']
    #allocation9 [shape = 's32[1]{0}', space=sflag, size = 0x4, scoped, tag = 'scoped memory for tpu_custom_call.1']
    #allocation10 [shape = 'u8[1024]{0}', space=vmem, size = 0x400, scoped, tag = 'input window, operand 3, single buffered']
    #allocation11 [shape = 'u8[1179648]{0}', space=vmem, size = 0x120000, scoped, tag = 'input window, operand 4, single buffered']
    #allocation12 [shape = 's32[1]{0}', space=sflag, size = 0x4, scoped, tag = 'scoped memory for tpu_custom_call.1']
    #allocation13 [shape = 'u8[1024]{0}', space=vmem, size = 0x400, scoped, tag = 'input window, operand 5, single buffered']
    #allocation14 [shape = 'u8[131072]{0}', space=vmem, size = 0x20000, scoped, tag = 'output window, operand 0']
    %11 = vsyncpa [#allocation6], 0
    %s12 = scalar_lea.sflag [#allocation6], 1
    %13 = vsyncpa %s12, 0
    %14 = vsyncpa [#allocation9], 0
    %15 = vsyncpa [#allocation12], 0
    %16 = vsyncpa [#allocation7], 0
    %s17 = scalar_lea.sflag [#allocation7], 1
    %18 = vsyncpa %s17, 0
    loop: start=0, step=1, limit=4
    $region2: #{tpu_custom_call.1} parent=1 // loop_pre_header
      _
    $region3: #{tpu_custom_call.1} parent=1 // loop_header
      %s20 = sphi 0, %s24
      %p21 = scmp.ge.s32.totalorder %s20, 4
      %s30 = sphi 0, %s32
      %s33 = sphi 0, %s30
      %s34 = sphi 0, %s33
      %s50 = sphi 0, %s34
      %s56 = sphi 0, %s58
      %s59 = sphi 0, %s56
      %s60 = sphi 0, %s59
      %s76 = sphi 0, %s60
      %s80 = sphi 0, %s80
      %s82 = sphi 0, %s80
      %s83 = sphi 0, %s82
      %s97 = sphi 0, %s83
      %s101 = sphi 0, %s101
      %s103 = sphi 0, %s101
      %s104 = sphi 0, %s103
      %s118 = sphi 0, %s104
      %s122 = sphi 0, %s122
      %s124 = sphi 0, %s122
      %s125 = sphi 0, %s124
      %s139 = sphi 0, %s125
      %s143 = sphi 0, %s143
      %s145 = sphi 0, %s143
      %s146 = sphi 0, %s145
      %s160 = sphi 0, %s146
      %s166 = sphi 0, %s168
      %s169 = sphi 0, %s166
      %s170 = sphi 0, %s169
      %s186 = sphi 0, %s170
    $region4: #{tpu_custom_call.1} parent=1 // loop_header_branch
      %23 = sbr.rel (%p21) target = $region8
    $region5: #{tpu_custom_call.1} parent=1 // loop_body
      %s25 = ssub.s32 %s20, 1
      %s26 = ssub.s32 %s20, 2
      %s27 = sadd.s32 %s20, 1
      %s28 = ssub.s32 %s20, %s27
      %p29 = scmp.eq.s32.totalorder %s28, 0
      %s31 = sadd.s32 %s30, 1
      %s32 = scalar_select %p29, %s30, %s31
      %p35 = pneg %p29
      %p36 = scmp.eq.s32.totalorder %s20, 1
      %p37 = por %p35, %p36
      %p38 = scmp.ne.s32.totalorder %s30, %s33
      %p39 = scmp.eq.s32.totalorder %s20, 0
      %p40 = por %p38, %p39
      %p41 = scmp.ne.s32.totalorder %s30, %s33
      %p42 = scmp.eq.s32.totalorder %s25, 1
      %p43 = por %p41, %p42
      %p44 = scmp.ne.s32.totalorder %s33, %s34
      %p45 = scmp.eq.s32.totalorder %s25, 0
      %p46 = por %p44, %p45
      %p47 = scmp.ne.s32.totalorder %s33, %s34
      %p48 = scmp.eq.s32.totalorder %s26, 1
      %p49 = por %p47, %p48
      %p51 = scmp.ne.s32.totalorder %s34, %s50
      %p52 = scmp.eq.s32.totalorder %s26, 0
      %p53 = por %p51, %p52
      %s54 = ssub.s32 %s20, %s27
      %p55 = scmp.eq.s32.totalorder %s54, 0
      %s57 = sadd.s32 %s56, 1
      %s58 = scalar_select %p55, %s56, %s57
      %p61 = pneg %p55
      %p62 = scmp.eq.s32.totalorder %s20, 1
      %p63 = por %p61, %p62
      %p64 = scmp.ne.s32.totalorder %s56, %s59
      %p65 = scmp.eq.s32.totalorder %s20, 0
      %p66 = por %p64, %p65
      %p67 = scmp.ne.s32.totalorder %s56, %s59
      %p68 = scmp.eq.s32.totalorder %s25, 1
      %p69 = por %p67, %p68
      %p70 = scmp.ne.s32.totalorder %s59, %s60
      %p71 = scmp.eq.s32.totalorder %s25, 0
      %p72 = por %p70, %p71
      %p73 = scmp.ne.s32.totalorder %s59, %s60
      %p74 = scmp.eq.s32.totalorder %s26, 1
      %p75 = por %p73, %p74
      %p77 = scmp.ne.s32.totalorder %s60, %s76
      %p78 = scmp.eq.s32.totalorder %s26, 0
      %p79 = por %p77, %p78
      %s81 = sadd.s32 %s80, 1
      %p84 = scmp.eq.s32.totalorder %s20, 1
      %p85 = scmp.ne.s32.totalorder %s80, %s82
      %p86 = scmp.eq.s32.totalorder %s20, 0
      %p87 = por %p85, %p86
      %p88 = scmp.ne.s32.totalorder %s80, %s82
      %p89 = scmp.eq.s32.totalorder %s25, 1
      %p90 = por %p88, %p89
      %p91 = scmp.ne.s32.totalorder %s82, %s83
      %p92 = scmp.eq.s32.totalorder %s25, 0
      %p93 = por %p91, %p92
      %p94 = scmp.ne.s32.totalorder %s82, %s83
      %p95 = scmp.eq.s32.totalorder %s26, 1
      %p96 = por %p94, %p95
      %p98 = scmp.ne.s32.totalorder %s83, %s97
      %p99 = scmp.eq.s32.totalorder %s26, 0
      %p100 = por %p98, %p99
      %s102 = sadd.s32 %s101, 1
      %p105 = scmp.eq.s32.totalorder %s20, 1
      %p106 = scmp.ne.s32.totalorder %s101, %s103
      %p107 = scmp.eq.s32.totalorder %s20, 0
      %p108 = por %p106, %p107
      %p109 = scmp.ne.s32.totalorder %s101, %s103
      %p110 = scmp.eq.s32.totalorder %s25, 1
      %p111 = por %p109, %p110
      %p112 = scmp.ne.s32.totalorder %s103, %s104
      %p113 = scmp.eq.s32.totalorder %s25, 0
      %p114 = por %p112, %p113
      %p115 = scmp.ne.s32.totalorder %s103, %s104
      %p116 = scmp.eq.s32.totalorder %s26, 1
      %p117 = por %p115, %p116
      %p119 = scmp.ne.s32.totalorder %s104, %s118
      %p120 = scmp.eq.s32.totalorder %s26, 0
      %p121 = por %p119, %p120
      %s123 = sadd.s32 %s122, 1
      %p126 = scmp.eq.s32.totalorder %s20, 1
      %p127 = scmp.ne.s32.totalorder %s122, %s124
      %p128 = scmp.eq.s32.totalorder %s20, 0
      %p129 = por %p127, %p128
      %p130 = scmp.ne.s32.totalorder %s122, %s124
      %p131 = scmp.eq.s32.totalorder %s25, 1
      %p132 = por %p130, %p131
      %p133 = scmp.ne.s32.totalorder %s124, %s125
      %p134 = scmp.eq.s32.totalorder %s25, 0
      %p135 = por %p133, %p134
      %p136 = scmp.ne.s32.totalorder %s124, %s125
      %p137 = scmp.eq.s32.totalorder %s26, 1
      %p138 = por %p136, %p137
      %p140 = scmp.ne.s32.totalorder %s125, %s139
      %p141 = scmp.eq.s32.totalorder %s26, 0
      %p142 = por %p140, %p141
      %s144 = sadd.s32 %s143, 1
      %p147 = scmp.eq.s32.totalorder %s20, 1
      %p148 = scmp.ne.s32.totalorder %s143, %s145
      %p149 = scmp.eq.s32.totalorder %s20, 0
      %p150 = por %p148, %p149
      %p151 = scmp.ne.s32.totalorder %s143, %s145
      %p152 = scmp.eq.s32.totalorder %s25, 1
      %p153 = por %p151, %p152
      %p154 = scmp.ne.s32.totalorder %s145, %s146
      %p155 = scmp.eq.s32.totalorder %s25, 0
      %p156 = por %p154, %p155
      %p157 = scmp.ne.s32.totalorder %s145, %s146
      %p158 = scmp.eq.s32.totalorder %s26, 1
      %p159 = por %p157, %p158
      %p161 = scmp.ne.s32.totalorder %s146, %s160
      %p162 = scmp.eq.s32.totalorder %s26, 0
      %p163 = por %p161, %p162
      %s164 = ssub.s32 %s20, %s27
      %p165 = scmp.eq.s32.totalorder %s164, 0
      %s167 = sadd.s32 %s166, 1
      %s168 = scalar_select %p165, %s166, %s167
      %p171 = pneg %p165
      %p172 = scmp.eq.s32.totalorder %s20, 1
      %p173 = por %p171, %p172
      %p174 = scmp.ne.s32.totalorder %s166, %s169
      %p175 = scmp.eq.s32.totalorder %s20, 0
      %p176 = por %p174, %p175
      %p177 = scmp.ne.s32.totalorder %s166, %s169
      %p178 = scmp.eq.s32.totalorder %s25, 1
      %p179 = por %p177, %p178
      %p180 = scmp.ne.s32.totalorder %s169, %s170
      %p181 = scmp.eq.s32.totalorder %s25, 0
      %p182 = por %p180, %p181
      %p183 = scmp.ne.s32.totalorder %s169, %s170
      %p184 = scmp.eq.s32.totalorder %s26, 1
      %p185 = por %p183, %p184
      %p187 = scmp.ne.s32.totalorder %s170, %s186
      %p188 = scmp.eq.s32.totalorder %s26, 0
      %p189 = por %p187, %p188
      %p190 = scmp.le.s32.totalorder 1, %s20
      %p191 = scmp.lt.s32.totalorder %s20, 3
      %p192 = pnand %p190, %p191
      %p193 = pneg %p192
      // Predicated region
      $region9: #{tpu_custom_call.1} parent=5 // pred_check
        _
      $region10: #{tpu_custom_call.1} parent=5 // pred_check_branch
        %195 = sbr.rel (%p192) target = $region12
      $region11: #{tpu_custom_call.1} parent=5 // pred_region
        %s196 = ssub.s32 %s20, 1
        // Predicated region
        $region13: #{tpu_custom_call.1} parent=11 // pred_check
          %p197 = pneg %p93
        $region14: #{tpu_custom_call.1} parent=11 // pred_check_branch
          %199 = sbr.rel (%p197) target = $region16
        $region15: #{tpu_custom_call.1} parent=11 // pred_region
          %s201 = ssub.s32 36864, 36864
          %202 = vsyncadd [#allocation9], %s201
          %s203 = sshll.u32 [#allocation8], 4
          %s204 = int_to_ptr.vmem [resolvable:$true] %s203
          %209 = dma.hbm_to_vmem [thread:$0]  %s2, 36864, %s204, [#allocation9], 128, 128, 8
        $region16: #{tpu_custom_call.1} parent=11 // pred_fallthru
          _
        // Predicated region
        $region17: #{tpu_custom_call.1} parent=11 // pred_check
          %p210 = pneg %p114
        $region18: #{tpu_custom_call.1} parent=11 // pred_check_branch
          %212 = sbr.rel (%p210) target = $region20
        $region19: #{tpu_custom_call.1} parent=11 // pred_region
          %s214 = ssub.s32 32, 32
          %215 = vsyncadd [#allocation9], %s214
          %s217 = sshll.u32 [#allocation10], 4
          %s218 = int_to_ptr.vmem [resolvable:$true] %s217
          %220 = dma.hbm_to_vmem [thread:$0]  %s3, 32, %s218, [#allocation9]
        $region20: #{tpu_custom_call.1} parent=11 // pred_fallthru
          _
        // Predicated region
        $region21: #{tpu_custom_call.1} parent=11 // pred_check
          %p221 = pneg %p135
        $region22: #{tpu_custom_call.1} parent=11 // pred_check_branch
          %223 = sbr.rel (%p221) target = $region24
        $region23: #{tpu_custom_call.1} parent=11 // pred_region
          %s225 = ssub.s32 36864, 36864
          %226 = vsyncadd [#allocation12], %s225
          %s227 = sshll.u32 [#allocation11], 4
          %s228 = int_to_ptr.vmem [resolvable:$true] %s227
          %233 = dma.hbm_to_vmem [thread:$0]  %s4, 36864, %s228, [#allocation12], 128, 128, 8
        $region24: #{tpu_custom_call.1} parent=11 // pred_fallthru
          _
        // Predicated region
        $region25: #{tpu_custom_call.1} parent=11 // pred_check
          %p234 = pneg %p156
        $region26: #{tpu_custom_call.1} parent=11 // pred_check_branch
          %236 = sbr.rel (%p234) target = $region28
        $region27: #{tpu_custom_call.1} parent=11 // pred_region
          %s238 = ssub.s32 32, 32
          %239 = vsyncadd [#allocation12], %s238
          %s241 = sshll.u32 [#allocation13], 4
          %s242 = int_to_ptr.vmem [resolvable:$true] %s241
          %244 = dma.hbm_to_vmem [thread:$0]  %s5, 32, %s242, [#allocation12]
        $region28: #{tpu_custom_call.1} parent=11 // pred_fallthru
          _
      $region12: #{tpu_custom_call.1} parent=5 // pred_fallthru
        _
      %p245 = scmp.lt.s32.totalorder %s20, 2
      // Predicated region
      $region29: #{tpu_custom_call.1} parent=5 // pred_check
        %p246 = pneg %p245
      $region30: #{tpu_custom_call.1} parent=5 // pred_check_branch
        %248 = sbr.rel (%p246) target = $region32
      $region31: #{tpu_custom_call.1} parent=5 // pred_region
        // Predicated region
        $region33: #{tpu_custom_call.1} parent=31 // pred_check
          %p249 = pneg %p40
        $region34: #{tpu_custom_call.1} parent=31 // pred_check_branch
          %251 = sbr.rel (%p249) target = $region36
        $region35: #{tpu_custom_call.1} parent=31 // pred_region
          %s252 = sand.u32 %s30, 1
          %s253 = scalar_lea.sflag [#allocation6], %s252
          %s254 = sand.u32 %s30, 1
          %s255 = smul.addr %s254, 128
          %s256 = scalar_lea.vmem [#allocation5], %s255
          %s258 = ssub.s32 2048, 2048
          %259 = vsyncadd %s253, %s258
          %s260 = smul.addr %s20, 16
          %s261 = smul.addr %s260, 128
          %s262 = scalar_lea.hbm %s0, %s261
          %s263 = sshll.u32 %s256, 4
          %s264 = int_to_ptr.vmem [resolvable:$true] %s263
          %269 = dma.hbm_to_vmem [thread:$0]  %s262, 2048, %s264, %s253, 256, 256, 16
        $region36: #{tpu_custom_call.1} parent=31 // pred_fallthru
          _
        // Predicated region
        $region37: #{tpu_custom_call.1} parent=31 // pred_check
          %p270 = pneg %p66
        $region38: #{tpu_custom_call.1} parent=31 // pred_check_branch
          %272 = sbr.rel (%p270) target = $region40
        $region39: #{tpu_custom_call.1} parent=31 // pred_region
          %p273 = scmp.lt.s32.totalorder %s20, 1
          %s274 = scalar_select %p273, %s20, 1
          %s275 = smul.addr %s274, 8
          %s276 = smul.addr %s275, 8
          %s277 = scalar_lea.vmem %s1, %s276
        $region40: #{tpu_custom_call.1} parent=31 // pred_fallthru
          _
      $region32: #{tpu_custom_call.1} parent=5 // pred_fallthru
        _
      %p278 = scmp.le.s32.totalorder 1, %s20
      %p279 = scmp.lt.s32.totalorder %s20, 3
      %p280 = pnand %p278, %p279
      %p281 = pneg %p280
      // Predicated region
      $region41: #{tpu_custom_call.1} parent=5 // pred_check
        _
      $region42: #{tpu_custom_call.1} parent=5 // pred_check_branch
        %283 = sbr.rel (%p280) target = $region44
      $region43: #{tpu_custom_call.1} parent=5 // pred_region
        %s284 = ssub.s32 %s20, 1
        %s285 = sand.u32 %s33, 1
        %s286 = scalar_lea.sflag [#allocation6], %s285
        %s287 = sand.u32 %s33, 1
        %s288 = smul.addr %s287, 128
        %s289 = scalar_lea.vmem [#allocation5], %s288
        // Predicated region
        $region45: #{tpu_custom_call.1} parent=43 // pred_check
          %p290 = pneg %p46
        $region46: #{tpu_custom_call.1} parent=43 // pred_check_branch
          %292 = sbr.rel (%p290) target = $region48
        $region47: #{tpu_custom_call.1} parent=43 // pred_region
          %293 = dma.done %s286, 2048
        $region48: #{tpu_custom_call.1} parent=43 // pred_fallthru
          _
        // Predicated region
        $region49: #{tpu_custom_call.1} parent=43 // pred_check
          %p294 = pneg %p93
        $region50: #{tpu_custom_call.1} parent=43 // pred_check_branch
          %296 = sbr.rel (%p294) target = $region52
        $region51: #{tpu_custom_call.1} parent=43 // pred_region
          %297 = dma.done [#allocation9], 36864
        $region52: #{tpu_custom_call.1} parent=43 // pred_fallthru
          _
        // Predicated region
        $region53: #{tpu_custom_call.1} parent=43 // pred_check
          %p298 = pneg %p114
        $region54: #{tpu_custom_call.1} parent=43 // pred_check_branch
          %300 = sbr.rel (%p298) target = $region56
        $region55: #{tpu_custom_call.1} parent=43 // pred_region
          %301 = dma.done [#allocation9], 32
        $region56: #{tpu_custom_call.1} parent=43 // pred_fallthru
          _
        // Predicated region
        $region57: #{tpu_custom_call.1} parent=43 // pred_check
          %p302 = pneg %p135
        $region58: #{tpu_custom_call.1} parent=43 // pred_check_branch
          %304 = sbr.rel (%p302) target = $region60
        $region59: #{tpu_custom_call.1} parent=43 // pred_region
          %305 = dma.done [#allocation12], 36864
        $region60: #{tpu_custom_call.1} parent=43 // pred_fallthru
          _
        // Predicated region
        $region61: #{tpu_custom_call.1} parent=43 // pred_check
          %p306 = pneg %p156
        $region62: #{tpu_custom_call.1} parent=43 // pred_check_branch
          %308 = sbr.rel (%p306) target = $region64
        $region63: #{tpu_custom_call.1} parent=43 // pred_region
          %309 = dma.done [#allocation12], 32
        $region64: #{tpu_custom_call.1} parent=43 // pred_fallthru
          _
        %s310 = sand.u32 %s33, 1
        %s311 = scalar_lea.sflag [#allocation6], %s310
        %s312 = sand.u32 %s33, 1
        %s313 = smul.addr %s312, 128
        %s314 = scalar_lea.vmem [#allocation5], %s313
        %p315 = pneg %p46
        %p316 = pneg %p43
        %p317 = scmp.lt.s32.totalorder %s25, 1
        %s318 = scalar_select %p317, %s25, 1
        %s319 = smul.addr %s318, 8
        %s320 = smul.addr %s319, 8
        %s321 = scalar_lea.vmem %s1, %s320
        %p322 = pneg %p72
        %p323 = pneg %p69
        %p324 = pneg %p93
        %p325 = pneg %p90
        %p326 = pneg %p114
        %p327 = pneg %p111
        %p328 = pneg %p135
        %p329 = pneg %p132
        %p330 = pneg %p156
        %p331 = pneg %p153
        %p332 = pneg %p182
        %p333 = pneg %p179
        %s334 = sand.u32 %s169, 1
        %s335 = scalar_lea.sflag [#allocation7], %s334
        %s336 = sand.u32 %s169, 1
        %s337 = smul.addr %s336, 128
        %s338 = scalar_lea.vmem [#allocation14], %s337
        %p339 = scmp.lt.s32.totalorder %s25, 1
        %s340 = scalar_select %p339, %s25, 1
        %s341 = smul.addr %s340, 8
        %s342 = smul.addr %s341, 8
        %s343 = scalar_lea.vmem %s1, %s342
        %345 = vst [vmem:[#allocation2] sm:$0xff] 0
        %346 = vst [vmem:[#allocation2 + $0x8] sm:$0x11] 0
        %s347 = scalar_lea.vmem [#allocation2], 144
        %348 = vst [vmem:[%s347] sm:$0xff] 0
        %349 = vst [vmem:[%s347 + $0x8] sm:$0x11] 0
        %vm350 = vcmask 1040384
        %vm351 = vsmask.f32 256
        %vm352 = vmand %vm350, %vm351
        %vm353 = vcmask 1044484
        %vm354 = vsmask.f32 4352
        %vm355 = vmand %vm353, %vm354
        %vm356 = vmor %vm355, %vm352
        %v357 = vld [vmem:[#allocation2] sm:$0x11]
        %v358 = vsel %vm356, 0, %v357
        %359 = vst [vmem:[#allocation2] sm:$0x11] %v358
        %v360 = vld [vmem:[#allocation2 + $0x10] sm:$0x11]
        %v361 = vsel %vm356, 0, %v360
        %362 = vst [vmem:[#allocation2 + $0x10] sm:$0x11] %v361
        %v363 = vld [vmem:[#allocation2 + $0x20] sm:$0x11]
        %v364 = vsel %vm356, 0, %v363
        %365 = vst [vmem:[#allocation2 + $0x20] sm:$0x11] %v364
        %v366 = vld [vmem:[#allocation2 + $0x30] sm:$0x11]
        %v367 = vsel %vm356, 0, %v366
        %368 = vst [vmem:[#allocation2 + $0x30] sm:$0x11] %v367
        %v369 = vld [vmem:[#allocation2 + $0x40] sm:$0x11]
        %v370 = vsel %vm356, 0, %v369
        %371 = vst [vmem:[#allocation2 + $0x40] sm:$0x11] %v370
        %v372 = vld [vmem:[#allocation2 + $0x50] sm:$0x11]
        %v373 = vsel %vm356, 0, %v372
        %374 = vst [vmem:[#allocation2 + $0x50] sm:$0x11] %v373
        %v375 = vld [vmem:[#allocation2 + $0x60] sm:$0x11]
        %v376 = vsel %vm356, 0, %v375
        %377 = vst [vmem:[#allocation2 + $0x60] sm:$0x11] %v376
        %v378 = vld [vmem:[#allocation2 + $0x70] sm:$0x11]
        %v379 = vsel %vm356, 0, %v378
        %380 = vst [vmem:[#allocation2 + $0x70] sm:$0x11] %v379
        %v381 = vld [vmem:[#allocation2 + $0x80] sm:$0x11]
        %v382 = vsel %vm356, 0, %v381
        %383 = vst [vmem:[#allocation2 + $0x80] sm:$0x11] %v382
        %v384 = vld [vmem:[#allocation2 + $0x90] sm:$0x11]
        %v385 = vsel %vm356, 0, %v384
        %386 = vst [vmem:[#allocation2 + $0x90] sm:$0x11] %v385
        %vm387 = vsmask.f32 7938
        %vm388 = vmand %vm350, %vm387
        %vm389 = vsmask.f32 7954
        %vm390 = vmand %vm353, %vm389
        %vm391 = vmor %vm390, %vm388
        %v392 = vld [vmem:[#allocation2 + $0x8] sm:$0x11]
        %v393 = vsel %vm391, 0, %v392
        %394 = vst [vmem:[#allocation2 + $0x8] sm:$0x11] %v393
        %v395 = vld [vmem:[#allocation2 + $0x18] sm:$0x11]
        %v396 = vsel %vm391, 0, %v395
        %397 = vst [vmem:[#allocation2 + $0x18] sm:$0x11] %v396
        %v398 = vld [vmem:[#allocation2 + $0x28] sm:$0x11]
        %v399 = vsel %vm391, 0, %v398
        %400 = vst [vmem:[#allocation2 + $0x28] sm:$0x11] %v399
        %v401 = vld [vmem:[#allocation2 + $0x38] sm:$0x11]
        %v402 = vsel %vm391, 0, %v401
        %403 = vst [vmem:[#allocation2 + $0x38] sm:$0x11] %v402
        %v404 = vld [vmem:[#allocation2 + $0x48] sm:$0x11]
        %v405 = vsel %vm391, 0, %v404
        %406 = vst [vmem:[#allocation2 + $0x48] sm:$0x11] %v405
        %v407 = vld [vmem:[#allocation2 + $0x58] sm:$0x11]
        %v408 = vsel %vm391, 0, %v407
        %409 = vst [vmem:[#allocation2 + $0x58] sm:$0x11] %v408
        %v410 = vld [vmem:[#allocation2 + $0x68] sm:$0x11]
        %v411 = vsel %vm391, 0, %v410
        %412 = vst [vmem:[#allocation2 + $0x68] sm:$0x11] %v411
        %v413 = vld [vmem:[#allocation2 + $0x78] sm:$0x11]
        %v414 = vsel %vm391, 0, %v413
        %415 = vst [vmem:[#allocation2 + $0x78] sm:$0x11] %v414
        %v416 = vld [vmem:[#allocation2 + $0x88] sm:$0x11]
        %v417 = vsel %vm391, 0, %v416
        %418 = vst [vmem:[#allocation2 + $0x88] sm:$0x11] %v417
        %v419 = vld [vmem:[#allocation2 + $0x98] sm:$0x11]
        %v420 = vsel %vm391, 0, %v419
        %421 = vst [vmem:[#allocation2 + $0x98] sm:$0x11] %v420
        %v422 = vld [vmem:[%s289] sm:$0xff]
        %v423 = vld [vmem:[%s289 + $0x8] sm:$0xff]
        %v424 = vld [vmem:[%s289 + $0x10] sm:$0xff]
        %v425 = vld [vmem:[%s289 + $0x18] sm:$0xff]
        %v426 = vld [vmem:[%s289 + $0x20] sm:$0xff]
        %v427 = vld [vmem:[%s289 + $0x28] sm:$0xff]
        %v428 = vld [vmem:[%s289 + $0x30] sm:$0xff]
        %v429 = vld [vmem:[%s289 + $0x38] sm:$0xff]
        %v430 = vld [vmem:[%s289 + $0x40] sm:$0xff]
        %v431 = vld [vmem:[%s289 + $0x48] sm:$0xff]
        %v432 = vld [vmem:[%s289 + $0x50] sm:$0xff]
        %v433 = vld [vmem:[%s289 + $0x58] sm:$0xff]
        %v434 = vld [vmem:[%s289 + $0x60] sm:$0xff]
        %v435 = vld [vmem:[%s289 + $0x68] sm:$0xff]
        %v436 = vld [vmem:[%s289 + $0x70] sm:$0xff]
        %v437 = vld [vmem:[%s289 + $0x78] sm:$0xff]
        %v438 = vld [vmem:[%s343] sm:$0xff]
        %v439 = vld [vmem:[%s343 + $0x8] sm:$0xff]
        %v440 = vld [vmem:[%s343 + $0x10] sm:$0xff]
        %v441 = vld [vmem:[%s343 + $0x18] sm:$0xff]
        %v442 = vld [vmem:[%s343 + $0x20] sm:$0xff]
        %v443 = vld [vmem:[%s343 + $0x28] sm:$0xff]
        %v444 = vld [vmem:[%s343 + $0x30] sm:$0xff]
        %v445 = vld [vmem:[%s343 + $0x38] sm:$0xff]
        %447 = vset.pattern.permute.xlu0 0
        %448 = vperm.xlu0 %447, %v438
        %v449 = vpop.permute.xlu0 %448
        %452 = vset.pattern.permute.xlu0 0
        %453 = vperm.xlu0 %452, %v439
        %v454 = vpop.permute.xlu0 %453
        %457 = vset.pattern.permute.xlu0 0
        %458 = vperm.xlu0 %457, %v440
        %v459 = vpop.permute.xlu0 %458
        %462 = vset.pattern.permute.xlu0 0
        %463 = vperm.xlu0 %462, %v441
        %v464 = vpop.permute.xlu0 %463
        %467 = vset.pattern.permute.xlu0 0
        %468 = vperm.xlu0 %467, %v442
        %v469 = vpop.permute.xlu0 %468
        %472 = vset.pattern.permute.xlu0 0
        %473 = vperm.xlu0 %472, %v443
        %v474 = vpop.permute.xlu0 %473
        %477 = vset.pattern.permute.xlu0 0
        %478 = vperm.xlu0 %477, %v444
        %v479 = vpop.permute.xlu0 %478
        %482 = vset.pattern.permute.xlu0 0
        %483 = vperm.xlu0 %482, %v445
        %v484 = vpop.permute.xlu0 %483
        %v486 = vmul.f32 %v422, %v449
        %v487 = vmul.f32 %v423, %v449
        %v488 = vmul.f32 %v424, %v454
        %v489 = vmul.f32 %v425, %v454
        %v490 = vmul.f32 %v426, %v459
        %v491 = vmul.f32 %v427, %v459
        %v492 = vmul.f32 %v428, %v464
        %v493 = vmul.f32 %v429, %v464
        %v494 = vmul.f32 %v430, %v469
        %v495 = vmul.f32 %v431, %v469
        %v496 = vmul.f32 %v432, %v474
        %v497 = vmul.f32 %v433, %v474
        %v498 = vmul.f32 %v434, %v479
        %v499 = vmul.f32 %v435, %v479
        %v500 = vmul.f32 %v436, %v484
        %v501 = vmul.f32 %v437, %v484
        %v502 = vpack.c.bf16 %v486, %v486
        %v503 = vpack.c.bf16 %v487, %v487
        %v504 = vpack.c.bf16 %v488, %v488
        %v505 = vpack.c.bf16 %v489, %v489
        %v506 = vpack.c.bf16 %v490, %v490
        %v507 = vpack.c.bf16 %v491, %v491
        %v508 = vpack.c.bf16 %v492, %v492
        %v509 = vpack.c.bf16 %v493, %v493
        %v510 = vpack.c.bf16 %v494, %v494
        %v511 = vpack.c.bf16 %v495, %v495
        %v512 = vpack.c.bf16 %v496, %v496
        %v513 = vpack.c.bf16 %v497, %v497
        %v514 = vpack.c.bf16 %v498, %v498
        %v515 = vpack.c.bf16 %v499, %v499
        %v516 = vpack.c.bf16 %v500, %v500
        %v517 = vpack.c.bf16 %v501, %v501
        %v534 = vunpack.c.l.b16 %v502
        %v535 = vunpack.c.l.b16 %v503
        %v536 = vunpack.c.l.b16 %v504
        %v537 = vunpack.c.l.b16 %v505
        %v538 = vunpack.c.l.b16 %v506
        %v539 = vunpack.c.l.b16 %v507
        %v540 = vunpack.c.l.b16 %v508
        %v541 = vunpack.c.l.b16 %v509
        %v542 = vunpack.c.l.b16 %v510
        %v543 = vunpack.c.l.b16 %v511
        %v544 = vunpack.c.l.b16 %v512
        %v545 = vunpack.c.l.b16 %v513
        %v546 = vunpack.c.l.b16 %v514
        %v547 = vunpack.c.l.b16 %v515
        %v548 = vunpack.c.l.b16 %v516
        %v549 = vunpack.c.l.b16 %v517
        %v550 = vpack.c.b16 %v535, %v534
        %v551 = vpack.c.b16 %v537, %v536
        %v552 = vpack.c.b16 %v539, %v538
        %v553 = vpack.c.b16 %v541, %v540
        %v554 = vpack.c.b16 %v543, %v542
        %v555 = vpack.c.b16 %v545, %v544
        %v556 = vpack.c.b16 %v547, %v546
        %v557 = vpack.c.b16 %v549, %v548
        %v559 = vshrl.u32 %v550, 16
        %v561 = vrot.slane %v559, 7
        %v562 = vshll.u32 %v550, 16
        %v564 = vor.u32 %v561, %v562
        %v565 = vrot.slane %v561, 4
        %v567 = vshrl.u32 %v551, 16
        %v569 = vrot.slane %v567, 7
        %v570 = vshll.u32 %v551, 16
        %v572 = vor.u32 %v569, %v570
        %v573 = vrot.slane %v569, 4
        %v575 = vshrl.u32 %v552, 16
        %v577 = vrot.slane %v575, 7
        %v578 = vshll.u32 %v552, 16
        %v580 = vor.u32 %v577, %v578
        %v581 = vrot.slane %v577, 4
        %v583 = vshrl.u32 %v553, 16
        %v585 = vrot.slane %v583, 7
        %v586 = vshll.u32 %v553, 16
        %v588 = vor.u32 %v585, %v586
        %v589 = vrot.slane %v585, 4
        %v591 = vshrl.u32 %v554, 16
        %v593 = vrot.slane %v591, 7
        %v594 = vshll.u32 %v554, 16
        %v596 = vor.u32 %v593, %v594
        %v597 = vrot.slane %v593, 4
        %v599 = vshrl.u32 %v555, 16
        %v601 = vrot.slane %v599, 7
        %v602 = vshll.u32 %v555, 16
        %v604 = vor.u32 %v601, %v602
        %v605 = vrot.slane %v601, 4
        %v607 = vshrl.u32 %v556, 16
        %v609 = vrot.slane %v607, 7
        %v610 = vshll.u32 %v556, 16
        %v612 = vor.u32 %v609, %v610
        %v613 = vrot.slane %v609, 4
        %v615 = vshrl.u32 %v557, 16
        %v617 = vrot.slane %v615, 7
        %v618 = vshll.u32 %v557, 16
        %v620 = vor.u32 %v617, %v618
        %v621 = vrot.slane %v617, 4
        %s638 = scalar_lea.vmem [#allocation2], 16
        %vm639 = vcmask 1043456
        %vm640 = vmand %vm639, %vm387
        %vm641 = vcmask 1047556
        %vm642 = vmand %vm641, %vm389
        %vm643 = vmor %vm642, %vm640
        %v644 = vld [vmem:[%s638] sm:$0xff]
        %v645 = vsel %vm643, %v564, %v644
        %646 = vst [vmem:[%s638] sm:$0xff] %v645
        %v647 = vld [vmem:[%s638 + $0x8] sm:$0x11]
        %v648 = vsel %vm356, %v565, %v647
        %649 = vst [vmem:[%s638 + $0x8] sm:$0x11] %v648
        %v650 = vld [vmem:[%s638 + $0x10] sm:$0xff]
        %v651 = vsel %vm643, %v572, %v650
        %652 = vst [vmem:[%s638 + $0x10] sm:$0xff] %v651
        %v653 = vld [vmem:[%s638 + $0x18] sm:$0x11]
        %v654 = vsel %vm356, %v573, %v653
        %655 = vst [vmem:[%s638 + $0x18] sm:$0x11] %v654
        %v656 = vld [vmem:[%s638 + $0x20] sm:$0xff]
        %v657 = vsel %vm643, %v580, %v656
        %658 = vst [vmem:[%s638 + $0x20] sm:$0xff] %v657
        %v659 = vld [vmem:[%s638 + $0x28] sm:$0x11]
        %v660 = vsel %vm356, %v581, %v659
        %661 = vst [vmem:[%s638 + $0x28] sm:$0x11] %v660
        %v662 = vld [vmem:[%s638 + $0x30] sm:$0xff]
        %v663 = vsel %vm643, %v588, %v662
        %664 = vst [vmem:[%s638 + $0x30] sm:$0xff] %v663
        %v665 = vld [vmem:[%s638 + $0x38] sm:$0x11]
        %v666 = vsel %vm356, %v589, %v665
        %667 = vst [vmem:[%s638 + $0x38] sm:$0x11] %v666
        %v668 = vld [vmem:[%s638 + $0x40] sm:$0xff]
        %v669 = vsel %vm643, %v596, %v668
        %670 = vst [vmem:[%s638 + $0x40] sm:$0xff] %v669
        %v671 = vld [vmem:[%s638 + $0x48] sm:$0x11]
        %v672 = vsel %vm356, %v597, %v671
        %673 = vst [vmem:[%s638 + $0x48] sm:$0x11] %v672
        %v674 = vld [vmem:[%s638 + $0x50] sm:$0xff]
        %v675 = vsel %vm643, %v604, %v674
        %676 = vst [vmem:[%s638 + $0x50] sm:$0xff] %v675
        %v677 = vld [vmem:[%s638 + $0x58] sm:$0x11]
        %v678 = vsel %vm356, %v605, %v677
        %679 = vst [vmem:[%s638 + $0x58] sm:$0x11] %v678
        %v680 = vld [vmem:[%s638 + $0x60] sm:$0xff]
        %v681 = vsel %vm643, %v612, %v680
        %682 = vst [vmem:[%s638 + $0x60] sm:$0xff] %v681
        %v683 = vld [vmem:[%s638 + $0x68] sm:$0x11]
        %v684 = vsel %vm356, %v613, %v683
        %685 = vst [vmem:[%s638 + $0x68] sm:$0x11] %v684
        %v686 = vld [vmem:[%s638 + $0x70] sm:$0xff]
        %v687 = vsel %vm643, %v620, %v686
        %688 = vst [vmem:[%s638 + $0x70] sm:$0xff] %v687
        %v689 = vld [vmem:[%s638 + $0x78] sm:$0x11]
        %v690 = vsel %vm356, %v621, %v689
        %691 = vst [vmem:[%s638 + $0x78] sm:$0x11] %v690
        %v692 = vld [vmem:[#allocation2] sm:$0xff]
        %v693 = vld [vmem:[#allocation2 + $0x10] sm:$0xff]
        %v694 = vld [vmem:[#allocation2 + $0x20] sm:$0xff]
        %v695 = vld [vmem:[#allocation2 + $0x30] sm:$0xff]
        %v696 = vld [vmem:[#allocation2 + $0x40] sm:$0xff]
        %v697 = vld [vmem:[#allocation2 + $0x50] sm:$0xff]
        %v698 = vld [vmem:[#allocation2 + $0x60] sm:$0xff]
        %v699 = vld [vmem:[#allocation2 + $0x70] sm:$0xff]
        %v700 = vld [vmem:[#allocation2 + $0x80] sm:$0xff]
        %v701 = vld [vmem:[#allocation2 + $0x90] sm:$0xff]
        %702 = vst [vmem:[#allocation3] sm:$0xff] %v692
        %703 = vst [vmem:[#allocation3 + $0x18] sm:$0xff] %v693
        %704 = vst [vmem:[#allocation3 + $0x30] sm:$0xff] %v694
        %705 = vst [vmem:[#allocation3 + $0x48] sm:$0xff] %v695
        %706 = vst [vmem:[#allocation3 + $0x60] sm:$0xff] %v696
        %707 = vst [vmem:[#allocation3 + $0x78] sm:$0xff] %v697
        %708 = vst [vmem:[#allocation3 + $0x90] sm:$0xff] %v698
        %709 = vst [vmem:[#allocation3 + $0xa8] sm:$0xff] %v699
        %710 = vst [vmem:[#allocation3 + $0xc0] sm:$0xff] %v700
        %711 = vst [vmem:[#allocation3 + $0xd8] sm:$0xff] %v701
        %v712 = vld [vmem:[#allocation2] sm:$0xff]
        %v713 = vld [vmem:[#allocation2 + $0x8] sm:$0x11]
        %v714 = vld [vmem:[#allocation2 + $0x10] sm:$0xff]
        %v715 = vld [vmem:[#allocation2 + $0x18] sm:$0x11]
        %v716 = vld [vmem:[#allocation2 + $0x20] sm:$0xff]
        %v717 = vld [vmem:[#allocation2 + $0x28] sm:$0x11]
        %v718 = vld [vmem:[#allocation2 + $0x30] sm:$0xff]
        %v719 = vld [vmem:[#allocation2 + $0x38] sm:$0x11]
        %v720 = vld [vmem:[#allocation2 + $0x40] sm:$0xff]
        %v721 = vld [vmem:[#allocation2 + $0x48] sm:$0x11]
        %v722 = vld [vmem:[#allocation2 + $0x50] sm:$0xff]
        %v723 = vld [vmem:[#allocation2 + $0x58] sm:$0x11]
        %v724 = vld [vmem:[#allocation2 + $0x60] sm:$0xff]
        %v725 = vld [vmem:[#allocation2 + $0x68] sm:$0x11]
        %v726 = vld [vmem:[#allocation2 + $0x70] sm:$0xff]
        %v727 = vld [vmem:[#allocation2 + $0x78] sm:$0x11]
        %v728 = vld [vmem:[#allocation2 + $0x80] sm:$0xff]
        %v729 = vld [vmem:[#allocation2 + $0x88] sm:$0x11]
        %v730 = vld [vmem:[#allocation2 + $0x90] sm:$0xff]
        %v731 = vld [vmem:[#allocation2 + $0x98] sm:$0x11]
        %vm732 = vsmask.f32 3328
        %vm733 = vsmask.f32 7440
        %vm734 = vmor %vm732, %vm733
        %v736 = vshrl.u32 %v712, 16
        %v738 = vrot.slane %v736, 4
        %v739 = vshll.u32 %v712, 16
        %v741 = vrot.slane %v739, 5
        %v742 = vor.u32 %v738, %v741
        %v743 = vrot.slane %v742, 4
        %v745 = vshll.u32 %v713, 16
        %v747 = vrot.slane %v745, 5
        %v748 = vsel %vm734, %v743, %v747
        %v750 = vshrl.u32 %v714, 16
        %v752 = vrot.slane %v750, 4
        %v753 = vshll.u32 %v714, 16
        %v755 = vrot.slane %v753, 5
        %v756 = vor.u32 %v752, %v755
        %v757 = vrot.slane %v756, 4
        %v759 = vshll.u32 %v715, 16
        %v761 = vrot.slane %v759, 5
        %v762 = vsel %vm734, %v757, %v761
        %v764 = vshrl.u32 %v716, 16
        %v766 = vrot.slane %v764, 4
        %v767 = vshll.u32 %v716, 16
        %v769 = vrot.slane %v767, 5
        %v770 = vor.u32 %v766, %v769
        %v771 = vrot.slane %v770, 4
        %v773 = vshll.u32 %v717, 16
        %v775 = vrot.slane %v773, 5
        %v776 = vsel %vm734, %v771, %v775
        %v778 = vshrl.u32 %v718, 16
        %v780 = vrot.slane %v778, 4
        %v781 = vshll.u32 %v718, 16
        %v783 = vrot.slane %v781, 5
        %v784 = vor.u32 %v780, %v783
        %v785 = vrot.slane %v784, 4
        %v787 = vshll.u32 %v719, 16
        %v789 = vrot.slane %v787, 5
        %v790 = vsel %vm734, %v785, %v789
        %v792 = vshrl.u32 %v720, 16
        %v794 = vrot.slane %v792, 4
        %v795 = vshll.u32 %v720, 16
        %v797 = vrot.slane %v795, 5
        %v798 = vor.u32 %v794, %v797
        %v799 = vrot.slane %v798, 4
        %v801 = vshll.u32 %v721, 16
        %v803 = vrot.slane %v801, 5
        %v804 = vsel %vm734, %v799, %v803
        %v806 = vshrl.u32 %v722, 16
        %v808 = vrot.slane %v806, 4
        %v809 = vshll.u32 %v722, 16
        %v811 = vrot.slane %v809, 5
        %v812 = vor.u32 %v808, %v811
        %v813 = vrot.slane %v812, 4
        %v815 = vshll.u32 %v723, 16
        %v817 = vrot.slane %v815, 5
        %v818 = vsel %vm734, %v813, %v817
        %v820 = vshrl.u32 %v724, 16
        %v822 = vrot.slane %v820, 4
        %v823 = vshll.u32 %v724, 16
        %v825 = vrot.slane %v823, 5
        %v826 = vor.u32 %v822, %v825
        %v827 = vrot.slane %v826, 4
        %v829 = vshll.u32 %v725, 16
        %v831 = vrot.slane %v829, 5
        %v832 = vsel %vm734, %v827, %v831
        %v834 = vshrl.u32 %v726, 16
        %v836 = vrot.slane %v834, 4
        %v837 = vshll.u32 %v726, 16
        %v839 = vrot.slane %v837, 5
        %v840 = vor.u32 %v836, %v839
        %v841 = vrot.slane %v840, 4
        %v843 = vshll.u32 %v727, 16
        %v845 = vrot.slane %v843, 5
        %v846 = vsel %vm734, %v841, %v845
        %v848 = vshrl.u32 %v728, 16
        %v850 = vrot.slane %v848, 4
        %v851 = vshll.u32 %v728, 16
        %v853 = vrot.slane %v851, 5
        %v854 = vor.u32 %v850, %v853
        %v855 = vrot.slane %v854, 4
        %v857 = vshll.u32 %v729, 16
        %v859 = vrot.slane %v857, 5
        %v860 = vsel %vm734, %v855, %v859
        %v862 = vshrl.u32 %v730, 16
        %v864 = vrot.slane %v862, 4
        %v865 = vshll.u32 %v730, 16
        %v867 = vrot.slane %v865, 5
        %v868 = vor.u32 %v864, %v867
        %v869 = vrot.slane %v868, 4
        %v871 = vshll.u32 %v731, 16
        %v873 = vrot.slane %v871, 5
        %v874 = vsel %vm734, %v869, %v873
        %885 = vst [vmem:[#allocation3 + $0x8] sm:$0xff] %v748
        %886 = vst [vmem:[#allocation3 + $0x20] sm:$0xff] %v762
        %887 = vst [vmem:[#allocation3 + $0x38] sm:$0xff] %v776
        %888 = vst [vmem:[#allocation3 + $0x50] sm:$0xff] %v790
        %889 = vst [vmem:[#allocation3 + $0x68] sm:$0xff] %v804
        %890 = vst [vmem:[#allocation3 + $0x80] sm:$0xff] %v818
        %891 = vst [vmem:[#allocation3 + $0x98] sm:$0xff] %v832
        %892 = vst [vmem:[#allocation3 + $0xb0] sm:$0xff] %v846
        %893 = vst [vmem:[#allocation3 + $0xc8] sm:$0xff] %v860
        %894 = vst [vmem:[#allocation3 + $0xe0] sm:$0xff] %v874
        %v895 = vld [vmem:[#allocation2] sm:$0xee]
        %v896 = vld [vmem:[#allocation2 + $0x8] sm:$0x11]
        %v897 = vld [vmem:[#allocation2 + $0x10] sm:$0xee]
        %v898 = vld [vmem:[#allocation2 + $0x18] sm:$0x11]
        %v899 = vld [vmem:[#allocation2 + $0x20] sm:$0xee]
        %v900 = vld [vmem:[#allocation2 + $0x28] sm:$0x11]
        %v901 = vld [vmem:[#allocation2 + $0x30] sm:$0xee]
        %v902 = vld [vmem:[#allocation2 + $0x38] sm:$0x11]
        %v903 = vld [vmem:[#allocation2 + $0x40] sm:$0xee]
        %v904 = vld [vmem:[#allocation2 + $0x48] sm:$0x11]
        %v905 = vld [vmem:[#allocation2 + $0x50] sm:$0xee]
        %v906 = vld [vmem:[#allocation2 + $0x58] sm:$0x11]
        %v907 = vld [vmem:[#allocation2 + $0x60] sm:$0xee]
        %v908 = vld [vmem:[#allocation2 + $0x68] sm:$0x11]
        %v909 = vld [vmem:[#allocation2 + $0x70] sm:$0xee]
        %v910 = vld [vmem:[#allocation2 + $0x78] sm:$0x11]
        %v911 = vld [vmem:[#allocation2 + $0x80] sm:$0xee]
        %v912 = vld [vmem:[#allocation2 + $0x88] sm:$0x11]
        %v913 = vld [vmem:[#allocation2 + $0x90] sm:$0xee]
        %v914 = vld [vmem:[#allocation2 + $0x98] sm:$0x11]
        %vm935 = vcmask 1042432
        %vm936 = vcmask 1046532
        %vm937 = vmor %vm935, %vm936
        %v938 = vrot.slane %v895, 5
        %v939 = vrot.slane %v938, 4
        %v940 = vrot.slane %v896, 5
        %v941 = vsel %vm937, %v939, %v940
        %v942 = vrot.slane %v897, 5
        %v943 = vrot.slane %v942, 4
        %v944 = vrot.slane %v898, 5
        %v945 = vsel %vm937, %v943, %v944
        %v946 = vrot.slane %v899, 5
        %v947 = vrot.slane %v946, 4
        %v948 = vrot.slane %v900, 5
        %v949 = vsel %vm937, %v947, %v948
        %v950 = vrot.slane %v901, 5
        %v951 = vrot.slane %v950, 4
        %v952 = vrot.slane %v902, 5
        %v953 = vsel %vm937, %v951, %v952
        %v954 = vrot.slane %v903, 5
        %v955 = vrot.slane %v954, 4
        %v956 = vrot.slane %v904, 5
        %v957 = vsel %vm937, %v955, %v956
        %v958 = vrot.slane %v905, 5
        %v959 = vrot.slane %v958, 4
        %v960 = vrot.slane %v906, 5
        %v961 = vsel %vm937, %v959, %v960
        %v962 = vrot.slane %v907, 5
        %v963 = vrot.slane %v962, 4
        %v964 = vrot.slane %v908, 5
        %v965 = vsel %vm937, %v963, %v964
        %v966 = vrot.slane %v909, 5
        %v967 = vrot.slane %v966, 4
        %v968 = vrot.slane %v910, 5
        %v969 = vsel %vm937, %v967, %v968
        %v970 = vrot.slane %v911, 5
        %v971 = vrot.slane %v970, 4
        %v972 = vrot.slane %v912, 5
        %v973 = vsel %vm937, %v971, %v972
        %v974 = vrot.slane %v913, 5
        %v975 = vrot.slane %v974, 4
        %v976 = vrot.slane %v914, 5
        %v977 = vsel %vm937, %v975, %v976
        %988 = vst [vmem:[#allocation3 + $0x10] sm:$0xff] %v941
        %989 = vst [vmem:[#allocation3 + $0x28] sm:$0xff] %v945
        %990 = vst [vmem:[#allocation3 + $0x40] sm:$0xff] %v949
        %991 = vst [vmem:[#allocation3 + $0x58] sm:$0xff] %v953
        %992 = vst [vmem:[#allocation3 + $0x70] sm:$0xff] %v957
        %993 = vst [vmem:[#allocation3 + $0x88] sm:$0xff] %v961
        %994 = vst [vmem:[#allocation3 + $0xa0] sm:$0xff] %v965
        %995 = vst [vmem:[#allocation3 + $0xb8] sm:$0xff] %v969
        %996 = vst [vmem:[#allocation3 + $0xd0] sm:$0xff] %v973
        %997 = vst [vmem:[#allocation3 + $0xe8] sm:$0xff] %v977
        %v998 = vld [vmem:[#allocation3] sm:$0xff]
        %v999 = vld [vmem:[#allocation3 + $0x8] sm:$0xff]
        %v1000 = vld [vmem:[#allocation3 + $0x10] sm:$0xff]
        %v1001 = vld [vmem:[#allocation3 + $0x18] sm:$0xff]
        %v1002 = vld [vmem:[#allocation3 + $0x20] sm:$0xff]
        %v1003 = vld [vmem:[#allocation3 + $0x28] sm:$0xff]
        %v1004 = vld [vmem:[#allocation3 + $0x30] sm:$0xff]
        %v1005 = vld [vmem:[#allocation3 + $0x38] sm:$0xff]
        %v1006 = vld [vmem:[#allocation3 + $0x40] sm:$0xff]
        %v1007 = vld [vmem:[#allocation3 + $0x48] sm:$0xff]
        %v1008 = vld [vmem:[#allocation3 + $0x50] sm:$0xff]
        %v1009 = vld [vmem:[#allocation3 + $0x58] sm:$0xff]
        %v1010 = vld [vmem:[#allocation3 + $0x60] sm:$0xff]
        %v1011 = vld [vmem:[#allocation3 + $0x68] sm:$0xff]
        %v1012 = vld [vmem:[#allocation3 + $0x70] sm:$0xff]
        %v1013 = vld [vmem:[#allocation3 + $0x78] sm:$0xff]
        %v1014 = vld [vmem:[#allocation3 + $0x80] sm:$0xff]
        %v1015 = vld [vmem:[#allocation3 + $0x88] sm:$0xff]
        %v1016 = vld [vmem:[#allocation3 + $0x90] sm:$0xff]
        %v1017 = vld [vmem:[#allocation3 + $0x98] sm:$0xff]
        %v1018 = vld [vmem:[#allocation3 + $0xa0] sm:$0xff]
        %v1019 = vld [vmem:[#allocation3 + $0xa8] sm:$0xff]
        %v1020 = vld [vmem:[#allocation3 + $0xb0] sm:$0xff]
        %v1021 = vld [vmem:[#allocation3 + $0xb8] sm:$0xff]
        %v1022 = vld [vmem:[#allocation8] sm:$0xff]
        %v1023 = vld [vmem:[#allocation8 + $0x8] sm:$0xff]
        %v1024 = vld [vmem:[#allocation8 + $0x10] sm:$0xff]
        %v1025 = vld [vmem:[#allocation8 + $0x18] sm:$0xff]
        %v1026 = vld [vmem:[#allocation8 + $0x20] sm:$0xff]
        %v1027 = vld [vmem:[#allocation8 + $0x28] sm:$0xff]
        %v1028 = vld [vmem:[#allocation8 + $0x30] sm:$0xff]
        %v1029 = vld [vmem:[#allocation8 + $0x38] sm:$0xff]
        %v1030 = vld [vmem:[#allocation8 + $0x40] sm:$0xff]
        %v1031 = vld [vmem:[#allocation8 + $0x48] sm:$0xff]
        %v1032 = vld [vmem:[#allocation8 + $0x50] sm:$0xff]
        %v1033 = vld [vmem:[#allocation8 + $0x58] sm:$0xff]
        %v1034 = vld [vmem:[#allocation8 + $0x60] sm:$0xff]
        %v1035 = vld [vmem:[#allocation8 + $0x68] sm:$0xff]
        %v1036 = vld [vmem:[#allocation8 + $0x70] sm:$0xff]
        %v1037 = vld [vmem:[#allocation8 + $0x78] sm:$0xff]
        %v1038 = vld [vmem:[#allocation8 + $0x80] sm:$0xff]
        %v1039 = vld [vmem:[#allocation8 + $0x88] sm:$0xff]
        %v1040 = vld [vmem:[#allocation8 + $0x90] sm:$0xff]
        %v1041 = vld [vmem:[#allocation8 + $0x98] sm:$0xff]
        %v1042 = vld [vmem:[#allocation8 + $0xa0] sm:$0xff]
        %v1043 = vld [vmem:[#allocation8 + $0xa8] sm:$0xff]
        %v1044 = vld [vmem:[#allocation8 + $0xb0] sm:$0xff]
        %v1045 = vld [vmem:[#allocation8 + $0xb8] sm:$0xff]
        %v1046 = vld [vmem:[#allocation8 + $0xc0] sm:$0xff]
        %v1047 = vld [vmem:[#allocation8 + $0xc8] sm:$0xff]
        %v1048 = vld [vmem:[#allocation8 + $0xd0] sm:$0xff]
        %v1049 = vld [vmem:[#allocation8 + $0xd8] sm:$0xff]
        %v1050 = vld [vmem:[#allocation8 + $0xe0] sm:$0xff]
        %v1051 = vld [vmem:[#allocation8 + $0xe8] sm:$0xff]
        %v1052 = vld [vmem:[#allocation8 + $0xf0] sm:$0xff]
        %v1053 = vld [vmem:[#allocation8 + $0xf8] sm:$0xff]
        %v1054 = vld [vmem:[#allocation8 + $0x100] sm:$0xff]
        %v1055 = vld [vmem:[#allocation8 + $0x108] sm:$0xff]
        %v1056 = vld [vmem:[#allocation8 + $0x110] sm:$0xff]
        %v1057 = vld [vmem:[#allocation8 + $0x118] sm:$0xff]
        %v1058 = vld [vmem:[#allocation8 + $0x120] sm:$0xff]
        %v1059 = vld [vmem:[#allocation8 + $0x128] sm:$0xff]
        %v1060 = vld [vmem:[#allocation8 + $0x130] sm:$0xff]
        %v1061 = vld [vmem:[#allocation8 + $0x138] sm:$0xff]
        %v1062 = vld [vmem:[#allocation8 + $0x140] sm:$0xff]
        %v1063 = vld [vmem:[#allocation8 + $0x148] sm:$0xff]
        %v1064 = vld [vmem:[#allocation8 + $0x150] sm:$0xff]
        %v1065 = vld [vmem:[#allocation8 + $0x158] sm:$0xff]
        %v1066 = vld [vmem:[#allocation8 + $0x160] sm:$0xff]
        %v1067 = vld [vmem:[#allocation8 + $0x168] sm:$0xff]
        %v1068 = vld [vmem:[#allocation8 + $0x170] sm:$0xff]
        %v1069 = vld [vmem:[#allocation8 + $0x178] sm:$0xff]
        %v1070 = vld [vmem:[#allocation8 + $0x180] sm:$0xff]
        %v1071 = vld [vmem:[#allocation8 + $0x188] sm:$0xff]
        %v1072 = vld [vmem:[#allocation8 + $0x190] sm:$0xff]
        %v1073 = vld [vmem:[#allocation8 + $0x198] sm:$0xff]
        %v1074 = vld [vmem:[#allocation8 + $0x1a0] sm:$0xff]
        %v1075 = vld [vmem:[#allocation8 + $0x1a8] sm:$0xff]
        %v1076 = vld [vmem:[#allocation8 + $0x1b0] sm:$0xff]
        %v1077 = vld [vmem:[#allocation8 + $0x1b8] sm:$0xff]
        %v1078 = vld [vmem:[#allocation8 + $0x1c0] sm:$0xff]
        %v1079 = vld [vmem:[#allocation8 + $0x1c8] sm:$0xff]
        %v1080 = vld [vmem:[#allocation8 + $0x1d0] sm:$0xff]
        %v1081 = vld [vmem:[#allocation8 + $0x1d8] sm:$0xff]
        %v1082 = vld [vmem:[#allocation8 + $0x1e0] sm:$0xff]
        %v1083 = vld [vmem:[#allocation8 + $0x1e8] sm:$0xff]
        %v1084 = vld [vmem:[#allocation8 + $0x1f0] sm:$0xff]
        %v1085 = vld [vmem:[#allocation8 + $0x1f8] sm:$0xff]
        %v1086 = vld [vmem:[#allocation8 + $0x200] sm:$0xff]
        %v1087 = vld [vmem:[#allocation8 + $0x208] sm:$0xff]
        %v1088 = vld [vmem:[#allocation8 + $0x210] sm:$0xff]
        %v1089 = vld [vmem:[#allocation8 + $0x218] sm:$0xff]
        %v1090 = vld [vmem:[#allocation8 + $0x220] sm:$0xff]
        %v1091 = vld [vmem:[#allocation8 + $0x228] sm:$0xff]
        %v1092 = vld [vmem:[#allocation8 + $0x230] sm:$0xff]
        %v1093 = vld [vmem:[#allocation8 + $0x238] sm:$0xff]
        %v1094 = vld [vmem:[#allocation8 + $0x240] sm:$0xff]
        %v1095 = vld [vmem:[#allocation8 + $0x248] sm:$0xff]
        %v1096 = vld [vmem:[#allocation8 + $0x250] sm:$0xff]
        %v1097 = vld [vmem:[#allocation8 + $0x258] sm:$0xff]
        %v1098 = vld [vmem:[#allocation8 + $0x260] sm:$0xff]
        %v1099 = vld [vmem:[#allocation8 + $0x268] sm:$0xff]
        %v1100 = vld [vmem:[#allocation8 + $0x270] sm:$0xff]
        %v1101 = vld [vmem:[#allocation8 + $0x278] sm:$0xff]
        %v1102 = vld [vmem:[#allocation8 + $0x280] sm:$0xff]
        %v1103 = vld [vmem:[#allocation8 + $0x288] sm:$0xff]
        %v1104 = vld [vmem:[#allocation8 + $0x290] sm:$0xff]
        %v1105 = vld [vmem:[#allocation8 + $0x298] sm:$0xff]
        %v1106 = vld [vmem:[#allocation8 + $0x2a0] sm:$0xff]
        %v1107 = vld [vmem:[#allocation8 + $0x2a8] sm:$0xff]
        %v1108 = vld [vmem:[#allocation8 + $0x2b0] sm:$0xff]
        %v1109 = vld [vmem:[#allocation8 + $0x2b8] sm:$0xff]
        %v1110 = vld [vmem:[#allocation8 + $0x2c0] sm:$0xff]
        %v1111 = vld [vmem:[#allocation8 + $0x2c8] sm:$0xff]
        %v1112 = vld [vmem:[#allocation8 + $0x2d0] sm:$0xff]
        %v1113 = vld [vmem:[#allocation8 + $0x2d8] sm:$0xff]
        %v1114 = vld [vmem:[#allocation8 + $0x2e0] sm:$0xff]
        %v1115 = vld [vmem:[#allocation8 + $0x2e8] sm:$0xff]
        %v1116 = vld [vmem:[#allocation8 + $0x2f0] sm:$0xff]
        %v1117 = vld [vmem:[#allocation8 + $0x2f8] sm:$0xff]
        %v1142 = vunpack.c.l.b16 %v998
        %v1143 = vunpack.c.h.b16 %v998
        %v1144 = vunpack.c.l.b16 %v999
        %v1145 = vunpack.c.h.b16 %v999
        %v1146 = vunpack.c.l.b16 %v1000
        %v1147 = vunpack.c.h.b16 %v1000
        %v1148 = vunpack.c.l.b16 %v1001
        %v1149 = vunpack.c.h.b16 %v1001
        %v1150 = vunpack.c.l.b16 %v1002
        %v1151 = vunpack.c.h.b16 %v1002
        %v1152 = vunpack.c.l.b16 %v1003
        %v1153 = vunpack.c.h.b16 %v1003
        %v1154 = vunpack.c.l.b16 %v1004
        %v1155 = vunpack.c.h.b16 %v1004
        %v1156 = vunpack.c.l.b16 %v1005
        %v1157 = vunpack.c.h.b16 %v1005
        %v1158 = vunpack.c.l.b16 %v1006
        %v1159 = vunpack.c.h.b16 %v1006
        %v1160 = vunpack.c.l.b16 %v1007
        %v1161 = vunpack.c.h.b16 %v1007
        %v1162 = vunpack.c.l.b16 %v1008
        %v1163 = vunpack.c.h.b16 %v1008
        %v1164 = vunpack.c.l.b16 %v1009
        %v1165 = vunpack.c.h.b16 %v1009
        %v1166 = vunpack.c.l.b16 %v1010
        %v1167 = vunpack.c.h.b16 %v1010
        %v1168 = vunpack.c.l.b16 %v1011
        %v1169 = vunpack.c.h.b16 %v1011
        %v1170 = vunpack.c.l.b16 %v1012
        %v1171 = vunpack.c.h.b16 %v1012
        %v1172 = vunpack.c.l.b16 %v1013
        %v1173 = vunpack.c.h.b16 %v1013
        %v1174 = vunpack.c.l.b16 %v1014
        %v1175 = vunpack.c.h.b16 %v1014
        %v1176 = vunpack.c.l.b16 %v1015
        %v1177 = vunpack.c.h.b16 %v1015
        %v1178 = vunpack.c.l.b16 %v1016
        %v1179 = vunpack.c.h.b16 %v1016
        %v1180 = vunpack.c.l.b16 %v1017
        %v1181 = vunpack.c.h.b16 %v1017
        %v1182 = vunpack.c.l.b16 %v1018
        %v1183 = vunpack.c.h.b16 %v1018
        %v1184 = vunpack.c.l.b16 %v1019
        %v1185 = vunpack.c.h.b16 %v1019
        %v1186 = vunpack.c.l.b16 %v1020
        %v1187 = vunpack.c.h.b16 %v1020
        %v1188 = vunpack.c.l.b16 %v1021
        %v1189 = vunpack.c.h.b16 %v1021
        %v1190 = vpack.c.b16 %v1148, %v1142
        %v1191 = vpack.c.b16 %v1149, %v1143
        %v1192 = vpack.c.b16 %v1150, %v1144
        %v1193 = vpack.c.b16 %v1151, %v1145
        %v1194 = vpack.c.b16 %v1152, %v1146
        %v1195 = vpack.c.b16 %v1153, %v1147
        %v1196 = vpack.c.b16 %v1160, %v1154
        %v1197 = vpack.c.b16 %v1161, %v1155
        %v1198 = vpack.c.b16 %v1162, %v1156
        %v1199 = vpack.c.b16 %v1163, %v1157
        %v1200 = vpack.c.b16 %v1164, %v1158
        %v1201 = vpack.c.b16 %v1165, %v1159
        %v1202 = vpack.c.b16 %v1172, %v1166
        %v1203 = vpack.c.b16 %v1173, %v1167
        %v1204 = vpack.c.b16 %v1174, %v1168
        %v1205 = vpack.c.b16 %v1175, %v1169
        %v1206 = vpack.c.b16 %v1176, %v1170
        %v1207 = vpack.c.b16 %v1177, %v1171
        %v1208 = vpack.c.b16 %v1184, %v1178
        %v1209 = vpack.c.b16 %v1185, %v1179
        %v1210 = vpack.c.b16 %v1186, %v1180
        %v1211 = vpack.c.b16 %v1187, %v1181
        %v1212 = vpack.c.b16 %v1188, %v1182
        %v1213 = vpack.c.b16 %v1189, %v1183
        %v1334 = vunpack.c.l.b16 %v1022
        %v1335 = vunpack.c.h.b16 %v1022
        %v1336 = vunpack.c.l.b16 %v1023
        %v1337 = vunpack.c.h.b16 %v1023
        %v1338 = vunpack.c.l.b16 %v1024
        %v1339 = vunpack.c.h.b16 %v1024
        %v1340 = vunpack.c.l.b16 %v1025
        %v1341 = vunpack.c.h.b16 %v1025
        %v1342 = vunpack.c.l.b16 %v1026
        %v1343 = vunpack.c.h.b16 %v1026
        %v1344 = vunpack.c.l.b16 %v1027
        %v1345 = vunpack.c.h.b16 %v1027
        %v1346 = vunpack.c.l.b16 %v1028
        %v1347 = vunpack.c.h.b16 %v1028
        %v1348 = vunpack.c.l.b16 %v1029
        %v1349 = vunpack.c.h.b16 %v1029
        %v1350 = vunpack.c.l.b16 %v1030
        %v1351 = vunpack.c.h.b16 %v1030
        %v1352 = vunpack.c.l.b16 %v1031
        %v1353 = vunpack.c.h.b16 %v1031
        %v1354 = vunpack.c.l.b16 %v1032
        %v1355 = vunpack.c.h.b16 %v1032
        %v1356 = vunpack.c.l.b16 %v1033
        %v1357 = vunpack.c.h.b16 %v1033
        %v1358 = vunpack.c.l.b16 %v1034
        %v1359 = vunpack.c.h.b16 %v1034
        %v1360 = vunpack.c.l.b16 %v1035
        %v1361 = vunpack.c.h.b16 %v1035
        %v1362 = vunpack.c.l.b16 %v1036
        %v1363 = vunpack.c.h.b16 %v1036
        %v1364 = vunpack.c.l.b16 %v1037
        %v1365 = vunpack.c.h.b16 %v1037
        %v1366 = vunpack.c.l.b16 %v1038
        %v1367 = vunpack.c.h.b16 %v1038
        %v1368 = vunpack.c.l.b16 %v1039
        %v1369 = vunpack.c.h.b16 %v1039
        %v1370 = vunpack.c.l.b16 %v1040
        %v1371 = vunpack.c.h.b16 %v1040
        %v1372 = vunpack.c.l.b16 %v1041
        %v1373 = vunpack.c.h.b16 %v1041
        %v1374 = vunpack.c.l.b16 %v1042
        %v1375 = vunpack.c.h.b16 %v1042
        %v1376 = vunpack.c.l.b16 %v1043
        %v1377 = vunpack.c.h.b16 %v1043
        %v1378 = vunpack.c.l.b16 %v1044
        %v1379 = vunpack.c.h.b16 %v1044
        %v1380 = vunpack.c.l.b16 %v1045
        %v1381 = vunpack.c.h.b16 %v1045
        %v1382 = vunpack.c.l.b16 %v1046
        %v1383 = vunpack.c.h.b16 %v1046
        %v1384 = vunpack.c.l.b16 %v1047
        %v1385 = vunpack.c.h.b16 %v1047
        %v1386 = vunpack.c.l.b16 %v1048
        %v1387 = vunpack.c.h.b16 %v1048
        %v1388 = vunpack.c.l.b16 %v1049
        %v1389 = vunpack.c.h.b16 %v1049
        %v1390 = vunpack.c.l.b16 %v1050
        %v1391 = vunpack.c.h.b16 %v1050
        %v1392 = vunpack.c.l.b16 %v1051
        %v1393 = vunpack.c.h.b16 %v1051
        %v1394 = vunpack.c.l.b16 %v1052
        %v1395 = vunpack.c.h.b16 %v1052
        %v1396 = vunpack.c.l.b16 %v1053
        %v1397 = vunpack.c.h.b16 %v1053
        %v1398 = vunpack.c.l.b16 %v1054
        %v1399 = vunpack.c.h.b16 %v1054
        %v1400 = vunpack.c.l.b16 %v1055
        %v1401 = vunpack.c.h.b16 %v1055
        %v1402 = vunpack.c.l.b16 %v1056
        %v1403 = vunpack.c.h.b16 %v1056
        %v1404 = vunpack.c.l.b16 %v1057
        %v1405 = vunpack.c.h.b16 %v1057
        %v1406 = vunpack.c.l.b16 %v1058
        %v1407 = vunpack.c.h.b16 %v1058
        %v1408 = vunpack.c.l.b16 %v1059
        %v1409 = vunpack.c.h.b16 %v1059
        %v1410 = vunpack.c.l.b16 %v1060
        %v1411 = vunpack.c.h.b16 %v1060
        %v1412 = vunpack.c.l.b16 %v1061
        %v1413 = vunpack.c.h.b16 %v1061
        %v1414 = vunpack.c.l.b16 %v1062
        %v1415 = vunpack.c.h.b16 %v1062
        %v1416 = vunpack.c.l.b16 %v1063
        %v1417 = vunpack.c.h.b16 %v1063
        %v1418 = vunpack.c.l.b16 %v1064
        %v1419 = vunpack.c.h.b16 %v1064
        %v1420 = vunpack.c.l.b16 %v1065
        %v1421 = vunpack.c.h.b16 %v1065
        %v1422 = vunpack.c.l.b16 %v1066
        %v1423 = vunpack.c.h.b16 %v1066
        %v1424 = vunpack.c.l.b16 %v1067
        %v1425 = vunpack.c.h.b16 %v1067
        %v1426 = vunpack.c.l.b16 %v1068
        %v1427 = vunpack.c.h.b16 %v1068
        %v1428 = vunpack.c.l.b16 %v1069
        %v1429 = vunpack.c.h.b16 %v1069
        %v1430 = vunpack.c.l.b16 %v1070
        %v1431 = vunpack.c.h.b16 %v1070
        %v1432 = vunpack.c.l.b16 %v1071
        %v1433 = vunpack.c.h.b16 %v1071
        %v1434 = vunpack.c.l.b16 %v1072
        %v1435 = vunpack.c.h.b16 %v1072
        %v1436 = vunpack.c.l.b16 %v1073
        %v1437 = vunpack.c.h.b16 %v1073
        %v1438 = vunpack.c.l.b16 %v1074
        %v1439 = vunpack.c.h.b16 %v1074
        %v1440 = vunpack.c.l.b16 %v1075
        %v1441 = vunpack.c.h.b16 %v1075
        %v1442 = vunpack.c.l.b16 %v1076
        %v1443 = vunpack.c.h.b16 %v1076
        %v1444 = vunpack.c.l.b16 %v1077
        %v1445 = vunpack.c.h.b16 %v1077
        %v1446 = vunpack.c.l.b16 %v1078
        %v1447 = vunpack.c.h.b16 %v1078
        %v1448 = vunpack.c.l.b16 %v1079
        %v1449 = vunpack.c.h.b16 %v1079
        %v1450 = vunpack.c.l.b16 %v1080
        %v1451 = vunpack.c.h.b16 %v1080
        %v1452 = vunpack.c.l.b16 %v1081
        %v1453 = vunpack.c.h.b16 %v1081
        %v1454 = vunpack.c.l.b16 %v1082
        %v1455 = vunpack.c.h.b16 %v1082
        %v1456 = vunpack.c.l.b16 %v1083
        %v1457 = vunpack.c.h.b16 %v1083
        %v1458 = vunpack.c.l.b16 %v1084
        %v1459 = vunpack.c.h.b16 %v1084
        %v1460 = vunpack.c.l.b16 %v1085
        %v1461 = vunpack.c.h.b16 %v1085
        %v1462 = vunpack.c.l.b16 %v1086
        %v1463 = vunpack.c.h.b16 %v1086
        %v1464 = vunpack.c.l.b16 %v1087
        %v1465 = vunpack.c.h.b16 %v1087
        %v1466 = vunpack.c.l.b16 %v1088
        %v1467 = vunpack.c.h.b16 %v1088
        %v1468 = vunpack.c.l.b16 %v1089
        %v1469 = vunpack.c.h.b16 %v1089
        %v1470 = vunpack.c.l.b16 %v1090
        %v1471 = vunpack.c.h.b16 %v1090
        %v1472 = vunpack.c.l.b16 %v1091
        %v1473 = vunpack.c.h.b16 %v1091
        %v1474 = vunpack.c.l.b16 %v1092
        %v1475 = vunpack.c.h.b16 %v1092
        %v1476 = vunpack.c.l.b16 %v1093
        %v1477 = vunpack.c.h.b16 %v1093
        %v1478 = vunpack.c.l.b16 %v1094
        %v1479 = vunpack.c.h.b16 %v1094
        %v1480 = vunpack.c.l.b16 %v1095
        %v1481 = vunpack.c.h.b16 %v1095
        %v1482 = vunpack.c.l.b16 %v1096
        %v1483 = vunpack.c.h.b16 %v1096
        %v1484 = vunpack.c.l.b16 %v1097
        %v1485 = vunpack.c.h.b16 %v1097
        %v1486 = vunpack.c.l.b16 %v1098
        %v1487 = vunpack.c.h.b16 %v1098
        %v1488 = vunpack.c.l.b16 %v1099
        %v1489 = vunpack.c.h.b16 %v1099
        %v1490 = vunpack.c.l.b16 %v1100
        %v1491 = vunpack.c.h.b16 %v1100
        %v1492 = vunpack.c.l.b16 %v1101
        %v1493 = vunpack.c.h.b16 %v1101
        %v1494 = vunpack.c.l.b16 %v1102
        %v1495 = vunpack.c.h.b16 %v1102
        %v1496 = vunpack.c.l.b16 %v1103
        %v1497 = vunpack.c.h.b16 %v1103
        %v1498 = vunpack.c.l.b16 %v1104
        %v1499 = vunpack.c.h.b16 %v1104
        %v1500 = vunpack.c.l.b16 %v1105
        %v1501 = vunpack.c.h.b16 %v1105
        %v1502 = vunpack.c.l.b16 %v1106
        %v1503 = vunpack.c.h.b16 %v1106
        %v1504 = vunpack.c.l.b16 %v1107
        %v1505 = vunpack.c.h.b16 %v1107
        %v1506 = vunpack.c.l.b16 %v1108
        %v1507 = vunpack.c.h.b16 %v1108
        %v1508 = vunpack.c.l.b16 %v1109
        %v1509 = vunpack.c.h.b16 %v1109
        %v1510 = vunpack.c.l.b16 %v1110
        %v1511 = vunpack.c.h.b16 %v1110
        %v1512 = vunpack.c.l.b16 %v1111
        %v1513 = vunpack.c.h.b16 %v1111
        %v1514 = vunpack.c.l.b16 %v1112
        %v1515 = vunpack.c.h.b16 %v1112
        %v1516 = vunpack.c.l.b16 %v1113
        %v1517 = vunpack.c.h.b16 %v1113
        %v1518 = vunpack.c.l.b16 %v1114
        %v1519 = vunpack.c.h.b16 %v1114
        %v1520 = vunpack.c.l.b16 %v1115
        %v1521 = vunpack.c.h.b16 %v1115
        %v1522 = vunpack.c.l.b16 %v1116
        %v1523 = vunpack.c.h.b16 %v1116
        %v1524 = vunpack.c.l.b16 %v1117
        %v1525 = vunpack.c.h.b16 %v1117
        %v1526 = vpack.c.b16 %v1336, %v1334
        %v1527 = vpack.c.b16 %v1337, %v1335
        %v1528 = vpack.c.b16 %v1340, %v1338
        %v1529 = vpack.c.b16 %v1341, %v1339
        %v1530 = vpack.c.b16 %v1344, %v1342
        %v1531 = vpack.c.b16 %v1345, %v1343
        %v1532 = vpack.c.b16 %v1348, %v1346
        %v1533 = vpack.c.b16 %v1349, %v1347
        %v1534 = vpack.c.b16 %v1352, %v1350
        %v1535 = vpack.c.b16 %v1353, %v1351
        %v1536 = vpack.c.b16 %v1356, %v1354
        %v1537 = vpack.c.b16 %v1357, %v1355
        %v1538 = vpack.c.b16 %v1360, %v1358
        %v1539 = vpack.c.b16 %v1361, %v1359
        %v1540 = vpack.c.b16 %v1364, %v1362
        %v1541 = vpack.c.b16 %v1365, %v1363
        %v1542 = vpack.c.b16 %v1368, %v1366
        %v1543 = vpack.c.b16 %v1369, %v1367
        %v1544 = vpack.c.b16 %v1372, %v1370
        %v1545 = vpack.c.b16 %v1373, %v1371
        %v1546 = vpack.c.b16 %v1376, %v1374
        %v1547 = vpack.c.b16 %v1377, %v1375
        %v1548 = vpack.c.b16 %v1380, %v1378
        %v1549 = vpack.c.b16 %v1381, %v1379
        %v1550 = vpack.c.b16 %v1384, %v1382
        %v1551 = vpack.c.b16 %v1385, %v1383
        %v1552 = vpack.c.b16 %v1388, %v1386
        %v1553 = vpack.c.b16 %v1389, %v1387
        %v1554 = vpack.c.b16 %v1392, %v1390
        %v1555 = vpack.c.b16 %v1393, %v1391
        %v1556 = vpack.c.b16 %v1396, %v1394
        %v1557 = vpack.c.b16 %v1397, %v1395
        %v1558 = vpack.c.b16 %v1400, %v1398
        %v1559 = vpack.c.b16 %v1401, %v1399
        %v1560 = vpack.c.b16 %v1404, %v1402
        %v1561 = vpack.c.b16 %v1405, %v1403
        %v1562 = vpack.c.b16 %v1408, %v1406
        %v1563 = vpack.c.b16 %v1409, %v1407
        %v1564 = vpack.c.b16 %v1412, %v1410
        %v1565 = vpack.c.b16 %v1413, %v1411
        %v1566 = vpack.c.b16 %v1416, %v1414
        %v1567 = vpack.c.b16 %v1417, %v1415
        %v1568 = vpack.c.b16 %v1420, %v1418
        %v1569 = vpack.c.b16 %v1421, %v1419
        %v1570 = vpack.c.b16 %v1424, %v1422
        %v1571 = vpack.c.b16 %v1425, %v1423
        %v1572 = vpack.c.b16 %v1428, %v1426
        %v1573 = vpack.c.b16 %v1429, %v1427
        %v1574 = vpack.c.b16 %v1432, %v1430
        %v1575 = vpack.c.b16 %v1433, %v1431
        %v1576 = vpack.c.b16 %v1436, %v1434
        %v1577 = vpack.c.b16 %v1437, %v1435
        %v1578 = vpack.c.b16 %v1440, %v1438
        %v1579 = vpack.c.b16 %v1441, %v1439
        %v1580 = vpack.c.b16 %v1444, %v1442
        %v1581 = vpack.c.b16 %v1445, %v1443
        %v1582 = vpack.c.b16 %v1448, %v1446
        %v1583 = vpack.c.b16 %v1449, %v1447
        %v1584 = vpack.c.b16 %v1452, %v1450
        %v1585 = vpack.c.b16 %v1453, %v1451
        %v1586 = vpack.c.b16 %v1456, %v1454
        %v1587 = vpack.c.b16 %v1457, %v1455
        %v1588 = vpack.c.b16 %v1460, %v1458
        %v1589 = vpack.c.b16 %v1461, %v1459
        %v1590 = vpack.c.b16 %v1464, %v1462
        %v1591 = vpack.c.b16 %v1465, %v1463
        %v1592 = vpack.c.b16 %v1468, %v1466
        %v1593 = vpack.c.b16 %v1469, %v1467
        %v1594 = vpack.c.b16 %v1472, %v1470
        %v1595 = vpack.c.b16 %v1473, %v1471
        %v1596 = vpack.c.b16 %v1476, %v1474
        %v1597 = vpack.c.b16 %v1477, %v1475
        %v1598 = vpack.c.b16 %v1480, %v1478
        %v1599 = vpack.c.b16 %v1481, %v1479
        %v1600 = vpack.c.b16 %v1484, %v1482
        %v1601 = vpack.c.b16 %v1485, %v1483
        %v1602 = vpack.c.b16 %v1488, %v1486
        %v1603 = vpack.c.b16 %v1489, %v1487
        %v1604 = vpack.c.b16 %v1492, %v1490
        %v1605 = vpack.c.b16 %v1493, %v1491
        %v1606 = vpack.c.b16 %v1496, %v1494
        %v1607 = vpack.c.b16 %v1497, %v1495
        %v1608 = vpack.c.b16 %v1500, %v1498
        %v1609 = vpack.c.b16 %v1501, %v1499
        %v1610 = vpack.c.b16 %v1504, %v1502
        %v1611 = vpack.c.b16 %v1505, %v1503
        %v1612 = vpack.c.b16 %v1508, %v1506
        %v1613 = vpack.c.b16 %v1509, %v1507
        %v1614 = vpack.c.b16 %v1512, %v1510
        %v1615 = vpack.c.b16 %v1513, %v1511
        %v1616 = vpack.c.b16 %v1516, %v1514
        %v1617 = vpack.c.b16 %v1517, %v1515
        %v1618 = vpack.c.b16 %v1520, %v1518
        %v1619 = vpack.c.b16 %v1521, %v1519
        %v1620 = vpack.c.b16 %v1524, %v1522
        %v1621 = vpack.c.b16 %v1525, %v1523
        %1718 = vmatprep.subr.bf16.mxu0 %v1527
        %1719 = vmatpush1.bf16.msra.mxu0 %v1526
        %1720 = vmatprep.subr.bf16.mxu0 %v1529
        %1721 = vmatpush1.bf16.msra.mxu0 %v1528
        %1722 = vmatprep.subr.bf16.mxu0 %v1531
        %1723 = vmatpush1.bf16.msra.mxu0 %v1530
        %1724 = vmatprep.subr.bf16.mxu0 %v1533
        %1725 = vmatpush1.bf16.msra.mxu0 %v1532
        %1726 = vmatprep.subr.bf16.mxu0 %v1535
        %1727 = vmatpush1.bf16.msra.mxu0 %v1534
        %1728 = vmatprep.subr.bf16.mxu0 %v1537
        %1729 = vmatpush1.bf16.msra.mxu0 %v1536
        %1730 = vmatprep.subr.bf16.mxu0 %v1539
        %1731 = vmatpush1.bf16.msra.mxu0 %v1538
        %1732 = vmatprep.subr.bf16.mxu0 %v1541
        %1733 = vmatpush1.bf16.msra.mxu0 %v1540
        %1734 = vmatprep.subr.bf16.mxu0 %v1543
        %1735 = vmatpush1.bf16.msra.mxu0 %v1542
        %1736 = vmatprep.subr.bf16.mxu0 %v1545
        %1737 = vmatpush1.bf16.msra.mxu0 %v1544
        %1738 = vmatprep.subr.bf16.mxu0 %v1547
        %1739 = vmatpush1.bf16.msra.mxu0 %v1546
        %1740 = vmatprep.subr.bf16.mxu0 %v1549
        %1741 = vmatpush1.bf16.msra.mxu0 %v1548
        %1742 = vmatprep.subr.bf16.mxu0 %v1551
        %1743 = vmatpush1.bf16.msra.mxu0 %v1550
        %1744 = vmatprep.subr.bf16.mxu0 %v1553
        %1745 = vmatpush1.bf16.msra.mxu0 %v1552
        %1746 = vmatprep.subr.bf16.mxu0 %v1555
        %1747 = vmatpush1.bf16.msra.mxu0 %v1554
        %1748 = vmatprep.subr.bf16.mxu0 %v1557
        %1749 = vmatpush1.bf16.msra.mxu0 %v1556
        %1750 = vmatprep.mubr.bf16.mxu0 %v1191
        %1751 = vmatmul.mubr.bf16.gmra.mrb[0].mxu0 %v1190
        %v1752 = vpop.f32.mrb[0].mxu0
        %v1753 = vadd.f32 0.0, %v1752
        %v1754 = vpop.f32.mrb[0].mxu0
        %v1755 = vadd.f32 0.0, %v1754
        %v1756 = vpop.f32.mrb[0].mxu0
        %v1757 = vadd.f32 0.0, %v1756
        %v1758 = vpop.f32.mrb[0].mxu0
        %v1759 = vadd.f32 0.0, %v1758
        %1760 = vmatprep.mubr.bf16.mxu0 %v1197
        %1761 = vmatmul.mubr.bf16.gmra.mrb[0].mxu0 %v1196
        %v1762 = vpop.f32.mrb[0].mxu0
        %v1763 = vadd.f32 0.0, %v1762
        %v1764 = vpop.f32.mrb[0].mxu0
        %v1765 = vadd.f32 0.0, %v1764
        %v1766 = vpop.f32.mrb[0].mxu0
        %v1767 = vadd.f32 0.0, %v1766
        %v1768 = vpop.f32.mrb[0].mxu0
        %v1769 = vadd.f32 0.0, %v1768
        %1770 = vmatprep.mubr.bf16.mxu0 %v1203
        %1771 = vmatmul.mubr.bf16.gmra.mrb[0].mxu0 %v1202
        %v1772 = vpop.f32.mrb[0].mxu0
        %v1773 = vadd.f32 0.0, %v1772
        %v1774 = vpop.f32.mrb[0].mxu0
        %v1775 = vadd.f32 0.0, %v1774
        %v1776 = vpop.f32.mrb[0].mxu0
        %v1777 = vadd.f32 0.0, %v1776
        %v1778 = vpop.f32.mrb[0].mxu0
        %v1779 = vadd.f32 0.0, %v1778
        %1780 = vmatprep.mubr.bf16.mxu0 %v1209
        %1781 = vmatmul.mubr.bf16.gmra.mrb[0].mxu0 %v1208
        %v1782 = vpop.f32.mrb[0].mxu0
        %v1783 = vadd.f32 0.0, %v1782
        %v1784 = vpop.f32.mrb[0].mxu0
        %v1785 = vadd.f32 0.0, %v1784
        %v1786 = vpop.f32.mrb[0].mxu0
        %v1787 = vadd.f32 0.0, %v1786
        %v1788 = vpop.f32.mrb[0].mxu0
        %v1789 = vadd.f32 0.0, %v1788
        %1790 = vdwg.mxu0
        %1791 = vmatprep.subr.bf16.mxu0 %v1559
        %1792 = vmatpush1.bf16.msra.mxu0 %v1558
        %1793 = vmatprep.subr.bf16.mxu0 %v1561
        %1794 = vmatpush1.bf16.msra.mxu0 %v1560
        %1795 = vmatprep.subr.bf16.mxu0 %v1563
        %1796 = vmatpush1.bf16.msra.mxu0 %v1562
        %1797 = vmatprep.subr.bf16.mxu0 %v1565
        %1798 = vmatpush1.bf16.msra.mxu0 %v1564
        %1799 = vmatprep.subr.bf16.mxu0 %v1567
        %1800 = vmatpush1.bf16.msra.mxu0 %v1566
        %1801 = vmatprep.subr.bf16.mxu0 %v1569
        %1802 = vmatpush1.bf16.msra.mxu0 %v1568
        %1803 = vmatprep.subr.bf16.mxu0 %v1571
        %1804 = vmatpush1.bf16.msra.mxu0 %v1570
        %1805 = vmatprep.subr.bf16.mxu0 %v1573
        %1806 = vmatpush1.bf16.msra.mxu0 %v1572
        %1807 = vmatprep.subr.bf16.mxu0 %v1575
        %1808 = vmatpush1.bf16.msra.mxu0 %v1574
        %1809 = vmatprep.subr.bf16.mxu0 %v1577
        %1810 = vmatpush1.bf16.msra.mxu0 %v1576
        %1811 = vmatprep.subr.bf16.mxu0 %v1579
        %1812 = vmatpush1.bf16.msra.mxu0 %v1578
        %1813 = vmatprep.subr.bf16.mxu0 %v1581
        %1814 = vmatpush1.bf16.msra.mxu0 %v1580
        %1815 = vmatprep.subr.bf16.mxu0 %v1583
        %1816 = vmatpush1.bf16.msra.mxu0 %v1582
        %1817 = vmatprep.subr.bf16.mxu0 %v1585
        %1818 = vmatpush1.bf16.msra.mxu0 %v1584
        %1819 = vmatprep.subr.bf16.mxu0 %v1587
        %1820 = vmatpush1.bf16.msra.mxu0 %v1586
        %1821 = vmatprep.subr.bf16.mxu0 %v1589
        %1822 = vmatpush1.bf16.msra.mxu0 %v1588
        %1823 = vmatprep.mubr.bf16.mxu0 %v1193
        %1824 = vmatmul.mubr.bf16.gmra.mrb[0].mxu0 %v1192
        %v1825 = vpop.f32.mrb[0].mxu0
        %v1826 = vadd.f32 %v1753, %v1825
        %v1827 = vpop.f32.mrb[0].mxu0
        %v1828 = vadd.f32 %v1755, %v1827
        %v1829 = vpop.f32.mrb[0].mxu0
        %v1830 = vadd.f32 %v1757, %v1829
        %v1831 = vpop.f32.mrb[0].mxu0
        %v1832 = vadd.f32 %v1759, %v1831
        %1833 = vmatprep.mubr.bf16.mxu0 %v1199
        %1834 = vmatmul.mubr.bf16.gmra.mrb[0].mxu0 %v1198
        %v1835 = vpop.f32.mrb[0].mxu0
        %v1836 = vadd.f32 %v1763, %v1835
        %v1837 = vpop.f32.mrb[0].mxu0
        %v1838 = vadd.f32 %v1765, %v1837
        %v1839 = vpop.f32.mrb[0].mxu0
        %v1840 = vadd.f32 %v1767, %v1839
        %v1841 = vpop.f32.mrb[0].mxu0
        %v1842 = vadd.f32 %v1769, %v1841
        %1843 = vmatprep.mubr.bf16.mxu0 %v1205
        %1844 = vmatmul.mubr.bf16.gmra.mrb[0].mxu0 %v1204
        %v1845 = vpop.f32.mrb[0].mxu0
        %v1846 = vadd.f32 %v1773, %v1845
        %v1847 = vpop.f32.mrb[0].mxu0
        %v1848 = vadd.f32 %v1775, %v1847
        %v1849 = vpop.f32.mrb[0].mxu0
        %v1850 = vadd.f32 %v1777, %v1849
        %v1851 = vpop.f32.mrb[0].mxu0
        %v1852 = vadd.f32 %v1779, %v1851
        %1853 = vmatprep.mubr.bf16.mxu0 %v1211
        %1854 = vmatmul.mubr.bf16.gmra.mrb[0].mxu0 %v1210
        %v1855 = vpop.f32.mrb[0].mxu0
        %v1856 = vadd.f32 %v1783, %v1855
        %v1857 = vpop.f32.mrb[0].mxu0
        %v1858 = vadd.f32 %v1785, %v1857
        %v1859 = vpop.f32.mrb[0].mxu0
        %v1860 = vadd.f32 %v1787, %v1859
        %v1861 = vpop.f32.mrb[0].mxu0
        %v1862 = vadd.f32 %v1789, %v1861
        %1863 = vdwg.mxu0
        %1864 = vmatprep.subr.bf16.mxu0 %v1591
        %1865 = vmatpush1.bf16.msra.mxu0 %v1590
        %1866 = vmatprep.subr.bf16.mxu0 %v1593
        %1867 = vmatpush1.bf16.msra.mxu0 %v1592
        %1868 = vmatprep.subr.bf16.mxu0 %v1595
        %1869 = vmatpush1.bf16.msra.mxu0 %v1594
        %1870 = vmatprep.subr.bf16.mxu0 %v1597
        %1871 = vmatpush1.bf16.msra.mxu0 %v1596
        %1872 = vmatprep.subr.bf16.mxu0 %v1599
        %1873 = vmatpush1.bf16.msra.mxu0 %v1598
        %1874 = vmatprep.subr.bf16.mxu0 %v1601
        %1875 = vmatpush1.bf16.msra.mxu0 %v1600
        %1876 = vmatprep.subr.bf16.mxu0 %v1603
        %1877 = vmatpush1.bf16.msra.mxu0 %v1602
        %1878 = vmatprep.subr.bf16.mxu0 %v1605
        %1879 = vmatpush1.bf16.msra.mxu0 %v1604
        %1880 = vmatprep.subr.bf16.mxu0 %v1607
        %1881 = vmatpush1.bf16.msra.mxu0 %v1606
        %1882 = vmatprep.subr.bf16.mxu0 %v1609
        %1883 = vmatpush1.bf16.msra.mxu0 %v1608
        %1884 = vmatprep.subr.bf16.mxu0 %v1611
        %1885 = vmatpush1.bf16.msra.mxu0 %v1610
        %1886 = vmatprep.subr.bf16.mxu0 %v1613
        %1887 = vmatpush1.bf16.msra.mxu0 %v1612
        %1888 = vmatprep.subr.bf16.mxu0 %v1615
        %1889 = vmatpush1.bf16.msra.mxu0 %v1614
        %1890 = vmatprep.subr.bf16.mxu0 %v1617
        %1891 = vmatpush1.bf16.msra.mxu0 %v1616
        %1892 = vmatprep.subr.bf16.mxu0 %v1619
        %1893 = vmatpush1.bf16.msra.mxu0 %v1618
        %1894 = vmatprep.subr.bf16.mxu0 %v1621
        %1895 = vmatpush1.bf16.msra.mxu0 %v1620
        %1896 = vmatprep.mubr.bf16.mxu0 %v1195
        %1897 = vmatmul.mubr.bf16.gmra.mrb[0].mxu0 %v1194
        %v1898 = vpop.f32.mrb[0].mxu0
        %v1899 = vadd.f32 %v1826, %v1898
        %v1900 = vpop.f32.mrb[0].mxu0
        %v1901 = vadd.f32 %v1828, %v1900
        %v1902 = vpop.f32.mrb[0].mxu0
        %v1903 = vadd.f32 %v1830, %v1902
        %v1904 = vpop.f32.mrb[0].mxu0
        %v1905 = vadd.f32 %v1832, %v1904
        %1906 = vmatprep.mubr.bf16.mxu0 %v1201
        %1907 = vmatmul.mubr.bf16.gmra.mrb[0].mxu0 %v1200
        %v1908 = vpop.f32.mrb[0].mxu0
        %v1909 = vadd.f32 %v1836, %v1908
        %v1910 = vpop.f32.mrb[0].mxu0
        %v1911 = vadd.f32 %v1838, %v1910
        %v1912 = vpop.f32.mrb[0].mxu0
        %v1913 = vadd.f32 %v1840, %v1912
        %v1914 = vpop.f32.mrb[0].mxu0
        %v1915 = vadd.f32 %v1842, %v1914
        %1916 = vmatprep.mubr.bf16.mxu0 %v1207
        %1917 = vmatmul.mubr.bf16.gmra.mrb[0].mxu0 %v1206
        %v1918 = vpop.f32.mrb[0].mxu0
        %v1919 = vadd.f32 %v1846, %v1918
        %v1920 = vpop.f32.mrb[0].mxu0
        %v1921 = vadd.f32 %v1848, %v1920
        %v1922 = vpop.f32.mrb[0].mxu0
        %v1923 = vadd.f32 %v1850, %v1922
        %v1924 = vpop.f32.mrb[0].mxu0
        %v1925 = vadd.f32 %v1852, %v1924
        %1926 = vmatprep.mubr.bf16.mxu0 %v1213
        %1927 = vmatmul.mubr.bf16.gmra.mrb[0].mxu0 %v1212
        %v1928 = vpop.f32.mrb[0].mxu0
        %v1929 = vadd.f32 %v1856, %v1928
        %v1930 = vpop.f32.mrb[0].mxu0
        %v1931 = vadd.f32 %v1858, %v1930
        %v1932 = vpop.f32.mrb[0].mxu0
        %v1933 = vadd.f32 %v1860, %v1932
        %v1934 = vpop.f32.mrb[0].mxu0
        %v1935 = vadd.f32 %v1862, %v1934
        %1936 = vdwg.mxu0
        %1937 = vst [vmem:[#allocation4] sm:$0xff] %v1899
        %1938 = vst [vmem:[#allocation4 + $0x8] sm:$0xff] %v1901
        %1939 = vst [vmem:[#allocation4 + $0x10] sm:$0xff] %v1903
        %1940 = vst [vmem:[#allocation4 + $0x18] sm:$0xff] %v1905
        %1941 = vst [vmem:[#allocation4 + $0x20] sm:$0xff] %v1909
        %1942 = vst [vmem:[#allocation4 + $0x28] sm:$0xff] %v1911
        %1943 = vst [vmem:[#allocation4 + $0x30] sm:$0xff] %v1913
        %1944 = vst [vmem:[#allocation4 + $0x38] sm:$0xff] %v1915
        %1945 = vst [vmem:[#allocation4 + $0x40] sm:$0xff] %v1919
        %1946 = vst [vmem:[#allocation4 + $0x48] sm:$0xff] %v1921
        %1947 = vst [vmem:[#allocation4 + $0x50] sm:$0xff] %v1923
        %1948 = vst [vmem:[#allocation4 + $0x58] sm:$0xff] %v1925
        %1949 = vst [vmem:[#allocation4 + $0x60] sm:$0xff] %v1929
        %1950 = vst [vmem:[#allocation4 + $0x68] sm:$0xff] %v1931
        %1951 = vst [vmem:[#allocation4 + $0x70] sm:$0xff] %v1933
        %1952 = vst [vmem:[#allocation4 + $0x78] sm:$0xff] %v1935
        %v1953 = vld [vmem:[#allocation4] sm:$0xff]
        %v1954 = vld [vmem:[#allocation4 + $0x8] sm:$0xff]
        %v1955 = vld [vmem:[#allocation4 + $0x10] sm:$0xff]
        %v1956 = vld [vmem:[#allocation4 + $0x18] sm:$0xff]
        %v1957 = vld [vmem:[#allocation4 + $0x20] sm:$0xff]
        %v1958 = vld [vmem:[#allocation4 + $0x28] sm:$0xff]
        %v1959 = vld [vmem:[#allocation4 + $0x30] sm:$0xff]
        %v1960 = vld [vmem:[#allocation4 + $0x38] sm:$0xff]
        %v1961 = vld [vmem:[#allocation4 + $0x40] sm:$0xff]
        %v1962 = vld [vmem:[#allocation4 + $0x48] sm:$0xff]
        %v1963 = vld [vmem:[#allocation4 + $0x50] sm:$0xff]
        %v1964 = vld [vmem:[#allocation4 + $0x58] sm:$0xff]
        %v1965 = vld [vmem:[#allocation4 + $0x60] sm:$0xff]
        %v1966 = vld [vmem:[#allocation4 + $0x68] sm:$0xff]
        %v1967 = vld [vmem:[#allocation4 + $0x70] sm:$0xff]
        %v1968 = vld [vmem:[#allocation4 + $0x78] sm:$0xff]
        %s1969 = scalar_lea.vmem [#allocation3], 24
        %v1970 = vld [vmem:[%s1969] sm:$0xff]
        %v1971 = vld [vmem:[%s1969 + $0x8] sm:$0xff]
        %v1972 = vld [vmem:[%s1969 + $0x10] sm:$0xff]
        %v1973 = vld [vmem:[%s1969 + $0x18] sm:$0xff]
        %v1974 = vld [vmem:[%s1969 + $0x20] sm:$0xff]
        %v1975 = vld [vmem:[%s1969 + $0x28] sm:$0xff]
        %v1976 = vld [vmem:[%s1969 + $0x30] sm:$0xff]
        %v1977 = vld [vmem:[%s1969 + $0x38] sm:$0xff]
        %v1978 = vld [vmem:[%s1969 + $0x40] sm:$0xff]
        %v1979 = vld [vmem:[%s1969 + $0x48] sm:$0xff]
        %v1980 = vld [vmem:[%s1969 + $0x50] sm:$0xff]
        %v1981 = vld [vmem:[%s1969 + $0x58] sm:$0xff]
        %v1982 = vld [vmem:[%s1969 + $0x60] sm:$0xff]
        %v1983 = vld [vmem:[%s1969 + $0x68] sm:$0xff]
        %v1984 = vld [vmem:[%s1969 + $0x70] sm:$0xff]
        %v1985 = vld [vmem:[%s1969 + $0x78] sm:$0xff]
        %v1986 = vld [vmem:[%s1969 + $0x80] sm:$0xff]
        %v1987 = vld [vmem:[%s1969 + $0x88] sm:$0xff]
        %v1988 = vld [vmem:[%s1969 + $0x90] sm:$0xff]
        %v1989 = vld [vmem:[%s1969 + $0x98] sm:$0xff]
        %v1990 = vld [vmem:[%s1969 + $0xa0] sm:$0xff]
        %v1991 = vld [vmem:[%s1969 + $0xa8] sm:$0xff]
        %v1992 = vld [vmem:[%s1969 + $0xb0] sm:$0xff]
        %v1993 = vld [vmem:[%s1969 + $0xb8] sm:$0xff]
        %s1994 = scalar_lea.vmem [#allocation8], 768
        %v1995 = vld [vmem:[%s1994] sm:$0xff]
        %v1996 = vld [vmem:[%s1994 + $0x8] sm:$0xff]
        %v1997 = vld [vmem:[%s1994 + $0x10] sm:$0xff]
        %v1998 = vld [vmem:[%s1994 + $0x18] sm:$0xff]
        %v1999 = vld [vmem:[%s1994 + $0x20] sm:$0xff]
        %v2000 = vld [vmem:[%s1994 + $0x28] sm:$0xff]
        %v2001 = vld [vmem:[%s1994 + $0x30] sm:$0xff]
        %v2002 = vld [vmem:[%s1994 + $0x38] sm:$0xff]
        %v2003 = vld [vmem:[%s1994 + $0x40] sm:$0xff]
        %v2004 = vld [vmem:[%s1994 + $0x48] sm:$0xff]
        %v2005 = vld [vmem:[%s1994 + $0x50] sm:$0xff]
        %v2006 = vld [vmem:[%s1994 + $0x58] sm:$0xff]
        %v2007 = vld [vmem:[%s1994 + $0x60] sm:$0xff]
        %v2008 = vld [vmem:[%s1994 + $0x68] sm:$0xff]
        %v2009 = vld [vmem:[%s1994 + $0x70] sm:$0xff]
        %v2010 = vld [vmem:[%s1994 + $0x78] sm:$0xff]
        %v2011 = vld [vmem:[%s1994 + $0x80] sm:$0xff]
        %v2012 = vld [vmem:[%s1994 + $0x88] sm:$0xff]
        %v2013 = vld [vmem:[%s1994 + $0x90] sm:$0xff]
        %v2014 = vld [vmem:[%s1994 + $0x98] sm:$0xff]
        %v2015 = vld [vmem:[%s1994 + $0xa0] sm:$0xff]
        %v2016 = vld [vmem:[%s1994 + $0xa8] sm:$0xff]
        %v2017 = vld [vmem:[%s1994 + $0xb0] sm:$0xff]
        %v2018 = vld [vmem:[%s1994 + $0xb8] sm:$0xff]
        %v2019 = vld [vmem:[%s1994 + $0xc0] sm:$0xff]
        %v2020 = vld [vmem:[%s1994 + $0xc8] sm:$0xff]
        %v2021 = vld [vmem:[%s1994 + $0xd0] sm:$0xff]
        %v2022 = vld [vmem:[%s1994 + $0xd8] sm:$0xff]
        %v2023 = vld [vmem:[%s1994 + $0xe0] sm:$0xff]
        %v2024 = vld [vmem:[%s1994 + $0xe8] sm:$0xff]
        %v2025 = vld [vmem:[%s1994 + $0xf0] sm:$0xff]
        %v2026 = vld [vmem:[%s1994 + $0xf8] sm:$0xff]
        %v2027 = vld [vmem:[%s1994 + $0x100] sm:$0xff]
        %v2028 = vld [vmem:[%s1994 + $0x108] sm:$0xff]
        %v2029 = vld [vmem:[%s1994 + $0x110] sm:$0xff]
        %v2030 = vld [vmem:[%s1994 + $0x118] sm:$0xff]
        %v2031 = vld [vmem:[%s1994 + $0x120] sm:$0xff]
        %v2032 = vld [vmem:[%s1994 + $0x128] sm:$0xff]
        %v2033 = vld [vmem:[%s1994 + $0x130] sm:$0xff]
        %v2034 = vld [vmem:[%s1994 + $0x138] sm:$0xff]
        %v2035 = vld [vmem:[%s1994 + $0x140] sm:$0xff]
        %v2036 = vld [vmem:[%s1994 + $0x148] sm:$0xff]
        %v2037 = vld [vmem:[%s1994 + $0x150] sm:$0xff]
        %v2038 = vld [vmem:[%s1994 + $0x158] sm:$0xff]
        %v2039 = vld [vmem:[%s1994 + $0x160] sm:$0xff]
        %v2040 = vld [vmem:[%s1994 + $0x168] sm:$0xff]
        %v2041 = vld [vmem:[%s1994 + $0x170] sm:$0xff]
        %v2042 = vld [vmem:[%s1994 + $0x178] sm:$0xff]
        %v2043 = vld [vmem:[%s1994 + $0x180] sm:$0xff]
        %v2044 = vld [vmem:[%s1994 + $0x188] sm:$0xff]
        %v2045 = vld [vmem:[%s1994 + $0x190] sm:$0xff]
        %v2046 = vld [vmem:[%s1994 + $0x198] sm:$0xff]
        %v2047 = vld [vmem:[%s1994 + $0x1a0] sm:$0xff]
        %v2048 = vld [vmem:[%s1994 + $0x1a8] sm:$0xff]
        %v2049 = vld [vmem:[%s1994 + $0x1b0] sm:$0xff]
        %v2050 = vld [vmem:[%s1994 + $0x1b8] sm:$0xff]
        %v2051 = vld [vmem:[%s1994 + $0x1c0] sm:$0xff]
        %v2052 = vld [vmem:[%s1994 + $0x1c8] sm:$0xff]
        %v2053 = vld [vmem:[%s1994 + $0x1d0] sm:$0xff]
        %v2054 = vld [vmem:[%s1994 + $0x1d8] sm:$0xff]
        %v2055 = vld [vmem:[%s1994 + $0x1e0] sm:$0xff]
        %v2056 = vld [vmem:[%s1994 + $0x1e8] sm:$0xff]
        %v2057 = vld [vmem:[%s1994 + $0x1f0] sm:$0xff]
        %v2058 = vld [vmem:[%s1994 + $0x1f8] sm:$0xff]
        %v2059 = vld [vmem:[%s1994 + $0x200] sm:$0xff]
        %v2060 = vld [vmem:[%s1994 + $0x208] sm:$0xff]
        %v2061 = vld [vmem:[%s1994 + $0x210] sm:$0xff]
        %v2062 = vld [vmem:[%s1994 + $0x218] sm:$0xff]
        %v2063 = vld [vmem:[%s1994 + $0x220] sm:$0xff]
        %v2064 = vld [vmem:[%s1994 + $0x228] sm:$0xff]
        %v2065 = vld [vmem:[%s1994 + $0x230] sm:$0xff]
        %v2066 = vld [vmem:[%s1994 + $0x238] sm:$0xff]
        %v2067 = vld [vmem:[%s1994 + $0x240] sm:$0xff]
        %v2068 = vld [vmem:[%s1994 + $0x248] sm:$0xff]
        %v2069 = vld [vmem:[%s1994 + $0x250] sm:$0xff]
        %v2070 = vld [vmem:[%s1994 + $0x258] sm:$0xff]
        %v2071 = vld [vmem:[%s1994 + $0x260] sm:$0xff]
        %v2072 = vld [vmem:[%s1994 + $0x268] sm:$0xff]
        %v2073 = vld [vmem:[%s1994 + $0x270] sm:$0xff]
        %v2074 = vld [vmem:[%s1994 + $0x278] sm:$0xff]
        %v2075 = vld [vmem:[%s1994 + $0x280] sm:$0xff]
        %v2076 = vld [vmem:[%s1994 + $0x288] sm:$0xff]
        %v2077 = vld [vmem:[%s1994 + $0x290] sm:$0xff]
        %v2078 = vld [vmem:[%s1994 + $0x298] sm:$0xff]
        %v2079 = vld [vmem:[%s1994 + $0x2a0] sm:$0xff]
        %v2080 = vld [vmem:[%s1994 + $0x2a8] sm:$0xff]
        %v2081 = vld [vmem:[%s1994 + $0x2b0] sm:$0xff]
        %v2082 = vld [vmem:[%s1994 + $0x2b8] sm:$0xff]
        %v2083 = vld [vmem:[%s1994 + $0x2c0] sm:$0xff]
        %v2084 = vld [vmem:[%s1994 + $0x2c8] sm:$0xff]
        %v2085 = vld [vmem:[%s1994 + $0x2d0] sm:$0xff]
        %v2086 = vld [vmem:[%s1994 + $0x2d8] sm:$0xff]
        %v2087 = vld [vmem:[%s1994 + $0x2e0] sm:$0xff]
        %v2088 = vld [vmem:[%s1994 + $0x2e8] sm:$0xff]
        %v2089 = vld [vmem:[%s1994 + $0x2f0] sm:$0xff]
        %v2090 = vld [vmem:[%s1994 + $0x2f8] sm:$0xff]
        %v2115 = vunpack.c.l.b16 %v1970
        %v2116 = vunpack.c.h.b16 %v1970
        %v2117 = vunpack.c.l.b16 %v1971
        %v2118 = vunpack.c.h.b16 %v1971
        %v2119 = vunpack.c.l.b16 %v1972
        %v2120 = vunpack.c.h.b16 %v1972
        %v2121 = vunpack.c.l.b16 %v1973
        %v2122 = vunpack.c.h.b16 %v1973
        %v2123 = vunpack.c.l.b16 %v1974
        %v2124 = vunpack.c.h.b16 %v1974
        %v2125 = vunpack.c.l.b16 %v1975
        %v2126 = vunpack.c.h.b16 %v1975
        %v2127 = vunpack.c.l.b16 %v1976
        %v2128 = vunpack.c.h.b16 %v1976
        %v2129 = vunpack.c.l.b16 %v1977
        %v2130 = vunpack.c.h.b16 %v1977
        %v2131 = vunpack.c.l.b16 %v1978
        %v2132 = vunpack.c.h.b16 %v1978
        %v2133 = vunpack.c.l.b16 %v1979
        %v2134 = vunpack.c.h.b16 %v1979
        %v2135 = vunpack.c.l.b16 %v1980
        %v2136 = vunpack.c.h.b16 %v1980
        %v2137 = vunpack.c.l.b16 %v1981
        %v2138 = vunpack.c.h.b16 %v1981
        %v2139 = vunpack.c.l.b16 %v1982
        %v2140 = vunpack.c.h.b16 %v1982
        %v2141 = vunpack.c.l.b16 %v1983
        %v2142 = vunpack.c.h.b16 %v1983
        %v2143 = vunpack.c.l.b16 %v1984
        %v2144 = vunpack.c.h.b16 %v1984
        %v2145 = vunpack.c.l.b16 %v1985
        %v2146 = vunpack.c.h.b16 %v1985
        %v2147 = vunpack.c.l.b16 %v1986
        %v2148 = vunpack.c.h.b16 %v1986
        %v2149 = vunpack.c.l.b16 %v1987
        %v2150 = vunpack.c.h.b16 %v1987
        %v2151 = vunpack.c.l.b16 %v1988
        %v2152 = vunpack.c.h.b16 %v1988
        %v2153 = vunpack.c.l.b16 %v1989
        %v2154 = vunpack.c.h.b16 %v1989
        %v2155 = vunpack.c.l.b16 %v1990
        %v2156 = vunpack.c.h.b16 %v1990
        %v2157 = vunpack.c.l.b16 %v1991
        %v2158 = vunpack.c.h.b16 %v1991
        %v2159 = vunpack.c.l.b16 %v1992
        %v2160 = vunpack.c.h.b16 %v1992
        %v2161 = vunpack.c.l.b16 %v1993
        %v2162 = vunpack.c.h.b16 %v1993
        %v2163 = vpack.c.b16 %v2121, %v2115
        %v2164 = vpack.c.b16 %v2122, %v2116
        %v2165 = vpack.c.b16 %v2123, %v2117
        %v2166 = vpack.c.b16 %v2124, %v2118
        %v2167 = vpack.c.b16 %v2125, %v2119
        %v2168 = vpack.c.b16 %v2126, %v2120
        %v2169 = vpack.c.b16 %v2133, %v2127
        %v2170 = vpack.c.b16 %v2134, %v2128
        %v2171 = vpack.c.b16 %v2135, %v2129
        %v2172 = vpack.c.b16 %v2136, %v2130
        %v2173 = vpack.c.b16 %v2137, %v2131
        %v2174 = vpack.c.b16 %v2138, %v2132
        %v2175 = vpack.c.b16 %v2145, %v2139
        %v2176 = vpack.c.b16 %v2146, %v2140
        %v2177 = vpack.c.b16 %v2147, %v2141
        %v2178 = vpack.c.b16 %v2148, %v2142
        %v2179 = vpack.c.b16 %v2149, %v2143
        %v2180 = vpack.c.b16 %v2150, %v2144
        %v2181 = vpack.c.b16 %v2157, %v2151
        %v2182 = vpack.c.b16 %v2158, %v2152
        %v2183 = vpack.c.b16 %v2159, %v2153
        %v2184 = vpack.c.b16 %v2160, %v2154
        %v2185 = vpack.c.b16 %v2161, %v2155
        %v2186 = vpack.c.b16 %v2162, %v2156
        %v2307 = vunpack.c.l.b16 %v1995
        %v2308 = vunpack.c.h.b16 %v1995
        %v2309 = vunpack.c.l.b16 %v1996
        %v2310 = vunpack.c.h.b16 %v1996
        %v2311 = vunpack.c.l.b16 %v1997
        %v2312 = vunpack.c.h.b16 %v1997
        %v2313 = vunpack.c.l.b16 %v1998
        %v2314 = vunpack.c.h.b16 %v1998
        %v2315 = vunpack.c.l.b16 %v1999
        %v2316 = vunpack.c.h.b16 %v1999
        %v2317 = vunpack.c.l.b16 %v2000
        %v2318 = vunpack.c.h.b16 %v2000
        %v2319 = vunpack.c.l.b16 %v2001
        %v2320 = vunpack.c.h.b16 %v2001
        %v2321 = vunpack.c.l.b16 %v2002
        %v2322 = vunpack.c.h.b16 %v2002
        %v2323 = vunpack.c.l.b16 %v2003
        %v2324 = vunpack.c.h.b16 %v2003
        %v2325 = vunpack.c.l.b16 %v2004
        %v2326 = vunpack.c.h.b16 %v2004
        %v2327 = vunpack.c.l.b16 %v2005
        %v2328 = vunpack.c.h.b16 %v2005
        %v2329 = vunpack.c.l.b16 %v2006
        %v2330 = vunpack.c.h.b16 %v2006
        %v2331 = vunpack.c.l.b16 %v2007
        %v2332 = vunpack.c.h.b16 %v2007
        %v2333 = vunpack.c.l.b16 %v2008
        %v2334 = vunpack.c.h.b16 %v2008
        %v2335 = vunpack.c.l.b16 %v2009
        %v2336 = vunpack.c.h.b16 %v2009
        %v2337 = vunpack.c.l.b16 %v2010
        %v2338 = vunpack.c.h.b16 %v2010
        %v2339 = vunpack.c.l.b16 %v2011
        %v2340 = vunpack.c.h.b16 %v2011
        %v2341 = vunpack.c.l.b16 %v2012
        %v2342 = vunpack.c.h.b16 %v2012
        %v2343 = vunpack.c.l.b16 %v2013
        %v2344 = vunpack.c.h.b16 %v2013
        %v2345 = vunpack.c.l.b16 %v2014
        %v2346 = vunpack.c.h.b16 %v2014
        %v2347 = vunpack.c.l.b16 %v2015
        %v2348 = vunpack.c.h.b16 %v2015
        %v2349 = vunpack.c.l.b16 %v2016
        %v2350 = vunpack.c.h.b16 %v2016
        %v2351 = vunpack.c.l.b16 %v2017
        %v2352 = vunpack.c.h.b16 %v2017
        %v2353 = vunpack.c.l.b16 %v2018
        %v2354 = vunpack.c.h.b16 %v2018
        %v2355 = vunpack.c.l.b16 %v2019
        %v2356 = vunpack.c.h.b16 %v2019
        %v2357 = vunpack.c.l.b16 %v2020
        %v2358 = vunpack.c.h.b16 %v2020
        %v2359 = vunpack.c.l.b16 %v2021
        %v2360 = vunpack.c.h.b16 %v2021
        %v2361 = vunpack.c.l.b16 %v2022
        %v2362 = vunpack.c.h.b16 %v2022
        %v2363 = vunpack.c.l.b16 %v2023
        %v2364 = vunpack.c.h.b16 %v2023
        %v2365 = vunpack.c.l.b16 %v2024
        %v2366 = vunpack.c.h.b16 %v2024
        %v2367 = vunpack.c.l.b16 %v2025
        %v2368 = vunpack.c.h.b16 %v2025
        %v2369 = vunpack.c.l.b16 %v2026
        %v2370 = vunpack.c.h.b16 %v2026
        %v2371 = vunpack.c.l.b16 %v2027
        %v2372 = vunpack.c.h.b16 %v2027
        %v2373 = vunpack.c.l.b16 %v2028
        %v2374 = vunpack.c.h.b16 %v2028
        %v2375 = vunpack.c.l.b16 %v2029
        %v2376 = vunpack.c.h.b16 %v2029
        %v2377 = vunpack.c.l.b16 %v2030
        %v2378 = vunpack.c.h.b16 %v2030
        %v2379 = vunpack.c.l.b16 %v2031
        %v2380 = vunpack.c.h.b16 %v2031
        %v2381 = vunpack.c.l.b16 %v2032
        %v2382 = vunpack.c.h.b16 %v2032
        %v2383 = vunpack.c.l.b16 %v2033
        %v2384 = vunpack.c.h.b16 %v2033
        %v2385 = vunpack.c.l.b16 %v2034
        %v2386 = vunpack.c.h.b16 %v2034
        %v2387 = vunpack.c.l.b16 %v2035
        %v2388 = vunpack.c.h.b16 %v2035
        %v2389 = vunpack.c.l.b16 %v2036
        %v2390 = vunpack.c.h.b16 %v2036
        %v2391 = vunpack.c.l.b16 %v2037
        %v2392 = vunpack.c.h.b16 %v2037
        %v2393 = vunpack.c.l.b16 %v2038
        %v2394 = vunpack.c.h.b16 %v2038
        %v2395 = vunpack.c.l.b16 %v2039
        %v2396 = vunpack.c.h.b16 %v2039
        %v2397 = vunpack.c.l.b16 %v2040
        %v2398 = vunpack.c.h.b16 %v2040
        %v2399 = vunpack.c.l.b16 %v2041
        %v2400 = vunpack.c.h.b16 %v2041
        %v2401 = vunpack.c.l.b16 %v2042
        %v2402 = vunpack.c.h.b16 %v2042
        %v2403 = vunpack.c.l.b16 %v2043
        %v2404 = vunpack.c.h.b16 %v2043
        %v2405 = vunpack.c.l.b16 %v2044
        %v2406 = vunpack.c.h.b16 %v2044
        %v2407 = vunpack.c.l.b16 %v2045
        %v2408 = vunpack.c.h.b16 %v2045
        %v2409 = vunpack.c.l.b16 %v2046
        %v2410 = vunpack.c.h.b16 %v2046
        %v2411 = vunpack.c.l.b16 %v2047
        %v2412 = vunpack.c.h.b16 %v2047
        %v2413 = vunpack.c.l.b16 %v2048
        %v2414 = vunpack.c.h.b16 %v2048
        %v2415 = vunpack.c.l.b16 %v2049
        %v2416 = vunpack.c.h.b16 %v2049
        %v2417 = vunpack.c.l.b16 %v2050
        %v2418 = vunpack.c.h.b16 %v2050
        %v2419 = vunpack.c.l.b16 %v2051
        %v2420 = vunpack.c.h.b16 %v2051
        %v2421 = vunpack.c.l.b16 %v2052
        %v2422 = vunpack.c.h.b16 %v2052
        %v2423 = vunpack.c.l.b16 %v2053
        %v2424 = vunpack.c.h.b16 %v2053
        %v2425 = vunpack.c.l.b16 %v2054
        %v2426 = vunpack.c.h.b16 %v2054
        %v2427 = vunpack.c.l.b16 %v2055
        %v2428 = vunpack.c.h.b16 %v2055
        %v2429 = vunpack.c.l.b16 %v2056
        %v2430 = vunpack.c.h.b16 %v2056
        %v2431 = vunpack.c.l.b16 %v2057
        %v2432 = vunpack.c.h.b16 %v2057
        %v2433 = vunpack.c.l.b16 %v2058
        %v2434 = vunpack.c.h.b16 %v2058
        %v2435 = vunpack.c.l.b16 %v2059
        %v2436 = vunpack.c.h.b16 %v2059
        %v2437 = vunpack.c.l.b16 %v2060
        %v2438 = vunpack.c.h.b16 %v2060
        %v2439 = vunpack.c.l.b16 %v2061
        %v2440 = vunpack.c.h.b16 %v2061
        %v2441 = vunpack.c.l.b16 %v2062
        %v2442 = vunpack.c.h.b16 %v2062
        %v2443 = vunpack.c.l.b16 %v2063
        %v2444 = vunpack.c.h.b16 %v2063
        %v2445 = vunpack.c.l.b16 %v2064
        %v2446 = vunpack.c.h.b16 %v2064
        %v2447 = vunpack.c.l.b16 %v2065
        %v2448 = vunpack.c.h.b16 %v2065
        %v2449 = vunpack.c.l.b16 %v2066
        %v2450 = vunpack.c.h.b16 %v2066
        %v2451 = vunpack.c.l.b16 %v2067
        %v2452 = vunpack.c.h.b16 %v2067
        %v2453 = vunpack.c.l.b16 %v2068
        %v2454 = vunpack.c.h.b16 %v2068
        %v2455 = vunpack.c.l.b16 %v2069
        %v2456 = vunpack.c.h.b16 %v2069
        %v2457 = vunpack.c.l.b16 %v2070
        %v2458 = vunpack.c.h.b16 %v2070
        %v2459 = vunpack.c.l.b16 %v2071
        %v2460 = vunpack.c.h.b16 %v2071
        %v2461 = vunpack.c.l.b16 %v2072
        %v2462 = vunpack.c.h.b16 %v2072
        %v2463 = vunpack.c.l.b16 %v2073
        %v2464 = vunpack.c.h.b16 %v2073
        %v2465 = vunpack.c.l.b16 %v2074
        %v2466 = vunpack.c.h.b16 %v2074
        %v2467 = vunpack.c.l.b16 %v2075
        %v2468 = vunpack.c.h.b16 %v2075
        %v2469 = vunpack.c.l.b16 %v2076
        %v2470 = vunpack.c.h.b16 %v2076
        %v2471 = vunpack.c.l.b16 %v2077
        %v2472 = vunpack.c.h.b16 %v2077
        %v2473 = vunpack.c.l.b16 %v2078
        %v2474 = vunpack.c.h.b16 %v2078
        %v2475 = vunpack.c.l.b16 %v2079
        %v2476 = vunpack.c.h.b16 %v2079
        %v2477 = vunpack.c.l.b16 %v2080
        %v2478 = vunpack.c.h.b16 %v2080
        %v2479 = vunpack.c.l.b16 %v2081
        %v2480 = vunpack.c.h.b16 %v2081
        %v2481 = vunpack.c.l.b16 %v2082
        %v2482 = vunpack.c.h.b16 %v2082
        %v2483 = vunpack.c.l.b16 %v2083
        %v2484 = vunpack.c.h.b16 %v2083
        %v2485 = vunpack.c.l.b16 %v2084
        %v2486 = vunpack.c.h.b16 %v2084
        %v2487 = vunpack.c.l.b16 %v2085
        %v2488 = vunpack.c.h.b16 %v2085
        %v2489 = vunpack.c.l.b16 %v2086
        %v2490 = vunpack.c.h.b16 %v2086
        %v2491 = vunpack.c.l.b16 %v2087
        %v2492 = vunpack.c.h.b16 %v2087
        %v2493 = vunpack.c.l.b16 %v2088
        %v2494 = vunpack.c.h.b16 %v2088
        %v2495 = vunpack.c.l.b16 %v2089
        %v2496 = vunpack.c.h.b16 %v2089
        %v2497 = vunpack.c.l.b16 %v2090
        %v2498 = vunpack.c.h.b16 %v2090
        %v2499 = vpack.c.b16 %v2309, %v2307
        %v2500 = vpack.c.b16 %v2310, %v2308
        %v2501 = vpack.c.b16 %v2313, %v2311
        %v2502 = vpack.c.b16 %v2314, %v2312
        %v2503 = vpack.c.b16 %v2317, %v2315
        %v2504 = vpack.c.b16 %v2318, %v2316
        %v2505 = vpack.c.b16 %v2321, %v2319
        %v2506 = vpack.c.b16 %v2322, %v2320
        %v2507 = vpack.c.b16 %v2325, %v2323
        %v2508 = vpack.c.b16 %v2326, %v2324
        %v2509 = vpack.c.b16 %v2329, %v2327
        %v2510 = vpack.c.b16 %v2330, %v2328
        %v2511 = vpack.c.b16 %v2333, %v2331
        %v2512 = vpack.c.b16 %v2334, %v2332
        %v2513 = vpack.c.b16 %v2337, %v2335
        %v2514 = vpack.c.b16 %v2338, %v2336
        %v2515 = vpack.c.b16 %v2341, %v2339
        %v2516 = vpack.c.b16 %v2342, %v2340
        %v2517 = vpack.c.b16 %v2345, %v2343
        %v2518 = vpack.c.b16 %v2346, %v2344
        %v2519 = vpack.c.b16 %v2349, %v2347
        %v2520 = vpack.c.b16 %v2350, %v2348
        %v2521 = vpack.c.b16 %v2353, %v2351
        %v2522 = vpack.c.b16 %v2354, %v2352
        %v2523 = vpack.c.b16 %v2357, %v2355
        %v2524 = vpack.c.b16 %v2358, %v2356
        %v2525 = vpack.c.b16 %v2361, %v2359
        %v2526 = vpack.c.b16 %v2362, %v2360
        %v2527 = vpack.c.b16 %v2365, %v2363
        %v2528 = vpack.c.b16 %v2366, %v2364
        %v2529 = vpack.c.b16 %v2369, %v2367
        %v2530 = vpack.c.b16 %v2370, %v2368
        %v2531 = vpack.c.b16 %v2373, %v2371
        %v2532 = vpack.c.b16 %v2374, %v2372
        %v2533 = vpack.c.b16 %v2377, %v2375
        %v2534 = vpack.c.b16 %v2378, %v2376
        %v2535 = vpack.c.b16 %v2381, %v2379
        %v2536 = vpack.c.b16 %v2382, %v2380
        %v2537 = vpack.c.b16 %v2385, %v2383
        %v2538 = vpack.c.b16 %v2386, %v2384
        %v2539 = vpack.c.b16 %v2389, %v2387
        %v2540 = vpack.c.b16 %v2390, %v2388
        %v2541 = vpack.c.b16 %v2393, %v2391
        %v2542 = vpack.c.b16 %v2394, %v2392
        %v2543 = vpack.c.b16 %v2397, %v2395
        %v2544 = vpack.c.b16 %v2398, %v2396
        %v2545 = vpack.c.b16 %v2401, %v2399
        %v2546 = vpack.c.b16 %v2402, %v2400
        %v2547 = vpack.c.b16 %v2405, %v2403
        %v2548 = vpack.c.b16 %v2406, %v2404
        %v2549 = vpack.c.b16 %v2409, %v2407
        %v2550 = vpack.c.b16 %v2410, %v2408
        %v2551 = vpack.c.b16 %v2413, %v2411
        %v2552 = vpack.c.b16 %v2414, %v2412
        %v2553 = vpack.c.b16 %v2417, %v2415
        %v2554 = vpack.c.b16 %v2418, %v2416
        %v2555 = vpack.c.b16 %v2421, %v2419
        %v2556 = vpack.c.b16 %v2422, %v2420
        %v2557 = vpack.c.b16 %v2425, %v2423
        %v2558 = vpack.c.b16 %v2426, %v2424
        %v2559 = vpack.c.b16 %v2429, %v2427
        %v2560 = vpack.c.b16 %v2430, %v2428
        %v2561 = vpack.c.b16 %v2433, %v2431
        %v2562 = vpack.c.b16 %v2434, %v2432
        %v2563 = vpack.c.b16 %v2437, %v2435
        %v2564 = vpack.c.b16 %v2438, %v2436
        %v2565 = vpack.c.b16 %v2441, %v2439
        %v2566 = vpack.c.b16 %v2442, %v2440
        %v2567 = vpack.c.b16 %v2445, %v2443
        %v2568 = vpack.c.b16 %v2446, %v2444
        %v2569 = vpack.c.b16 %v2449, %v2447
        %v2570 = vpack.c.b16 %v2450, %v2448
        %v2571 = vpack.c.b16 %v2453, %v2451
        %v2572 = vpack.c.b16 %v2454, %v2452
        %v2573 = vpack.c.b16 %v2457, %v2455
        %v2574 = vpack.c.b16 %v2458, %v2456
        %v2575 = vpack.c.b16 %v2461, %v2459
        %v2576 = vpack.c.b16 %v2462, %v2460
        %v2577 = vpack.c.b16 %v2465, %v2463
        %v2578 = vpack.c.b16 %v2466, %v2464
        %v2579 = vpack.c.b16 %v2469, %v2467
        %v2580 = vpack.c.b16 %v2470, %v2468
        %v2581 = vpack.c.b16 %v2473, %v2471
        %v2582 = vpack.c.b16 %v2474, %v2472
        %v2583 = vpack.c.b16 %v2477, %v2475
        %v2584 = vpack.c.b16 %v2478, %v2476
        %v2585 = vpack.c.b16 %v2481, %v2479
        %v2586 = vpack.c.b16 %v2482, %v2480
        %v2587 = vpack.c.b16 %v2485, %v2483
        %v2588 = vpack.c.b16 %v2486, %v2484
        %v2589 = vpack.c.b16 %v2489, %v2487
        %v2590 = vpack.c.b16 %v2490, %v2488
        %v2591 = vpack.c.b16 %v2493, %v2491
        %v2592 = vpack.c.b16 %v2494, %v2492
        %v2593 = vpack.c.b16 %v2497, %v2495
        %v2594 = vpack.c.b16 %v2498, %v2496
        %2691 = vmatprep.subr.bf16.mxu0 %v2500
        %2692 = vmatpush1.bf16.msra.mxu0 %v2499
        %2693 = vmatprep.subr.bf16.mxu0 %v2502
        %2694 = vmatpush1.bf16.msra.mxu0 %v2501
        %2695 = vmatprep.subr.bf16.mxu0 %v2504
        %2696 = vmatpush1.bf16.msra.mxu0 %v2503
        %2697 = vmatprep.subr.bf16.mxu0 %v2506
        %2698 = vmatpush1.bf16.msra.mxu0 %v2505
        %2699 = vmatprep.subr.bf16.mxu0 %v2508
        %2700 = vmatpush1.bf16.msra.mxu0 %v2507
        %2701 = vmatprep.subr.bf16.mxu0 %v2510
        %2702 = vmatpush1.bf16.msra.mxu0 %v2509
        %2703 = vmatprep.subr.bf16.mxu0 %v2512
        %2704 = vmatpush1.bf16.msra.mxu0 %v2511
        %2705 = vmatprep.subr.bf16.mxu0 %v2514
        %2706 = vmatpush1.bf16.msra.mxu0 %v2513
        %2707 = vmatprep.subr.bf16.mxu0 %v2516
        %2708 = vmatpush1.bf16.msra.mxu0 %v2515
        %2709 = vmatprep.subr.bf16.mxu0 %v2518
        %2710 = vmatpush1.bf16.msra.mxu0 %v2517
        %2711 = vmatprep.subr.bf16.mxu0 %v2520
        %2712 = vmatpush1.bf16.msra.mxu0 %v2519
        %2713 = vmatprep.subr.bf16.mxu0 %v2522
        %2714 = vmatpush1.bf16.msra.mxu0 %v2521
        %2715 = vmatprep.subr.bf16.mxu0 %v2524
        %2716 = vmatpush1.bf16.msra.mxu0 %v2523
        %2717 = vmatprep.subr.bf16.mxu0 %v2526
        %2718 = vmatpush1.bf16.msra.mxu0 %v2525
        %2719 = vmatprep.subr.bf16.mxu0 %v2528
        %2720 = vmatpush1.bf16.msra.mxu0 %v2527
        %2721 = vmatprep.subr.bf16.mxu0 %v2530
        %2722 = vmatpush1.bf16.msra.mxu0 %v2529
        %2723 = vmatprep.mubr.bf16.mxu0 %v2164
        %2724 = vmatmul.mubr.bf16.gmra.mrb[0].mxu0 %v2163
        %v2725 = vpop.f32.mrb[0].mxu0
        %v2726 = vadd.f32 0.0, %v2725
        %v2727 = vpop.f32.mrb[0].mxu0
        %v2728 = vadd.f32 0.0, %v2727
        %v2729 = vpop.f32.mrb[0].mxu0
        %v2730 = vadd.f32 0.0, %v2729
        %v2731 = vpop.f32.mrb[0].mxu0
        %v2732 = vadd.f32 0.0, %v2731
        %2733 = vmatprep.mubr.bf16.mxu0 %v2170
        %2734 = vmatmul.mubr.bf16.gmra.mrb[0].mxu0 %v2169
        %v2735 = vpop.f32.mrb[0].mxu0
        %v2736 = vadd.f32 0.0, %v2735
        %v2737 = vpop.f32.mrb[0].mxu0
        %v2738 = vadd.f32 0.0, %v2737
        %v2739 = vpop.f32.mrb[0].mxu0
        %v2740 = vadd.f32 0.0, %v2739
        %v2741 = vpop.f32.mrb[0].mxu0
        %v2742 = vadd.f32 0.0, %v2741
        %2743 = vmatprep.mubr.bf16.mxu0 %v2176
        %2744 = vmatmul.mubr.bf16.gmra.mrb[0].mxu0 %v2175
        %v2745 = vpop.f32.mrb[0].mxu0
        %v2746 = vadd.f32 0.0, %v2745
        %v2747 = vpop.f32.mrb[0].mxu0
        %v2748 = vadd.f32 0.0, %v2747
        %v2749 = vpop.f32.mrb[0].mxu0
        %v2750 = vadd.f32 0.0, %v2749
        %v2751 = vpop.f32.mrb[0].mxu0
        %v2752 = vadd.f32 0.0, %v2751
        %2753 = vmatprep.mubr.bf16.mxu0 %v2182
        %2754 = vmatmul.mubr.bf16.gmra.mrb[0].mxu0 %v2181
        %v2755 = vpop.f32.mrb[0].mxu0
        %v2756 = vadd.f32 0.0, %v2755
        %v2757 = vpop.f32.mrb[0].mxu0
        %v2758 = vadd.f32 0.0, %v2757
        %v2759 = vpop.f32.mrb[0].mxu0
        %v2760 = vadd.f32 0.0, %v2759
        %v2761 = vpop.f32.mrb[0].mxu0
        %v2762 = vadd.f32 0.0, %v2761
        %2763 = vdwg.mxu0
        %2764 = vmatprep.subr.bf16.mxu0 %v2532
        %2765 = vmatpush1.bf16.msra.mxu0 %v2531
        %2766 = vmatprep.subr.bf16.mxu0 %v2534
        %2767 = vmatpush1.bf16.msra.mxu0 %v2533
        %2768 = vmatprep.subr.bf16.mxu0 %v2536
        %2769 = vmatpush1.bf16.msra.mxu0 %v2535
        %2770 = vmatprep.subr.bf16.mxu0 %v2538
        %2771 = vmatpush1.bf16.msra.mxu0 %v2537
        %2772 = vmatprep.subr.bf16.mxu0 %v2540
        %2773 = vmatpush1.bf16.msra.mxu0 %v2539
        %2774 = vmatprep.subr.bf16.mxu0 %v2542
        %2775 = vmatpush1.bf16.msra.mxu0 %v2541
        %2776 = vmatprep.subr.bf16.mxu0 %v2544
        %2777 = vmatpush1.bf16.msra.mxu0 %v2543
        %2778 = vmatprep.subr.bf16.mxu0 %v2546
        %2779 = vmatpush1.bf16.msra.mxu0 %v2545
        %2780 = vmatprep.subr.bf16.mxu0 %v2548
        %2781 = vmatpush1.bf16.msra.mxu0 %v2547
        %2782 = vmatprep.subr.bf16.mxu0 %v2550
        %2783 = vmatpush1.bf16.msra.mxu0 %v2549
        %2784 = vmatprep.subr.bf16.mxu0 %v2552
        %2785 = vmatpush1.bf16.msra.mxu0 %v2551
        %2786 = vmatprep.subr.bf16.mxu0 %v2554
        %2787 = vmatpush1.bf16.msra.mxu0 %v2553
        %2788 = vmatprep.subr.bf16.mxu0 %v2556
        %2789 = vmatpush1.bf16.msra.mxu0 %v2555
        %2790 = vmatprep.subr.bf16.mxu0 %v2558
        %2791 = vmatpush1.bf16.msra.mxu0 %v2557
        %2792 = vmatprep.subr.bf16.mxu0 %v2560
        %2793 = vmatpush1.bf16.msra.mxu0 %v2559
        %2794 = vmatprep.subr.bf16.mxu0 %v2562
        %2795 = vmatpush1.bf16.msra.mxu0 %v2561
        %2796 = vmatprep.mubr.bf16.mxu0 %v2166
        %2797 = vmatmul.mubr.bf16.gmra.mrb[0].mxu0 %v2165
        %v2798 = vpop.f32.mrb[0].mxu0
        %v2799 = vadd.f32 %v2726, %v2798
        %v2800 = vpop.f32.mrb[0].mxu0
        %v2801 = vadd.f32 %v2728, %v2800
        %v2802 = vpop.f32.mrb[0].mxu0
        %v2803 = vadd.f32 %v2730, %v2802
        %v2804 = vpop.f32.mrb[0].mxu0
        %v2805 = vadd.f32 %v2732, %v2804
        %2806 = vmatprep.mubr.bf16.mxu0 %v2172
        %2807 = vmatmul.mubr.bf16.gmra.mrb[0].mxu0 %v2171
        %v2808 = vpop.f32.mrb[0].mxu0
        %v2809 = vadd.f32 %v2736, %v2808
        %v2810 = vpop.f32.mrb[0].mxu0
        %v2811 = vadd.f32 %v2738, %v2810
        %v2812 = vpop.f32.mrb[0].mxu0
        %v2813 = vadd.f32 %v2740, %v2812
        %v2814 = vpop.f32.mrb[0].mxu0
        %v2815 = vadd.f32 %v2742, %v2814
        %2816 = vmatprep.mubr.bf16.mxu0 %v2178
        %2817 = vmatmul.mubr.bf16.gmra.mrb[0].mxu0 %v2177
        %v2818 = vpop.f32.mrb[0].mxu0
        %v2819 = vadd.f32 %v2746, %v2818
        %v2820 = vpop.f32.mrb[0].mxu0
        %v2821 = vadd.f32 %v2748, %v2820
        %v2822 = vpop.f32.mrb[0].mxu0
        %v2823 = vadd.f32 %v2750, %v2822
        %v2824 = vpop.f32.mrb[0].mxu0
        %v2825 = vadd.f32 %v2752, %v2824
        %2826 = vmatprep.mubr.bf16.mxu0 %v2184
        %2827 = vmatmul.mubr.bf16.gmra.mrb[0].mxu0 %v2183
        %v2828 = vpop.f32.mrb[0].mxu0
        %v2829 = vadd.f32 %v2756, %v2828
        %v2830 = vpop.f32.mrb[0].mxu0
        %v2831 = vadd.f32 %v2758, %v2830
        %v2832 = vpop.f32.mrb[0].mxu0
        %v2833 = vadd.f32 %v2760, %v2832
        %v2834 = vpop.f32.mrb[0].mxu0
        %v2835 = vadd.f32 %v2762, %v2834
        %2836 = vdwg.mxu0
        %2837 = vmatprep.subr.bf16.mxu0 %v2564
        %2838 = vmatpush1.bf16.msra.mxu0 %v2563
        %2839 = vmatprep.subr.bf16.mxu0 %v2566
        %2840 = vmatpush1.bf16.msra.mxu0 %v2565
        %2841 = vmatprep.subr.bf16.mxu0 %v2568
        %2842 = vmatpush1.bf16.msra.mxu0 %v2567
        %2843 = vmatprep.subr.bf16.mxu0 %v2570
        %2844 = vmatpush1.bf16.msra.mxu0 %v2569
        %2845 = vmatprep.subr.bf16.mxu0 %v2572
        %2846 = vmatpush1.bf16.msra.mxu0 %v2571
        %2847 = vmatprep.subr.bf16.mxu0 %v2574
        %2848 = vmatpush1.bf16.msra.mxu0 %v2573
        %2849 = vmatprep.subr.bf16.mxu0 %v2576
        %2850 = vmatpush1.bf16.msra.mxu0 %v2575
        %2851 = vmatprep.subr.bf16.mxu0 %v2578
        %2852 = vmatpush1.bf16.msra.mxu0 %v2577
        %2853 = vmatprep.subr.bf16.mxu0 %v2580
        %2854 = vmatpush1.bf16.msra.mxu0 %v2579
        %2855 = vmatprep.subr.bf16.mxu0 %v2582
        %2856 = vmatpush1.bf16.msra.mxu0 %v2581
        %2857 = vmatprep.subr.bf16.mxu0 %v2584
        %2858 = vmatpush1.bf16.msra.mxu0 %v2583
        %2859 = vmatprep.subr.bf16.mxu0 %v2586
        %2860 = vmatpush1.bf16.msra.mxu0 %v2585
        %2861 = vmatprep.subr.bf16.mxu0 %v2588
        %2862 = vmatpush1.bf16.msra.mxu0 %v2587
        %2863 = vmatprep.subr.bf16.mxu0 %v2590
        %2864 = vmatpush1.bf16.msra.mxu0 %v2589
        %2865 = vmatprep.subr.bf16.mxu0 %v2592
        %2866 = vmatpush1.bf16.msra.mxu0 %v2591
        %2867 = vmatprep.subr.bf16.mxu0 %v2594
        %2868 = vmatpush1.bf16.msra.mxu0 %v2593
        %2869 = vmatprep.mubr.bf16.mxu0 %v2168
        %2870 = vmatmul.mubr.bf16.gmra.mrb[0].mxu0 %v2167
        %v2871 = vpop.f32.mrb[0].mxu0
        %v2872 = vadd.f32 %v2799, %v2871
        %v2873 = vpop.f32.mrb[0].mxu0
        %v2874 = vadd.f32 %v2801, %v2873
        %v2875 = vpop.f32.mrb[0].mxu0
        %v2876 = vadd.f32 %v2803, %v2875
        %v2877 = vpop.f32.mrb[0].mxu0
        %v2878 = vadd.f32 %v2805, %v2877
        %2879 = vmatprep.mubr.bf16.mxu0 %v2174
        %2880 = vmatmul.mubr.bf16.gmra.mrb[0].mxu0 %v2173
        %v2881 = vpop.f32.mrb[0].mxu0
        %v2882 = vadd.f32 %v2809, %v2881
        %v2883 = vpop.f32.mrb[0].mxu0
        %v2884 = vadd.f32 %v2811, %v2883
        %v2885 = vpop.f32.mrb[0].mxu0
        %v2886 = vadd.f32 %v2813, %v2885
        %v2887 = vpop.f32.mrb[0].mxu0
        %v2888 = vadd.f32 %v2815, %v2887
        %2889 = vmatprep.mubr.bf16.mxu0 %v2180
        %2890 = vmatmul.mubr.bf16.gmra.mrb[0].mxu0 %v2179
        %v2891 = vpop.f32.mrb[0].mxu0
        %v2892 = vadd.f32 %v2819, %v2891
        %v2893 = vpop.f32.mrb[0].mxu0
        %v2894 = vadd.f32 %v2821, %v2893
        %v2895 = vpop.f32.mrb[0].mxu0
        %v2896 = vadd.f32 %v2823, %v2895
        %v2897 = vpop.f32.mrb[0].mxu0
        %v2898 = vadd.f32 %v2825, %v2897
        %2899 = vmatprep.mubr.bf16.mxu0 %v2186
        %2900 = vmatmul.mubr.bf16.gmra.mrb[0].mxu0 %v2185
        %v2901 = vpop.f32.mrb[0].mxu0
        %v2902 = vadd.f32 %v2829, %v2901
        %v2903 = vpop.f32.mrb[0].mxu0
        %v2904 = vadd.f32 %v2831, %v2903
        %v2905 = vpop.f32.mrb[0].mxu0
        %v2906 = vadd.f32 %v2833, %v2905
        %v2907 = vpop.f32.mrb[0].mxu0
        %v2908 = vadd.f32 %v2835, %v2907
        %2909 = vdwg.mxu0
        %v2910 = vadd.f32 %v1953, %v2872
        %v2911 = vadd.f32 %v1954, %v2874
        %v2912 = vadd.f32 %v1955, %v2876
        %v2913 = vadd.f32 %v1956, %v2878
        %v2914 = vadd.f32 %v1957, %v2882
        %v2915 = vadd.f32 %v1958, %v2884
        %v2916 = vadd.f32 %v1959, %v2886
        %v2917 = vadd.f32 %v1960, %v2888
        %v2918 = vadd.f32 %v1961, %v2892
        %v2919 = vadd.f32 %v1962, %v2894
        %v2920 = vadd.f32 %v1963, %v2896
        %v2921 = vadd.f32 %v1964, %v2898
        %v2922 = vadd.f32 %v1965, %v2902
        %v2923 = vadd.f32 %v1966, %v2904
        %v2924 = vadd.f32 %v1967, %v2906
        %v2925 = vadd.f32 %v1968, %v2908
        %2926 = vst [vmem:[#allocation4] sm:$0xff] %v2910
        %2927 = vst [vmem:[#allocation4 + $0x8] sm:$0xff] %v2911
        %2928 = vst [vmem:[#allocation4 + $0x10] sm:$0xff] %v2912
        %2929 = vst [vmem:[#allocation4 + $0x18] sm:$0xff] %v2913
        %2930 = vst [vmem:[#allocation4 + $0x20] sm:$0xff] %v2914
        %2931 = vst [vmem:[#allocation4 + $0x28] sm:$0xff] %v2915
        %2932 = vst [vmem:[#allocation4 + $0x30] sm:$0xff] %v2916
        %2933 = vst [vmem:[#allocation4 + $0x38] sm:$0xff] %v2917
        %2934 = vst [vmem:[#allocation4 + $0x40] sm:$0xff] %v2918
        %2935 = vst [vmem:[#allocation4 + $0x48] sm:$0xff] %v2919
        %2936 = vst [vmem:[#allocation4 + $0x50] sm:$0xff] %v2920
        %2937 = vst [vmem:[#allocation4 + $0x58] sm:$0xff] %v2921
        %2938 = vst [vmem:[#allocation4 + $0x60] sm:$0xff] %v2922
        %2939 = vst [vmem:[#allocation4 + $0x68] sm:$0xff] %v2923
        %2940 = vst [vmem:[#allocation4 + $0x70] sm:$0xff] %v2924
        %2941 = vst [vmem:[#allocation4 + $0x78] sm:$0xff] %v2925
        %v2942 = vld [vmem:[#allocation4] sm:$0xff]
        %v2943 = vld [vmem:[#allocation4 + $0x8] sm:$0xff]
        %v2944 = vld [vmem:[#allocation4 + $0x10] sm:$0xff]
        %v2945 = vld [vmem:[#allocation4 + $0x18] sm:$0xff]
        %v2946 = vld [vmem:[#allocation4 + $0x20] sm:$0xff]
        %v2947 = vld [vmem:[#allocation4 + $0x28] sm:$0xff]
        %v2948 = vld [vmem:[#allocation4 + $0x30] sm:$0xff]
        %v2949 = vld [vmem:[#allocation4 + $0x38] sm:$0xff]
        %v2950 = vld [vmem:[#allocation4 + $0x40] sm:$0xff]
        %v2951 = vld [vmem:[#allocation4 + $0x48] sm:$0xff]
        %v2952 = vld [vmem:[#allocation4 + $0x50] sm:$0xff]
        %v2953 = vld [vmem:[#allocation4 + $0x58] sm:$0xff]
        %v2954 = vld [vmem:[#allocation4 + $0x60] sm:$0xff]
        %v2955 = vld [vmem:[#allocation4 + $0x68] sm:$0xff]
        %v2956 = vld [vmem:[#allocation4 + $0x70] sm:$0xff]
        %v2957 = vld [vmem:[#allocation4 + $0x78] sm:$0xff]
        %s2958 = scalar_lea.vmem [#allocation3], 48
        %v2959 = vld [vmem:[%s2958] sm:$0xff]
        %v2960 = vld [vmem:[%s2958 + $0x8] sm:$0xff]
        %v2961 = vld [vmem:[%s2958 + $0x10] sm:$0xff]
        %v2962 = vld [vmem:[%s2958 + $0x18] sm:$0xff]
        %v2963 = vld [vmem:[%s2958 + $0x20] sm:$0xff]
        %v2964 = vld [vmem:[%s2958 + $0x28] sm:$0xff]
        %v2965 = vld [vmem:[%s2958 + $0x30] sm:$0xff]
        %v2966 = vld [vmem:[%s2958 + $0x38] sm:$0xff]
        %v2967 = vld [vmem:[%s2958 + $0x40] sm:$0xff]
        %v2968 = vld [vmem:[%s2958 + $0x48] sm:$0xff]
        %v2969 = vld [vmem:[%s2958 + $0x50] sm:$0xff]
        %v2970 = vld [vmem:[%s2958 + $0x58] sm:$0xff]
        %v2971 = vld [vmem:[%s2958 + $0x60] sm:$0xff]
        %v2972 = vld [vmem:[%s2958 + $0x68] sm:$0xff]
        %v2973 = vld [vmem:[%s2958 + $0x70] sm:$0xff]
        %v2974 = vld [vmem:[%s2958 + $0x78] sm:$0xff]
        %v2975 = vld [vmem:[%s2958 + $0x80] sm:$0xff]
        %v2976 = vld [vmem:[%s2958 + $0x88] sm:$0xff]
        %v2977 = vld [vmem:[%s2958 + $0x90] sm:$0xff]
        %v2978 = vld [vmem:[%s2958 + $0x98] sm:$0xff]
        %v2979 = vld [vmem:[%s2958 + $0xa0] sm:$0xff]
        %v2980 = vld [vmem:[%s2958 + $0xa8] sm:$0xff]
        %v2981 = vld [vmem:[%s2958 + $0xb0] sm:$0xff]
        %v2982 = vld [vmem:[%s2958 + $0xb8] sm:$0xff]
        %s2983 = scalar_lea.vmem [#allocation8], 1536
        %v2984 = vld [vmem:[%s2983] sm:$0xff]
        %v2985 = vld [vmem:[%s2983 + $0x8] sm:$0xff]
        %v2986 = vld [vmem:[%s2983 + $0x10] sm:$0xff]
        %v2987 = vld [vmem:[%s2983 + $0x18] sm:$0xff]
        %v2988 = vld [vmem:[%s2983 + $0x20] sm:$0xff]
        %v2989 = vld [vmem:[%s2983 + $0x28] sm:$0xff]
        %v2990 = vld [vmem:[%s2983 + $0x30] sm:$0xff]
        %v2991 = vld [vmem:[%s2983 + $0x38] sm:$0xff]
        %v2992 = vld [vmem:[%s2983 + $0x40] sm:$0xff]
        %v2993 = vld [vmem:[%s2983 + $0x48] sm:$0xff]
        %v2994 = vld [vmem:[%s2983 + $0x50] sm:$0xff]
        %v2995 = vld [vmem:[%s2983 + $0x58] sm:$0xff]
        %v2996 = vld [vmem:[%s2983 + $0x60] sm:$0xff]
        %v2997 = vld [vmem:[%s2983 + $0x68] sm:$0xff]
        %v2998 = vld [vmem:[%s2983 + $0x70] sm:$0xff]
        %v2999 = vld [vmem:[%s2983 + $0x78] sm:$0xff]
        %v3000 = vld [vmem:[%s2983 + $0x80] sm:$0xff]
        %v3001 = vld [vmem:[%s2983 + $0x88] sm:$0xff]
        %v3002 = vld [vmem:[%s2983 + $0x90] sm:$0xff]
        %v3003 = vld [vmem:[%s2983 + $0x98] sm:$0xff]
        %v3004 = vld [vmem:[%s2983 + $0xa0] sm:$0xff]
        %v3005 = vld [vmem:[%s2983 + $0xa8] sm:$0xff]
        %v3006 = vld [vmem:[%s2983 + $0xb0] sm:$0xff]
        %v3007 = vld [vmem:[%s2983 + $0xb8] sm:$0xff]
        %v3008 = vld [vmem:[%s2983 + $0xc0] sm:$0xff]
        %v3009 = vld [vmem:[%s2983 + $0xc8] sm:$0xff]
        %v3010 = vld [vmem:[%s2983 + $0xd0] sm:$0xff]
        %v3011 = vld [vmem:[%s2983 + $0xd8] sm:$0xff]
        %v3012 = vld [vmem:[%s2983 + $0xe0] sm:$0xff]
        %v3013 = vld [vmem:[%s2983 + $0xe8] sm:$0xff]
        %v3014 = vld [vmem:[%s2983 + $0xf0] sm:$0xff]
        %v3015 = vld [vmem:[%s2983 + $0xf8] sm:$0xff]
        %v3016 = vld [vmem:[%s2983 + $0x100] sm:$0xff]
        %v3017 = vld [vmem:[%s2983 + $0x108] sm:$0xff]
        %v3018 = vld [vmem:[%s2983 + $0x110] sm:$0xff]
        %v3019 = vld [vmem:[%s2983 + $0x118] sm:$0xff]
        %v3020 = vld [vmem:[%s2983 + $0x120] sm:$0xff]
        %v3021 = vld [vmem:[%s2983 + $0x128] sm:$0xff]
        %v3022 = vld [vmem:[%s2983 + $0x130] sm:$0xff]
        %v3023 = vld [vmem:[%s2983 + $0x138] sm:$0xff]
        %v3024 = vld [vmem:[%s2983 + $0x140] sm:$0xff]
        %v3025 = vld [vmem:[%s2983 + $0x148] sm:$0xff]
        %v3026 = vld [vmem:[%s2983 + $0x150] sm:$0xff]
        %v3027 = vld [vmem:[%s2983 + $0x158] sm:$0xff]
        %v3028 = vld [vmem:[%s2983 + $0x160] sm:$0xff]
        %v3029 = vld [vmem:[%s2983 + $0x168] sm:$0xff]
        %v3030 = vld [vmem:[%s2983 + $0x170] sm:$0xff]
        %v3031 = vld [vmem:[%s2983 + $0x178] sm:$0xff]
        %v3032 = vld [vmem:[%s2983 + $0x180] sm:$0xff]
        %v3033 = vld [vmem:[%s2983 + $0x188] sm:$0xff]
        %v3034 = vld [vmem:[%s2983 + $0x190] sm:$0xff]
        %v3035 = vld [vmem:[%s2983 + $0x198] sm:$0xff]
        %v3036 = vld [vmem:[%s2983 + $0x1a0] sm:$0xff]
        %v3037 = vld [vmem:[%s2983 + $0x1a8] sm:$0xff]
        %v3038 = vld [vmem:[%s2983 + $0x1b0] sm:$0xff]
        %v3039 = vld [vmem:[%s2983 + $0x1b8] sm:$0xff]
        %v3040 = vld [vmem:[%s2983 + $0x1c0] sm:$0xff]
        %v3041 = vld [vmem:[%s2983 + $0x1c8] sm:$0xff]
        %v3042 = vld [vmem:[%s2983 + $0x1d0] sm:$0xff]
        %v3043 = vld [vmem:[%s2983 + $0x1d8] sm:$0xff]
        %v3044 = vld [vmem:[%s2983 + $0x1e0] sm:$0xff]
        %v3045 = vld [vmem:[%s2983 + $0x1e8] sm:$0xff]
        %v3046 = vld [vmem:[%s2983 + $0x1f0] sm:$0xff]
        %v3047 = vld [vmem:[%s2983 + $0x1f8] sm:$0xff]
        %v3048 = vld [vmem:[%s2983 + $0x200] sm:$0xff]
        %v3049 = vld [vmem:[%s2983 + $0x208] sm:$0xff]
        %v3050 = vld [vmem:[%s2983 + $0x210] sm:$0xff]
        %v3051 = vld [vmem:[%s2983 + $0x218] sm:$0xff]
        %v3052 = vld [vmem:[%s2983 + $0x220] sm:$0xff]
        %v3053 = vld [vmem:[%s2983 + $0x228] sm:$0xff]
        %v3054 = vld [vmem:[%s2983 + $0x230] sm:$0xff]
        %v3055 = vld [vmem:[%s2983 + $0x238] sm:$0xff]
        %v3056 = vld [vmem:[%s2983 + $0x240] sm:$0xff]
        %v3057 = vld [vmem:[%s2983 + $0x248] sm:$0xff]
        %v3058 = vld [vmem:[%s2983 + $0x250] sm:$0xff]
        %v3059 = vld [vmem:[%s2983 + $0x258] sm:$0xff]
        %v3060 = vld [vmem:[%s2983 + $0x260] sm:$0xff]
        %v3061 = vld [vmem:[%s2983 + $0x268] sm:$0xff]
        %v3062 = vld [vmem:[%s2983 + $0x270] sm:$0xff]
        %v3063 = vld [vmem:[%s2983 + $0x278] sm:$0xff]
        %v3064 = vld [vmem:[%s2983 + $0x280] sm:$0xff]
        %v3065 = vld [vmem:[%s2983 + $0x288] sm:$0xff]
        %v3066 = vld [vmem:[%s2983 + $0x290] sm:$0xff]
        %v3067 = vld [vmem:[%s2983 + $0x298] sm:$0xff]
        %v3068 = vld [vmem:[%s2983 + $0x2a0] sm:$0xff]
        %v3069 = vld [vmem:[%s2983 + $0x2a8] sm:$0xff]
        %v3070 = vld [vmem:[%s2983 + $0x2b0] sm:$0xff]
        %v3071 = vld [vmem:[%s2983 + $0x2b8] sm:$0xff]
        %v3072 = vld [vmem:[%s2983 + $0x2c0] sm:$0xff]
        %v3073 = vld [vmem:[%s2983 + $0x2c8] sm:$0xff]
        %v3074 = vld [vmem:[%s2983 + $0x2d0] sm:$0xff]
        %v3075 = vld [vmem:[%s2983 + $0x2d8] sm:$0xff]
        %v3076 = vld [vmem:[%s2983 + $0x2e0] sm:$0xff]
        %v3077 = vld [vmem:[%s2983 + $0x2e8] sm:$0xff]
        %v3078 = vld [vmem:[%s2983 + $0x2f0] sm:$0xff]
        %v3079 = vld [vmem:[%s2983 + $0x2f8] sm:$0xff]
        %v3104 = vunpack.c.l.b16 %v2959
        %v3105 = vunpack.c.h.b16 %v2959
        %v3106 = vunpack.c.l.b16 %v2960
        %v3107 = vunpack.c.h.b16 %v2960
        %v3108 = vunpack.c.l.b16 %v2961
        %v3109 = vunpack.c.h.b16 %v2961
        %v3110 = vunpack.c.l.b16 %v2962
        %v3111 = vunpack.c.h.b16 %v2962
        %v3112 = vunpack.c.l.b16 %v2963
        %v3113 = vunpack.c.h.b16 %v2963
        %v3114 = vunpack.c.l.b16 %v2964
        %v3115 = vunpack.c.h.b16 %v2964
        %v3116 = vunpack.c.l.b16 %v2965
        %v3117 = vunpack.c.h.b16 %v2965
        %v3118 = vunpack.c.l.b16 %v2966
        %v3119 = vunpack.c.h.b16 %v2966
        %v3120 = vunpack.c.l.b16 %v2967
        %v3121 = vunpack.c.h.b16 %v2967
        %v3122 = vunpack.c.l.b16 %v2968
        %v3123 = vunpack.c.h.b16 %v2968
        %v3124 = vunpack.c.l.b16 %v2969
        %v3125 = vunpack.c.h.b16 %v2969
        %v3126 = vunpack.c.l.b16 %v2970
        %v3127 = vunpack.c.h.b16 %v2970
        %v3128 = vunpack.c.l.b16 %v2971
        %v3129 = vunpack.c.h.b16 %v2971
        %v3130 = vunpack.c.l.b16 %v2972
        %v3131 = vunpack.c.h.b16 %v2972
        %v3132 = vunpack.c.l.b16 %v2973
        %v3133 = vunpack.c.h.b16 %v2973
        %v3134 = vunpack.c.l.b16 %v2974
        %v3135 = vunpack.c.h.b16 %v2974
        %v3136 = vunpack.c.l.b16 %v2975
        %v3137 = vunpack.c.h.b16 %v2975
        %v3138 = vunpack.c.l.b16 %v2976
        %v3139 = vunpack.c.h.b16 %v2976
        %v3140 = vunpack.c.l.b16 %v2977
        %v3141 = vunpack.c.h.b16 %v2977
        %v3142 = vunpack.c.l.b16 %v2978
        %v3143 = vunpack.c.h.b16 %v2978
        %v3144 = vunpack.c.l.b16 %v2979
        %v3145 = vunpack.c.h.b16 %v2979
        %v3146 = vunpack.c.l.b16 %v2980
        %v3147 = vunpack.c.h.b16 %v2980
        %v3148 = vunpack.c.l.b16 %v2981
        %v3149 = vunpack.c.h.b16 %v2981
        %v3150 = vunpack.c.l.b16 %v2982
        %v3151 = vunpack.c.h.b16 %v2982
        %v3152 = vpack.c.b16 %v3110, %v3104
        %v3153 = vpack.c.b16 %v3111, %v3105
        %v3154 = vpack.c.b16 %v3112, %v3106
        %v3155 = vpack.c.b16 %v3113, %v3107
        %v3156 = vpack.c.b16 %v3114, %v3108
        %v3157 = vpack.c.b16 %v3115, %v3109
        %v3158 = vpack.c.b16 %v3122, %v3116
        %v3159 = vpack.c.b16 %v3123, %v3117
        %v3160 = vpack.c.b16 %v3124, %v3118
        %v3161 = vpack.c.b16 %v3125, %v3119
        %v3162 = vpack.c.b16 %v3126, %v3120
        %v3163 = vpack.c.b16 %v3127, %v3121
        %v3164 = vpack.c.b16 %v3134, %v3128
        %v3165 = vpack.c.b16 %v3135, %v3129
        %v3166 = vpack.c.b16 %v3136, %v3130
        %v3167 = vpack.c.b16 %v3137, %v3131
        %v3168 = vpack.c.b16 %v3138, %v3132
        %v3169 = vpack.c.b16 %v3139, %v3133
        %v3170 = vpack.c.b16 %v3146, %v3140
        %v3171 = vpack.c.b16 %v3147, %v3141
        %v3172 = vpack.c.b16 %v3148, %v3142
        %v3173 = vpack.c.b16 %v3149, %v3143
        %v3174 = vpack.c.b16 %v3150, %v3144
        %v3175 = vpack.c.b16 %v3151, %v3145
        %v3296 = vunpack.c.l.b16 %v2984
        %v3297 = vunpack.c.h.b16 %v2984
        %v3298 = vunpack.c.l.b16 %v2985
        %v3299 = vunpack.c.h.b16 %v2985
        %v3300 = vunpack.c.l.b16 %v2986
        %v3301 = vunpack.c.h.b16 %v2986
        %v3302 = vunpack.c.l.b16 %v2987
        %v3303 = vunpack.c.h.b16 %v2987
        %v3304 = vunpack.c.l.b16 %v2988
        %v3305 = vunpack.c.h.b16 %v2988
        %v3306 = vunpack.c.l.b16 %v2989
        %v3307 = vunpack.c.h.b16 %v2989
        %v3308 = vunpack.c.l.b16 %v2990
        %v3309 = vunpack.c.h.b16 %v2990
        %v3310 = vunpack.c.l.b16 %v2991
        %v3311 = vunpack.c.h.b16 %v2991
        %v3312 = vunpack.c.l.b16 %v2992
        %v3313 = vunpack.c.h.b16 %v2992
        %v3314 = vunpack.c.l.b16 %v2993
        %v3315 = vunpack.c.h.b16 %v2993
        %v3316 = vunpack.c.l.b16 %v2994
        %v3317 = vunpack.c.h.b16 %v2994
        %v3318 = vunpack.c.l.b16 %v2995
        %v3319 = vunpack.c.h.b16 %v2995
        %v3320 = vunpack.c.l.b16 %v2996
        %v3321 = vunpack.c.h.b16 %v2996
        %v3322 = vunpack.c.l.b16 %v2997
        %v3323 = vunpack.c.h.b16 %v2997
        %v3324 = vunpack.c.l.b16 %v2998
        %v3325 = vunpack.c.h.b16 %v2998
        %v3326 = vunpack.c.l.b16 %v2999
        %v3327 = vunpack.c.h.b16 %v2999
        %v3328 = vunpack.c.l.b16 %v3000
        %v3329 = vunpack.c.h.b16 %v3000
        %v3330 = vunpack.c.l.b16 %v3001
        %v3331 = vunpack.c.h.b16 %v3001
        %v3332 = vunpack.c.l.b16 %v3002
        %v3333 = vunpack.c.h.b16 %v3002
        %v3334 = vunpack.c.l.b16 %v3003
        %v3335 = vunpack.c.h.b16 %v3003
        %v3336 = vunpack.c.l.b16 %v3004
        %v3337 = vunpack.c.h.b16 %v3004
        %v3338 = vunpack.c.l.b16 %v3005
        %v3339 = vunpack.c.h.b16 %v3005
        %v3340 = vunpack.c.l.b16 %v3006
        %v3341 = vunpack.c.h.b16 %v3006
        %v3342 = vunpack.c.l.b16 %v3007
        %v3343 = vunpack.c.h.b16 %v3007
        %v3344 = vunpack.c.l.b16 %v3008
        %v3345 = vunpack.c.h.b16 %v3008
        %v3346 = vunpack.c.l.b16 %v3009
        %v3347 = vunpack.c.h.b16 %v3009
        %v3348 = vunpack.c.l.b16 %v3010
        %v3349 = vunpack.c.h.b16 %v3010
        %v3350 = vunpack.c.l.b16 %v3011
        %v3351 = vunpack.c.h.b16 %v3011
        %v3352 = vunpack.c.l.b16 %v3012
        %v3353 = vunpack.c.h.b16 %v3012
        %v3354 = vunpack.c.l.b16 %v3013
        %v3355 = vunpack.c.h.b16 %v3013
        %v3356 = vunpack.c.l.b16 %v3014
        %v3357 = vunpack.c.h.b16 %v3014
        %v3358 = vunpack.c.l.b16 %v3015
        %v3359 = vunpack.c.h.b16 %v3015
        %v3360 = vunpack.c.l.b16 %v3016
        %v3361 = vunpack.c.h.b16 %v3016
        %v3362 = vunpack.c.l.b16 %v3017
        %v3363 = vunpack.c.h.b16 %v3017
        %v3364 = vunpack.c.l.b16 %v3018
        %v3365 = vunpack.c.h.b16 %v3018
        %v3366 = vunpack.c.l.b16 %v3019
        %v3367 = vunpack.c.h.b16 %v3019
        %v3368 = vunpack.c.l.b16 %v3020
        %v3369 = vunpack.c.h.b16 %v3020
        %v3370 = vunpack.c.l.b16 %v3021
        %v3371 = vunpack.c.h.b16 %v3021
        %v3372 = vunpack.c.l.b16 %v3022
        %v3373 = vunpack.c.h.b16 %v3022
        %v3374 = vunpack.c.l.b16 %v3023
        %v3375 = vunpack.c.h.b16 %v3023
        %v3376 = vunpack.c.l.b16 %v3024
        %v3377 = vunpack.c.h.b16 %v3024
        %v3378 = vunpack.c.l.b16 %v3025
        %v3379 = vunpack.c.h.b16 %v3025
        %v3380 = vunpack.c.l.b16 %v3026
        %v3381 = vunpack.c.h.b16 %v3026
        %v3382 = vunpack.c.l.b16 %v3027
        %v3383 = vunpack.c.h.b16 %v3027
        %v3384 = vunpack.c.l.b16 %v3028
        %v3385 = vunpack.c.h.b16 %v3028
        %v3386 = vunpack.c.l.b16 %v3029
        %v3387 = vunpack.c.h.b16 %v3029
        %v3388 = vunpack.c.l.b16 %v3030
        %v3389 = vunpack.c.h.b16 %v3030
        %v3390 = vunpack.c.l.b16 %v3031
        %v3391 = vunpack.c.h.b16 %v3031
        %v3392 = vunpack.c.l.b16 %v3032
        %v3393 = vunpack.c.h.b16 %v3032
        %v3394 = vunpack.c.l.b16 %v3033
        %v3395 = vunpack.c.h.b16 %v3033
        %v3396 = vunpack.c.l.b16 %v3034
        %v3397 = vunpack.c.h.b16 %v3034
        %v3398 = vunpack.c.l.b16 %v3035
        %v3399 = vunpack.c.h.b16 %v3035
        %v3400 = vunpack.c.l.b16 %v3036
        %v3401 = vunpack.c.h.b16 %v3036
        %v3402 = vunpack.c.l.b16 %v3037
        %v3403 = vunpack.c.h.b16 %v3037
        %v3404 = vunpack.c.l.b16 %v3038
        %v3405 = vunpack.c.h.b16 %v3038
        %v3406 = vunpack.c.l.b16 %v3039
        %v3407 = vunpack.c.h.b16 %v3039
        %v3408 = vunpack.c.l.b16 %v3040
        %v3409 = vunpack.c.h.b16 %v3040
        %v3410 = vunpack.c.l.b16 %v3041
        %v3411 = vunpack.c.h.b16 %v3041
        %v3412 = vunpack.c.l.b16 %v3042
        %v3413 = vunpack.c.h.b16 %v3042
        %v3414 = vunpack.c.l.b16 %v3043
        %v3415 = vunpack.c.h.b16 %v3043
        %v3416 = vunpack.c.l.b16 %v3044
        %v3417 = vunpack.c.h.b16 %v3044
        %v3418 = vunpack.c.l.b16 %v3045
        %v3419 = vunpack.c.h.b16 %v3045
        %v3420 = vunpack.c.l.b16 %v3046
        %v3421 = vunpack.c.h.b16 %v3046
        %v3422 = vunpack.c.l.b16 %v3047
        %v3423 = vunpack.c.h.b16 %v3047
        %v3424 = vunpack.c.l.b16 %v3048
        %v3425 = vunpack.c.h.b16 %v3048
        %v3426 = vunpack.c.l.b16 %v3049
        %v3427 = vunpack.c.h.b16 %v3049
        %v3428 = vunpack.c.l.b16 %v3050
        %v3429 = vunpack.c.h.b16 %v3050
        %v3430 = vunpack.c.l.b16 %v3051
        %v3431 = vunpack.c.h.b16 %v3051
        %v3432 = vunpack.c.l.b16 %v3052
        %v3433 = vunpack.c.h.b16 %v3052
        %v3434 = vunpack.c.l.b16 %v3053
        %v3435 = vunpack.c.h.b16 %v3053
        %v3436 = vunpack.c.l.b16 %v3054
        %v3437 = vunpack.c.h.b16 %v3054
        %v3438 = vunpack.c.l.b16 %v3055
        %v3439 = vunpack.c.h.b16 %v3055
        %v3440 = vunpack.c.l.b16 %v3056
        %v3441 = vunpack.c.h.b16 %v3056
        %v3442 = vunpack.c.l.b16 %v3057
        %v3443 = vunpack.c.h.b16 %v3057
        %v3444 = vunpack.c.l.b16 %v3058
        %v3445 = vunpack.c.h.b16 %v3058
        %v3446 = vunpack.c.l.b16 %v3059
        %v3447 = vunpack.c.h.b16 %v3059
        %v3448 = vunpack.c.l.b16 %v3060
        %v3449 = vunpack.c.h.b16 %v3060
        %v3450 = vunpack.c.l.b16 %v3061
        %v3451 = vunpack.c.h.b16 %v3061
        %v3452 = vunpack.c.l.b16 %v3062
        %v3453 = vunpack.c.h.b16 %v3062
        %v3454 = vunpack.c.l.b16 %v3063
        %v3455 = vunpack.c.h.b16 %v3063
        %v3456 = vunpack.c.l.b16 %v3064
        %v3457 = vunpack.c.h.b16 %v3064
        %v3458 = vunpack.c.l.b16 %v3065
        %v3459 = vunpack.c.h.b16 %v3065
        %v3460 = vunpack.c.l.b16 %v3066
        %v3461 = vunpack.c.h.b16 %v3066
        %v3462 = vunpack.c.l.b16 %v3067
        %v3463 = vunpack.c.h.b16 %v3067
        %v3464 = vunpack.c.l.b16 %v3068
        %v3465 = vunpack.c.h.b16 %v3068
        %v3466 = vunpack.c.l.b16 %v3069
        %v3467 = vunpack.c.h.b16 %v3069
        %v3468 = vunpack.c.l.b16 %v3070
        %v3469 = vunpack.c.h.b16 %v3070
        %v3470 = vunpack.c.l.b16 %v3071
        %v3471 = vunpack.c.h.b16 %v3071
        %v3472 = vunpack.c.l.b16 %v3072
        %v3473 = vunpack.c.h.b16 %v3072
        %v3474 = vunpack.c.l.b16 %v3073
        %v3475 = vunpack.c.h.b16 %v3073
        %v3476 = vunpack.c.l.b16 %v3074
        %v3477 = vunpack.c.h.b16 %v3074
        %v3478 = vunpack.c.l.b16 %v3075
        %v3479 = vunpack.c.h.b16 %v3075
        %v3480 = vunpack.c.l.b16 %v3076
        %v3481 = vunpack.c.h.b16 %v3076
        %v3482 = vunpack.c.l.b16 %v3077
        %v3483 = vunpack.c.h.b16 %v3077
        %v3484 = vunpack.c.l.b16 %v3078
        %v3485 = vunpack.c.h.b16 %v3078
        %v3486 = vunpack.c.l.b16 %v3079
        %v3487 = vunpack.c.h.b16 %v3079
        %v3488 = vpack.c.b16 %v3298, %v3296
        %v3489 = vpack.c.b16 %v3299, %v3297
        %v3490 = vpack.c.b16 %v3302, %v3300
        %v3491 = vpack.c.b16 %v3303, %v3301
        %v3492 = vpack.c.b16 %v3306, %v3304
        %v3493 = vpack.c.b16 %v3307, %v3305
        %v3494 = vpack.c.b16 %v3310, %v3308
        %v3495 = vpack.c.b16 %v3311, %v3309
        %v3496 = vpack.c.b16 %v3314, %v3312
        %v3497 = vpack.c.b16 %v3315, %v3313
        %v3498 = vpack.c.b16 %v3318, %v3316
        %v3499 = vpack.c.b16 %v3319, %v3317
        %v3500 = vpack.c.b16 %v3322, %v3320
        %v3501 = vpack.c.b16 %v3323, %v3321
        %v3502 = vpack.c.b16 %v3326, %v3324
        %v3503 = vpack.c.b16 %v3327, %v3325
        %v3504 = vpack.c.b16 %v3330, %v3328
        %v3505 = vpack.c.b16 %v3331, %v3329
        %v3506 = vpack.c.b16 %v3334, %v3332
        %v3507 = vpack.c.b16 %v3335, %v3333
        %v3508 = vpack.c.b16 %v3338, %v3336
        %v3509 = vpack.c.b16 %v3339, %v3337
        %v3510 = vpack.c.b16 %v3342, %v3340
        %v3511 = vpack.c.b16 %v3343, %v3341
        %v3512 = vpack.c.b16 %v3346, %v3344
        %v3513 = vpack.c.b16 %v3347, %v3345
        %v3514 = vpack.c.b16 %v3350, %v3348
        %v3515 = vpack.c.b16 %v3351, %v3349
        %v3516 = vpack.c.b16 %v3354, %v3352
        %v3517 = vpack.c.b16 %v3355, %v3353
        %v3518 = vpack.c.b16 %v3358, %v3356
        %v3519 = vpack.c.b16 %v3359, %v3357
        %v3520 = vpack.c.b16 %v3362, %v3360
        %v3521 = vpack.c.b16 %v3363, %v3361
        %v3522 = vpack.c.b16 %v3366, %v3364
        %v3523 = vpack.c.b16 %v3367, %v3365
        %v3524 = vpack.c.b16 %v3370, %v3368
        %v3525 = vpack.c.b16 %v3371, %v3369
        %v3526 = vpack.c.b16 %v3374, %v3372
        %v3527 = vpack.c.b16 %v3375, %v3373
        %v3528 = vpack.c.b16 %v3378, %v3376
        %v3529 = vpack.c.b16 %v3379, %v3377
        %v3530 = vpack.c.b16 %v3382, %v3380
        %v3531 = vpack.c.b16 %v3383, %v3381
        %v3532 = vpack.c.b16 %v3386, %v3384
        %v3533 = vpack.c.b16 %v3387, %v3385
        %v3534 = vpack.c.b16 %v3390, %v3388
        %v3535 = vpack.c.b16 %v3391, %v3389
        %v3536 = vpack.c.b16 %v3394, %v3392
        %v3537 = vpack.c.b16 %v3395, %v3393
        %v3538 = vpack.c.b16 %v3398, %v3396
        %v3539 = vpack.c.b16 %v3399, %v3397
        %v3540 = vpack.c.b16 %v3402, %v3400
        %v3541 = vpack.c.b16 %v3403, %v3401
        %v3542 = vpack.c.b16 %v3406, %v3404
        %v3543 = vpack.c.b16 %v3407, %v3405
        %v3544 = vpack.c.b16 %v3410, %v3408
        %v3545 = vpack.c.b16 %v3411, %v3409
        %v3546 = vpack.c.b16 %v3414, %v3412
        %v3547 = vpack.c.b16 %v3415, %v3413
        %v3548 = vpack.c.b16 %v3418, %v3416
        %v3549 = vpack.c.b16 %v3419, %v3417
        %v3550 = vpack.c.b16 %v3422, %v3420
        %v3551 = vpack.c.b16 %v3423, %v3421
        %v3552 = vpack.c.b16 %v3426, %v3424
        %v3553 = vpack.c.b16 %v3427, %v3425
        %v3554 = vpack.c.b16 %v3430, %v3428
        %v3555 = vpack.c.b16 %v3431, %v3429
        %v3556 = vpack.c.b16 %v3434, %v3432
        %v3557 = vpack.c.b16 %v3435, %v3433
        %v3558 = vpack.c.b16 %v3438, %v3436
        %v3559 = vpack.c.b16 %v3439, %v3437
        %v3560 = vpack.c.b16 %v3442, %v3440
        %v3561 = vpack.c.b16 %v3443, %v3441
        %v3562 = vpack.c.b16 %v3446, %v3444
        %v3563 = vpack.c.b16 %v3447, %v3445
        %v3564 = vpack.c.b16 %v3450, %v3448
        %v3565 = vpack.c.b16 %v3451, %v3449
        %v3566 = vpack.c.b16 %v3454, %v3452
        %v3567 = vpack.c.b16 %v3455, %v3453
        %v3568 = vpack.c.b16 %v3458, %v3456
        %v3569 = vpack.c.b16 %v3459, %v3457
        %v3570 = vpack.c.b16 %v3462, %v3460
        %v3571 = vpack.c.b16 %v3463, %v3461
        %v3572 = vpack.c.b16 %v3466, %v3464
        %v3573 = vpack.c.b16 %v3467, %v3465
        %v3574 = vpack.c.b16 %v3470, %v3468
        %v3575 = vpack.c.b16 %v3471, %v3469
        %v3576 = vpack.c.b16 %v3474, %v3472
        %v3577 = vpack.c.b16 %v3475, %v3473
        %v3578 = vpack.c.b16 %v3478, %v3476
        %v3579 = vpack.c.b16 %v3479, %v3477
        %v3580 = vpack.c.b16 %v3482, %v3480
        %v3581 = vpack.c.b16 %v3483, %v3481
        %v3582 = vpack.c.b16 %v3486, %v3484
        %v3583 = vpack.c.b16 %v3487, %v3485
        %3680 = vmatprep.subr.bf16.mxu0 %v3489
        %3681 = vmatpush1.bf16.msra.mxu0 %v3488
        %3682 = vmatprep.subr.bf16.mxu0 %v3491
        %3683 = vmatpush1.bf16.msra.mxu0 %v3490
        %3684 = vmatprep.subr.bf16.mxu0 %v3493
        %3685 = vmatpush1.bf16.msra.mxu0 %v3492
        %3686 = vmatprep.subr.bf16.mxu0 %v3495
        %3687 = vmatpush1.bf16.msra.mxu0 %v3494
        %3688 = vmatprep.subr.bf16.mxu0 %v3497
        %3689 = vmatpush1.bf16.msra.mxu0 %v3496
        %3690 = vmatprep.subr.bf16.mxu0 %v3499
        %3691 = vmatpush1.bf16.msra.mxu0 %v3498
        %3692 = vmatprep.subr.bf16.mxu0 %v3501
        %3693 = vmatpush1.bf16.msra.mxu0 %v3500
        %3694 = vmatprep.subr.bf16.mxu0 %v3503
        %3695 = vmatpush1.bf16.msra.mxu0 %v3502
        %3696 = vmatprep.subr.bf16.mxu0 %v3505
        %3697 = vmatpush1.bf16.msra.mxu0 %v3504
        %3698 = vmatprep.subr.bf16.mxu0 %v3507
        %3699 = vmatpush1.bf16.msra.mxu0 %v3506
        %3700 = vmatprep.subr.bf16.mxu0 %v3509
        %3701 = vmatpush1.bf16.msra.mxu0 %v3508
        %3702 = vmatprep.subr.bf16.mxu0 %v3511
        %3703 = vmatpush1.bf16.msra.mxu0 %v3510
        %3704 = vmatprep.subr.bf16.mxu0 %v3513
        %3705 = vmatpush1.bf16.msra.mxu0 %v3512
        %3706 = vmatprep.subr.bf16.mxu0 %v3515
        %3707 = vmatpush1.bf16.msra.mxu0 %v3514
        %3708 = vmatprep.subr.bf16.mxu0 %v3517
        %3709 = vmatpush1.bf16.msra.mxu0 %v3516
        %3710 = vmatprep.subr.bf16.mxu0 %v3519
        %3711 = vmatpush1.bf16.msra.mxu0 %v3518
        %3712 = vmatprep.mubr.bf16.mxu0 %v3153
        %3713 = vmatmul.mubr.bf16.gmra.mrb[0].mxu0 %v3152
        %v3714 = vpop.f32.mrb[0].mxu0
        %v3715 = vadd.f32 0.0, %v3714
        %v3716 = vpop.f32.mrb[0].mxu0
        %v3717 = vadd.f32 0.0, %v3716
        %v3718 = vpop.f32.mrb[0].mxu0
        %v3719 = vadd.f32 0.0, %v3718
        %v3720 = vpop.f32.mrb[0].mxu0
        %v3721 = vadd.f32 0.0, %v3720
        %3722 = vmatprep.mubr.bf16.mxu0 %v3159
        %3723 = vmatmul.mubr.bf16.gmra.mrb[0].mxu0 %v3158
        %v3724 = vpop.f32.mrb[0].mxu0
        %v3725 = vadd.f32 0.0, %v3724
        %v3726 = vpop.f32.mrb[0].mxu0
        %v3727 = vadd.f32 0.0, %v3726
        %v3728 = vpop.f32.mrb[0].mxu0
        %v3729 = vadd.f32 0.0, %v3728
        %v3730 = vpop.f32.mrb[0].mxu0
        %v3731 = vadd.f32 0.0, %v3730
        %3732 = vmatprep.mubr.bf16.mxu0 %v3165
        %3733 = vmatmul.mubr.bf16.gmra.mrb[0].mxu0 %v3164
        %v3734 = vpop.f32.mrb[0].mxu0
        %v3735 = vadd.f32 0.0, %v3734
        %v3736 = vpop.f32.mrb[0].mxu0
        %v3737 = vadd.f32 0.0, %v3736
        %v3738 = vpop.f32.mrb[0].mxu0
        %v3739 = vadd.f32 0.0, %v3738
        %v3740 = vpop.f32.mrb[0].mxu0
        %v3741 = vadd.f32 0.0, %v3740
        %3742 = vmatprep.mubr.bf16.mxu0 %v3171
        %3743 = vmatmul.mubr.bf16.gmra.mrb[0].mxu0 %v3170
        %v3744 = vpop.f32.mrb[0].mxu0
        %v3745 = vadd.f32 0.0, %v3744
        %v3746 = vpop.f32.mrb[0].mxu0
        %v3747 = vadd.f32 0.0, %v3746
        %v3748 = vpop.f32.mrb[0].mxu0
        %v3749 = vadd.f32 0.0, %v3748
        %v3750 = vpop.f32.mrb[0].mxu0
        %v3751 = vadd.f32 0.0, %v3750
        %3752 = vdwg.mxu0
        %3753 = vmatprep.subr.bf16.mxu0 %v3521
        %3754 = vmatpush1.bf16.msra.mxu0 %v3520
        %3755 = vmatprep.subr.bf16.mxu0 %v3523
        %3756 = vmatpush1.bf16.msra.mxu0 %v3522
        %3757 = vmatprep.subr.bf16.mxu0 %v3525
        %3758 = vmatpush1.bf16.msra.mxu0 %v3524
        %3759 = vmatprep.subr.bf16.mxu0 %v3527
        %3760 = vmatpush1.bf16.msra.mxu0 %v3526
        %3761 = vmatprep.subr.bf16.mxu0 %v3529
        %3762 = vmatpush1.bf16.msra.mxu0 %v3528
        %3763 = vmatprep.subr.bf16.mxu0 %v3531
        %3764 = vmatpush1.bf16.msra.mxu0 %v3530
        %3765 = vmatprep.subr.bf16.mxu0 %v3533
        %3766 = vmatpush1.bf16.msra.mxu0 %v3532
        %3767 = vmatprep.subr.bf16.mxu0 %v3535
        %3768 = vmatpush1.bf16.msra.mxu0 %v3534
        %3769 = vmatprep.subr.bf16.mxu0 %v3537
        %3770 = vmatpush1.bf16.msra.mxu0 %v3536
        %3771 = vmatprep.subr.bf16.mxu0 %v3539
        %3772 = vmatpush1.bf16.msra.mxu0 %v3538
        %3773 = vmatprep.subr.bf16.mxu0 %v3541
        %3774 = vmatpush1.bf16.msra.mxu0 %v3540
        %3775 = vmatprep.subr.bf16.mxu0 %v3543
        %3776 = vmatpush1.bf16.msra.mxu0 %v3542
        %3777 = vmatprep.subr.bf16.mxu0 %v3545
        %3778 = vmatpush1.bf16.msra.mxu0 %v3544
        %3779 = vmatprep.subr.bf16.mxu0 %v3547
        %3780 = vmatpush1.bf16.msra.mxu0 %v3546
        %3781 = vmatprep.subr.bf16.mxu0 %v3549
        %3782 = vmatpush1.bf16.msra.mxu0 %v3548
        %3783 = vmatprep.subr.bf16.mxu0 %v3551
        %3784 = vmatpush1.bf16.msra.mxu0 %v3550
        %3785 = vmatprep.mubr.bf16.mxu0 %v3155
        %3786 = vmatmul.mubr.bf16.gmra.mrb[0].mxu0 %v3154
        %v3787 = vpop.f32.mrb[0].mxu0
        %v3788 = vadd.f32 %v3715, %v3787
        %v3789 = vpop.f32.mrb[0].mxu0
        %v3790 = vadd.f32 %v3717, %v3789
        %v3791 = vpop.f32.mrb[0].mxu0
        %v3792 = vadd.f32 %v3719, %v3791
        %v3793 = vpop.f32.mrb[0].mxu0
        %v3794 = vadd.f32 %v3721, %v3793
        %3795 = vmatprep.mubr.bf16.mxu0 %v3161
        %3796 = vmatmul.mubr.bf16.gmra.mrb[0].mxu0 %v3160
        %v3797 = vpop.f32.mrb[0].mxu0
        %v3798 = vadd.f32 %v3725, %v3797
        %v3799 = vpop.f32.mrb[0].mxu0
        %v3800 = vadd.f32 %v3727, %v3799
        %v3801 = vpop.f32.mrb[0].mxu0
        %v3802 = vadd.f32 %v3729, %v3801
        %v3803 = vpop.f32.mrb[0].mxu0
        %v3804 = vadd.f32 %v3731, %v3803
        %3805 = vmatprep.mubr.bf16.mxu0 %v3167
        %3806 = vmatmul.mubr.bf16.gmra.mrb[0].mxu0 %v3166
        %v3807 = vpop.f32.mrb[0].mxu0
        %v3808 = vadd.f32 %v3735, %v3807
        %v3809 = vpop.f32.mrb[0].mxu0
        %v3810 = vadd.f32 %v3737, %v3809
        %v3811 = vpop.f32.mrb[0].mxu0
        %v3812 = vadd.f32 %v3739, %v3811
        %v3813 = vpop.f32.mrb[0].mxu0
        %v3814 = vadd.f32 %v3741, %v3813
        %3815 = vmatprep.mubr.bf16.mxu0 %v3173
        %3816 = vmatmul.mubr.bf16.gmra.mrb[0].mxu0 %v3172
        %v3817 = vpop.f32.mrb[0].mxu0
        %v3818 = vadd.f32 %v3745, %v3817
        %v3819 = vpop.f32.mrb[0].mxu0
        %v3820 = vadd.f32 %v3747, %v3819
        %v3821 = vpop.f32.mrb[0].mxu0
        %v3822 = vadd.f32 %v3749, %v3821
        %v3823 = vpop.f32.mrb[0].mxu0
        %v3824 = vadd.f32 %v3751, %v3823
        %3825 = vdwg.mxu0
        %3826 = vmatprep.subr.bf16.mxu0 %v3553
        %3827 = vmatpush1.bf16.msra.mxu0 %v3552
        %3828 = vmatprep.subr.bf16.mxu0 %v3555
        %3829 = vmatpush1.bf16.msra.mxu0 %v3554
        %3830 = vmatprep.subr.bf16.mxu0 %v3557
        %3831 = vmatpush1.bf16.msra.mxu0 %v3556
        %3832 = vmatprep.subr.bf16.mxu0 %v3559
        %3833 = vmatpush1.bf16.msra.mxu0 %v3558
        %3834 = vmatprep.subr.bf16.mxu0 %v3561
        %3835 = vmatpush1.bf16.msra.mxu0 %v3560
        %3836 = vmatprep.subr.bf16.mxu0 %v3563
        %3837 = vmatpush1.bf16.msra.mxu0 %v3562
        %3838 = vmatprep.subr.bf16.mxu0 %v3565
        %3839 = vmatpush1.bf16.msra.mxu0 %v3564
        %3840 = vmatprep.subr.bf16.mxu0 %v3567
        %3841 = vmatpush1.bf16.msra.mxu0 %v3566
        %3842 = vmatprep.subr.bf16.mxu0 %v3569
        %3843 = vmatpush1.bf16.msra.mxu0 %v3568
        %3844 = vmatprep.subr.bf16.mxu0 %v3571
        %3845 = vmatpush1.bf16.msra.mxu0 %v3570
        %3846 = vmatprep.subr.bf16.mxu0 %v3573
        %3847 = vmatpush1.bf16.msra.mxu0 %v3572
        %3848 = vmatprep.subr.bf16.mxu0 %v3575
        %3849 = vmatpush1.bf16.msra.mxu0 %v3574
        %3850 = vmatprep.subr.bf16.mxu0 %v3577
        %3851 = vmatpush1.bf16.msra.mxu0 %v3576
        %3852 = vmatprep.subr.bf16.mxu0 %v3579
        %3853 = vmatpush1.bf16.msra.mxu0 %v3578
        %3854 = vmatprep.subr.bf16.mxu0 %v3581
        %3855 = vmatpush1.bf16.msra.mxu0 %v3580
        %3856 = vmatprep.subr.bf16.mxu0 %v3583
        %3857 = vmatpush1.bf16.msra.mxu0 %v3582
        %3858 = vmatprep.mubr.bf16.mxu0 %v3157
        %3859 = vmatmul.mubr.bf16.gmra.mrb[0].mxu0 %v3156
        %v3860 = vpop.f32.mrb[0].mxu0
        %v3861 = vadd.f32 %v3788, %v3860
        %v3862 = vpop.f32.mrb[0].mxu0
        %v3863 = vadd.f32 %v3790, %v3862
        %v3864 = vpop.f32.mrb[0].mxu0
        %v3865 = vadd.f32 %v3792, %v3864
        %v3866 = vpop.f32.mrb[0].mxu0
        %v3867 = vadd.f32 %v3794, %v3866
        %3868 = vmatprep.mubr.bf16.mxu0 %v3163
        %3869 = vmatmul.mubr.bf16.gmra.mrb[0].mxu0 %v3162
        %v3870 = vpop.f32.mrb[0].mxu0
        %v3871 = vadd.f32 %v3798, %v3870
        %v3872 = vpop.f32.mrb[0].mxu0
        %v3873 = vadd.f32 %v3800, %v3872
        %v3874 = vpop.f32.mrb[0].mxu0
        %v3875 = vadd.f32 %v3802, %v3874
        %v3876 = vpop.f32.mrb[0].mxu0
        %v3877 = vadd.f32 %v3804, %v3876
        %3878 = vmatprep.mubr.bf16.mxu0 %v3169
        %3879 = vmatmul.mubr.bf16.gmra.mrb[0].mxu0 %v3168
        %v3880 = vpop.f32.mrb[0].mxu0
        %v3881 = vadd.f32 %v3808, %v3880
        %v3882 = vpop.f32.mrb[0].mxu0
        %v3883 = vadd.f32 %v3810, %v3882
        %v3884 = vpop.f32.mrb[0].mxu0
        %v3885 = vadd.f32 %v3812, %v3884
        %v3886 = vpop.f32.mrb[0].mxu0
        %v3887 = vadd.f32 %v3814, %v3886
        %3888 = vmatprep.mubr.bf16.mxu0 %v3175
        %3889 = vmatmul.mubr.bf16.gmra.mrb[0].mxu0 %v3174
        %v3890 = vpop.f32.mrb[0].mxu0
        %v3891 = vadd.f32 %v3818, %v3890
        %v3892 = vpop.f32.mrb[0].mxu0
        %v3893 = vadd.f32 %v3820, %v3892
        %v3894 = vpop.f32.mrb[0].mxu0
        %v3895 = vadd.f32 %v3822, %v3894
        %v3896 = vpop.f32.mrb[0].mxu0
        %v3897 = vadd.f32 %v3824, %v3896
        %3898 = vdwg.mxu0
        %v3899 = vadd.f32 %v2942, %v3861
        %v3900 = vadd.f32 %v2943, %v3863
        %v3901 = vadd.f32 %v2944, %v3865
        %v3902 = vadd.f32 %v2945, %v3867
        %v3903 = vadd.f32 %v2946, %v3871
        %v3904 = vadd.f32 %v2947, %v3873
        %v3905 = vadd.f32 %v2948, %v3875
        %v3906 = vadd.f32 %v2949, %v3877
        %v3907 = vadd.f32 %v2950, %v3881
        %v3908 = vadd.f32 %v2951, %v3883
        %v3909 = vadd.f32 %v2952, %v3885
        %v3910 = vadd.f32 %v2953, %v3887
        %v3911 = vadd.f32 %v2954, %v3891
        %v3912 = vadd.f32 %v2955, %v3893
        %v3913 = vadd.f32 %v2956, %v3895
        %v3914 = vadd.f32 %v2957, %v3897
        %3915 = vst [vmem:[#allocation4] sm:$0xff] %v3899
        %3916 = vst [vmem:[#allocation4 + $0x8] sm:$0xff] %v3900
        %3917 = vst [vmem:[#allocation4 + $0x10] sm:$0xff] %v3901
        %3918 = vst [vmem:[#allocation4 + $0x18] sm:$0xff] %v3902
        %3919 = vst [vmem:[#allocation4 + $0x20] sm:$0xff] %v3903
        %3920 = vst [vmem:[#allocation4 + $0x28] sm:$0xff] %v3904
        %3921 = vst [vmem:[#allocation4 + $0x30] sm:$0xff] %v3905
        %3922 = vst [vmem:[#allocation4 + $0x38] sm:$0xff] %v3906
        %3923 = vst [vmem:[#allocation4 + $0x40] sm:$0xff] %v3907
        %3924 = vst [vmem:[#allocation4 + $0x48] sm:$0xff] %v3908
        %3925 = vst [vmem:[#allocation4 + $0x50] sm:$0xff] %v3909
        %3926 = vst [vmem:[#allocation4 + $0x58] sm:$0xff] %v3910
        %3927 = vst [vmem:[#allocation4 + $0x60] sm:$0xff] %v3911
        %3928 = vst [vmem:[#allocation4 + $0x68] sm:$0xff] %v3912
        %3929 = vst [vmem:[#allocation4 + $0x70] sm:$0xff] %v3913
        %3930 = vst [vmem:[#allocation4 + $0x78] sm:$0xff] %v3914
        %v3931 = vld [vmem:[#allocation4] sm:$0xff]
        %v3932 = vld [vmem:[#allocation4 + $0x8] sm:$0xff]
        %v3933 = vld [vmem:[#allocation4 + $0x10] sm:$0xff]
        %v3934 = vld [vmem:[#allocation4 + $0x18] sm:$0xff]
        %v3935 = vld [vmem:[#allocation4 + $0x20] sm:$0xff]
        %v3936 = vld [vmem:[#allocation4 + $0x28] sm:$0xff]
        %v3937 = vld [vmem:[#allocation4 + $0x30] sm:$0xff]
        %v3938 = vld [vmem:[#allocation4 + $0x38] sm:$0xff]
        %v3939 = vld [vmem:[#allocation4 + $0x40] sm:$0xff]
        %v3940 = vld [vmem:[#allocation4 + $0x48] sm:$0xff]
        %v3941 = vld [vmem:[#allocation4 + $0x50] sm:$0xff]
        %v3942 = vld [vmem:[#allocation4 + $0x58] sm:$0xff]
        %v3943 = vld [vmem:[#allocation4 + $0x60] sm:$0xff]
        %v3944 = vld [vmem:[#allocation4 + $0x68] sm:$0xff]
        %v3945 = vld [vmem:[#allocation4 + $0x70] sm:$0xff]
        %v3946 = vld [vmem:[#allocation4 + $0x78] sm:$0xff]
        %v3947 = vld [vmem:[#allocation10] sm:$0x3]
        %v3949 = vlaneseq
        %v3950 = vshrl.u32 %v3949, 7
        %v3951 = vsub.s32 0, %v3950
        %v3952 = vrot.slane %v3947, %v3951
        %v3953 = vlaneseq
        %v3954 = vshrl.u32 %v3953, 7
        %v3955 = vsub.s32 1, %v3954
        %v3956 = vrot.slane %v3947, %v3955
        %v3959 = vadd.f32 %v3931, %v3952
        %v3960 = vadd.f32 %v3932, %v3956
        %v3961 = vadd.f32 %v3933, %v3952
        %v3962 = vadd.f32 %v3934, %v3956
        %v3963 = vadd.f32 %v3935, %v3952
        %v3964 = vadd.f32 %v3936, %v3956
        %v3965 = vadd.f32 %v3937, %v3952
        %v3966 = vadd.f32 %v3938, %v3956
        %v3967 = vadd.f32 %v3939, %v3952
        %v3968 = vadd.f32 %v3940, %v3956
        %v3969 = vadd.f32 %v3941, %v3952
        %v3970 = vadd.f32 %v3942, %v3956
        %v3971 = vadd.f32 %v3943, %v3952
        %v3972 = vadd.f32 %v3944, %v3956
        %v3973 = vadd.f32 %v3945, %v3952
        %v3974 = vadd.f32 %v3946, %v3956
        %v3975 = vmax.f32 %v3959, 0.0
        %v3976 = vmax.f32 %v3960, 0.0
        %v3977 = vmax.f32 %v3961, 0.0
        %v3978 = vmax.f32 %v3962, 0.0
        %v3979 = vmax.f32 %v3963, 0.0
        %v3980 = vmax.f32 %v3964, 0.0
        %v3981 = vmax.f32 %v3965, 0.0
        %v3982 = vmax.f32 %v3966, 0.0
        %v3983 = vmax.f32 %v3967, 0.0
        %v3984 = vmax.f32 %v3968, 0.0
        %v3985 = vmax.f32 %v3969, 0.0
        %v3986 = vmax.f32 %v3970, 0.0
        %v3987 = vmax.f32 %v3971, 0.0
        %v3988 = vmax.f32 %v3972, 0.0
        %v3989 = vmax.f32 %v3973, 0.0
        %v3990 = vmax.f32 %v3974, 0.0
        %v3991 = vpack.c.bf16 %v3977, %v3975
        %v3992 = vpack.c.bf16 %v3978, %v3976
        %v3993 = vpack.c.bf16 %v3981, %v3979
        %v3994 = vpack.c.bf16 %v3982, %v3980
        %v3995 = vpack.c.bf16 %v3985, %v3983
        %v3996 = vpack.c.bf16 %v3986, %v3984
        %v3997 = vpack.c.bf16 %v3989, %v3987
        %v3998 = vpack.c.bf16 %v3990, %v3988
        %v4007 = vunpack.c.l.b16 %v3991
        %v4008 = vunpack.c.l.b16 %v3992
        %v4009 = vunpack.c.h.b16 %v3991
        %v4010 = vunpack.c.h.b16 %v3992
        %v4011 = vunpack.c.l.b16 %v3993
        %v4012 = vunpack.c.l.b16 %v3994
        %v4013 = vunpack.c.h.b16 %v3993
        %v4014 = vunpack.c.h.b16 %v3994
        %v4015 = vunpack.c.l.b16 %v3995
        %v4016 = vunpack.c.l.b16 %v3996
        %v4017 = vunpack.c.h.b16 %v3995
        %v4018 = vunpack.c.h.b16 %v3996
        %v4019 = vunpack.c.l.b16 %v3997
        %v4020 = vunpack.c.l.b16 %v3998
        %v4021 = vunpack.c.h.b16 %v3997
        %v4022 = vunpack.c.h.b16 %v3998
        %v4023 = vpack.c.b16 %v4008, %v4007
        %v4024 = vpack.c.b16 %v4010, %v4009
        %v4025 = vpack.c.b16 %v4012, %v4011
        %v4026 = vpack.c.b16 %v4014, %v4013
        %v4027 = vpack.c.b16 %v4016, %v4015
        %v4028 = vpack.c.b16 %v4018, %v4017
        %v4029 = vpack.c.b16 %v4020, %v4019
        %v4030 = vpack.c.b16 %v4022, %v4021
        %v4032 = vshrl.u32 %v4023, 16
        %v4034 = vrot.slane %v4032, 7
        %v4035 = vshll.u32 %v4023, 16
        %v4037 = vor.u32 %v4034, %v4035
        %v4038 = vrot.slane %v4034, 4
        %v4040 = vshrl.u32 %v4024, 16
        %v4042 = vrot.slane %v4040, 7
        %v4043 = vshll.u32 %v4024, 16
        %v4045 = vor.u32 %v4042, %v4043
        %v4046 = vrot.slane %v4042, 4
        %v4048 = vshrl.u32 %v4025, 16
        %v4050 = vrot.slane %v4048, 7
        %v4051 = vshll.u32 %v4025, 16
        %v4053 = vor.u32 %v4050, %v4051
        %v4054 = vrot.slane %v4050, 4
        %v4056 = vshrl.u32 %v4026, 16
        %v4058 = vrot.slane %v4056, 7
        %v4059 = vshll.u32 %v4026, 16
        %v4061 = vor.u32 %v4058, %v4059
        %v4062 = vrot.slane %v4058, 4
        %v4064 = vshrl.u32 %v4027, 16
        %v4066 = vrot.slane %v4064, 7
        %v4067 = vshll.u32 %v4027, 16
        %v4069 = vor.u32 %v4066, %v4067
        %v4070 = vrot.slane %v4066, 4
        %v4072 = vshrl.u32 %v4028, 16
        %v4074 = vrot.slane %v4072, 7
        %v4075 = vshll.u32 %v4028, 16
        %v4077 = vor.u32 %v4074, %v4075
        %v4078 = vrot.slane %v4074, 4
        %v4080 = vshrl.u32 %v4029, 16
        %v4082 = vrot.slane %v4080, 7
        %v4083 = vshll.u32 %v4029, 16
        %v4085 = vor.u32 %v4082, %v4083
        %v4086 = vrot.slane %v4082, 4
        %v4088 = vshrl.u32 %v4030, 16
        %v4090 = vrot.slane %v4088, 7
        %v4091 = vshll.u32 %v4030, 16
        %v4093 = vor.u32 %v4090, %v4091
        %v4094 = vrot.slane %v4090, 4
        %v4111 = vld [vmem:[%s638] sm:$0xff]
        %v4112 = vsel %vm643, %v4037, %v4111
        %4113 = vst [vmem:[%s638] sm:$0xff] %v4112
        %v4114 = vld [vmem:[%s638 + $0x8] sm:$0x11]
        %v4115 = vsel %vm356, %v4038, %v4114
        %4116 = vst [vmem:[%s638 + $0x8] sm:$0x11] %v4115
        %v4117 = vld [vmem:[%s638 + $0x10] sm:$0xff]
        %v4118 = vsel %vm643, %v4045, %v4117
        %4119 = vst [vmem:[%s638 + $0x10] sm:$0xff] %v4118
        %v4120 = vld [vmem:[%s638 + $0x18] sm:$0x11]
        %v4121 = vsel %vm356, %v4046, %v4120
        %4122 = vst [vmem:[%s638 + $0x18] sm:$0x11] %v4121
        %v4123 = vld [vmem:[%s638 + $0x20] sm:$0xff]
        %v4124 = vsel %vm643, %v4053, %v4123
        %4125 = vst [vmem:[%s638 + $0x20] sm:$0xff] %v4124
        %v4126 = vld [vmem:[%s638 + $0x28] sm:$0x11]
        %v4127 = vsel %vm356, %v4054, %v4126
        %4128 = vst [vmem:[%s638 + $0x28] sm:$0x11] %v4127
        %v4129 = vld [vmem:[%s638 + $0x30] sm:$0xff]
        %v4130 = vsel %vm643, %v4061, %v4129
        %4131 = vst [vmem:[%s638 + $0x30] sm:$0xff] %v4130
        %v4132 = vld [vmem:[%s638 + $0x38] sm:$0x11]
        %v4133 = vsel %vm356, %v4062, %v4132
        %4134 = vst [vmem:[%s638 + $0x38] sm:$0x11] %v4133
        %v4135 = vld [vmem:[%s638 + $0x40] sm:$0xff]
        %v4136 = vsel %vm643, %v4069, %v4135
        %4137 = vst [vmem:[%s638 + $0x40] sm:$0xff] %v4136
        %v4138 = vld [vmem:[%s638 + $0x48] sm:$0x11]
        %v4139 = vsel %vm356, %v4070, %v4138
        %4140 = vst [vmem:[%s638 + $0x48] sm:$0x11] %v4139
        %v4141 = vld [vmem:[%s638 + $0x50] sm:$0xff]
        %v4142 = vsel %vm643, %v4077, %v4141
        %4143 = vst [vmem:[%s638 + $0x50] sm:$0xff] %v4142
        %v4144 = vld [vmem:[%s638 + $0x58] sm:$0x11]
        %v4145 = vsel %vm356, %v4078, %v4144
        %4146 = vst [vmem:[%s638 + $0x58] sm:$0x11] %v4145
        %v4147 = vld [vmem:[%s638 + $0x60] sm:$0xff]
        %v4148 = vsel %vm643, %v4085, %v4147
        %4149 = vst [vmem:[%s638 + $0x60] sm:$0xff] %v4148
        %v4150 = vld [vmem:[%s638 + $0x68] sm:$0x11]
        %v4151 = vsel %vm356, %v4086, %v4150
        %4152 = vst [vmem:[%s638 + $0x68] sm:$0x11] %v4151
        %v4153 = vld [vmem:[%s638 + $0x70] sm:$0xff]
        %v4154 = vsel %vm643, %v4093, %v4153
        %4155 = vst [vmem:[%s638 + $0x70] sm:$0xff] %v4154
        %v4156 = vld [vmem:[%s638 + $0x78] sm:$0x11]
        %v4157 = vsel %vm356, %v4094, %v4156
        %4158 = vst [vmem:[%s638 + $0x78] sm:$0x11] %v4157
        %v4159 = vld [vmem:[#allocation2] sm:$0xff]
        %v4160 = vld [vmem:[#allocation2 + $0x10] sm:$0xff]
        %v4161 = vld [vmem:[#allocation2 + $0x20] sm:$0xff]
        %v4162 = vld [vmem:[#allocation2 + $0x30] sm:$0xff]
        %v4163 = vld [vmem:[#allocation2 + $0x40] sm:$0xff]
        %v4164 = vld [vmem:[#allocation2 + $0x50] sm:$0xff]
        %v4165 = vld [vmem:[#allocation2 + $0x60] sm:$0xff]
        %v4166 = vld [vmem:[#allocation2 + $0x70] sm:$0xff]
        %v4167 = vld [vmem:[#allocation2 + $0x80] sm:$0xff]
        %v4168 = vld [vmem:[#allocation2 + $0x90] sm:$0xff]
        %4169 = vst [vmem:[#allocation3] sm:$0xff] %v4159
        %4170 = vst [vmem:[#allocation3 + $0x18] sm:$0xff] %v4160
        %4171 = vst [vmem:[#allocation3 + $0x30] sm:$0xff] %v4161
        %4172 = vst [vmem:[#allocation3 + $0x48] sm:$0xff] %v4162
        %4173 = vst [vmem:[#allocation3 + $0x60] sm:$0xff] %v4163
        %4174 = vst [vmem:[#allocation3 + $0x78] sm:$0xff] %v4164
        %4175 = vst [vmem:[#allocation3 + $0x90] sm:$0xff] %v4165
        %4176 = vst [vmem:[#allocation3 + $0xa8] sm:$0xff] %v4166
        %4177 = vst [vmem:[#allocation3 + $0xc0] sm:$0xff] %v4167
        %4178 = vst [vmem:[#allocation3 + $0xd8] sm:$0xff] %v4168
        %v4179 = vld [vmem:[#allocation2] sm:$0xff]
        %v4180 = vld [vmem:[#allocation2 + $0x8] sm:$0x11]
        %v4181 = vld [vmem:[#allocation2 + $0x10] sm:$0xff]
        %v4182 = vld [vmem:[#allocation2 + $0x18] sm:$0x11]
        %v4183 = vld [vmem:[#allocation2 + $0x20] sm:$0xff]
        %v4184 = vld [vmem:[#allocation2 + $0x28] sm:$0x11]
        %v4185 = vld [vmem:[#allocation2 + $0x30] sm:$0xff]
        %v4186 = vld [vmem:[#allocation2 + $0x38] sm:$0x11]
        %v4187 = vld [vmem:[#allocation2 + $0x40] sm:$0xff]
        %v4188 = vld [vmem:[#allocation2 + $0x48] sm:$0x11]
        %v4189 = vld [vmem:[#allocation2 + $0x50] sm:$0xff]
        %v4190 = vld [vmem:[#allocation2 + $0x58] sm:$0x11]
        %v4191 = vld [vmem:[#allocation2 + $0x60] sm:$0xff]
        %v4192 = vld [vmem:[#allocation2 + $0x68] sm:$0x11]
        %v4193 = vld [vmem:[#allocation2 + $0x70] sm:$0xff]
        %v4194 = vld [vmem:[#allocation2 + $0x78] sm:$0x11]
        %v4195 = vld [vmem:[#allocation2 + $0x80] sm:$0xff]
        %v4196 = vld [vmem:[#allocation2 + $0x88] sm:$0x11]
        %v4197 = vld [vmem:[#allocation2 + $0x90] sm:$0xff]
        %v4198 = vld [vmem:[#allocation2 + $0x98] sm:$0x11]
        %v4200 = vshrl.u32 %v4179, 16
        %v4202 = vrot.slane %v4200, 4
        %v4203 = vshll.u32 %v4179, 16
        %v4205 = vrot.slane %v4203, 5
        %v4206 = vor.u32 %v4202, %v4205
        %v4207 = vrot.slane %v4206, 4
        %v4209 = vshll.u32 %v4180, 16
        %v4211 = vrot.slane %v4209, 5
        %v4212 = vsel %vm734, %v4207, %v4211
        %v4214 = vshrl.u32 %v4181, 16
        %v4216 = vrot.slane %v4214, 4
        %v4217 = vshll.u32 %v4181, 16
        %v4219 = vrot.slane %v4217, 5
        %v4220 = vor.u32 %v4216, %v4219
        %v4221 = vrot.slane %v4220, 4
        %v4223 = vshll.u32 %v4182, 16
        %v4225 = vrot.slane %v4223, 5
        %v4226 = vsel %vm734, %v4221, %v4225
        %v4228 = vshrl.u32 %v4183, 16
        %v4230 = vrot.slane %v4228, 4
        %v4231 = vshll.u32 %v4183, 16
        %v4233 = vrot.slane %v4231, 5
        %v4234 = vor.u32 %v4230, %v4233
        %v4235 = vrot.slane %v4234, 4
        %v4237 = vshll.u32 %v4184, 16
        %v4239 = vrot.slane %v4237, 5
        %v4240 = vsel %vm734, %v4235, %v4239
        %v4242 = vshrl.u32 %v4185, 16
        %v4244 = vrot.slane %v4242, 4
        %v4245 = vshll.u32 %v4185, 16
        %v4247 = vrot.slane %v4245, 5
        %v4248 = vor.u32 %v4244, %v4247
        %v4249 = vrot.slane %v4248, 4
        %v4251 = vshll.u32 %v4186, 16
        %v4253 = vrot.slane %v4251, 5
        %v4254 = vsel %vm734, %v4249, %v4253
        %v4256 = vshrl.u32 %v4187, 16
        %v4258 = vrot.slane %v4256, 4
        %v4259 = vshll.u32 %v4187, 16
        %v4261 = vrot.slane %v4259, 5
        %v4262 = vor.u32 %v4258, %v4261
        %v4263 = vrot.slane %v4262, 4
        %v4265 = vshll.u32 %v4188, 16
        %v4267 = vrot.slane %v4265, 5
        %v4268 = vsel %vm734, %v4263, %v4267
        %v4270 = vshrl.u32 %v4189, 16
        %v4272 = vrot.slane %v4270, 4
        %v4273 = vshll.u32 %v4189, 16
        %v4275 = vrot.slane %v4273, 5
        %v4276 = vor.u32 %v4272, %v4275
        %v4277 = vrot.slane %v4276, 4
        %v4279 = vshll.u32 %v4190, 16
        %v4281 = vrot.slane %v4279, 5
        %v4282 = vsel %vm734, %v4277, %v4281
        %v4284 = vshrl.u32 %v4191, 16
        %v4286 = vrot.slane %v4284, 4
        %v4287 = vshll.u32 %v4191, 16
        %v4289 = vrot.slane %v4287, 5
        %v4290 = vor.u32 %v4286, %v4289
        %v4291 = vrot.slane %v4290, 4
        %v4293 = vshll.u32 %v4192, 16
        %v4295 = vrot.slane %v4293, 5
        %v4296 = vsel %vm734, %v4291, %v4295
        %v4298 = vshrl.u32 %v4193, 16
        %v4300 = vrot.slane %v4298, 4
        %v4301 = vshll.u32 %v4193, 16
        %v4303 = vrot.slane %v4301, 5
        %v4304 = vor.u32 %v4300, %v4303
        %v4305 = vrot.slane %v4304, 4
        %v4307 = vshll.u32 %v4194, 16
        %v4309 = vrot.slane %v4307, 5
        %v4310 = vsel %vm734, %v4305, %v4309
        %v4312 = vshrl.u32 %v4195, 16
        %v4314 = vrot.slane %v4312, 4
        %v4315 = vshll.u32 %v4195, 16
        %v4317 = vrot.slane %v4315, 5
        %v4318 = vor.u32 %v4314, %v4317
        %v4319 = vrot.slane %v4318, 4
        %v4321 = vshll.u32 %v4196, 16
        %v4323 = vrot.slane %v4321, 5
        %v4324 = vsel %vm734, %v4319, %v4323
        %v4326 = vshrl.u32 %v4197, 16
        %v4328 = vrot.slane %v4326, 4
        %v4329 = vshll.u32 %v4197, 16
        %v4331 = vrot.slane %v4329, 5
        %v4332 = vor.u32 %v4328, %v4331
        %v4333 = vrot.slane %v4332, 4
        %v4335 = vshll.u32 %v4198, 16
        %v4337 = vrot.slane %v4335, 5
        %v4338 = vsel %vm734, %v4333, %v4337
        %4349 = vst [vmem:[#allocation3 + $0x8] sm:$0xff] %v4212
        %4350 = vst [vmem:[#allocation3 + $0x20] sm:$0xff] %v4226
        %4351 = vst [vmem:[#allocation3 + $0x38] sm:$0xff] %v4240
        %4352 = vst [vmem:[#allocation3 + $0x50] sm:$0xff] %v4254
        %4353 = vst [vmem:[#allocation3 + $0x68] sm:$0xff] %v4268
        %4354 = vst [vmem:[#allocation3 + $0x80] sm:$0xff] %v4282
        %4355 = vst [vmem:[#allocation3 + $0x98] sm:$0xff] %v4296
        %4356 = vst [vmem:[#allocation3 + $0xb0] sm:$0xff] %v4310
        %4357 = vst [vmem:[#allocation3 + $0xc8] sm:$0xff] %v4324
        %4358 = vst [vmem:[#allocation3 + $0xe0] sm:$0xff] %v4338
        %v4359 = vld [vmem:[#allocation2] sm:$0xee]
        %v4360 = vld [vmem:[#allocation2 + $0x8] sm:$0x11]
        %v4361 = vld [vmem:[#allocation2 + $0x10] sm:$0xee]
        %v4362 = vld [vmem:[#allocation2 + $0x18] sm:$0x11]
        %v4363 = vld [vmem:[#allocation2 + $0x20] sm:$0xee]
        %v4364 = vld [vmem:[#allocation2 + $0x28] sm:$0x11]
        %v4365 = vld [vmem:[#allocation2 + $0x30] sm:$0xee]
        %v4366 = vld [vmem:[#allocation2 + $0x38] sm:$0x11]
        %v4367 = vld [vmem:[#allocation2 + $0x40] sm:$0xee]
        %v4368 = vld [vmem:[#allocation2 + $0x48] sm:$0x11]
        %v4369 = vld [vmem:[#allocation2 + $0x50] sm:$0xee]
        %v4370 = vld [vmem:[#allocation2 + $0x58] sm:$0x11]
        %v4371 = vld [vmem:[#allocation2 + $0x60] sm:$0xee]
        %v4372 = vld [vmem:[#allocation2 + $0x68] sm:$0x11]
        %v4373 = vld [vmem:[#allocation2 + $0x70] sm:$0xee]
        %v4374 = vld [vmem:[#allocation2 + $0x78] sm:$0x11]
        %v4375 = vld [vmem:[#allocation2 + $0x80] sm:$0xee]
        %v4376 = vld [vmem:[#allocation2 + $0x88] sm:$0x11]
        %v4377 = vld [vmem:[#allocation2 + $0x90] sm:$0xee]
        %v4378 = vld [vmem:[#allocation2 + $0x98] sm:$0x11]
        %v4399 = vrot.slane %v4359, 5
        %v4400 = vrot.slane %v4399, 4
        %v4401 = vrot.slane %v4360, 5
        %v4402 = vsel %vm937, %v4400, %v4401
        %v4403 = vrot.slane %v4361, 5
        %v4404 = vrot.slane %v4403, 4
        %v4405 = vrot.slane %v4362, 5
        %v4406 = vsel %vm937, %v4404, %v4405
        %v4407 = vrot.slane %v4363, 5
        %v4408 = vrot.slane %v4407, 4
        %v4409 = vrot.slane %v4364, 5
        %v4410 = vsel %vm937, %v4408, %v4409
        %v4411 = vrot.slane %v4365, 5
        %v4412 = vrot.slane %v4411, 4
        %v4413 = vrot.slane %v4366, 5
        %v4414 = vsel %vm937, %v4412, %v4413
        %v4415 = vrot.slane %v4367, 5
        %v4416 = vrot.slane %v4415, 4
        %v4417 = vrot.slane %v4368, 5
        %v4418 = vsel %vm937, %v4416, %v4417
        %v4419 = vrot.slane %v4369, 5
        %v4420 = vrot.slane %v4419, 4
        %v4421 = vrot.slane %v4370, 5
        %v4422 = vsel %vm937, %v4420, %v4421
        %v4423 = vrot.slane %v4371, 5
        %v4424 = vrot.slane %v4423, 4
        %v4425 = vrot.slane %v4372, 5
        %v4426 = vsel %vm937, %v4424, %v4425
        %v4427 = vrot.slane %v4373, 5
        %v4428 = vrot.slane %v4427, 4
        %v4429 = vrot.slane %v4374, 5
        %v4430 = vsel %vm937, %v4428, %v4429
        %v4431 = vrot.slane %v4375, 5
        %v4432 = vrot.slane %v4431, 4
        %v4433 = vrot.slane %v4376, 5
        %v4434 = vsel %vm937, %v4432, %v4433
        %v4435 = vrot.slane %v4377, 5
        %v4436 = vrot.slane %v4435, 4
        %v4437 = vrot.slane %v4378, 5
        %v4438 = vsel %vm937, %v4436, %v4437
        %4449 = vst [vmem:[#allocation3 + $0x10] sm:$0xff] %v4402
        %4450 = vst [vmem:[#allocation3 + $0x28] sm:$0xff] %v4406
        %4451 = vst [vmem:[#allocation3 + $0x40] sm:$0xff] %v4410
        %4452 = vst [vmem:[#allocation3 + $0x58] sm:$0xff] %v4414
        %4453 = vst [vmem:[#allocation3 + $0x70] sm:$0xff] %v4418
        %4454 = vst [vmem:[#allocation3 + $0x88] sm:$0xff] %v4422
        %4455 = vst [vmem:[#allocation3 + $0xa0] sm:$0xff] %v4426
        %4456 = vst [vmem:[#allocation3 + $0xb8] sm:$0xff] %v4430
        %4457 = vst [vmem:[#allocation3 + $0xd0] sm:$0xff] %v4434
        %4458 = vst [vmem:[#allocation3 + $0xe8] sm:$0xff] %v4438
        %v4459 = vld [vmem:[#allocation3] sm:$0xff]
        %v4460 = vld [vmem:[#allocation3 + $0x8] sm:$0xff]
        %v4461 = vld [vmem:[#allocation3 + $0x10] sm:$0xff]
        %v4462 = vld [vmem:[#allocation3 + $0x18] sm:$0xff]
        %v4463 = vld [vmem:[#allocation3 + $0x20] sm:$0xff]
        %v4464 = vld [vmem:[#allocation3 + $0x28] sm:$0xff]
        %v4465 = vld [vmem:[#allocation3 + $0x30] sm:$0xff]
        %v4466 = vld [vmem:[#allocation3 + $0x38] sm:$0xff]
        %v4467 = vld [vmem:[#allocation3 + $0x40] sm:$0xff]
        %v4468 = vld [vmem:[#allocation3 + $0x48] sm:$0xff]
        %v4469 = vld [vmem:[#allocation3 + $0x50] sm:$0xff]
        %v4470 = vld [vmem:[#allocation3 + $0x58] sm:$0xff]
        %v4471 = vld [vmem:[#allocation3 + $0x60] sm:$0xff]
        %v4472 = vld [vmem:[#allocation3 + $0x68] sm:$0xff]
        %v4473 = vld [vmem:[#allocation3 + $0x70] sm:$0xff]
        %v4474 = vld [vmem:[#allocation3 + $0x78] sm:$0xff]
        %v4475 = vld [vmem:[#allocation3 + $0x80] sm:$0xff]
        %v4476 = vld [vmem:[#allocation3 + $0x88] sm:$0xff]
        %v4477 = vld [vmem:[#allocation3 + $0x90] sm:$0xff]
        %v4478 = vld [vmem:[#allocation3 + $0x98] sm:$0xff]
        %v4479 = vld [vmem:[#allocation3 + $0xa0] sm:$0xff]
        %v4480 = vld [vmem:[#allocation3 + $0xa8] sm:$0xff]
        %v4481 = vld [vmem:[#allocation3 + $0xb0] sm:$0xff]
        %v4482 = vld [vmem:[#allocation3 + $0xb8] sm:$0xff]
        %v4483 = vld [vmem:[#allocation11] sm:$0xff]
        %v4484 = vld [vmem:[#allocation11 + $0x8] sm:$0xff]
        %v4485 = vld [vmem:[#allocation11 + $0x10] sm:$0xff]
        %v4486 = vld [vmem:[#allocation11 + $0x18] sm:$0xff]
        %v4487 = vld [vmem:[#allocation11 + $0x20] sm:$0xff]
        %v4488 = vld [vmem:[#allocation11 + $0x28] sm:$0xff]
        %v4489 = vld [vmem:[#allocation11 + $0x30] sm:$0xff]
        %v4490 = vld [vmem:[#allocation11 + $0x38] sm:$0xff]
        %v4491 = vld [vmem:[#allocation11 + $0x40] sm:$0xff]
        %v4492 = vld [vmem:[#allocation11 + $0x48] sm:$0xff]
        %v4493 = vld [vmem:[#allocation11 + $0x50] sm:$0xff]
        %v4494 = vld [vmem:[#allocation11 + $0x58] sm:$0xff]
        %v4495 = vld [vmem:[#allocation11 + $0x60] sm:$0xff]
        %v4496 = vld [vmem:[#allocation11 + $0x68] sm:$0xff]
        %v4497 = vld [vmem:[#allocation11 + $0x70] sm:$0xff]
        %v4498 = vld [vmem:[#allocation11 + $0x78] sm:$0xff]
        %v4499 = vld [vmem:[#allocation11 + $0x80] sm:$0xff]
        %v4500 = vld [vmem:[#allocation11 + $0x88] sm:$0xff]
        %v4501 = vld [vmem:[#allocation11 + $0x90] sm:$0xff]
        %v4502 = vld [vmem:[#allocation11 + $0x98] sm:$0xff]
        %v4503 = vld [vmem:[#allocation11 + $0xa0] sm:$0xff]
        %v4504 = vld [vmem:[#allocation11 + $0xa8] sm:$0xff]
        %v4505 = vld [vmem:[#allocation11 + $0xb0] sm:$0xff]
        %v4506 = vld [vmem:[#allocation11 + $0xb8] sm:$0xff]
        %v4507 = vld [vmem:[#allocation11 + $0xc0] sm:$0xff]
        %v4508 = vld [vmem:[#allocation11 + $0xc8] sm:$0xff]
        %v4509 = vld [vmem:[#allocation11 + $0xd0] sm:$0xff]
        %v4510 = vld [vmem:[#allocation11 + $0xd8] sm:$0xff]
        %v4511 = vld [vmem:[#allocation11 + $0xe0] sm:$0xff]
        %v4512 = vld [vmem:[#allocation11 + $0xe8] sm:$0xff]
        %v4513 = vld [vmem:[#allocation11 + $0xf0] sm:$0xff]
        %v4514 = vld [vmem:[#allocation11 + $0xf8] sm:$0xff]
        %v4515 = vld [vmem:[#allocation11 + $0x100] sm:$0xff]
        %v4516 = vld [vmem:[#allocation11 + $0x108] sm:$0xff]
        %v4517 = vld [vmem:[#allocation11 + $0x110] sm:$0xff]
        %v4518 = vld [vmem:[#allocation11 + $0x118] sm:$0xff]
        %v4519 = vld [vmem:[#allocation11 + $0x120] sm:$0xff]
        %v4520 = vld [vmem:[#allocation11 + $0x128] sm:$0xff]
        %v4521 = vld [vmem:[#allocation11 + $0x130] sm:$0xff]
        %v4522 = vld [vmem:[#allocation11 + $0x138] sm:$0xff]
        %v4523 = vld [vmem:[#allocation11 + $0x140] sm:$0xff]
        %v4524 = vld [vmem:[#allocation11 + $0x148] sm:$0xff]
        %v4525 = vld [vmem:[#allocation11 + $0x150] sm:$0xff]
        %v4526 = vld [vmem:[#allocation11 + $0x158] sm:$0xff]
        %v4527 = vld [vmem:[#allocation11 + $0x160] sm:$0xff]
        %v4528 = vld [vmem:[#allocation11 + $0x168] sm:$0xff]
        %v4529 = vld [vmem:[#allocation11 + $0x170] sm:$0xff]
        %v4530 = vld [vmem:[#allocation11 + $0x178] sm:$0xff]
        %v4531 = vld [vmem:[#allocation11 + $0x180] sm:$0xff]
        %v4532 = vld [vmem:[#allocation11 + $0x188] sm:$0xff]
        %v4533 = vld [vmem:[#allocation11 + $0x190] sm:$0xff]
        %v4534 = vld [vmem:[#allocation11 + $0x198] sm:$0xff]
        %v4535 = vld [vmem:[#allocation11 + $0x1a0] sm:$0xff]
        %v4536 = vld [vmem:[#allocation11 + $0x1a8] sm:$0xff]
        %v4537 = vld [vmem:[#allocation11 + $0x1b0] sm:$0xff]
        %v4538 = vld [vmem:[#allocation11 + $0x1b8] sm:$0xff]
        %v4539 = vld [vmem:[#allocation11 + $0x1c0] sm:$0xff]
        %v4540 = vld [vmem:[#allocation11 + $0x1c8] sm:$0xff]
        %v4541 = vld [vmem:[#allocation11 + $0x1d0] sm:$0xff]
        %v4542 = vld [vmem:[#allocation11 + $0x1d8] sm:$0xff]
        %v4543 = vld [vmem:[#allocation11 + $0x1e0] sm:$0xff]
        %v4544 = vld [vmem:[#allocation11 + $0x1e8] sm:$0xff]
        %v4545 = vld [vmem:[#allocation11 + $0x1f0] sm:$0xff]
        %v4546 = vld [vmem:[#allocation11 + $0x1f8] sm:$0xff]
        %v4547 = vld [vmem:[#allocation11 + $0x200] sm:$0xff]
        %v4548 = vld [vmem:[#allocation11 + $0x208] sm:$0xff]
        %v4549 = vld [vmem:[#allocation11 + $0x210] sm:$0xff]
        %v4550 = vld [vmem:[#allocation11 + $0x218] sm:$0xff]
        %v4551 = vld [vmem:[#allocation11 + $0x220] sm:$0xff]
        %v4552 = vld [vmem:[#allocation11 + $0x228] sm:$0xff]
        %v4553 = vld [vmem:[#allocation11 + $0x230] sm:$0xff]
        %v4554 = vld [vmem:[#allocation11 + $0x238] sm:$0xff]
        %v4555 = vld [vmem:[#allocation11 + $0x240] sm:$0xff]
        %v4556 = vld [vmem:[#allocation11 + $0x248] sm:$0xff]
        %v4557 = vld [vmem:[#allocation11 + $0x250] sm:$0xff]
        %v4558 = vld [vmem:[#allocation11 + $0x258] sm:$0xff]
        %v4559 = vld [vmem:[#allocation11 + $0x260] sm:$0xff]
        %v4560 = vld [vmem:[#allocation11 + $0x268] sm:$0xff]
        %v4561 = vld [vmem:[#allocation11 + $0x270] sm:$0xff]
        %v4562 = vld [vmem:[#allocation11 + $0x278] sm:$0xff]
        %v4563 = vld [vmem:[#allocation11 + $0x280] sm:$0xff]
        %v4564 = vld [vmem:[#allocation11 + $0x288] sm:$0xff]
        %v4565 = vld [vmem:[#allocation11 + $0x290] sm:$0xff]
        %v4566 = vld [vmem:[#allocation11 + $0x298] sm:$0xff]
        %v4567 = vld [vmem:[#allocation11 + $0x2a0] sm:$0xff]
        %v4568 = vld [vmem:[#allocation11 + $0x2a8] sm:$0xff]
        %v4569 = vld [vmem:[#allocation11 + $0x2b0] sm:$0xff]
        %v4570 = vld [vmem:[#allocation11 + $0x2b8] sm:$0xff]
        %v4571 = vld [vmem:[#allocation11 + $0x2c0] sm:$0xff]
        %v4572 = vld [vmem:[#allocation11 + $0x2c8] sm:$0xff]
        %v4573 = vld [vmem:[#allocation11 + $0x2d0] sm:$0xff]
        %v4574 = vld [vmem:[#allocation11 + $0x2d8] sm:$0xff]
        %v4575 = vld [vmem:[#allocation11 + $0x2e0] sm:$0xff]
        %v4576 = vld [vmem:[#allocation11 + $0x2e8] sm:$0xff]
        %v4577 = vld [vmem:[#allocation11 + $0x2f0] sm:$0xff]
        %v4578 = vld [vmem:[#allocation11 + $0x2f8] sm:$0xff]
        %v4603 = vunpack.c.l.b16 %v4459
        %v4604 = vunpack.c.h.b16 %v4459
        %v4605 = vunpack.c.l.b16 %v4460
        %v4606 = vunpack.c.h.b16 %v4460
        %v4607 = vunpack.c.l.b16 %v4461
        %v4608 = vunpack.c.h.b16 %v4461
        %v4609 = vunpack.c.l.b16 %v4462
        %v4610 = vunpack.c.h.b16 %v4462
        %v4611 = vunpack.c.l.b16 %v4463
        %v4612 = vunpack.c.h.b16 %v4463
        %v4613 = vunpack.c.l.b16 %v4464
        %v4614 = vunpack.c.h.b16 %v4464
        %v4615 = vunpack.c.l.b16 %v4465
        %v4616 = vunpack.c.h.b16 %v4465
        %v4617 = vunpack.c.l.b16 %v4466
        %v4618 = vunpack.c.h.b16 %v4466
        %v4619 = vunpack.c.l.b16 %v4467
        %v4620 = vunpack.c.h.b16 %v4467
        %v4621 = vunpack.c.l.b16 %v4468
        %v4622 = vunpack.c.h.b16 %v4468
        %v4623 = vunpack.c.l.b16 %v4469
        %v4624 = vunpack.c.h.b16 %v4469
        %v4625 = vunpack.c.l.b16 %v4470
        %v4626 = vunpack.c.h.b16 %v4470
        %v4627 = vunpack.c.l.b16 %v4471
        %v4628 = vunpack.c.h.b16 %v4471
        %v4629 = vunpack.c.l.b16 %v4472
        %v4630 = vunpack.c.h.b16 %v4472
        %v4631 = vunpack.c.l.b16 %v4473
        %v4632 = vunpack.c.h.b16 %v4473
        %v4633 = vunpack.c.l.b16 %v4474
        %v4634 = vunpack.c.h.b16 %v4474
        %v4635 = vunpack.c.l.b16 %v4475
        %v4636 = vunpack.c.h.b16 %v4475
        %v4637 = vunpack.c.l.b16 %v4476
        %v4638 = vunpack.c.h.b16 %v4476
        %v4639 = vunpack.c.l.b16 %v4477
        %v4640 = vunpack.c.h.b16 %v4477
        %v4641 = vunpack.c.l.b16 %v4478
        %v4642 = vunpack.c.h.b16 %v4478
        %v4643 = vunpack.c.l.b16 %v4479
        %v4644 = vunpack.c.h.b16 %v4479
        %v4645 = vunpack.c.l.b16 %v4480
        %v4646 = vunpack.c.h.b16 %v4480
        %v4647 = vunpack.c.l.b16 %v4481
        %v4648 = vunpack.c.h.b16 %v4481
        %v4649 = vunpack.c.l.b16 %v4482
        %v4650 = vunpack.c.h.b16 %v4482
        %v4651 = vpack.c.b16 %v4609, %v4603
        %v4652 = vpack.c.b16 %v4610, %v4604
        %v4653 = vpack.c.b16 %v4611, %v4605
        %v4654 = vpack.c.b16 %v4612, %v4606
        %v4655 = vpack.c.b16 %v4613, %v4607
        %v4656 = vpack.c.b16 %v4614, %v4608
        %v4657 = vpack.c.b16 %v4621, %v4615
        %v4658 = vpack.c.b16 %v4622, %v4616
        %v4659 = vpack.c.b16 %v4623, %v4617
        %v4660 = vpack.c.b16 %v4624, %v4618
        %v4661 = vpack.c.b16 %v4625, %v4619
        %v4662 = vpack.c.b16 %v4626, %v4620
        %v4663 = vpack.c.b16 %v4633, %v4627
        %v4664 = vpack.c.b16 %v4634, %v4628
        %v4665 = vpack.c.b16 %v4635, %v4629
        %v4666 = vpack.c.b16 %v4636, %v4630
        %v4667 = vpack.c.b16 %v4637, %v4631
        %v4668 = vpack.c.b16 %v4638, %v4632
        %v4669 = vpack.c.b16 %v4645, %v4639
        %v4670 = vpack.c.b16 %v4646, %v4640
        %v4671 = vpack.c.b16 %v4647, %v4641
        %v4672 = vpack.c.b16 %v4648, %v4642
        %v4673 = vpack.c.b16 %v4649, %v4643
        %v4674 = vpack.c.b16 %v4650, %v4644
        %v4795 = vunpack.c.l.b16 %v4483
        %v4796 = vunpack.c.h.b16 %v4483
        %v4797 = vunpack.c.l.b16 %v4484
        %v4798 = vunpack.c.h.b16 %v4484
        %v4799 = vunpack.c.l.b16 %v4485
        %v4800 = vunpack.c.h.b16 %v4485
        %v4801 = vunpack.c.l.b16 %v4486
        %v4802 = vunpack.c.h.b16 %v4486
        %v4803 = vunpack.c.l.b16 %v4487
        %v4804 = vunpack.c.h.b16 %v4487
        %v4805 = vunpack.c.l.b16 %v4488
        %v4806 = vunpack.c.h.b16 %v4488
        %v4807 = vunpack.c.l.b16 %v4489
        %v4808 = vunpack.c.h.b16 %v4489
        %v4809 = vunpack.c.l.b16 %v4490
        %v4810 = vunpack.c.h.b16 %v4490
        %v4811 = vunpack.c.l.b16 %v4491
        %v4812 = vunpack.c.h.b16 %v4491
        %v4813 = vunpack.c.l.b16 %v4492
        %v4814 = vunpack.c.h.b16 %v4492
        %v4815 = vunpack.c.l.b16 %v4493
        %v4816 = vunpack.c.h.b16 %v4493
        %v4817 = vunpack.c.l.b16 %v4494
        %v4818 = vunpack.c.h.b16 %v4494
        %v4819 = vunpack.c.l.b16 %v4495
        %v4820 = vunpack.c.h.b16 %v4495
        %v4821 = vunpack.c.l.b16 %v4496
        %v4822 = vunpack.c.h.b16 %v4496
        %v4823 = vunpack.c.l.b16 %v4497
        %v4824 = vunpack.c.h.b16 %v4497
        %v4825 = vunpack.c.l.b16 %v4498
        %v4826 = vunpack.c.h.b16 %v4498
        %v4827 = vunpack.c.l.b16 %v4499
        %v4828 = vunpack.c.h.b16 %v4499
        %v4829 = vunpack.c.l.b16 %v4500
        %v4830 = vunpack.c.h.b16 %v4500
        %v4831 = vunpack.c.l.b16 %v4501
        %v4832 = vunpack.c.h.b16 %v4501
        %v4833 = vunpack.c.l.b16 %v4502
        %v4834 = vunpack.c.h.b16 %v4502
        %v4835 = vunpack.c.l.b16 %v4503
        %v4836 = vunpack.c.h.b16 %v4503
        %v4837 = vunpack.c.l.b16 %v4504
        %v4838 = vunpack.c.h.b16 %v4504
        %v4839 = vunpack.c.l.b16 %v4505
        %v4840 = vunpack.c.h.b16 %v4505
        %v4841 = vunpack.c.l.b16 %v4506
        %v4842 = vunpack.c.h.b16 %v4506
        %v4843 = vunpack.c.l.b16 %v4507
        %v4844 = vunpack.c.h.b16 %v4507
        %v4845 = vunpack.c.l.b16 %v4508
        %v4846 = vunpack.c.h.b16 %v4508
        %v4847 = vunpack.c.l.b16 %v4509
        %v4848 = vunpack.c.h.b16 %v4509
        %v4849 = vunpack.c.l.b16 %v4510
        %v4850 = vunpack.c.h.b16 %v4510
        %v4851 = vunpack.c.l.b16 %v4511
        %v4852 = vunpack.c.h.b16 %v4511
        %v4853 = vunpack.c.l.b16 %v4512
        %v4854 = vunpack.c.h.b16 %v4512
        %v4855 = vunpack.c.l.b16 %v4513
        %v4856 = vunpack.c.h.b16 %v4513
        %v4857 = vunpack.c.l.b16 %v4514
        %v4858 = vunpack.c.h.b16 %v4514
        %v4859 = vunpack.c.l.b16 %v4515
        %v4860 = vunpack.c.h.b16 %v4515
        %v4861 = vunpack.c.l.b16 %v4516
        %v4862 = vunpack.c.h.b16 %v4516
        %v4863 = vunpack.c.l.b16 %v4517
        %v4864 = vunpack.c.h.b16 %v4517
        %v4865 = vunpack.c.l.b16 %v4518
        %v4866 = vunpack.c.h.b16 %v4518
        %v4867 = vunpack.c.l.b16 %v4519
        %v4868 = vunpack.c.h.b16 %v4519
        %v4869 = vunpack.c.l.b16 %v4520
        %v4870 = vunpack.c.h.b16 %v4520
        %v4871 = vunpack.c.l.b16 %v4521
        %v4872 = vunpack.c.h.b16 %v4521
        %v4873 = vunpack.c.l.b16 %v4522
        %v4874 = vunpack.c.h.b16 %v4522
        %v4875 = vunpack.c.l.b16 %v4523
        %v4876 = vunpack.c.h.b16 %v4523
        %v4877 = vunpack.c.l.b16 %v4524
        %v4878 = vunpack.c.h.b16 %v4524
        %v4879 = vunpack.c.l.b16 %v4525
        %v4880 = vunpack.c.h.b16 %v4525
        %v4881 = vunpack.c.l.b16 %v4526
        %v4882 = vunpack.c.h.b16 %v4526
        %v4883 = vunpack.c.l.b16 %v4527
        %v4884 = vunpack.c.h.b16 %v4527
        %v4885 = vunpack.c.l.b16 %v4528
        %v4886 = vunpack.c.h.b16 %v4528
        %v4887 = vunpack.c.l.b16 %v4529
        %v4888 = vunpack.c.h.b16 %v4529
        %v4889 = vunpack.c.l.b16 %v4530
        %v4890 = vunpack.c.h.b16 %v4530
        %v4891 = vunpack.c.l.b16 %v4531
        %v4892 = vunpack.c.h.b16 %v4531
        %v4893 = vunpack.c.l.b16 %v4532
        %v4894 = vunpack.c.h.b16 %v4532
        %v4895 = vunpack.c.l.b16 %v4533
        %v4896 = vunpack.c.h.b16 %v4533
        %v4897 = vunpack.c.l.b16 %v4534
        %v4898 = vunpack.c.h.b16 %v4534
        %v4899 = vunpack.c.l.b16 %v4535
        %v4900 = vunpack.c.h.b16 %v4535
        %v4901 = vunpack.c.l.b16 %v4536
        %v4902 = vunpack.c.h.b16 %v4536
        %v4903 = vunpack.c.l.b16 %v4537
        %v4904 = vunpack.c.h.b16 %v4537
        %v4905 = vunpack.c.l.b16 %v4538
        %v4906 = vunpack.c.h.b16 %v4538
        %v4907 = vunpack.c.l.b16 %v4539
        %v4908 = vunpack.c.h.b16 %v4539
        %v4909 = vunpack.c.l.b16 %v4540
        %v4910 = vunpack.c.h.b16 %v4540
        %v4911 = vunpack.c.l.b16 %v4541
        %v4912 = vunpack.c.h.b16 %v4541
        %v4913 = vunpack.c.l.b16 %v4542
        %v4914 = vunpack.c.h.b16 %v4542
        %v4915 = vunpack.c.l.b16 %v4543
        %v4916 = vunpack.c.h.b16 %v4543
        %v4917 = vunpack.c.l.b16 %v4544
        %v4918 = vunpack.c.h.b16 %v4544
        %v4919 = vunpack.c.l.b16 %v4545
        %v4920 = vunpack.c.h.b16 %v4545
        %v4921 = vunpack.c.l.b16 %v4546
        %v4922 = vunpack.c.h.b16 %v4546
        %v4923 = vunpack.c.l.b16 %v4547
        %v4924 = vunpack.c.h.b16 %v4547
        %v4925 = vunpack.c.l.b16 %v4548
        %v4926 = vunpack.c.h.b16 %v4548
        %v4927 = vunpack.c.l.b16 %v4549
        %v4928 = vunpack.c.h.b16 %v4549
        %v4929 = vunpack.c.l.b16 %v4550
        %v4930 = vunpack.c.h.b16 %v4550
        %v4931 = vunpack.c.l.b16 %v4551
        %v4932 = vunpack.c.h.b16 %v4551
        %v4933 = vunpack.c.l.b16 %v4552
        %v4934 = vunpack.c.h.b16 %v4552
        %v4935 = vunpack.c.l.b16 %v4553
        %v4936 = vunpack.c.h.b16 %v4553
        %v4937 = vunpack.c.l.b16 %v4554
        %v4938 = vunpack.c.h.b16 %v4554
        %v4939 = vunpack.c.l.b16 %v4555
        %v4940 = vunpack.c.h.b16 %v4555
        %v4941 = vunpack.c.l.b16 %v4556
        %v4942 = vunpack.c.h.b16 %v4556
        %v4943 = vunpack.c.l.b16 %v4557
        %v4944 = vunpack.c.h.b16 %v4557
        %v4945 = vunpack.c.l.b16 %v4558
        %v4946 = vunpack.c.h.b16 %v4558
        %v4947 = vunpack.c.l.b16 %v4559
        %v4948 = vunpack.c.h.b16 %v4559
        %v4949 = vunpack.c.l.b16 %v4560
        %v4950 = vunpack.c.h.b16 %v4560
        %v4951 = vunpack.c.l.b16 %v4561
        %v4952 = vunpack.c.h.b16 %v4561
        %v4953 = vunpack.c.l.b16 %v4562
        %v4954 = vunpack.c.h.b16 %v4562
        %v4955 = vunpack.c.l.b16 %v4563
        %v4956 = vunpack.c.h.b16 %v4563
        %v4957 = vunpack.c.l.b16 %v4564
        %v4958 = vunpack.c.h.b16 %v4564
        %v4959 = vunpack.c.l.b16 %v4565
        %v4960 = vunpack.c.h.b16 %v4565
        %v4961 = vunpack.c.l.b16 %v4566
        %v4962 = vunpack.c.h.b16 %v4566
        %v4963 = vunpack.c.l.b16 %v4567
        %v4964 = vunpack.c.h.b16 %v4567
        %v4965 = vunpack.c.l.b16 %v4568
        %v4966 = vunpack.c.h.b16 %v4568
        %v4967 = vunpack.c.l.b16 %v4569
        %v4968 = vunpack.c.h.b16 %v4569
        %v4969 = vunpack.c.l.b16 %v4570
        %v4970 = vunpack.c.h.b16 %v4570
        %v4971 = vunpack.c.l.b16 %v4571
        %v4972 = vunpack.c.h.b16 %v4571
        %v4973 = vunpack.c.l.b16 %v4572
        %v4974 = vunpack.c.h.b16 %v4572
        %v4975 = vunpack.c.l.b16 %v4573
        %v4976 = vunpack.c.h.b16 %v4573
        %v4977 = vunpack.c.l.b16 %v4574
        %v4978 = vunpack.c.h.b16 %v4574
        %v4979 = vunpack.c.l.b16 %v4575
        %v4980 = vunpack.c.h.b16 %v4575
        %v4981 = vunpack.c.l.b16 %v4576
        %v4982 = vunpack.c.h.b16 %v4576
        %v4983 = vunpack.c.l.b16 %v4577
        %v4984 = vunpack.c.h.b16 %v4577
        %v4985 = vunpack.c.l.b16 %v4578
        %v4986 = vunpack.c.h.b16 %v4578
        %v4987 = vpack.c.b16 %v4797, %v4795
        %v4988 = vpack.c.b16 %v4798, %v4796
        %v4989 = vpack.c.b16 %v4801, %v4799
        %v4990 = vpack.c.b16 %v4802, %v4800
        %v4991 = vpack.c.b16 %v4805, %v4803
        %v4992 = vpack.c.b16 %v4806, %v4804
        %v4993 = vpack.c.b16 %v4809, %v4807
        %v4994 = vpack.c.b16 %v4810, %v4808
        %v4995 = vpack.c.b16 %v4813, %v4811
        %v4996 = vpack.c.b16 %v4814, %v4812
        %v4997 = vpack.c.b16 %v4817, %v4815
        %v4998 = vpack.c.b16 %v4818, %v4816
        %v4999 = vpack.c.b16 %v4821, %v4819
        %v5000 = vpack.c.b16 %v4822, %v4820
        %v5001 = vpack.c.b16 %v4825, %v4823
        %v5002 = vpack.c.b16 %v4826, %v4824
        %v5003 = vpack.c.b16 %v4829, %v4827
        %v5004 = vpack.c.b16 %v4830, %v4828
        %v5005 = vpack.c.b16 %v4833, %v4831
        %v5006 = vpack.c.b16 %v4834, %v4832
        %v5007 = vpack.c.b16 %v4837, %v4835
        %v5008 = vpack.c.b16 %v4838, %v4836
        %v5009 = vpack.c.b16 %v4841, %v4839
        %v5010 = vpack.c.b16 %v4842, %v4840
        %v5011 = vpack.c.b16 %v4845, %v4843
        %v5012 = vpack.c.b16 %v4846, %v4844
        %v5013 = vpack.c.b16 %v4849, %v4847
        %v5014 = vpack.c.b16 %v4850, %v4848
        %v5015 = vpack.c.b16 %v4853, %v4851
        %v5016 = vpack.c.b16 %v4854, %v4852
        %v5017 = vpack.c.b16 %v4857, %v4855
        %v5018 = vpack.c.b16 %v4858, %v4856
        %v5019 = vpack.c.b16 %v4861, %v4859
        %v5020 = vpack.c.b16 %v4862, %v4860
        %v5021 = vpack.c.b16 %v4865, %v4863
        %v5022 = vpack.c.b16 %v4866, %v4864
        %v5023 = vpack.c.b16 %v4869, %v4867
        %v5024 = vpack.c.b16 %v4870, %v4868
        %v5025 = vpack.c.b16 %v4873, %v4871
        %v5026 = vpack.c.b16 %v4874, %v4872
        %v5027 = vpack.c.b16 %v4877, %v4875
        %v5028 = vpack.c.b16 %v4878, %v4876
        %v5029 = vpack.c.b16 %v4881, %v4879
        %v5030 = vpack.c.b16 %v4882, %v4880
        %v5031 = vpack.c.b16 %v4885, %v4883
        %v5032 = vpack.c.b16 %v4886, %v4884
        %v5033 = vpack.c.b16 %v4889, %v4887
        %v5034 = vpack.c.b16 %v4890, %v4888
        %v5035 = vpack.c.b16 %v4893, %v4891
        %v5036 = vpack.c.b16 %v4894, %v4892
        %v5037 = vpack.c.b16 %v4897, %v4895
        %v5038 = vpack.c.b16 %v4898, %v4896
        %v5039 = vpack.c.b16 %v4901, %v4899
        %v5040 = vpack.c.b16 %v4902, %v4900
        %v5041 = vpack.c.b16 %v4905, %v4903
        %v5042 = vpack.c.b16 %v4906, %v4904
        %v5043 = vpack.c.b16 %v4909, %v4907
        %v5044 = vpack.c.b16 %v4910, %v4908
        %v5045 = vpack.c.b16 %v4913, %v4911
        %v5046 = vpack.c.b16 %v4914, %v4912
        %v5047 = vpack.c.b16 %v4917, %v4915
        %v5048 = vpack.c.b16 %v4918, %v4916
        %v5049 = vpack.c.b16 %v4921, %v4919
        %v5050 = vpack.c.b16 %v4922, %v4920
        %v5051 = vpack.c.b16 %v4925, %v4923
        %v5052 = vpack.c.b16 %v4926, %v4924
        %v5053 = vpack.c.b16 %v4929, %v4927
        %v5054 = vpack.c.b16 %v4930, %v4928
        %v5055 = vpack.c.b16 %v4933, %v4931
        %v5056 = vpack.c.b16 %v4934, %v4932
        %v5057 = vpack.c.b16 %v4937, %v4935
        %v5058 = vpack.c.b16 %v4938, %v4936
        %v5059 = vpack.c.b16 %v4941, %v4939
        %v5060 = vpack.c.b16 %v4942, %v4940
        %v5061 = vpack.c.b16 %v4945, %v4943
        %v5062 = vpack.c.b16 %v4946, %v4944
        %v5063 = vpack.c.b16 %v4949, %v4947
        %v5064 = vpack.c.b16 %v4950, %v4948
        %v5065 = vpack.c.b16 %v4953, %v4951
        %v5066 = vpack.c.b16 %v4954, %v4952
        %v5067 = vpack.c.b16 %v4957, %v4955
        %v5068 = vpack.c.b16 %v4958, %v4956
        %v5069 = vpack.c.b16 %v4961, %v4959
        %v5070 = vpack.c.b16 %v4962, %v4960
        %v5071 = vpack.c.b16 %v4965, %v4963
        %v5072 = vpack.c.b16 %v4966, %v4964
        %v5073 = vpack.c.b16 %v4969, %v4967
        %v5074 = vpack.c.b16 %v4970, %v4968
        %v5075 = vpack.c.b16 %v4973, %v4971
        %v5076 = vpack.c.b16 %v4974, %v4972
        %v5077 = vpack.c.b16 %v4977, %v4975
        %v5078 = vpack.c.b16 %v4978, %v4976
        %v5079 = vpack.c.b16 %v4981, %v4979
        %v5080 = vpack.c.b16 %v4982, %v4980
        %v5081 = vpack.c.b16 %v4985, %v4983
        %v5082 = vpack.c.b16 %v4986, %v4984
        %5179 = vmatprep.subr.bf16.mxu0 %v4988
        %5180 = vmatpush1.bf16.msra.mxu0 %v4987
        %5181 = vmatprep.subr.bf16.mxu0 %v4990
        %5182 = vmatpush1.bf16.msra.mxu0 %v4989
        %5183 = vmatprep.subr.bf16.mxu0 %v4992
        %5184 = vmatpush1.bf16.msra.mxu0 %v4991
        %5185 = vmatprep.subr.bf16.mxu0 %v4994
        %5186 = vmatpush1.bf16.msra.mxu0 %v4993
        %5187 = vmatprep.subr.bf16.mxu0 %v4996
        %5188 = vmatpush1.bf16.msra.mxu0 %v4995
        %5189 = vmatprep.subr.bf16.mxu0 %v4998
        %5190 = vmatpush1.bf16.msra.mxu0 %v4997
        %5191 = vmatprep.subr.bf16.mxu0 %v5000
        %5192 = vmatpush1.bf16.msra.mxu0 %v4999
        %5193 = vmatprep.subr.bf16.mxu0 %v5002
        %5194 = vmatpush1.bf16.msra.mxu0 %v5001
        %5195 = vmatprep.subr.bf16.mxu0 %v5004
        %5196 = vmatpush1.bf16.msra.mxu0 %v5003
        %5197 = vmatprep.subr.bf16.mxu0 %v5006
        %5198 = vmatpush1.bf16.msra.mxu0 %v5005
        %5199 = vmatprep.subr.bf16.mxu0 %v5008
        %5200 = vmatpush1.bf16.msra.mxu0 %v5007
        %5201 = vmatprep.subr.bf16.mxu0 %v5010
        %5202 = vmatpush1.bf16.msra.mxu0 %v5009
        %5203 = vmatprep.subr.bf16.mxu0 %v5012
        %5204 = vmatpush1.bf16.msra.mxu0 %v5011
        %5205 = vmatprep.subr.bf16.mxu0 %v5014
        %5206 = vmatpush1.bf16.msra.mxu0 %v5013
        %5207 = vmatprep.subr.bf16.mxu0 %v5016
        %5208 = vmatpush1.bf16.msra.mxu0 %v5015
        %5209 = vmatprep.subr.bf16.mxu0 %v5018
        %5210 = vmatpush1.bf16.msra.mxu0 %v5017
        %5211 = vmatprep.mubr.bf16.mxu0 %v4652
        %5212 = vmatmul.mubr.bf16.gmra.mrb[0].mxu0 %v4651
        %v5213 = vpop.f32.mrb[0].mxu0
        %v5214 = vadd.f32 0.0, %v5213
        %v5215 = vpop.f32.mrb[0].mxu0
        %v5216 = vadd.f32 0.0, %v5215
        %v5217 = vpop.f32.mrb[0].mxu0
        %v5218 = vadd.f32 0.0, %v5217
        %v5219 = vpop.f32.mrb[0].mxu0
        %v5220 = vadd.f32 0.0, %v5219
        %5221 = vmatprep.mubr.bf16.mxu0 %v4658
        %5222 = vmatmul.mubr.bf16.gmra.mrb[0].mxu0 %v4657
        %v5223 = vpop.f32.mrb[0].mxu0
        %v5224 = vadd.f32 0.0, %v5223
        %v5225 = vpop.f32.mrb[0].mxu0
        %v5226 = vadd.f32 0.0, %v5225
        %v5227 = vpop.f32.mrb[0].mxu0
        %v5228 = vadd.f32 0.0, %v5227
        %v5229 = vpop.f32.mrb[0].mxu0
        %v5230 = vadd.f32 0.0, %v5229
        %5231 = vmatprep.mubr.bf16.mxu0 %v4664
        %5232 = vmatmul.mubr.bf16.gmra.mrb[0].mxu0 %v4663
        %v5233 = vpop.f32.mrb[0].mxu0
        %v5234 = vadd.f32 0.0, %v5233
        %v5235 = vpop.f32.mrb[0].mxu0
        %v5236 = vadd.f32 0.0, %v5235
        %v5237 = vpop.f32.mrb[0].mxu0
        %v5238 = vadd.f32 0.0, %v5237
        %v5239 = vpop.f32.mrb[0].mxu0
        %v5240 = vadd.f32 0.0, %v5239
        %5241 = vmatprep.mubr.bf16.mxu0 %v4670
        %5242 = vmatmul.mubr.bf16.gmra.mrb[0].mxu0 %v4669
        %v5243 = vpop.f32.mrb[0].mxu0
        %v5244 = vadd.f32 0.0, %v5243
        %v5245 = vpop.f32.mrb[0].mxu0
        %v5246 = vadd.f32 0.0, %v5245
        %v5247 = vpop.f32.mrb[0].mxu0
        %v5248 = vadd.f32 0.0, %v5247
        %v5249 = vpop.f32.mrb[0].mxu0
        %v5250 = vadd.f32 0.0, %v5249
        %5251 = vdwg.mxu0
        %5252 = vmatprep.subr.bf16.mxu0 %v5020
        %5253 = vmatpush1.bf16.msra.mxu0 %v5019
        %5254 = vmatprep.subr.bf16.mxu0 %v5022
        %5255 = vmatpush1.bf16.msra.mxu0 %v5021
        %5256 = vmatprep.subr.bf16.mxu0 %v5024
        %5257 = vmatpush1.bf16.msra.mxu0 %v5023
        %5258 = vmatprep.subr.bf16.mxu0 %v5026
        %5259 = vmatpush1.bf16.msra.mxu0 %v5025
        %5260 = vmatprep.subr.bf16.mxu0 %v5028
        %5261 = vmatpush1.bf16.msra.mxu0 %v5027
        %5262 = vmatprep.subr.bf16.mxu0 %v5030
        %5263 = vmatpush1.bf16.msra.mxu0 %v5029
        %5264 = vmatprep.subr.bf16.mxu0 %v5032
        %5265 = vmatpush1.bf16.msra.mxu0 %v5031
        %5266 = vmatprep.subr.bf16.mxu0 %v5034
        %5267 = vmatpush1.bf16.msra.mxu0 %v5033
        %5268 = vmatprep.subr.bf16.mxu0 %v5036
        %5269 = vmatpush1.bf16.msra.mxu0 %v5035
        %5270 = vmatprep.subr.bf16.mxu0 %v5038
        %5271 = vmatpush1.bf16.msra.mxu0 %v5037
        %5272 = vmatprep.subr.bf16.mxu0 %v5040
        %5273 = vmatpush1.bf16.msra.mxu0 %v5039
        %5274 = vmatprep.subr.bf16.mxu0 %v5042
        %5275 = vmatpush1.bf16.msra.mxu0 %v5041
        %5276 = vmatprep.subr.bf16.mxu0 %v5044
        %5277 = vmatpush1.bf16.msra.mxu0 %v5043
        %5278 = vmatprep.subr.bf16.mxu0 %v5046
        %5279 = vmatpush1.bf16.msra.mxu0 %v5045
        %5280 = vmatprep.subr.bf16.mxu0 %v5048
        %5281 = vmatpush1.bf16.msra.mxu0 %v5047
        %5282 = vmatprep.subr.bf16.mxu0 %v5050
        %5283 = vmatpush1.bf16.msra.mxu0 %v5049
        %5284 = vmatprep.mubr.bf16.mxu0 %v4654
        %5285 = vmatmul.mubr.bf16.gmra.mrb[0].mxu0 %v4653
        %v5286 = vpop.f32.mrb[0].mxu0
        %v5287 = vadd.f32 %v5214, %v5286
        %v5288 = vpop.f32.mrb[0].mxu0
        %v5289 = vadd.f32 %v5216, %v5288
        %v5290 = vpop.f32.mrb[0].mxu0
        %v5291 = vadd.f32 %v5218, %v5290
        %v5292 = vpop.f32.mrb[0].mxu0
        %v5293 = vadd.f32 %v5220, %v5292
        %5294 = vmatprep.mubr.bf16.mxu0 %v4660
        %5295 = vmatmul.mubr.bf16.gmra.mrb[0].mxu0 %v4659
        %v5296 = vpop.f32.mrb[0].mxu0
        %v5297 = vadd.f32 %v5224, %v5296
        %v5298 = vpop.f32.mrb[0].mxu0
        %v5299 = vadd.f32 %v5226, %v5298
        %v5300 = vpop.f32.mrb[0].mxu0
        %v5301 = vadd.f32 %v5228, %v5300
        %v5302 = vpop.f32.mrb[0].mxu0
        %v5303 = vadd.f32 %v5230, %v5302
        %5304 = vmatprep.mubr.bf16.mxu0 %v4666
        %5305 = vmatmul.mubr.bf16.gmra.mrb[0].mxu0 %v4665
        %v5306 = vpop.f32.mrb[0].mxu0
        %v5307 = vadd.f32 %v5234, %v5306
        %v5308 = vpop.f32.mrb[0].mxu0
        %v5309 = vadd.f32 %v5236, %v5308
        %v5310 = vpop.f32.mrb[0].mxu0
        %v5311 = vadd.f32 %v5238, %v5310
        %v5312 = vpop.f32.mrb[0].mxu0
        %v5313 = vadd.f32 %v5240, %v5312
        %5314 = vmatprep.mubr.bf16.mxu0 %v4672
        %5315 = vmatmul.mubr.bf16.gmra.mrb[0].mxu0 %v4671
        %v5316 = vpop.f32.mrb[0].mxu0
        %v5317 = vadd.f32 %v5244, %v5316
        %v5318 = vpop.f32.mrb[0].mxu0
        %v5319 = vadd.f32 %v5246, %v5318
        %v5320 = vpop.f32.mrb[0].mxu0
        %v5321 = vadd.f32 %v5248, %v5320
        %v5322 = vpop.f32.mrb[0].mxu0
        %v5323 = vadd.f32 %v5250, %v5322
        %5324 = vdwg.mxu0
        %5325 = vmatprep.subr.bf16.mxu0 %v5052
        %5326 = vmatpush1.bf16.msra.mxu0 %v5051
        %5327 = vmatprep.subr.bf16.mxu0 %v5054
        %5328 = vmatpush1.bf16.msra.mxu0 %v5053
        %5329 = vmatprep.subr.bf16.mxu0 %v5056
        %5330 = vmatpush1.bf16.msra.mxu0 %v5055
        %5331 = vmatprep.subr.bf16.mxu0 %v5058
        %5332 = vmatpush1.bf16.msra.mxu0 %v5057
        %5333 = vmatprep.subr.bf16.mxu0 %v5060
        %5334 = vmatpush1.bf16.msra.mxu0 %v5059
        %5335 = vmatprep.subr.bf16.mxu0 %v5062
        %5336 = vmatpush1.bf16.msra.mxu0 %v5061
        %5337 = vmatprep.subr.bf16.mxu0 %v5064
        %5338 = vmatpush1.bf16.msra.mxu0 %v5063
        %5339 = vmatprep.subr.bf16.mxu0 %v5066
        %5340 = vmatpush1.bf16.msra.mxu0 %v5065
        %5341 = vmatprep.subr.bf16.mxu0 %v5068
        %5342 = vmatpush1.bf16.msra.mxu0 %v5067
        %5343 = vmatprep.subr.bf16.mxu0 %v5070
        %5344 = vmatpush1.bf16.msra.mxu0 %v5069
        %5345 = vmatprep.subr.bf16.mxu0 %v5072
        %5346 = vmatpush1.bf16.msra.mxu0 %v5071
        %5347 = vmatprep.subr.bf16.mxu0 %v5074
        %5348 = vmatpush1.bf16.msra.mxu0 %v5073
        %5349 = vmatprep.subr.bf16.mxu0 %v5076
        %5350 = vmatpush1.bf16.msra.mxu0 %v5075
        %5351 = vmatprep.subr.bf16.mxu0 %v5078
        %5352 = vmatpush1.bf16.msra.mxu0 %v5077
        %5353 = vmatprep.subr.bf16.mxu0 %v5080
        %5354 = vmatpush1.bf16.msra.mxu0 %v5079
        %5355 = vmatprep.subr.bf16.mxu0 %v5082
        %5356 = vmatpush1.bf16.msra.mxu0 %v5081
        %5357 = vmatprep.mubr.bf16.mxu0 %v4656
        %5358 = vmatmul.mubr.bf16.gmra.mrb[0].mxu0 %v4655
        %v5359 = vpop.f32.mrb[0].mxu0
        %v5360 = vadd.f32 %v5287, %v5359
        %v5361 = vpop.f32.mrb[0].mxu0
        %v5362 = vadd.f32 %v5289, %v5361
        %v5363 = vpop.f32.mrb[0].mxu0
        %v5364 = vadd.f32 %v5291, %v5363
        %v5365 = vpop.f32.mrb[0].mxu0
        %v5366 = vadd.f32 %v5293, %v5365
        %5367 = vmatprep.mubr.bf16.mxu0 %v4662
        %5368 = vmatmul.mubr.bf16.gmra.mrb[0].mxu0 %v4661
        %v5369 = vpop.f32.mrb[0].mxu0
        %v5370 = vadd.f32 %v5297, %v5369
        %v5371 = vpop.f32.mrb[0].mxu0
        %v5372 = vadd.f32 %v5299, %v5371
        %v5373 = vpop.f32.mrb[0].mxu0
        %v5374 = vadd.f32 %v5301, %v5373
        %v5375 = vpop.f32.mrb[0].mxu0
        %v5376 = vadd.f32 %v5303, %v5375
        %5377 = vmatprep.mubr.bf16.mxu0 %v4668
        %5378 = vmatmul.mubr.bf16.gmra.mrb[0].mxu0 %v4667
        %v5379 = vpop.f32.mrb[0].mxu0
        %v5380 = vadd.f32 %v5307, %v5379
        %v5381 = vpop.f32.mrb[0].mxu0
        %v5382 = vadd.f32 %v5309, %v5381
        %v5383 = vpop.f32.mrb[0].mxu0
        %v5384 = vadd.f32 %v5311, %v5383
        %v5385 = vpop.f32.mrb[0].mxu0
        %v5386 = vadd.f32 %v5313, %v5385
        %5387 = vmatprep.mubr.bf16.mxu0 %v4674
        %5388 = vmatmul.mubr.bf16.gmra.mrb[0].mxu0 %v4673
        %v5389 = vpop.f32.mrb[0].mxu0
        %v5390 = vadd.f32 %v5317, %v5389
        %v5391 = vpop.f32.mrb[0].mxu0
        %v5392 = vadd.f32 %v5319, %v5391
        %v5393 = vpop.f32.mrb[0].mxu0
        %v5394 = vadd.f32 %v5321, %v5393
        %v5395 = vpop.f32.mrb[0].mxu0
        %v5396 = vadd.f32 %v5323, %v5395
        %5397 = vdwg.mxu0
        %5398 = vst [vmem:[#allocation4] sm:$0xff] %v5360
        %5399 = vst [vmem:[#allocation4 + $0x8] sm:$0xff] %v5362
        %5400 = vst [vmem:[#allocation4 + $0x10] sm:$0xff] %v5364
        %5401 = vst [vmem:[#allocation4 + $0x18] sm:$0xff] %v5366
        %5402 = vst [vmem:[#allocation4 + $0x20] sm:$0xff] %v5370
        %5403 = vst [vmem:[#allocation4 + $0x28] sm:$0xff] %v5372
        %5404 = vst [vmem:[#allocation4 + $0x30] sm:$0xff] %v5374
        %5405 = vst [vmem:[#allocation4 + $0x38] sm:$0xff] %v5376
        %5406 = vst [vmem:[#allocation4 + $0x40] sm:$0xff] %v5380
        %5407 = vst [vmem:[#allocation4 + $0x48] sm:$0xff] %v5382
        %5408 = vst [vmem:[#allocation4 + $0x50] sm:$0xff] %v5384
        %5409 = vst [vmem:[#allocation4 + $0x58] sm:$0xff] %v5386
        %5410 = vst [vmem:[#allocation4 + $0x60] sm:$0xff] %v5390
        %5411 = vst [vmem:[#allocation4 + $0x68] sm:$0xff] %v5392
        %5412 = vst [vmem:[#allocation4 + $0x70] sm:$0xff] %v5394
        %5413 = vst [vmem:[#allocation4 + $0x78] sm:$0xff] %v5396
        %v5414 = vld [vmem:[#allocation4] sm:$0xff]
        %v5415 = vld [vmem:[#allocation4 + $0x8] sm:$0xff]
        %v5416 = vld [vmem:[#allocation4 + $0x10] sm:$0xff]
        %v5417 = vld [vmem:[#allocation4 + $0x18] sm:$0xff]
        %v5418 = vld [vmem:[#allocation4 + $0x20] sm:$0xff]
        %v5419 = vld [vmem:[#allocation4 + $0x28] sm:$0xff]
        %v5420 = vld [vmem:[#allocation4 + $0x30] sm:$0xff]
        %v5421 = vld [vmem:[#allocation4 + $0x38] sm:$0xff]
        %v5422 = vld [vmem:[#allocation4 + $0x40] sm:$0xff]
        %v5423 = vld [vmem:[#allocation4 + $0x48] sm:$0xff]
        %v5424 = vld [vmem:[#allocation4 + $0x50] sm:$0xff]
        %v5425 = vld [vmem:[#allocation4 + $0x58] sm:$0xff]
        %v5426 = vld [vmem:[#allocation4 + $0x60] sm:$0xff]
        %v5427 = vld [vmem:[#allocation4 + $0x68] sm:$0xff]
        %v5428 = vld [vmem:[#allocation4 + $0x70] sm:$0xff]
        %v5429 = vld [vmem:[#allocation4 + $0x78] sm:$0xff]
        %v5430 = vld [vmem:[%s1969] sm:$0xff]
        %v5431 = vld [vmem:[%s1969 + $0x8] sm:$0xff]
        %v5432 = vld [vmem:[%s1969 + $0x10] sm:$0xff]
        %v5433 = vld [vmem:[%s1969 + $0x18] sm:$0xff]
        %v5434 = vld [vmem:[%s1969 + $0x20] sm:$0xff]
        %v5435 = vld [vmem:[%s1969 + $0x28] sm:$0xff]
        %v5436 = vld [vmem:[%s1969 + $0x30] sm:$0xff]
        %v5437 = vld [vmem:[%s1969 + $0x38] sm:$0xff]
        %v5438 = vld [vmem:[%s1969 + $0x40] sm:$0xff]
        %v5439 = vld [vmem:[%s1969 + $0x48] sm:$0xff]
        %v5440 = vld [vmem:[%s1969 + $0x50] sm:$0xff]
        %v5441 = vld [vmem:[%s1969 + $0x58] sm:$0xff]
        %v5442 = vld [vmem:[%s1969 + $0x60] sm:$0xff]
        %v5443 = vld [vmem:[%s1969 + $0x68] sm:$0xff]
        %v5444 = vld [vmem:[%s1969 + $0x70] sm:$0xff]
        %v5445 = vld [vmem:[%s1969 + $0x78] sm:$0xff]
        %v5446 = vld [vmem:[%s1969 + $0x80] sm:$0xff]
        %v5447 = vld [vmem:[%s1969 + $0x88] sm:$0xff]
        %v5448 = vld [vmem:[%s1969 + $0x90] sm:$0xff]
        %v5449 = vld [vmem:[%s1969 + $0x98] sm:$0xff]
        %v5450 = vld [vmem:[%s1969 + $0xa0] sm:$0xff]
        %v5451 = vld [vmem:[%s1969 + $0xa8] sm:$0xff]
        %v5452 = vld [vmem:[%s1969 + $0xb0] sm:$0xff]
        %v5453 = vld [vmem:[%s1969 + $0xb8] sm:$0xff]
        %s5454 = scalar_lea.vmem [#allocation11], 768
        %v5455 = vld [vmem:[%s5454] sm:$0xff]
        %v5456 = vld [vmem:[%s5454 + $0x8] sm:$0xff]
        %v5457 = vld [vmem:[%s5454 + $0x10] sm:$0xff]
        %v5458 = vld [vmem:[%s5454 + $0x18] sm:$0xff]
        %v5459 = vld [vmem:[%s5454 + $0x20] sm:$0xff]
        %v5460 = vld [vmem:[%s5454 + $0x28] sm:$0xff]
        %v5461 = vld [vmem:[%s5454 + $0x30] sm:$0xff]
        %v5462 = vld [vmem:[%s5454 + $0x38] sm:$0xff]
        %v5463 = vld [vmem:[%s5454 + $0x40] sm:$0xff]
        %v5464 = vld [vmem:[%s5454 + $0x48] sm:$0xff]
        %v5465 = vld [vmem:[%s5454 + $0x50] sm:$0xff]
        %v5466 = vld [vmem:[%s5454 + $0x58] sm:$0xff]
        %v5467 = vld [vmem:[%s5454 + $0x60] sm:$0xff]
        %v5468 = vld [vmem:[%s5454 + $0x68] sm:$0xff]
        %v5469 = vld [vmem:[%s5454 + $0x70] sm:$0xff]
        %v5470 = vld [vmem:[%s5454 + $0x78] sm:$0xff]
        %v5471 = vld [vmem:[%s5454 + $0x80] sm:$0xff]
        %v5472 = vld [vmem:[%s5454 + $0x88] sm:$0xff]
        %v5473 = vld [vmem:[%s5454 + $0x90] sm:$0xff]
        %v5474 = vld [vmem:[%s5454 + $0x98] sm:$0xff]
        %v5475 = vld [vmem:[%s5454 + $0xa0] sm:$0xff]
        %v5476 = vld [vmem:[%s5454 + $0xa8] sm:$0xff]
        %v5477 = vld [vmem:[%s5454 + $0xb0] sm:$0xff]
        %v5478 = vld [vmem:[%s5454 + $0xb8] sm:$0xff]
        %v5479 = vld [vmem:[%s5454 + $0xc0] sm:$0xff]
        %v5480 = vld [vmem:[%s5454 + $0xc8] sm:$0xff]
        %v5481 = vld [vmem:[%s5454 + $0xd0] sm:$0xff]
        %v5482 = vld [vmem:[%s5454 + $0xd8] sm:$0xff]
        %v5483 = vld [vmem:[%s5454 + $0xe0] sm:$0xff]
        %v5484 = vld [vmem:[%s5454 + $0xe8] sm:$0xff]
        %v5485 = vld [vmem:[%s5454 + $0xf0] sm:$0xff]
        %v5486 = vld [vmem:[%s5454 + $0xf8] sm:$0xff]
        %v5487 = vld [vmem:[%s5454 + $0x100] sm:$0xff]
        %v5488 = vld [vmem:[%s5454 + $0x108] sm:$0xff]
        %v5489 = vld [vmem:[%s5454 + $0x110] sm:$0xff]
        %v5490 = vld [vmem:[%s5454 + $0x118] sm:$0xff]
        %v5491 = vld [vmem:[%s5454 + $0x120] sm:$0xff]
        %v5492 = vld [vmem:[%s5454 + $0x128] sm:$0xff]
        %v5493 = vld [vmem:[%s5454 + $0x130] sm:$0xff]
        %v5494 = vld [vmem:[%s5454 + $0x138] sm:$0xff]
        %v5495 = vld [vmem:[%s5454 + $0x140] sm:$0xff]
        %v5496 = vld [vmem:[%s5454 + $0x148] sm:$0xff]
        %v5497 = vld [vmem:[%s5454 + $0x150] sm:$0xff]
        %v5498 = vld [vmem:[%s5454 + $0x158] sm:$0xff]
        %v5499 = vld [vmem:[%s5454 + $0x160] sm:$0xff]
        %v5500 = vld [vmem:[%s5454 + $0x168] sm:$0xff]
        %v5501 = vld [vmem:[%s5454 + $0x170] sm:$0xff]
        %v5502 = vld [vmem:[%s5454 + $0x178] sm:$0xff]
        %v5503 = vld [vmem:[%s5454 + $0x180] sm:$0xff]
        %v5504 = vld [vmem:[%s5454 + $0x188] sm:$0xff]
        %v5505 = vld [vmem:[%s5454 + $0x190] sm:$0xff]
        %v5506 = vld [vmem:[%s5454 + $0x198] sm:$0xff]
        %v5507 = vld [vmem:[%s5454 + $0x1a0] sm:$0xff]
        %v5508 = vld [vmem:[%s5454 + $0x1a8] sm:$0xff]
        %v5509 = vld [vmem:[%s5454 + $0x1b0] sm:$0xff]
        %v5510 = vld [vmem:[%s5454 + $0x1b8] sm:$0xff]
        %v5511 = vld [vmem:[%s5454 + $0x1c0] sm:$0xff]
        %v5512 = vld [vmem:[%s5454 + $0x1c8] sm:$0xff]
        %v5513 = vld [vmem:[%s5454 + $0x1d0] sm:$0xff]
        %v5514 = vld [vmem:[%s5454 + $0x1d8] sm:$0xff]
        %v5515 = vld [vmem:[%s5454 + $0x1e0] sm:$0xff]
        %v5516 = vld [vmem:[%s5454 + $0x1e8] sm:$0xff]
        %v5517 = vld [vmem:[%s5454 + $0x1f0] sm:$0xff]
        %v5518 = vld [vmem:[%s5454 + $0x1f8] sm:$0xff]
        %v5519 = vld [vmem:[%s5454 + $0x200] sm:$0xff]
        %v5520 = vld [vmem:[%s5454 + $0x208] sm:$0xff]
        %v5521 = vld [vmem:[%s5454 + $0x210] sm:$0xff]
        %v5522 = vld [vmem:[%s5454 + $0x218] sm:$0xff]
        %v5523 = vld [vmem:[%s5454 + $0x220] sm:$0xff]
        %v5524 = vld [vmem:[%s5454 + $0x228] sm:$0xff]
        %v5525 = vld [vmem:[%s5454 + $0x230] sm:$0xff]
        %v5526 = vld [vmem:[%s5454 + $0x238] sm:$0xff]
        %v5527 = vld [vmem:[%s5454 + $0x240] sm:$0xff]
        %v5528 = vld [vmem:[%s5454 + $0x248] sm:$0xff]
        %v5529 = vld [vmem:[%s5454 + $0x250] sm:$0xff]
        %v5530 = vld [vmem:[%s5454 + $0x258] sm:$0xff]
        %v5531 = vld [vmem:[%s5454 + $0x260] sm:$0xff]
        %v5532 = vld [vmem:[%s5454 + $0x268] sm:$0xff]
        %v5533 = vld [vmem:[%s5454 + $0x270] sm:$0xff]
        %v5534 = vld [vmem:[%s5454 + $0x278] sm:$0xff]
        %v5535 = vld [vmem:[%s5454 + $0x280] sm:$0xff]
        %v5536 = vld [vmem:[%s5454 + $0x288] sm:$0xff]
        %v5537 = vld [vmem:[%s5454 + $0x290] sm:$0xff]
        %v5538 = vld [vmem:[%s5454 + $0x298] sm:$0xff]
        %v5539 = vld [vmem:[%s5454 + $0x2a0] sm:$0xff]
        %v5540 = vld [vmem:[%s5454 + $0x2a8] sm:$0xff]
        %v5541 = vld [vmem:[%s5454 + $0x2b0] sm:$0xff]
        %v5542 = vld [vmem:[%s5454 + $0x2b8] sm:$0xff]
        %v5543 = vld [vmem:[%s5454 + $0x2c0] sm:$0xff]
        %v5544 = vld [vmem:[%s5454 + $0x2c8] sm:$0xff]
        %v5545 = vld [vmem:[%s5454 + $0x2d0] sm:$0xff]
        %v5546 = vld [vmem:[%s5454 + $0x2d8] sm:$0xff]
        %v5547 = vld [vmem:[%s5454 + $0x2e0] sm:$0xff]
        %v5548 = vld [vmem:[%s5454 + $0x2e8] sm:$0xff]
        %v5549 = vld [vmem:[%s5454 + $0x2f0] sm:$0xff]
        %v5550 = vld [vmem:[%s5454 + $0x2f8] sm:$0xff]
        %v5575 = vunpack.c.l.b16 %v5430
        %v5576 = vunpack.c.h.b16 %v5430
        %v5577 = vunpack.c.l.b16 %v5431
        %v5578 = vunpack.c.h.b16 %v5431
        %v5579 = vunpack.c.l.b16 %v5432
        %v5580 = vunpack.c.h.b16 %v5432
        %v5581 = vunpack.c.l.b16 %v5433
        %v5582 = vunpack.c.h.b16 %v5433
        %v5583 = vunpack.c.l.b16 %v5434
        %v5584 = vunpack.c.h.b16 %v5434
        %v5585 = vunpack.c.l.b16 %v5435
        %v5586 = vunpack.c.h.b16 %v5435
        %v5587 = vunpack.c.l.b16 %v5436
        %v5588 = vunpack.c.h.b16 %v5436
        %v5589 = vunpack.c.l.b16 %v5437
        %v5590 = vunpack.c.h.b16 %v5437
        %v5591 = vunpack.c.l.b16 %v5438
        %v5592 = vunpack.c.h.b16 %v5438
        %v5593 = vunpack.c.l.b16 %v5439
        %v5594 = vunpack.c.h.b16 %v5439
        %v5595 = vunpack.c.l.b16 %v5440
        %v5596 = vunpack.c.h.b16 %v5440
        %v5597 = vunpack.c.l.b16 %v5441
        %v5598 = vunpack.c.h.b16 %v5441
        %v5599 = vunpack.c.l.b16 %v5442
        %v5600 = vunpack.c.h.b16 %v5442
        %v5601 = vunpack.c.l.b16 %v5443
        %v5602 = vunpack.c.h.b16 %v5443
        %v5603 = vunpack.c.l.b16 %v5444
        %v5604 = vunpack.c.h.b16 %v5444
        %v5605 = vunpack.c.l.b16 %v5445
        %v5606 = vunpack.c.h.b16 %v5445
        %v5607 = vunpack.c.l.b16 %v5446
        %v5608 = vunpack.c.h.b16 %v5446
        %v5609 = vunpack.c.l.b16 %v5447
        %v5610 = vunpack.c.h.b16 %v5447
        %v5611 = vunpack.c.l.b16 %v5448
        %v5612 = vunpack.c.h.b16 %v5448
        %v5613 = vunpack.c.l.b16 %v5449
        %v5614 = vunpack.c.h.b16 %v5449
        %v5615 = vunpack.c.l.b16 %v5450
        %v5616 = vunpack.c.h.b16 %v5450
        %v5617 = vunpack.c.l.b16 %v5451
        %v5618 = vunpack.c.h.b16 %v5451
        %v5619 = vunpack.c.l.b16 %v5452
        %v5620 = vunpack.c.h.b16 %v5452
        %v5621 = vunpack.c.l.b16 %v5453
        %v5622 = vunpack.c.h.b16 %v5453
        %v5623 = vpack.c.b16 %v5581, %v5575
        %v5624 = vpack.c.b16 %v5582, %v5576
        %v5625 = vpack.c.b16 %v5583, %v5577
        %v5626 = vpack.c.b16 %v5584, %v5578
        %v5627 = vpack.c.b16 %v5585, %v5579
        %v5628 = vpack.c.b16 %v5586, %v5580
        %v5629 = vpack.c.b16 %v5593, %v5587
        %v5630 = vpack.c.b16 %v5594, %v5588
        %v5631 = vpack.c.b16 %v5595, %v5589
        %v5632 = vpack.c.b16 %v5596, %v5590
        %v5633 = vpack.c.b16 %v5597, %v5591
        %v5634 = vpack.c.b16 %v5598, %v5592
        %v5635 = vpack.c.b16 %v5605, %v5599
        %v5636 = vpack.c.b16 %v5606, %v5600
        %v5637 = vpack.c.b16 %v5607, %v5601
        %v5638 = vpack.c.b16 %v5608, %v5602
        %v5639 = vpack.c.b16 %v5609, %v5603
        %v5640 = vpack.c.b16 %v5610, %v5604
        %v5641 = vpack.c.b16 %v5617, %v5611
        %v5642 = vpack.c.b16 %v5618, %v5612
        %v5643 = vpack.c.b16 %v5619, %v5613
        %v5644 = vpack.c.b16 %v5620, %v5614
        %v5645 = vpack.c.b16 %v5621, %v5615
        %v5646 = vpack.c.b16 %v5622, %v5616
        %v5767 = vunpack.c.l.b16 %v5455
        %v5768 = vunpack.c.h.b16 %v5455
        %v5769 = vunpack.c.l.b16 %v5456
        %v5770 = vunpack.c.h.b16 %v5456
        %v5771 = vunpack.c.l.b16 %v5457
        %v5772 = vunpack.c.h.b16 %v5457
        %v5773 = vunpack.c.l.b16 %v5458
        %v5774 = vunpack.c.h.b16 %v5458
        %v5775 = vunpack.c.l.b16 %v5459
        %v5776 = vunpack.c.h.b16 %v5459
        %v5777 = vunpack.c.l.b16 %v5460
        %v5778 = vunpack.c.h.b16 %v5460
        %v5779 = vunpack.c.l.b16 %v5461
        %v5780 = vunpack.c.h.b16 %v5461
        %v5781 = vunpack.c.l.b16 %v5462
        %v5782 = vunpack.c.h.b16 %v5462
        %v5783 = vunpack.c.l.b16 %v5463
        %v5784 = vunpack.c.h.b16 %v5463
        %v5785 = vunpack.c.l.b16 %v5464
        %v5786 = vunpack.c.h.b16 %v5464
        %v5787 = vunpack.c.l.b16 %v5465
        %v5788 = vunpack.c.h.b16 %v5465
        %v5789 = vunpack.c.l.b16 %v5466
        %v5790 = vunpack.c.h.b16 %v5466
        %v5791 = vunpack.c.l.b16 %v5467
        %v5792 = vunpack.c.h.b16 %v5467
        %v5793 = vunpack.c.l.b16 %v5468
        %v5794 = vunpack.c.h.b16 %v5468
        %v5795 = vunpack.c.l.b16 %v5469
        %v5796 = vunpack.c.h.b16 %v5469
        %v5797 = vunpack.c.l.b16 %v5470
        %v5798 = vunpack.c.h.b16 %v5470
        %v5799 = vunpack.c.l.b16 %v5471
        %v5800 = vunpack.c.h.b16 %v5471
        %v5801 = vunpack.c.l.b16 %v5472
        %v5802 = vunpack.c.h.b16 %v5472
        %v5803 = vunpack.c.l.b16 %v5473
        %v5804 = vunpack.c.h.b16 %v5473
        %v5805 = vunpack.c.l.b16 %v5474
        %v5806 = vunpack.c.h.b16 %v5474
        %v5807 = vunpack.c.l.b16 %v5475
        %v5808 = vunpack.c.h.b16 %v5475
        %v5809 = vunpack.c.l.b16 %v5476
        %v5810 = vunpack.c.h.b16 %v5476
        %v5811 = vunpack.c.l.b16 %v5477
        %v5812 = vunpack.c.h.b16 %v5477
        %v5813 = vunpack.c.l.b16 %v5478
        %v5814 = vunpack.c.h.b16 %v5478
        %v5815 = vunpack.c.l.b16 %v5479
        %v5816 = vunpack.c.h.b16 %v5479
        %v5817 = vunpack.c.l.b16 %v5480
        %v5818 = vunpack.c.h.b16 %v5480
        %v5819 = vunpack.c.l.b16 %v5481
        %v5820 = vunpack.c.h.b16 %v5481
        %v5821 = vunpack.c.l.b16 %v5482
        %v5822 = vunpack.c.h.b16 %v5482
        %v5823 = vunpack.c.l.b16 %v5483
        %v5824 = vunpack.c.h.b16 %v5483
        %v5825 = vunpack.c.l.b16 %v5484
        %v5826 = vunpack.c.h.b16 %v5484
        %v5827 = vunpack.c.l.b16 %v5485
        %v5828 = vunpack.c.h.b16 %v5485
        %v5829 = vunpack.c.l.b16 %v5486
        %v5830 = vunpack.c.h.b16 %v5486
        %v5831 = vunpack.c.l.b16 %v5487
        %v5832 = vunpack.c.h.b16 %v5487
        %v5833 = vunpack.c.l.b16 %v5488
        %v5834 = vunpack.c.h.b16 %v5488
        %v5835 = vunpack.c.l.b16 %v5489
        %v5836 = vunpack.c.h.b16 %v5489
        %v5837 = vunpack.c.l.b16 %v5490
        %v5838 = vunpack.c.h.b16 %v5490
        %v5839 = vunpack.c.l.b16 %v5491
        %v5840 = vunpack.c.h.b16 %v5491
        %v5841 = vunpack.c.l.b16 %v5492
        %v5842 = vunpack.c.h.b16 %v5492
        %v5843 = vunpack.c.l.b16 %v5493
        %v5844 = vunpack.c.h.b16 %v5493
        %v5845 = vunpack.c.l.b16 %v5494
        %v5846 = vunpack.c.h.b16 %v5494
        %v5847 = vunpack.c.l.b16 %v5495
        %v5848 = vunpack.c.h.b16 %v5495
        %v5849 = vunpack.c.l.b16 %v5496
        %v5850 = vunpack.c.h.b16 %v5496
        %v5851 = vunpack.c.l.b16 %v5497
        %v5852 = vunpack.c.h.b16 %v5497
        %v5853 = vunpack.c.l.b16 %v5498
        %v5854 = vunpack.c.h.b16 %v5498
        %v5855 = vunpack.c.l.b16 %v5499
        %v5856 = vunpack.c.h.b16 %v5499
        %v5857 = vunpack.c.l.b16 %v5500
        %v5858 = vunpack.c.h.b16 %v5500
        %v5859 = vunpack.c.l.b16 %v5501
        %v5860 = vunpack.c.h.b16 %v5501
        %v5861 = vunpack.c.l.b16 %v5502
        %v5862 = vunpack.c.h.b16 %v5502
        %v5863 = vunpack.c.l.b16 %v5503
        %v5864 = vunpack.c.h.b16 %v5503
        %v5865 = vunpack.c.l.b16 %v5504
        %v5866 = vunpack.c.h.b16 %v5504
        %v5867 = vunpack.c.l.b16 %v5505
        %v5868 = vunpack.c.h.b16 %v5505
        %v5869 = vunpack.c.l.b16 %v5506
        %v5870 = vunpack.c.h.b16 %v5506
        %v5871 = vunpack.c.l.b16 %v5507
        %v5872 = vunpack.c.h.b16 %v5507
        %v5873 = vunpack.c.l.b16 %v5508
        %v5874 = vunpack.c.h.b16 %v5508
        %v5875 = vunpack.c.l.b16 %v5509
        %v5876 = vunpack.c.h.b16 %v5509
        %v5877 = vunpack.c.l.b16 %v5510
        %v5878 = vunpack.c.h.b16 %v5510
        %v5879 = vunpack.c.l.b16 %v5511
        %v5880 = vunpack.c.h.b16 %v5511
        %v5881 = vunpack.c.l.b16 %v5512
        %v5882 = vunpack.c.h.b16 %v5512
        %v5883 = vunpack.c.l.b16 %v5513
        %v5884 = vunpack.c.h.b16 %v5513
        %v5885 = vunpack.c.l.b16 %v5514
        %v5886 = vunpack.c.h.b16 %v5514
        %v5887 = vunpack.c.l.b16 %v5515
        %v5888 = vunpack.c.h.b16 %v5515
        %v5889 = vunpack.c.l.b16 %v5516
        %v5890 = vunpack.c.h.b16 %v5516
        %v5891 = vunpack.c.l.b16 %v5517
        %v5892 = vunpack.c.h.b16 %v5517
        %v5893 = vunpack.c.l.b16 %v5518
        %v5894 = vunpack.c.h.b16 %v5518
        %v5895 = vunpack.c.l.b16 %v5519
        %v5896 = vunpack.c.h.b16 %v5519
        %v5897 = vunpack.c.l.b16 %v5520
        %v5898 = vunpack.c.h.b16 %v5520
        %v5899 = vunpack.c.l.b16 %v5521
        %v5900 = vunpack.c.h.b16 %v5521
        %v5901 = vunpack.c.l.b16 %v5522
        %v5902 = vunpack.c.h.b16 %v5522
        %v5903 = vunpack.c.l.b16 %v5523
        %v5904 = vunpack.c.h.b16 %v5523
        %v5905 = vunpack.c.l.b16 %v5524
        %v5906 = vunpack.c.h.b16 %v5524
        %v5907 = vunpack.c.l.b16 %v5525
        %v5908 = vunpack.c.h.b16 %v5525
        %v5909 = vunpack.c.l.b16 %v5526
        %v5910 = vunpack.c.h.b16 %v5526
        %v5911 = vunpack.c.l.b16 %v5527
        %v5912 = vunpack.c.h.b16 %v5527
        %v5913 = vunpack.c.l.b16 %v5528
        %v5914 = vunpack.c.h.b16 %v5528
        %v5915 = vunpack.c.l.b16 %v5529
        %v5916 = vunpack.c.h.b16 %v5529
        %v5917 = vunpack.c.l.b16 %v5530
        %v5918 = vunpack.c.h.b16 %v5530
        %v5919 = vunpack.c.l.b16 %v5531
        %v5920 = vunpack.c.h.b16 %v5531
        %v5921 = vunpack.c.l.b16 %v5532
        %v5922 = vunpack.c.h.b16 %v5532
        %v5923 = vunpack.c.l.b16 %v5533
        %v5924 = vunpack.c.h.b16 %v5533
        %v5925 = vunpack.c.l.b16 %v5534
        %v5926 = vunpack.c.h.b16 %v5534
        %v5927 = vunpack.c.l.b16 %v5535
        %v5928 = vunpack.c.h.b16 %v5535
        %v5929 = vunpack.c.l.b16 %v5536
        %v5930 = vunpack.c.h.b16 %v5536
        %v5931 = vunpack.c.l.b16 %v5537
        %v5932 = vunpack.c.h.b16 %v5537
        %v5933 = vunpack.c.l.b16 %v5538
        %v5934 = vunpack.c.h.b16 %v5538
        %v5935 = vunpack.c.l.b16 %v5539
        %v5936 = vunpack.c.h.b16 %v5539
        %v5937 = vunpack.c.l.b16 %v5540
        %v5938 = vunpack.c.h.b16 %v5540
        %v5939 = vunpack.c.l.b16 %v5541
        %v5940 = vunpack.c.h.b16 %v5541
        %v5941 = vunpack.c.l.b16 %v5542
        %v5942 = vunpack.c.h.b16 %v5542
        %v5943 = vunpack.c.l.b16 %v5543
        %v5944 = vunpack.c.h.b16 %v5543
        %v5945 = vunpack.c.l.b16 %v5544
        %v5946 = vunpack.c.h.b16 %v5544
        %v5947 = vunpack.c.l.b16 %v5545
        %v5948 = vunpack.c.h.b16 %v5545
        %v5949 = vunpack.c.l.b16 %v5546
        %v5950 = vunpack.c.h.b16 %v5546
        %v5951 = vunpack.c.l.b16 %v5547
        %v5952 = vunpack.c.h.b16 %v5547
        %v5953 = vunpack.c.l.b16 %v5548
        %v5954 = vunpack.c.h.b16 %v5548
        %v5955 = vunpack.c.l.b16 %v5549
        %v5956 = vunpack.c.h.b16 %v5549
        %v5957 = vunpack.c.l.b16 %v5550
        %v5958 = vunpack.c.h.b16 %v5550
        %v5959 = vpack.c.b16 %v5769, %v5767
        %v5960 = vpack.c.b16 %v5770, %v5768
        %v5961 = vpack.c.b16 %v5773, %v5771
        %v5962 = vpack.c.b16 %v5774, %v5772
        %v5963 = vpack.c.b16 %v5777, %v5775
        %v5964 = vpack.c.b16 %v5778, %v5776
        %v5965 = vpack.c.b16 %v5781, %v5779
        %v5966 = vpack.c.b16 %v5782, %v5780
        %v5967 = vpack.c.b16 %v5785, %v5783
        %v5968 = vpack.c.b16 %v5786, %v5784
        %v5969 = vpack.c.b16 %v5789, %v5787
        %v5970 = vpack.c.b16 %v5790, %v5788
        %v5971 = vpack.c.b16 %v5793, %v5791
        %v5972 = vpack.c.b16 %v5794, %v5792
        %v5973 = vpack.c.b16 %v5797, %v5795
        %v5974 = vpack.c.b16 %v5798, %v5796
        %v5975 = vpack.c.b16 %v5801, %v5799
        %v5976 = vpack.c.b16 %v5802, %v5800
        %v5977 = vpack.c.b16 %v5805, %v5803
        %v5978 = vpack.c.b16 %v5806, %v5804
        %v5979 = vpack.c.b16 %v5809, %v5807
        %v5980 = vpack.c.b16 %v5810, %v5808
        %v5981 = vpack.c.b16 %v5813, %v5811
        %v5982 = vpack.c.b16 %v5814, %v5812
        %v5983 = vpack.c.b16 %v5817, %v5815
        %v5984 = vpack.c.b16 %v5818, %v5816
        %v5985 = vpack.c.b16 %v5821, %v5819
        %v5986 = vpack.c.b16 %v5822, %v5820
        %v5987 = vpack.c.b16 %v5825, %v5823
        %v5988 = vpack.c.b16 %v5826, %v5824
        %v5989 = vpack.c.b16 %v5829, %v5827
        %v5990 = vpack.c.b16 %v5830, %v5828
        %v5991 = vpack.c.b16 %v5833, %v5831
        %v5992 = vpack.c.b16 %v5834, %v5832
        %v5993 = vpack.c.b16 %v5837, %v5835
        %v5994 = vpack.c.b16 %v5838, %v5836
        %v5995 = vpack.c.b16 %v5841, %v5839
        %v5996 = vpack.c.b16 %v5842, %v5840
        %v5997 = vpack.c.b16 %v5845, %v5843
        %v5998 = vpack.c.b16 %v5846, %v5844
        %v5999 = vpack.c.b16 %v5849, %v5847
        %v6000 = vpack.c.b16 %v5850, %v5848
        %v6001 = vpack.c.b16 %v5853, %v5851
        %v6002 = vpack.c.b16 %v5854, %v5852
        %v6003 = vpack.c.b16 %v5857, %v5855
        %v6004 = vpack.c.b16 %v5858, %v5856
        %v6005 = vpack.c.b16 %v5861, %v5859
        %v6006 = vpack.c.b16 %v5862, %v5860
        %v6007 = vpack.c.b16 %v5865, %v5863
        %v6008 = vpack.c.b16 %v5866, %v5864
        %v6009 = vpack.c.b16 %v5869, %v5867
        %v6010 = vpack.c.b16 %v5870, %v5868
        %v6011 = vpack.c.b16 %v5873, %v5871
        %v6012 = vpack.c.b16 %v5874, %v5872
        %v6013 = vpack.c.b16 %v5877, %v5875
        %v6014 = vpack.c.b16 %v5878, %v5876
        %v6015 = vpack.c.b16 %v5881, %v5879
        %v6016 = vpack.c.b16 %v5882, %v5880
        %v6017 = vpack.c.b16 %v5885, %v5883
        %v6018 = vpack.c.b16 %v5886, %v5884
        %v6019 = vpack.c.b16 %v5889, %v5887
        %v6020 = vpack.c.b16 %v5890, %v5888
        %v6021 = vpack.c.b16 %v5893, %v5891
        %v6022 = vpack.c.b16 %v5894, %v5892
        %v6023 = vpack.c.b16 %v5897, %v5895
        %v6024 = vpack.c.b16 %v5898, %v5896
        %v6025 = vpack.c.b16 %v5901, %v5899
        %v6026 = vpack.c.b16 %v5902, %v5900
        %v6027 = vpack.c.b16 %v5905, %v5903
        %v6028 = vpack.c.b16 %v5906, %v5904
        %v6029 = vpack.c.b16 %v5909, %v5907
        %v6030 = vpack.c.b16 %v5910, %v5908
        %v6031 = vpack.c.b16 %v5913, %v5911
        %v6032 = vpack.c.b16 %v5914, %v5912
        %v6033 = vpack.c.b16 %v5917, %v5915
        %v6034 = vpack.c.b16 %v5918, %v5916
        %v6035 = vpack.c.b16 %v5921, %v5919
        %v6036 = vpack.c.b16 %v5922, %v5920
        %v6037 = vpack.c.b16 %v5925, %v5923
        %v6038 = vpack.c.b16 %v5926, %v5924
        %v6039 = vpack.c.b16 %v5929, %v5927
        %v6040 = vpack.c.b16 %v5930, %v5928
        %v6041 = vpack.c.b16 %v5933, %v5931
        %v6042 = vpack.c.b16 %v5934, %v5932
        %v6043 = vpack.c.b16 %v5937, %v5935
        %v6044 = vpack.c.b16 %v5938, %v5936
        %v6045 = vpack.c.b16 %v5941, %v5939
        %v6046 = vpack.c.b16 %v5942, %v5940
        %v6047 = vpack.c.b16 %v5945, %v5943
        %v6048 = vpack.c.b16 %v5946, %v5944
        %v6049 = vpack.c.b16 %v5949, %v5947
        %v6050 = vpack.c.b16 %v5950, %v5948
        %v6051 = vpack.c.b16 %v5953, %v5951
        %v6052 = vpack.c.b16 %v5954, %v5952
        %v6053 = vpack.c.b16 %v5957, %v5955
        %v6054 = vpack.c.b16 %v5958, %v5956
        %6151 = vmatprep.subr.bf16.mxu0 %v5960
        %6152 = vmatpush1.bf16.msra.mxu0 %v5959
        %6153 = vmatprep.subr.bf16.mxu0 %v5962
        %6154 = vmatpush1.bf16.msra.mxu0 %v5961
        %6155 = vmatprep.subr.bf16.mxu0 %v5964
        %6156 = vmatpush1.bf16.msra.mxu0 %v5963
        %6157 = vmatprep.subr.bf16.mxu0 %v5966
        %6158 = vmatpush1.bf16.msra.mxu0 %v5965
        %6159 = vmatprep.subr.bf16.mxu0 %v5968
        %6160 = vmatpush1.bf16.msra.mxu0 %v5967
        %6161 = vmatprep.subr.bf16.mxu0 %v5970
        %6162 = vmatpush1.bf16.msra.mxu0 %v5969
        %6163 = vmatprep.subr.bf16.mxu0 %v5972
        %6164 = vmatpush1.bf16.msra.mxu0 %v5971
        %6165 = vmatprep.subr.bf16.mxu0 %v5974
        %6166 = vmatpush1.bf16.msra.mxu0 %v5973
        %6167 = vmatprep.subr.bf16.mxu0 %v5976
        %6168 = vmatpush1.bf16.msra.mxu0 %v5975
        %6169 = vmatprep.subr.bf16.mxu0 %v5978
        %6170 = vmatpush1.bf16.msra.mxu0 %v5977
        %6171 = vmatprep.subr.bf16.mxu0 %v5980
        %6172 = vmatpush1.bf16.msra.mxu0 %v5979
        %6173 = vmatprep.subr.bf16.mxu0 %v5982
        %6174 = vmatpush1.bf16.msra.mxu0 %v5981
        %6175 = vmatprep.subr.bf16.mxu0 %v5984
        %6176 = vmatpush1.bf16.msra.mxu0 %v5983
        %6177 = vmatprep.subr.bf16.mxu0 %v5986
        %6178 = vmatpush1.bf16.msra.mxu0 %v5985
        %6179 = vmatprep.subr.bf16.mxu0 %v5988
        %6180 = vmatpush1.bf16.msra.mxu0 %v5987
        %6181 = vmatprep.subr.bf16.mxu0 %v5990
        %6182 = vmatpush1.bf16.msra.mxu0 %v5989
        %6183 = vmatprep.mubr.bf16.mxu0 %v5624
        %6184 = vmatmul.mubr.bf16.gmra.mrb[0].mxu0 %v5623
        %v6185 = vpop.f32.mrb[0].mxu0
        %v6186 = vadd.f32 0.0, %v6185
        %v6187 = vpop.f32.mrb[0].mxu0
        %v6188 = vadd.f32 0.0, %v6187
        %v6189 = vpop.f32.mrb[0].mxu0
        %v6190 = vadd.f32 0.0, %v6189
        %v6191 = vpop.f32.mrb[0].mxu0
        %v6192 = vadd.f32 0.0, %v6191
        %6193 = vmatprep.mubr.bf16.mxu0 %v5630
        %6194 = vmatmul.mubr.bf16.gmra.mrb[0].mxu0 %v5629
        %v6195 = vpop.f32.mrb[0].mxu0
        %v6196 = vadd.f32 0.0, %v6195
        %v6197 = vpop.f32.mrb[0].mxu0
        %v6198 = vadd.f32 0.0, %v6197
        %v6199 = vpop.f32.mrb[0].mxu0
        %v6200 = vadd.f32 0.0, %v6199
        %v6201 = vpop.f32.mrb[0].mxu0
        %v6202 = vadd.f32 0.0, %v6201
        %6203 = vmatprep.mubr.bf16.mxu0 %v5636
        %6204 = vmatmul.mubr.bf16.gmra.mrb[0].mxu0 %v5635
        %v6205 = vpop.f32.mrb[0].mxu0
        %v6206 = vadd.f32 0.0, %v6205
        %v6207 = vpop.f32.mrb[0].mxu0
        %v6208 = vadd.f32 0.0, %v6207
        %v6209 = vpop.f32.mrb[0].mxu0
        %v6210 = vadd.f32 0.0, %v6209
        %v6211 = vpop.f32.mrb[0].mxu0
        %v6212 = vadd.f32 0.0, %v6211
        %6213 = vmatprep.mubr.bf16.mxu0 %v5642
        %6214 = vmatmul.mubr.bf16.gmra.mrb[0].mxu0 %v5641
        %v6215 = vpop.f32.mrb[0].mxu0
        %v6216 = vadd.f32 0.0, %v6215
        %v6217 = vpop.f32.mrb[0].mxu0
        %v6218 = vadd.f32 0.0, %v6217
        %v6219 = vpop.f32.mrb[0].mxu0
        %v6220 = vadd.f32 0.0, %v6219
        %v6221 = vpop.f32.mrb[0].mxu0
        %v6222 = vadd.f32 0.0, %v6221
        %6223 = vdwg.mxu0
        %6224 = vmatprep.subr.bf16.mxu0 %v5992
        %6225 = vmatpush1.bf16.msra.mxu0 %v5991
        %6226 = vmatprep.subr.bf16.mxu0 %v5994
        %6227 = vmatpush1.bf16.msra.mxu0 %v5993
        %6228 = vmatprep.subr.bf16.mxu0 %v5996
        %6229 = vmatpush1.bf16.msra.mxu0 %v5995
        %6230 = vmatprep.subr.bf16.mxu0 %v5998
        %6231 = vmatpush1.bf16.msra.mxu0 %v5997
        %6232 = vmatprep.subr.bf16.mxu0 %v6000
        %6233 = vmatpush1.bf16.msra.mxu0 %v5999
        %6234 = vmatprep.subr.bf16.mxu0 %v6002
        %6235 = vmatpush1.bf16.msra.mxu0 %v6001
        %6236 = vmatprep.subr.bf16.mxu0 %v6004
        %6237 = vmatpush1.bf16.msra.mxu0 %v6003
        %6238 = vmatprep.subr.bf16.mxu0 %v6006
        %6239 = vmatpush1.bf16.msra.mxu0 %v6005
        %6240 = vmatprep.subr.bf16.mxu0 %v6008
        %6241 = vmatpush1.bf16.msra.mxu0 %v6007
        %6242 = vmatprep.subr.bf16.mxu0 %v6010
        %6243 = vmatpush1.bf16.msra.mxu0 %v6009
        %6244 = vmatprep.subr.bf16.mxu0 %v6012
        %6245 = vmatpush1.bf16.msra.mxu0 %v6011
        %6246 = vmatprep.subr.bf16.mxu0 %v6014
        %6247 = vmatpush1.bf16.msra.mxu0 %v6013
        %6248 = vmatprep.subr.bf16.mxu0 %v6016
        %6249 = vmatpush1.bf16.msra.mxu0 %v6015
        %6250 = vmatprep.subr.bf16.mxu0 %v6018
        %6251 = vmatpush1.bf16.msra.mxu0 %v6017
        %6252 = vmatprep.subr.bf16.mxu0 %v6020
        %6253 = vmatpush1.bf16.msra.mxu0 %v6019
        %6254 = vmatprep.subr.bf16.mxu0 %v6022
        %6255 = vmatpush1.bf16.msra.mxu0 %v6021
        %6256 = vmatprep.mubr.bf16.mxu0 %v5626
        %6257 = vmatmul.mubr.bf16.gmra.mrb[0].mxu0 %v5625
        %v6258 = vpop.f32.mrb[0].mxu0
        %v6259 = vadd.f32 %v6186, %v6258
        %v6260 = vpop.f32.mrb[0].mxu0
        %v6261 = vadd.f32 %v6188, %v6260
        %v6262 = vpop.f32.mrb[0].mxu0
        %v6263 = vadd.f32 %v6190, %v6262
        %v6264 = vpop.f32.mrb[0].mxu0
        %v6265 = vadd.f32 %v6192, %v6264
        %6266 = vmatprep.mubr.bf16.mxu0 %v5632
        %6267 = vmatmul.mubr.bf16.gmra.mrb[0].mxu0 %v5631
        %v6268 = vpop.f32.mrb[0].mxu0
        %v6269 = vadd.f32 %v6196, %v6268
        %v6270 = vpop.f32.mrb[0].mxu0
        %v6271 = vadd.f32 %v6198, %v6270
        %v6272 = vpop.f32.mrb[0].mxu0
        %v6273 = vadd.f32 %v6200, %v6272
        %v6274 = vpop.f32.mrb[0].mxu0
        %v6275 = vadd.f32 %v6202, %v6274
        %6276 = vmatprep.mubr.bf16.mxu0 %v5638
        %6277 = vmatmul.mubr.bf16.gmra.mrb[0].mxu0 %v5637
        %v6278 = vpop.f32.mrb[0].mxu0
        %v6279 = vadd.f32 %v6206, %v6278
        %v6280 = vpop.f32.mrb[0].mxu0
        %v6281 = vadd.f32 %v6208, %v6280
        %v6282 = vpop.f32.mrb[0].mxu0
        %v6283 = vadd.f32 %v6210, %v6282
        %v6284 = vpop.f32.mrb[0].mxu0
        %v6285 = vadd.f32 %v6212, %v6284
        %6286 = vmatprep.mubr.bf16.mxu0 %v5644
        %6287 = vmatmul.mubr.bf16.gmra.mrb[0].mxu0 %v5643
        %v6288 = vpop.f32.mrb[0].mxu0
        %v6289 = vadd.f32 %v6216, %v6288
        %v6290 = vpop.f32.mrb[0].mxu0
        %v6291 = vadd.f32 %v6218, %v6290
        %v6292 = vpop.f32.mrb[0].mxu0
        %v6293 = vadd.f32 %v6220, %v6292
        %v6294 = vpop.f32.mrb[0].mxu0
        %v6295 = vadd.f32 %v6222, %v6294
        %6296 = vdwg.mxu0
        %6297 = vmatprep.subr.bf16.mxu0 %v6024
        %6298 = vmatpush1.bf16.msra.mxu0 %v6023
        %6299 = vmatprep.subr.bf16.mxu0 %v6026
        %6300 = vmatpush1.bf16.msra.mxu0 %v6025
        %6301 = vmatprep.subr.bf16.mxu0 %v6028
        %6302 = vmatpush1.bf16.msra.mxu0 %v6027
        %6303 = vmatprep.subr.bf16.mxu0 %v6030
        %6304 = vmatpush1.bf16.msra.mxu0 %v6029
        %6305 = vmatprep.subr.bf16.mxu0 %v6032
        %6306 = vmatpush1.bf16.msra.mxu0 %v6031
        %6307 = vmatprep.subr.bf16.mxu0 %v6034
        %6308 = vmatpush1.bf16.msra.mxu0 %v6033
        %6309 = vmatprep.subr.bf16.mxu0 %v6036
        %6310 = vmatpush1.bf16.msra.mxu0 %v6035
        %6311 = vmatprep.subr.bf16.mxu0 %v6038
        %6312 = vmatpush1.bf16.msra.mxu0 %v6037
        %6313 = vmatprep.subr.bf16.mxu0 %v6040
        %6314 = vmatpush1.bf16.msra.mxu0 %v6039
        %6315 = vmatprep.subr.bf16.mxu0 %v6042
        %6316 = vmatpush1.bf16.msra.mxu0 %v6041
        %6317 = vmatprep.subr.bf16.mxu0 %v6044
        %6318 = vmatpush1.bf16.msra.mxu0 %v6043
        %6319 = vmatprep.subr.bf16.mxu0 %v6046
        %6320 = vmatpush1.bf16.msra.mxu0 %v6045
        %6321 = vmatprep.subr.bf16.mxu0 %v6048
        %6322 = vmatpush1.bf16.msra.mxu0 %v6047
        %6323 = vmatprep.subr.bf16.mxu0 %v6050
        %6324 = vmatpush1.bf16.msra.mxu0 %v6049
        %6325 = vmatprep.subr.bf16.mxu0 %v6052
        %6326 = vmatpush1.bf16.msra.mxu0 %v6051
        %6327 = vmatprep.subr.bf16.mxu0 %v6054
        %6328 = vmatpush1.bf16.msra.mxu0 %v6053
        %6329 = vmatprep.mubr.bf16.mxu0 %v5628
        %6330 = vmatmul.mubr.bf16.gmra.mrb[0].mxu0 %v5627
        %v6331 = vpop.f32.mrb[0].mxu0
        %v6332 = vadd.f32 %v6259, %v6331
        %v6333 = vpop.f32.mrb[0].mxu0
        %v6334 = vadd.f32 %v6261, %v6333
        %v6335 = vpop.f32.mrb[0].mxu0
        %v6336 = vadd.f32 %v6263, %v6335
        %v6337 = vpop.f32.mrb[0].mxu0
        %v6338 = vadd.f32 %v6265, %v6337
        %6339 = vmatprep.mubr.bf16.mxu0 %v5634
        %6340 = vmatmul.mubr.bf16.gmra.mrb[0].mxu0 %v5633
        %v6341 = vpop.f32.mrb[0].mxu0
        %v6342 = vadd.f32 %v6269, %v6341
        %v6343 = vpop.f32.mrb[0].mxu0
        %v6344 = vadd.f32 %v6271, %v6343
        %v6345 = vpop.f32.mrb[0].mxu0
        %v6346 = vadd.f32 %v6273, %v6345
        %v6347 = vpop.f32.mrb[0].mxu0
        %v6348 = vadd.f32 %v6275, %v6347
        %6349 = vmatprep.mubr.bf16.mxu0 %v5640
        %6350 = vmatmul.mubr.bf16.gmra.mrb[0].mxu0 %v5639
        %v6351 = vpop.f32.mrb[0].mxu0
        %v6352 = vadd.f32 %v6279, %v6351
        %v6353 = vpop.f32.mrb[0].mxu0
        %v6354 = vadd.f32 %v6281, %v6353
        %v6355 = vpop.f32.mrb[0].mxu0
        %v6356 = vadd.f32 %v6283, %v6355
        %v6357 = vpop.f32.mrb[0].mxu0
        %v6358 = vadd.f32 %v6285, %v6357
        %6359 = vmatprep.mubr.bf16.mxu0 %v5646
        %6360 = vmatmul.mubr.bf16.gmra.mrb[0].mxu0 %v5645
        %v6361 = vpop.f32.mrb[0].mxu0
        %v6362 = vadd.f32 %v6289, %v6361
        %v6363 = vpop.f32.mrb[0].mxu0
        %v6364 = vadd.f32 %v6291, %v6363
        %v6365 = vpop.f32.mrb[0].mxu0
        %v6366 = vadd.f32 %v6293, %v6365
        %v6367 = vpop.f32.mrb[0].mxu0
        %v6368 = vadd.f32 %v6295, %v6367
        %6369 = vdwg.mxu0
        %v6370 = vadd.f32 %v5414, %v6332
        %v6371 = vadd.f32 %v5415, %v6334
        %v6372 = vadd.f32 %v5416, %v6336
        %v6373 = vadd.f32 %v5417, %v6338
        %v6374 = vadd.f32 %v5418, %v6342
        %v6375 = vadd.f32 %v5419, %v6344
        %v6376 = vadd.f32 %v5420, %v6346
        %v6377 = vadd.f32 %v5421, %v6348
        %v6378 = vadd.f32 %v5422, %v6352
        %v6379 = vadd.f32 %v5423, %v6354
        %v6380 = vadd.f32 %v5424, %v6356
        %v6381 = vadd.f32 %v5425, %v6358
        %v6382 = vadd.f32 %v5426, %v6362
        %v6383 = vadd.f32 %v5427, %v6364
        %v6384 = vadd.f32 %v5428, %v6366
        %v6385 = vadd.f32 %v5429, %v6368
        %6386 = vst [vmem:[#allocation4] sm:$0xff] %v6370
        %6387 = vst [vmem:[#allocation4 + $0x8] sm:$0xff] %v6371
        %6388 = vst [vmem:[#allocation4 + $0x10] sm:$0xff] %v6372
        %6389 = vst [vmem:[#allocation4 + $0x18] sm:$0xff] %v6373
        %6390 = vst [vmem:[#allocation4 + $0x20] sm:$0xff] %v6374
        %6391 = vst [vmem:[#allocation4 + $0x28] sm:$0xff] %v6375
        %6392 = vst [vmem:[#allocation4 + $0x30] sm:$0xff] %v6376
        %6393 = vst [vmem:[#allocation4 + $0x38] sm:$0xff] %v6377
        %6394 = vst [vmem:[#allocation4 + $0x40] sm:$0xff] %v6378
        %6395 = vst [vmem:[#allocation4 + $0x48] sm:$0xff] %v6379
        %6396 = vst [vmem:[#allocation4 + $0x50] sm:$0xff] %v6380
        %6397 = vst [vmem:[#allocation4 + $0x58] sm:$0xff] %v6381
        %6398 = vst [vmem:[#allocation4 + $0x60] sm:$0xff] %v6382
        %6399 = vst [vmem:[#allocation4 + $0x68] sm:$0xff] %v6383
        %6400 = vst [vmem:[#allocation4 + $0x70] sm:$0xff] %v6384
        %6401 = vst [vmem:[#allocation4 + $0x78] sm:$0xff] %v6385
        %v6402 = vld [vmem:[#allocation4] sm:$0xff]
        %v6403 = vld [vmem:[#allocation4 + $0x8] sm:$0xff]
        %v6404 = vld [vmem:[#allocation4 + $0x10] sm:$0xff]
        %v6405 = vld [vmem:[#allocation4 + $0x18] sm:$0xff]
        %v6406 = vld [vmem:[#allocation4 + $0x20] sm:$0xff]
        %v6407 = vld [vmem:[#allocation4 + $0x28] sm:$0xff]
        %v6408 = vld [vmem:[#allocation4 + $0x30] sm:$0xff]
        %v6409 = vld [vmem:[#allocation4 + $0x38] sm:$0xff]
        %v6410 = vld [vmem:[#allocation4 + $0x40] sm:$0xff]
        %v6411 = vld [vmem:[#allocation4 + $0x48] sm:$0xff]
        %v6412 = vld [vmem:[#allocation4 + $0x50] sm:$0xff]
        %v6413 = vld [vmem:[#allocation4 + $0x58] sm:$0xff]
        %v6414 = vld [vmem:[#allocation4 + $0x60] sm:$0xff]
        %v6415 = vld [vmem:[#allocation4 + $0x68] sm:$0xff]
        %v6416 = vld [vmem:[#allocation4 + $0x70] sm:$0xff]
        %v6417 = vld [vmem:[#allocation4 + $0x78] sm:$0xff]
        %v6418 = vld [vmem:[%s2958] sm:$0xff]
        %v6419 = vld [vmem:[%s2958 + $0x8] sm:$0xff]
        %v6420 = vld [vmem:[%s2958 + $0x10] sm:$0xff]
        %v6421 = vld [vmem:[%s2958 + $0x18] sm:$0xff]
        %v6422 = vld [vmem:[%s2958 + $0x20] sm:$0xff]
        %v6423 = vld [vmem:[%s2958 + $0x28] sm:$0xff]
        %v6424 = vld [vmem:[%s2958 + $0x30] sm:$0xff]
        %v6425 = vld [vmem:[%s2958 + $0x38] sm:$0xff]
        %v6426 = vld [vmem:[%s2958 + $0x40] sm:$0xff]
        %v6427 = vld [vmem:[%s2958 + $0x48] sm:$0xff]
        %v6428 = vld [vmem:[%s2958 + $0x50] sm:$0xff]
        %v6429 = vld [vmem:[%s2958 + $0x58] sm:$0xff]
        %v6430 = vld [vmem:[%s2958 + $0x60] sm:$0xff]
        %v6431 = vld [vmem:[%s2958 + $0x68] sm:$0xff]
        %v6432 = vld [vmem:[%s2958 + $0x70] sm:$0xff]
        %v6433 = vld [vmem:[%s2958 + $0x78] sm:$0xff]
        %v6434 = vld [vmem:[%s2958 + $0x80] sm:$0xff]
        %v6435 = vld [vmem:[%s2958 + $0x88] sm:$0xff]
        %v6436 = vld [vmem:[%s2958 + $0x90] sm:$0xff]
        %v6437 = vld [vmem:[%s2958 + $0x98] sm:$0xff]
        %v6438 = vld [vmem:[%s2958 + $0xa0] sm:$0xff]
        %v6439 = vld [vmem:[%s2958 + $0xa8] sm:$0xff]
        %v6440 = vld [vmem:[%s2958 + $0xb0] sm:$0xff]
        %v6441 = vld [vmem:[%s2958 + $0xb8] sm:$0xff]
        %s6442 = scalar_lea.vmem [#allocation11], 1536
        %v6443 = vld [vmem:[%s6442] sm:$0xff]
        %v6444 = vld [vmem:[%s6442 + $0x8] sm:$0xff]
        %v6445 = vld [vmem:[%s6442 + $0x10] sm:$0xff]
        %v6446 = vld [vmem:[%s6442 + $0x18] sm:$0xff]
        %v6447 = vld [vmem:[%s6442 + $0x20] sm:$0xff]
        %v6448 = vld [vmem:[%s6442 + $0x28] sm:$0xff]
        %v6449 = vld [vmem:[%s6442 + $0x30] sm:$0xff]
        %v6450 = vld [vmem:[%s6442 + $0x38] sm:$0xff]
        %v6451 = vld [vmem:[%s6442 + $0x40] sm:$0xff]
        %v6452 = vld [vmem:[%s6442 + $0x48] sm:$0xff]
        %v6453 = vld [vmem:[%s6442 + $0x50] sm:$0xff]
        %v6454 = vld [vmem:[%s6442 + $0x58] sm:$0xff]
        %v6455 = vld [vmem:[%s6442 + $0x60] sm:$0xff]
        %v6456 = vld [vmem:[%s6442 + $0x68] sm:$0xff]
        %v6457 = vld [vmem:[%s6442 + $0x70] sm:$0xff]
        %v6458 = vld [vmem:[%s6442 + $0x78] sm:$0xff]
        %v6459 = vld [vmem:[%s6442 + $0x80] sm:$0xff]
        %v6460 = vld [vmem:[%s6442 + $0x88] sm:$0xff]
        %v6461 = vld [vmem:[%s6442 + $0x90] sm:$0xff]
        %v6462 = vld [vmem:[%s6442 + $0x98] sm:$0xff]
        %v6463 = vld [vmem:[%s6442 + $0xa0] sm:$0xff]
        %v6464 = vld [vmem:[%s6442 + $0xa8] sm:$0xff]
        %v6465 = vld [vmem:[%s6442 + $0xb0] sm:$0xff]
        %v6466 = vld [vmem:[%s6442 + $0xb8] sm:$0xff]
        %v6467 = vld [vmem:[%s6442 + $0xc0] sm:$0xff]
        %v6468 = vld [vmem:[%s6442 + $0xc8] sm:$0xff]
        %v6469 = vld [vmem:[%s6442 + $0xd0] sm:$0xff]
        %v6470 = vld [vmem:[%s6442 + $0xd8] sm:$0xff]
        %v6471 = vld [vmem:[%s6442 + $0xe0] sm:$0xff]
        %v6472 = vld [vmem:[%s6442 + $0xe8] sm:$0xff]
        %v6473 = vld [vmem:[%s6442 + $0xf0] sm:$0xff]
        %v6474 = vld [vmem:[%s6442 + $0xf8] sm:$0xff]
        %v6475 = vld [vmem:[%s6442 + $0x100] sm:$0xff]
        %v6476 = vld [vmem:[%s6442 + $0x108] sm:$0xff]
        %v6477 = vld [vmem:[%s6442 + $0x110] sm:$0xff]
        %v6478 = vld [vmem:[%s6442 + $0x118] sm:$0xff]
        %v6479 = vld [vmem:[%s6442 + $0x120] sm:$0xff]
        %v6480 = vld [vmem:[%s6442 + $0x128] sm:$0xff]
        %v6481 = vld [vmem:[%s6442 + $0x130] sm:$0xff]
        %v6482 = vld [vmem:[%s6442 + $0x138] sm:$0xff]
        %v6483 = vld [vmem:[%s6442 + $0x140] sm:$0xff]
        %v6484 = vld [vmem:[%s6442 + $0x148] sm:$0xff]
        %v6485 = vld [vmem:[%s6442 + $0x150] sm:$0xff]
        %v6486 = vld [vmem:[%s6442 + $0x158] sm:$0xff]
        %v6487 = vld [vmem:[%s6442 + $0x160] sm:$0xff]
        %v6488 = vld [vmem:[%s6442 + $0x168] sm:$0xff]
        %v6489 = vld [vmem:[%s6442 + $0x170] sm:$0xff]
        %v6490 = vld [vmem:[%s6442 + $0x178] sm:$0xff]
        %v6491 = vld [vmem:[%s6442 + $0x180] sm:$0xff]
        %v6492 = vld [vmem:[%s6442 + $0x188] sm:$0xff]
        %v6493 = vld [vmem:[%s6442 + $0x190] sm:$0xff]
        %v6494 = vld [vmem:[%s6442 + $0x198] sm:$0xff]
        %v6495 = vld [vmem:[%s6442 + $0x1a0] sm:$0xff]
        %v6496 = vld [vmem:[%s6442 + $0x1a8] sm:$0xff]
        %v6497 = vld [vmem:[%s6442 + $0x1b0] sm:$0xff]
        %v6498 = vld [vmem:[%s6442 + $0x1b8] sm:$0xff]
        %v6499 = vld [vmem:[%s6442 + $0x1c0] sm:$0xff]
        %v6500 = vld [vmem:[%s6442 + $0x1c8] sm:$0xff]
        %v6501 = vld [vmem:[%s6442 + $0x1d0] sm:$0xff]
        %v6502 = vld [vmem:[%s6442 + $0x1d8] sm:$0xff]
        %v6503 = vld [vmem:[%s6442 + $0x1e0] sm:$0xff]
        %v6504 = vld [vmem:[%s6442 + $0x1e8] sm:$0xff]
        %v6505 = vld [vmem:[%s6442 + $0x1f0] sm:$0xff]
        %v6506 = vld [vmem:[%s6442 + $0x1f8] sm:$0xff]
        %v6507 = vld [vmem:[%s6442 + $0x200] sm:$0xff]
        %v6508 = vld [vmem:[%s6442 + $0x208] sm:$0xff]
        %v6509 = vld [vmem:[%s6442 + $0x210] sm:$0xff]
        %v6510 = vld [vmem:[%s6442 + $0x218] sm:$0xff]
        %v6511 = vld [vmem:[%s6442 + $0x220] sm:$0xff]
        %v6512 = vld [vmem:[%s6442 + $0x228] sm:$0xff]
        %v6513 = vld [vmem:[%s6442 + $0x230] sm:$0xff]
        %v6514 = vld [vmem:[%s6442 + $0x238] sm:$0xff]
        %v6515 = vld [vmem:[%s6442 + $0x240] sm:$0xff]
        %v6516 = vld [vmem:[%s6442 + $0x248] sm:$0xff]
        %v6517 = vld [vmem:[%s6442 + $0x250] sm:$0xff]
        %v6518 = vld [vmem:[%s6442 + $0x258] sm:$0xff]
        %v6519 = vld [vmem:[%s6442 + $0x260] sm:$0xff]
        %v6520 = vld [vmem:[%s6442 + $0x268] sm:$0xff]
        %v6521 = vld [vmem:[%s6442 + $0x270] sm:$0xff]
        %v6522 = vld [vmem:[%s6442 + $0x278] sm:$0xff]
        %v6523 = vld [vmem:[%s6442 + $0x280] sm:$0xff]
        %v6524 = vld [vmem:[%s6442 + $0x288] sm:$0xff]
        %v6525 = vld [vmem:[%s6442 + $0x290] sm:$0xff]
        %v6526 = vld [vmem:[%s6442 + $0x298] sm:$0xff]
        %v6527 = vld [vmem:[%s6442 + $0x2a0] sm:$0xff]
        %v6528 = vld [vmem:[%s6442 + $0x2a8] sm:$0xff]
        %v6529 = vld [vmem:[%s6442 + $0x2b0] sm:$0xff]
        %v6530 = vld [vmem:[%s6442 + $0x2b8] sm:$0xff]
        %v6531 = vld [vmem:[%s6442 + $0x2c0] sm:$0xff]
        %v6532 = vld [vmem:[%s6442 + $0x2c8] sm:$0xff]
        %v6533 = vld [vmem:[%s6442 + $0x2d0] sm:$0xff]
        %v6534 = vld [vmem:[%s6442 + $0x2d8] sm:$0xff]
        %v6535 = vld [vmem:[%s6442 + $0x2e0] sm:$0xff]
        %v6536 = vld [vmem:[%s6442 + $0x2e8] sm:$0xff]
        %v6537 = vld [vmem:[%s6442 + $0x2f0] sm:$0xff]
        %v6538 = vld [vmem:[%s6442 + $0x2f8] sm:$0xff]
        %v6563 = vunpack.c.l.b16 %v6418
        %v6564 = vunpack.c.h.b16 %v6418
        %v6565 = vunpack.c.l.b16 %v6419
        %v6566 = vunpack.c.h.b16 %v6419
        %v6567 = vunpack.c.l.b16 %v6420
        %v6568 = vunpack.c.h.b16 %v6420
        %v6569 = vunpack.c.l.b16 %v6421
        %v6570 = vunpack.c.h.b16 %v6421
        %v6571 = vunpack.c.l.b16 %v6422
        %v6572 = vunpack.c.h.b16 %v6422
        %v6573 = vunpack.c.l.b16 %v6423
        %v6574 = vunpack.c.h.b16 %v6423
        %v6575 = vunpack.c.l.b16 %v6424
        %v6576 = vunpack.c.h.b16 %v6424
        %v6577 = vunpack.c.l.b16 %v6425
        %v6578 = vunpack.c.h.b16 %v6425
        %v6579 = vunpack.c.l.b16 %v6426
        %v6580 = vunpack.c.h.b16 %v6426
        %v6581 = vunpack.c.l.b16 %v6427
        %v6582 = vunpack.c.h.b16 %v6427
        %v6583 = vunpack.c.l.b16 %v6428
        %v6584 = vunpack.c.h.b16 %v6428
        %v6585 = vunpack.c.l.b16 %v6429
        %v6586 = vunpack.c.h.b16 %v6429
        %v6587 = vunpack.c.l.b16 %v6430
        %v6588 = vunpack.c.h.b16 %v6430
        %v6589 = vunpack.c.l.b16 %v6431
        %v6590 = vunpack.c.h.b16 %v6431
        %v6591 = vunpack.c.l.b16 %v6432
        %v6592 = vunpack.c.h.b16 %v6432
        %v6593 = vunpack.c.l.b16 %v6433
        %v6594 = vunpack.c.h.b16 %v6433
        %v6595 = vunpack.c.l.b16 %v6434
        %v6596 = vunpack.c.h.b16 %v6434
        %v6597 = vunpack.c.l.b16 %v6435
        %v6598 = vunpack.c.h.b16 %v6435
        %v6599 = vunpack.c.l.b16 %v6436
        %v6600 = vunpack.c.h.b16 %v6436
        %v6601 = vunpack.c.l.b16 %v6437
        %v6602 = vunpack.c.h.b16 %v6437
        %v6603 = vunpack.c.l.b16 %v6438
        %v6604 = vunpack.c.h.b16 %v6438
        %v6605 = vunpack.c.l.b16 %v6439
        %v6606 = vunpack.c.h.b16 %v6439
        %v6607 = vunpack.c.l.b16 %v6440
        %v6608 = vunpack.c.h.b16 %v6440
        %v6609 = vunpack.c.l.b16 %v6441
        %v6610 = vunpack.c.h.b16 %v6441
        %v6611 = vpack.c.b16 %v6569, %v6563
        %v6612 = vpack.c.b16 %v6570, %v6564
        %v6613 = vpack.c.b16 %v6571, %v6565
        %v6614 = vpack.c.b16 %v6572, %v6566
        %v6615 = vpack.c.b16 %v6573, %v6567
        %v6616 = vpack.c.b16 %v6574, %v6568
        %v6617 = vpack.c.b16 %v6581, %v6575
        %v6618 = vpack.c.b16 %v6582, %v6576
        %v6619 = vpack.c.b16 %v6583, %v6577
        %v6620 = vpack.c.b16 %v6584, %v6578
        %v6621 = vpack.c.b16 %v6585, %v6579
        %v6622 = vpack.c.b16 %v6586, %v6580
        %v6623 = vpack.c.b16 %v6593, %v6587
        %v6624 = vpack.c.b16 %v6594, %v6588
        %v6625 = vpack.c.b16 %v6595, %v6589
        %v6626 = vpack.c.b16 %v6596, %v6590
        %v6627 = vpack.c.b16 %v6597, %v6591
        %v6628 = vpack.c.b16 %v6598, %v6592
        %v6629 = vpack.c.b16 %v6605, %v6599
        %v6630 = vpack.c.b16 %v6606, %v6600
        %v6631 = vpack.c.b16 %v6607, %v6601
        %v6632 = vpack.c.b16 %v6608, %v6602
        %v6633 = vpack.c.b16 %v6609, %v6603
        %v6634 = vpack.c.b16 %v6610, %v6604
        %v6755 = vunpack.c.l.b16 %v6443
        %v6756 = vunpack.c.h.b16 %v6443
        %v6757 = vunpack.c.l.b16 %v6444
        %v6758 = vunpack.c.h.b16 %v6444
        %v6759 = vunpack.c.l.b16 %v6445
        %v6760 = vunpack.c.h.b16 %v6445
        %v6761 = vunpack.c.l.b16 %v6446
        %v6762 = vunpack.c.h.b16 %v6446
        %v6763 = vunpack.c.l.b16 %v6447
        %v6764 = vunpack.c.h.b16 %v6447
        %v6765 = vunpack.c.l.b16 %v6448
        %v6766 = vunpack.c.h.b16 %v6448
        %v6767 = vunpack.c.l.b16 %v6449
        %v6768 = vunpack.c.h.b16 %v6449
        %v6769 = vunpack.c.l.b16 %v6450
        %v6770 = vunpack.c.h.b16 %v6450
        %v6771 = vunpack.c.l.b16 %v6451
        %v6772 = vunpack.c.h.b16 %v6451
        %v6773 = vunpack.c.l.b16 %v6452
        %v6774 = vunpack.c.h.b16 %v6452
        %v6775 = vunpack.c.l.b16 %v6453
        %v6776 = vunpack.c.h.b16 %v6453
        %v6777 = vunpack.c.l.b16 %v6454
        %v6778 = vunpack.c.h.b16 %v6454
        %v6779 = vunpack.c.l.b16 %v6455
        %v6780 = vunpack.c.h.b16 %v6455
        %v6781 = vunpack.c.l.b16 %v6456
        %v6782 = vunpack.c.h.b16 %v6456
        %v6783 = vunpack.c.l.b16 %v6457
        %v6784 = vunpack.c.h.b16 %v6457
        %v6785 = vunpack.c.l.b16 %v6458
        %v6786 = vunpack.c.h.b16 %v6458
        %v6787 = vunpack.c.l.b16 %v6459
        %v6788 = vunpack.c.h.b16 %v6459
        %v6789 = vunpack.c.l.b16 %v6460
        %v6790 = vunpack.c.h.b16 %v6460
        %v6791 = vunpack.c.l.b16 %v6461
        %v6792 = vunpack.c.h.b16 %v6461
        %v6793 = vunpack.c.l.b16 %v6462
        %v6794 = vunpack.c.h.b16 %v6462
        %v6795 = vunpack.c.l.b16 %v6463
        %v6796 = vunpack.c.h.b16 %v6463
        %v6797 = vunpack.c.l.b16 %v6464
        %v6798 = vunpack.c.h.b16 %v6464
        %v6799 = vunpack.c.l.b16 %v6465
        %v6800 = vunpack.c.h.b16 %v6465
        %v6801 = vunpack.c.l.b16 %v6466
        %v6802 = vunpack.c.h.b16 %v6466
        %v6803 = vunpack.c.l.b16 %v6467
        %v6804 = vunpack.c.h.b16 %v6467
        %v6805 = vunpack.c.l.b16 %v6468
        %v6806 = vunpack.c.h.b16 %v6468
        %v6807 = vunpack.c.l.b16 %v6469
        %v6808 = vunpack.c.h.b16 %v6469
        %v6809 = vunpack.c.l.b16 %v6470
        %v6810 = vunpack.c.h.b16 %v6470
        %v6811 = vunpack.c.l.b16 %v6471
        %v6812 = vunpack.c.h.b16 %v6471
        %v6813 = vunpack.c.l.b16 %v6472
        %v6814 = vunpack.c.h.b16 %v6472
        %v6815 = vunpack.c.l.b16 %v6473
        %v6816 = vunpack.c.h.b16 %v6473
        %v6817 = vunpack.c.l.b16 %v6474
        %v6818 = vunpack.c.h.b16 %v6474
        %v6819 = vunpack.c.l.b16 %v6475
        %v6820 = vunpack.c.h.b16 %v6475
        %v6821 = vunpack.c.l.b16 %v6476
        %v6822 = vunpack.c.h.b16 %v6476
        %v6823 = vunpack.c.l.b16 %v6477
        %v6824 = vunpack.c.h.b16 %v6477
        %v6825 = vunpack.c.l.b16 %v6478
        %v6826 = vunpack.c.h.b16 %v6478
        %v6827 = vunpack.c.l.b16 %v6479
        %v6828 = vunpack.c.h.b16 %v6479
        %v6829 = vunpack.c.l.b16 %v6480
        %v6830 = vunpack.c.h.b16 %v6480
        %v6831 = vunpack.c.l.b16 %v6481
        %v6832 = vunpack.c.h.b16 %v6481
        %v6833 = vunpack.c.l.b16 %v6482
        %v6834 = vunpack.c.h.b16 %v6482
        %v6835 = vunpack.c.l.b16 %v6483
        %v6836 = vunpack.c.h.b16 %v6483
        %v6837 = vunpack.c.l.b16 %v6484
        %v6838 = vunpack.c.h.b16 %v6484
        %v6839 = vunpack.c.l.b16 %v6485
        %v6840 = vunpack.c.h.b16 %v6485
        %v6841 = vunpack.c.l.b16 %v6486
        %v6842 = vunpack.c.h.b16 %v6486
        %v6843 = vunpack.c.l.b16 %v6487
        %v6844 = vunpack.c.h.b16 %v6487
        %v6845 = vunpack.c.l.b16 %v6488
        %v6846 = vunpack.c.h.b16 %v6488
        %v6847 = vunpack.c.l.b16 %v6489
        %v6848 = vunpack.c.h.b16 %v6489
        %v6849 = vunpack.c.l.b16 %v6490
        %v6850 = vunpack.c.h.b16 %v6490
        %v6851 = vunpack.c.l.b16 %v6491
        %v6852 = vunpack.c.h.b16 %v6491
        %v6853 = vunpack.c.l.b16 %v6492
        %v6854 = vunpack.c.h.b16 %v6492
        %v6855 = vunpack.c.l.b16 %v6493
        %v6856 = vunpack.c.h.b16 %v6493
        %v6857 = vunpack.c.l.b16 %v6494
        %v6858 = vunpack.c.h.b16 %v6494
        %v6859 = vunpack.c.l.b16 %v6495
        %v6860 = vunpack.c.h.b16 %v6495
        %v6861 = vunpack.c.l.b16 %v6496
        %v6862 = vunpack.c.h.b16 %v6496
        %v6863 = vunpack.c.l.b16 %v6497
        %v6864 = vunpack.c.h.b16 %v6497
        %v6865 = vunpack.c.l.b16 %v6498
        %v6866 = vunpack.c.h.b16 %v6498
        %v6867 = vunpack.c.l.b16 %v6499
        %v6868 = vunpack.c.h.b16 %v6499
        %v6869 = vunpack.c.l.b16 %v6500
        %v6870 = vunpack.c.h.b16 %v6500
        %v6871 = vunpack.c.l.b16 %v6501
        %v6872 = vunpack.c.h.b16 %v6501
        %v6873 = vunpack.c.l.b16 %v6502
        %v6874 = vunpack.c.h.b16 %v6502
        %v6875 = vunpack.c.l.b16 %v6503
        %v6876 = vunpack.c.h.b16 %v6503
        %v6877 = vunpack.c.l.b16 %v6504
        %v6878 = vunpack.c.h.b16 %v6504
        %v6879 = vunpack.c.l.b16 %v6505
        %v6880 = vunpack.c.h.b16 %v6505
        %v6881 = vunpack.c.l.b16 %v6506
        %v6882 = vunpack.c.h.b16 %v6506
        %v6883 = vunpack.c.l.b16 %v6507
        %v6884 = vunpack.c.h.b16 %v6507
        %v6885 = vunpack.c.l.b16 %v6508
        %v6886 = vunpack.c.h.b16 %v6508
        %v6887 = vunpack.c.l.b16 %v6509
        %v6888 = vunpack.c.h.b16 %v6509
        %v6889 = vunpack.c.l.b16 %v6510
        %v6890 = vunpack.c.h.b16 %v6510
        %v6891 = vunpack.c.l.b16 %v6511
        %v6892 = vunpack.c.h.b16 %v6511
        %v6893 = vunpack.c.l.b16 %v6512
        %v6894 = vunpack.c.h.b16 %v6512
        %v6895 = vunpack.c.l.b16 %v6513
        %v6896 = vunpack.c.h.b16 %v6513
        %v6897 = vunpack.c.l.b16 %v6514
        %v6898 = vunpack.c.h.b16 %v6514
        %v6899 = vunpack.c.l.b16 %v6515
        %v6900 = vunpack.c.h.b16 %v6515
        %v6901 = vunpack.c.l.b16 %v6516
        %v6902 = vunpack.c.h.b16 %v6516
        %v6903 = vunpack.c.l.b16 %v6517
        %v6904 = vunpack.c.h.b16 %v6517
        %v6905 = vunpack.c.l.b16 %v6518
        %v6906 = vunpack.c.h.b16 %v6518
        %v6907 = vunpack.c.l.b16 %v6519
        %v6908 = vunpack.c.h.b16 %v6519
        %v6909 = vunpack.c.l.b16 %v6520
        %v6910 = vunpack.c.h.b16 %v6520
        %v6911 = vunpack.c.l.b16 %v6521
        %v6912 = vunpack.c.h.b16 %v6521
        %v6913 = vunpack.c.l.b16 %v6522
        %v6914 = vunpack.c.h.b16 %v6522
        %v6915 = vunpack.c.l.b16 %v6523
        %v6916 = vunpack.c.h.b16 %v6523
        %v6917 = vunpack.c.l.b16 %v6524
        %v6918 = vunpack.c.h.b16 %v6524
        %v6919 = vunpack.c.l.b16 %v6525
        %v6920 = vunpack.c.h.b16 %v6525
        %v6921 = vunpack.c.l.b16 %v6526
        %v6922 = vunpack.c.h.b16 %v6526
        %v6923 = vunpack.c.l.b16 %v6527
        %v6924 = vunpack.c.h.b16 %v6527
        %v6925 = vunpack.c.l.b16 %v6528
        %v6926 = vunpack.c.h.b16 %v6528
        %v6927 = vunpack.c.l.b16 %v6529
        %v6928 = vunpack.c.h.b16 %v6529
        %v6929 = vunpack.c.l.b16 %v6530
        %v6930 = vunpack.c.h.b16 %v6530
        %v6931 = vunpack.c.l.b16 %v6531
        %v6932 = vunpack.c.h.b16 %v6531
        %v6933 = vunpack.c.l.b16 %v6532
        %v6934 = vunpack.c.h.b16 %v6532
        %v6935 = vunpack.c.l.b16 %v6533
        %v6936 = vunpack.c.h.b16 %v6533
        %v6937 = vunpack.c.l.b16 %v6534
        %v6938 = vunpack.c.h.b16 %v6534
        %v6939 = vunpack.c.l.b16 %v6535
        %v6940 = vunpack.c.h.b16 %v6535
        %v6941 = vunpack.c.l.b16 %v6536
        %v6942 = vunpack.c.h.b16 %v6536
        %v6943 = vunpack.c.l.b16 %v6537
        %v6944 = vunpack.c.h.b16 %v6537
        %v6945 = vunpack.c.l.b16 %v6538
        %v6946 = vunpack.c.h.b16 %v6538
        %v6947 = vpack.c.b16 %v6757, %v6755
        %v6948 = vpack.c.b16 %v6758, %v6756
        %v6949 = vpack.c.b16 %v6761, %v6759
        %v6950 = vpack.c.b16 %v6762, %v6760
        %v6951 = vpack.c.b16 %v6765, %v6763
        %v6952 = vpack.c.b16 %v6766, %v6764
        %v6953 = vpack.c.b16 %v6769, %v6767
        %v6954 = vpack.c.b16 %v6770, %v6768
        %v6955 = vpack.c.b16 %v6773, %v6771
        %v6956 = vpack.c.b16 %v6774, %v6772
        %v6957 = vpack.c.b16 %v6777, %v6775
        %v6958 = vpack.c.b16 %v6778, %v6776
        %v6959 = vpack.c.b16 %v6781, %v6779
        %v6960 = vpack.c.b16 %v6782, %v6780
        %v6961 = vpack.c.b16 %v6785, %v6783
        %v6962 = vpack.c.b16 %v6786, %v6784
        %v6963 = vpack.c.b16 %v6789, %v6787
        %v6964 = vpack.c.b16 %v6790, %v6788
        %v6965 = vpack.c.b16 %v6793, %v6791
        %v6966 = vpack.c.b16 %v6794, %v6792
        %v6967 = vpack.c.b16 %v6797, %v6795
        %v6968 = vpack.c.b16 %v6798, %v6796
        %v6969 = vpack.c.b16 %v6801, %v6799
        %v6970 = vpack.c.b16 %v6802, %v6800
        %v6971 = vpack.c.b16 %v6805, %v6803
        %v6972 = vpack.c.b16 %v6806, %v6804
        %v6973 = vpack.c.b16 %v6809, %v6807
        %v6974 = vpack.c.b16 %v6810, %v6808
        %v6975 = vpack.c.b16 %v6813, %v6811
        %v6976 = vpack.c.b16 %v6814, %v6812
        %v6977 = vpack.c.b16 %v6817, %v6815
        %v6978 = vpack.c.b16 %v6818, %v6816
        %v6979 = vpack.c.b16 %v6821, %v6819
        %v6980 = vpack.c.b16 %v6822, %v6820
        %v6981 = vpack.c.b16 %v6825, %v6823
        %v6982 = vpack.c.b16 %v6826, %v6824
        %v6983 = vpack.c.b16 %v6829, %v6827
        %v6984 = vpack.c.b16 %v6830, %v6828
        %v6985 = vpack.c.b16 %v6833, %v6831
        %v6986 = vpack.c.b16 %v6834, %v6832
        %v6987 = vpack.c.b16 %v6837, %v6835
        %v6988 = vpack.c.b16 %v6838, %v6836
        %v6989 = vpack.c.b16 %v6841, %v6839
        %v6990 = vpack.c.b16 %v6842, %v6840
        %v6991 = vpack.c.b16 %v6845, %v6843
        %v6992 = vpack.c.b16 %v6846, %v6844
        %v6993 = vpack.c.b16 %v6849, %v6847
        %v6994 = vpack.c.b16 %v6850, %v6848
        %v6995 = vpack.c.b16 %v6853, %v6851
        %v6996 = vpack.c.b16 %v6854, %v6852
        %v6997 = vpack.c.b16 %v6857, %v6855
        %v6998 = vpack.c.b16 %v6858, %v6856
        %v6999 = vpack.c.b16 %v6861, %v6859
        %v7000 = vpack.c.b16 %v6862, %v6860
        %v7001 = vpack.c.b16 %v6865, %v6863
        %v7002 = vpack.c.b16 %v6866, %v6864
        %v7003 = vpack.c.b16 %v6869, %v6867
        %v7004 = vpack.c.b16 %v6870, %v6868
        %v7005 = vpack.c.b16 %v6873, %v6871
        %v7006 = vpack.c.b16 %v6874, %v6872
        %v7007 = vpack.c.b16 %v6877, %v6875
        %v7008 = vpack.c.b16 %v6878, %v6876
        %v7009 = vpack.c.b16 %v6881, %v6879
        %v7010 = vpack.c.b16 %v6882, %v6880
        %v7011 = vpack.c.b16 %v6885, %v6883
        %v7012 = vpack.c.b16 %v6886, %v6884
        %v7013 = vpack.c.b16 %v6889, %v6887
        %v7014 = vpack.c.b16 %v6890, %v6888
        %v7015 = vpack.c.b16 %v6893, %v6891
        %v7016 = vpack.c.b16 %v6894, %v6892
        %v7017 = vpack.c.b16 %v6897, %v6895
        %v7018 = vpack.c.b16 %v6898, %v6896
        %v7019 = vpack.c.b16 %v6901, %v6899
        %v7020 = vpack.c.b16 %v6902, %v6900
        %v7021 = vpack.c.b16 %v6905, %v6903
        %v7022 = vpack.c.b16 %v6906, %v6904
        %v7023 = vpack.c.b16 %v6909, %v6907
        %v7024 = vpack.c.b16 %v6910, %v6908
        %v7025 = vpack.c.b16 %v6913, %v6911
        %v7026 = vpack.c.b16 %v6914, %v6912
        %v7027 = vpack.c.b16 %v6917, %v6915
        %v7028 = vpack.c.b16 %v6918, %v6916
        %v7029 = vpack.c.b16 %v6921, %v6919
        %v7030 = vpack.c.b16 %v6922, %v6920
        %v7031 = vpack.c.b16 %v6925, %v6923
        %v7032 = vpack.c.b16 %v6926, %v6924
        %v7033 = vpack.c.b16 %v6929, %v6927
        %v7034 = vpack.c.b16 %v6930, %v6928
        %v7035 = vpack.c.b16 %v6933, %v6931
        %v7036 = vpack.c.b16 %v6934, %v6932
        %v7037 = vpack.c.b16 %v6937, %v6935
        %v7038 = vpack.c.b16 %v6938, %v6936
        %v7039 = vpack.c.b16 %v6941, %v6939
        %v7040 = vpack.c.b16 %v6942, %v6940
        %v7041 = vpack.c.b16 %v6945, %v6943
        %v7042 = vpack.c.b16 %v6946, %v6944
        %7139 = vmatprep.subr.bf16.mxu0 %v6948
        %7140 = vmatpush1.bf16.msra.mxu0 %v6947
        %7141 = vmatprep.subr.bf16.mxu0 %v6950
        %7142 = vmatpush1.bf16.msra.mxu0 %v6949
        %7143 = vmatprep.subr.bf16.mxu0 %v6952
        %7144 = vmatpush1.bf16.msra.mxu0 %v6951
        %7145 = vmatprep.subr.bf16.mxu0 %v6954
        %7146 = vmatpush1.bf16.msra.mxu0 %v6953
        %7147 = vmatprep.subr.bf16.mxu0 %v6956
        %7148 = vmatpush1.bf16.msra.mxu0 %v6955
        %7149 = vmatprep.subr.bf16.mxu0 %v6958
        %7150 = vmatpush1.bf16.msra.mxu0 %v6957
        %7151 = vmatprep.subr.bf16.mxu0 %v6960
        %7152 = vmatpush1.bf16.msra.mxu0 %v6959
        %7153 = vmatprep.subr.bf16.mxu0 %v6962
        %7154 = vmatpush1.bf16.msra.mxu0 %v6961
        %7155 = vmatprep.subr.bf16.mxu0 %v6964
        %7156 = vmatpush1.bf16.msra.mxu0 %v6963
        %7157 = vmatprep.subr.bf16.mxu0 %v6966
        %7158 = vmatpush1.bf16.msra.mxu0 %v6965
        %7159 = vmatprep.subr.bf16.mxu0 %v6968
        %7160 = vmatpush1.bf16.msra.mxu0 %v6967
        %7161 = vmatprep.subr.bf16.mxu0 %v6970
        %7162 = vmatpush1.bf16.msra.mxu0 %v6969
        %7163 = vmatprep.subr.bf16.mxu0 %v6972
        %7164 = vmatpush1.bf16.msra.mxu0 %v6971
        %7165 = vmatprep.subr.bf16.mxu0 %v6974
        %7166 = vmatpush1.bf16.msra.mxu0 %v6973
        %7167 = vmatprep.subr.bf16.mxu0 %v6976
        %7168 = vmatpush1.bf16.msra.mxu0 %v6975
        %7169 = vmatprep.subr.bf16.mxu0 %v6978
        %7170 = vmatpush1.bf16.msra.mxu0 %v6977
        %7171 = vmatprep.mubr.bf16.mxu0 %v6612
        %7172 = vmatmul.mubr.bf16.gmra.mrb[0].mxu0 %v6611
        %v7173 = vpop.f32.mrb[0].mxu0
        %v7174 = vadd.f32 0.0, %v7173
        %v7175 = vpop.f32.mrb[0].mxu0
        %v7176 = vadd.f32 0.0, %v7175
        %v7177 = vpop.f32.mrb[0].mxu0
        %v7178 = vadd.f32 0.0, %v7177
        %v7179 = vpop.f32.mrb[0].mxu0
        %v7180 = vadd.f32 0.0, %v7179
        %7181 = vmatprep.mubr.bf16.mxu0 %v6618
        %7182 = vmatmul.mubr.bf16.gmra.mrb[0].mxu0 %v6617
        %v7183 = vpop.f32.mrb[0].mxu0
        %v7184 = vadd.f32 0.0, %v7183
        %v7185 = vpop.f32.mrb[0].mxu0
        %v7186 = vadd.f32 0.0, %v7185
        %v7187 = vpop.f32.mrb[0].mxu0
        %v7188 = vadd.f32 0.0, %v7187
        %v7189 = vpop.f32.mrb[0].mxu0
        %v7190 = vadd.f32 0.0, %v7189
        %7191 = vmatprep.mubr.bf16.mxu0 %v6624
        %7192 = vmatmul.mubr.bf16.gmra.mrb[0].mxu0 %v6623
        %v7193 = vpop.f32.mrb[0].mxu0
        %v7194 = vadd.f32 0.0, %v7193
        %v7195 = vpop.f32.mrb[0].mxu0
        %v7196 = vadd.f32 0.0, %v7195
        %v7197 = vpop.f32.mrb[0].mxu0
        %v7198 = vadd.f32 0.0, %v7197
        %v7199 = vpop.f32.mrb[0].mxu0
        %v7200 = vadd.f32 0.0, %v7199
        %7201 = vmatprep.mubr.bf16.mxu0 %v6630
        %7202 = vmatmul.mubr.bf16.gmra.mrb[0].mxu0 %v6629
        %v7203 = vpop.f32.mrb[0].mxu0
        %v7204 = vadd.f32 0.0, %v7203
        %v7205 = vpop.f32.mrb[0].mxu0
        %v7206 = vadd.f32 0.0, %v7205
        %v7207 = vpop.f32.mrb[0].mxu0
        %v7208 = vadd.f32 0.0, %v7207
        %v7209 = vpop.f32.mrb[0].mxu0
        %v7210 = vadd.f32 0.0, %v7209
        %7211 = vdwg.mxu0
        %7212 = vmatprep.subr.bf16.mxu0 %v6980
        %7213 = vmatpush1.bf16.msra.mxu0 %v6979
        %7214 = vmatprep.subr.bf16.mxu0 %v6982
        %7215 = vmatpush1.bf16.msra.mxu0 %v6981
        %7216 = vmatprep.subr.bf16.mxu0 %v6984
        %7217 = vmatpush1.bf16.msra.mxu0 %v6983
        %7218 = vmatprep.subr.bf16.mxu0 %v6986
        %7219 = vmatpush1.bf16.msra.mxu0 %v6985
        %7220 = vmatprep.subr.bf16.mxu0 %v6988
        %7221 = vmatpush1.bf16.msra.mxu0 %v6987
        %7222 = vmatprep.subr.bf16.mxu0 %v6990
        %7223 = vmatpush1.bf16.msra.mxu0 %v6989
        %7224 = vmatprep.subr.bf16.mxu0 %v6992
        %7225 = vmatpush1.bf16.msra.mxu0 %v6991
        %7226 = vmatprep.subr.bf16.mxu0 %v6994
        %7227 = vmatpush1.bf16.msra.mxu0 %v6993
        %7228 = vmatprep.subr.bf16.mxu0 %v6996
        %7229 = vmatpush1.bf16.msra.mxu0 %v6995
        %7230 = vmatprep.subr.bf16.mxu0 %v6998
        %7231 = vmatpush1.bf16.msra.mxu0 %v6997
        %7232 = vmatprep.subr.bf16.mxu0 %v7000
        %7233 = vmatpush1.bf16.msra.mxu0 %v6999
        %7234 = vmatprep.subr.bf16.mxu0 %v7002
        %7235 = vmatpush1.bf16.msra.mxu0 %v7001
        %7236 = vmatprep.subr.bf16.mxu0 %v7004
        %7237 = vmatpush1.bf16.msra.mxu0 %v7003
        %7238 = vmatprep.subr.bf16.mxu0 %v7006
        %7239 = vmatpush1.bf16.msra.mxu0 %v7005
        %7240 = vmatprep.subr.bf16.mxu0 %v7008
        %7241 = vmatpush1.bf16.msra.mxu0 %v7007
        %7242 = vmatprep.subr.bf16.mxu0 %v7010
        %7243 = vmatpush1.bf16.msra.mxu0 %v7009
        %7244 = vmatprep.mubr.bf16.mxu0 %v6614
        %7245 = vmatmul.mubr.bf16.gmra.mrb[0].mxu0 %v6613
        %v7246 = vpop.f32.mrb[0].mxu0
        %v7247 = vadd.f32 %v7174, %v7246
        %v7248 = vpop.f32.mrb[0].mxu0
        %v7249 = vadd.f32 %v7176, %v7248
        %v7250 = vpop.f32.mrb[0].mxu0
        %v7251 = vadd.f32 %v7178, %v7250
        %v7252 = vpop.f32.mrb[0].mxu0
        %v7253 = vadd.f32 %v7180, %v7252
        %7254 = vmatprep.mubr.bf16.mxu0 %v6620
        %7255 = vmatmul.mubr.bf16.gmra.mrb[0].mxu0 %v6619
        %v7256 = vpop.f32.mrb[0].mxu0
        %v7257 = vadd.f32 %v7184, %v7256
        %v7258 = vpop.f32.mrb[0].mxu0
        %v7259 = vadd.f32 %v7186, %v7258
        %v7260 = vpop.f32.mrb[0].mxu0
        %v7261 = vadd.f32 %v7188, %v7260
        %v7262 = vpop.f32.mrb[0].mxu0
        %v7263 = vadd.f32 %v7190, %v7262
        %7264 = vmatprep.mubr.bf16.mxu0 %v6626
        %7265 = vmatmul.mubr.bf16.gmra.mrb[0].mxu0 %v6625
        %v7266 = vpop.f32.mrb[0].mxu0
        %v7267 = vadd.f32 %v7194, %v7266
        %v7268 = vpop.f32.mrb[0].mxu0
        %v7269 = vadd.f32 %v7196, %v7268
        %v7270 = vpop.f32.mrb[0].mxu0
        %v7271 = vadd.f32 %v7198, %v7270
        %v7272 = vpop.f32.mrb[0].mxu0
        %v7273 = vadd.f32 %v7200, %v7272
        %7274 = vmatprep.mubr.bf16.mxu0 %v6632
        %7275 = vmatmul.mubr.bf16.gmra.mrb[0].mxu0 %v6631
        %v7276 = vpop.f32.mrb[0].mxu0
        %v7277 = vadd.f32 %v7204, %v7276
        %v7278 = vpop.f32.mrb[0].mxu0
        %v7279 = vadd.f32 %v7206, %v7278
        %v7280 = vpop.f32.mrb[0].mxu0
        %v7281 = vadd.f32 %v7208, %v7280
        %v7282 = vpop.f32.mrb[0].mxu0
        %v7283 = vadd.f32 %v7210, %v7282
        %7284 = vdwg.mxu0
        %7285 = vmatprep.subr.bf16.mxu0 %v7012
        %7286 = vmatpush1.bf16.msra.mxu0 %v7011
        %7287 = vmatprep.subr.bf16.mxu0 %v7014
        %7288 = vmatpush1.bf16.msra.mxu0 %v7013
        %7289 = vmatprep.subr.bf16.mxu0 %v7016
        %7290 = vmatpush1.bf16.msra.mxu0 %v7015
        %7291 = vmatprep.subr.bf16.mxu0 %v7018
        %7292 = vmatpush1.bf16.msra.mxu0 %v7017
        %7293 = vmatprep.subr.bf16.mxu0 %v7020
        %7294 = vmatpush1.bf16.msra.mxu0 %v7019
        %7295 = vmatprep.subr.bf16.mxu0 %v7022
        %7296 = vmatpush1.bf16.msra.mxu0 %v7021
        %7297 = vmatprep.subr.bf16.mxu0 %v7024
        %7298 = vmatpush1.bf16.msra.mxu0 %v7023
        %7299 = vmatprep.subr.bf16.mxu0 %v7026
        %7300 = vmatpush1.bf16.msra.mxu0 %v7025
        %7301 = vmatprep.subr.bf16.mxu0 %v7028
        %7302 = vmatpush1.bf16.msra.mxu0 %v7027
        %7303 = vmatprep.subr.bf16.mxu0 %v7030
        %7304 = vmatpush1.bf16.msra.mxu0 %v7029
        %7305 = vmatprep.subr.bf16.mxu0 %v7032
        %7306 = vmatpush1.bf16.msra.mxu0 %v7031
        %7307 = vmatprep.subr.bf16.mxu0 %v7034
        %7308 = vmatpush1.bf16.msra.mxu0 %v7033
        %7309 = vmatprep.subr.bf16.mxu0 %v7036
        %7310 = vmatpush1.bf16.msra.mxu0 %v7035
        %7311 = vmatprep.subr.bf16.mxu0 %v7038
        %7312 = vmatpush1.bf16.msra.mxu0 %v7037
        %7313 = vmatprep.subr.bf16.mxu0 %v7040
        %7314 = vmatpush1.bf16.msra.mxu0 %v7039
        %7315 = vmatprep.subr.bf16.mxu0 %v7042
        %7316 = vmatpush1.bf16.msra.mxu0 %v7041
        %7317 = vmatprep.mubr.bf16.mxu0 %v6616
        %7318 = vmatmul.mubr.bf16.gmra.mrb[0].mxu0 %v6615
        %v7319 = vpop.f32.mrb[0].mxu0
        %v7320 = vadd.f32 %v7247, %v7319
        %v7321 = vpop.f32.mrb[0].mxu0
        %v7322 = vadd.f32 %v7249, %v7321
        %v7323 = vpop.f32.mrb[0].mxu0
        %v7324 = vadd.f32 %v7251, %v7323
        %v7325 = vpop.f32.mrb[0].mxu0
        %v7326 = vadd.f32 %v7253, %v7325
        %7327 = vmatprep.mubr.bf16.mxu0 %v6622
        %7328 = vmatmul.mubr.bf16.gmra.mrb[0].mxu0 %v6621
        %v7329 = vpop.f32.mrb[0].mxu0
        %v7330 = vadd.f32 %v7257, %v7329
        %v7331 = vpop.f32.mrb[0].mxu0
        %v7332 = vadd.f32 %v7259, %v7331
        %v7333 = vpop.f32.mrb[0].mxu0
        %v7334 = vadd.f32 %v7261, %v7333
        %v7335 = vpop.f32.mrb[0].mxu0
        %v7336 = vadd.f32 %v7263, %v7335
        %7337 = vmatprep.mubr.bf16.mxu0 %v6628
        %7338 = vmatmul.mubr.bf16.gmra.mrb[0].mxu0 %v6627
        %v7339 = vpop.f32.mrb[0].mxu0
        %v7340 = vadd.f32 %v7267, %v7339
        %v7341 = vpop.f32.mrb[0].mxu0
        %v7342 = vadd.f32 %v7269, %v7341
        %v7343 = vpop.f32.mrb[0].mxu0
        %v7344 = vadd.f32 %v7271, %v7343
        %v7345 = vpop.f32.mrb[0].mxu0
        %v7346 = vadd.f32 %v7273, %v7345
        %7347 = vmatprep.mubr.bf16.mxu0 %v6634
        %7348 = vmatmul.mubr.bf16.gmra.mrb[0].mxu0 %v6633
        %v7349 = vpop.f32.mrb[0].mxu0
        %v7350 = vadd.f32 %v7277, %v7349
        %v7351 = vpop.f32.mrb[0].mxu0
        %v7352 = vadd.f32 %v7279, %v7351
        %v7353 = vpop.f32.mrb[0].mxu0
        %v7354 = vadd.f32 %v7281, %v7353
        %v7355 = vpop.f32.mrb[0].mxu0
        %v7356 = vadd.f32 %v7283, %v7355
        %7357 = vdwg.mxu0
        %v7358 = vadd.f32 %v6402, %v7320
        %v7359 = vadd.f32 %v6403, %v7322
        %v7360 = vadd.f32 %v6404, %v7324
        %v7361 = vadd.f32 %v6405, %v7326
        %v7362 = vadd.f32 %v6406, %v7330
        %v7363 = vadd.f32 %v6407, %v7332
        %v7364 = vadd.f32 %v6408, %v7334
        %v7365 = vadd.f32 %v6409, %v7336
        %v7366 = vadd.f32 %v6410, %v7340
        %v7367 = vadd.f32 %v6411, %v7342
        %v7368 = vadd.f32 %v6412, %v7344
        %v7369 = vadd.f32 %v6413, %v7346
        %v7370 = vadd.f32 %v6414, %v7350
        %v7371 = vadd.f32 %v6415, %v7352
        %v7372 = vadd.f32 %v6416, %v7354
        %v7373 = vadd.f32 %v6417, %v7356
        %7374 = vst [vmem:[#allocation4] sm:$0xff] %v7358
        %7375 = vst [vmem:[#allocation4 + $0x8] sm:$0xff] %v7359
        %7376 = vst [vmem:[#allocation4 + $0x10] sm:$0xff] %v7360
        %7377 = vst [vmem:[#allocation4 + $0x18] sm:$0xff] %v7361
        %7378 = vst [vmem:[#allocation4 + $0x20] sm:$0xff] %v7362
        %7379 = vst [vmem:[#allocation4 + $0x28] sm:$0xff] %v7363
        %7380 = vst [vmem:[#allocation4 + $0x30] sm:$0xff] %v7364
        %7381 = vst [vmem:[#allocation4 + $0x38] sm:$0xff] %v7365
        %7382 = vst [vmem:[#allocation4 + $0x40] sm:$0xff] %v7366
        %7383 = vst [vmem:[#allocation4 + $0x48] sm:$0xff] %v7367
        %7384 = vst [vmem:[#allocation4 + $0x50] sm:$0xff] %v7368
        %7385 = vst [vmem:[#allocation4 + $0x58] sm:$0xff] %v7369
        %7386 = vst [vmem:[#allocation4 + $0x60] sm:$0xff] %v7370
        %7387 = vst [vmem:[#allocation4 + $0x68] sm:$0xff] %v7371
        %7388 = vst [vmem:[#allocation4 + $0x70] sm:$0xff] %v7372
        %7389 = vst [vmem:[#allocation4 + $0x78] sm:$0xff] %v7373
        %v7390 = vld [vmem:[#allocation4] sm:$0xff]
        %v7391 = vld [vmem:[#allocation4 + $0x8] sm:$0xff]
        %v7392 = vld [vmem:[#allocation4 + $0x10] sm:$0xff]
        %v7393 = vld [vmem:[#allocation4 + $0x18] sm:$0xff]
        %v7394 = vld [vmem:[#allocation4 + $0x20] sm:$0xff]
        %v7395 = vld [vmem:[#allocation4 + $0x28] sm:$0xff]
        %v7396 = vld [vmem:[#allocation4 + $0x30] sm:$0xff]
        %v7397 = vld [vmem:[#allocation4 + $0x38] sm:$0xff]
        %v7398 = vld [vmem:[#allocation4 + $0x40] sm:$0xff]
        %v7399 = vld [vmem:[#allocation4 + $0x48] sm:$0xff]
        %v7400 = vld [vmem:[#allocation4 + $0x50] sm:$0xff]
        %v7401 = vld [vmem:[#allocation4 + $0x58] sm:$0xff]
        %v7402 = vld [vmem:[#allocation4 + $0x60] sm:$0xff]
        %v7403 = vld [vmem:[#allocation4 + $0x68] sm:$0xff]
        %v7404 = vld [vmem:[#allocation4 + $0x70] sm:$0xff]
        %v7405 = vld [vmem:[#allocation4 + $0x78] sm:$0xff]
        %v7406 = vld [vmem:[#allocation13] sm:$0x3]
        %v7408 = vlaneseq
        %v7409 = vshrl.u32 %v7408, 7
        %v7410 = vsub.s32 0, %v7409
        %v7411 = vrot.slane %v7406, %v7410
        %v7412 = vlaneseq
        %v7413 = vshrl.u32 %v7412, 7
        %v7414 = vsub.s32 1, %v7413
        %v7415 = vrot.slane %v7406, %v7414
        %v7418 = vadd.f32 %v7390, %v7411
        %v7419 = vadd.f32 %v7391, %v7415
        %v7420 = vadd.f32 %v7392, %v7411
        %v7421 = vadd.f32 %v7393, %v7415
        %v7422 = vadd.f32 %v7394, %v7411
        %v7423 = vadd.f32 %v7395, %v7415
        %v7424 = vadd.f32 %v7396, %v7411
        %v7425 = vadd.f32 %v7397, %v7415
        %v7426 = vadd.f32 %v7398, %v7411
        %v7427 = vadd.f32 %v7399, %v7415
        %v7428 = vadd.f32 %v7400, %v7411
        %v7429 = vadd.f32 %v7401, %v7415
        %v7430 = vadd.f32 %v7402, %v7411
        %v7431 = vadd.f32 %v7403, %v7415
        %v7432 = vadd.f32 %v7404, %v7411
        %v7433 = vadd.f32 %v7405, %v7415
        %7434 = vst [vmem:[%s338] sm:$0xff] %v7418
        %7435 = vst [vmem:[%s338 + $0x8] sm:$0xff] %v7419
        %7436 = vst [vmem:[%s338 + $0x10] sm:$0xff] %v7420
        %7437 = vst [vmem:[%s338 + $0x18] sm:$0xff] %v7421
        %7438 = vst [vmem:[%s338 + $0x20] sm:$0xff] %v7422
        %7439 = vst [vmem:[%s338 + $0x28] sm:$0xff] %v7423
        %7440 = vst [vmem:[%s338 + $0x30] sm:$0xff] %v7424
        %7441 = vst [vmem:[%s338 + $0x38] sm:$0xff] %v7425
        %7442 = vst [vmem:[%s338 + $0x40] sm:$0xff] %v7426
        %7443 = vst [vmem:[%s338 + $0x48] sm:$0xff] %v7427
        %7444 = vst [vmem:[%s338 + $0x50] sm:$0xff] %v7428
        %7445 = vst [vmem:[%s338 + $0x58] sm:$0xff] %v7429
        %7446 = vst [vmem:[%s338 + $0x60] sm:$0xff] %v7430
        %7447 = vst [vmem:[%s338 + $0x68] sm:$0xff] %v7431
        %7448 = vst [vmem:[%s338 + $0x70] sm:$0xff] %v7432
        %7449 = vst [vmem:[%s338 + $0x78] sm:$0xff] %v7433
        %s7450 = sand.u32 %s169, 1
        %s7451 = scalar_lea.sflag [#allocation7], %s7450
        %s7452 = sand.u32 %s169, 1
        %s7453 = smul.addr %s7452, 128
        %s7454 = scalar_lea.vmem [#allocation14], %s7453
        // Predicated region
        $region65: #{tpu_custom_call.1} parent=43 // pred_check
          %p7455 = pneg %p179
        $region66: #{tpu_custom_call.1} parent=43 // pred_check_branch
          %7457 = sbr.rel (%p7455) target = $region68
        $region67: #{tpu_custom_call.1} parent=43 // pred_region
          %s7459 = ssub.s32 2048, 2048
          %7460 = vsyncadd %s7451, %s7459
          %s7461 = smul.addr %s25, 16
          %s7462 = smul.addr %s7461, 128
          %s7463 = scalar_lea.hbm %s6, %s7462
          %s7464 = sshll.u32 %s7454, 4
          %s7465 = int_to_ptr.vmem [resolvable:$true] %s7464
          %7470 = dma.vmem_to_hbm [thread:$0]  %s7465, 2048, %s7463, %s7451, 256, 256, 16
        $region68: #{tpu_custom_call.1} parent=43 // pred_fallthru
          _
      $region44: #{tpu_custom_call.1} parent=5 // pred_fallthru
        _
      %p7471 = scmp.le.s32.totalorder 2, %s20
      // Predicated region
      $region69: #{tpu_custom_call.1} parent=5 // pred_check
        %p7472 = pneg %p7471
      $region70: #{tpu_custom_call.1} parent=5 // pred_check_branch
        %7474 = sbr.rel (%p7472) target = $region72
      $region71: #{tpu_custom_call.1} parent=5 // pred_region
        %s7475 = ssub.s32 %s20, 2
        // Predicated region
        $region73: #{tpu_custom_call.1} parent=71 // pred_check
          %p7476 = pneg %p185
        $region74: #{tpu_custom_call.1} parent=71 // pred_check_branch
          %7478 = sbr.rel (%p7476) target = $region76
        $region75: #{tpu_custom_call.1} parent=71 // pred_region
          %s7479 = sand.u32 %s170, 1
          %s7480 = scalar_lea.sflag [#allocation7], %s7479
          %s7481 = sand.u32 %s170, 1
          %s7482 = smul.addr %s7481, 128
          %s7483 = scalar_lea.vmem [#allocation14], %s7482
          %7484 = dma.done %s7480, 2048
        $region76: #{tpu_custom_call.1} parent=71 // pred_fallthru
          _
      $region72: #{tpu_custom_call.1} parent=5 // pred_fallthru
        _
    $region6: #{tpu_custom_call.1} parent=1 // loop_footer
      %s24 = sadd.s32 1, %s20
    $region7: #{tpu_custom_call.1} parent=1 // loop_footer_branch
      %19 = sbr.rel target = $region3
    $region8: #{tpu_custom_call.1} parent=1 // loop_exit
      _
    %7485 = vsyncpa [#allocation6], 1
    %s7486 = scalar_lea.sflag [#allocation6], 1
    %7487 = vsyncpa %s7486, 1
    %7488 = vsyncpa [#allocation9], 1
    %7489 = vsyncpa [#allocation12], 1
    %7490 = vsyncpa [#allocation7], 1
    %s7491 = scalar_lea.sflag [#allocation7], 1
    %7492 = vsyncpa %s7491, 1

</llo_original>
